<compile_context>
chip_gen: v7x
topology: tpu7x:2x2x1
jax: 0.10.0
libtpu: 0.0.40
codegen_flags: <defaults>
</compile_context>

<pallas_src>
import functools
import math

import jax
import jax.numpy as jnp
from jax.experimental import pallas as pl
from jax.experimental.pallas import tpu as pltpu

# ---------------- configuration (small synthetic sizes) ----------------
GRID = 4                    # grid_size
PATCH = 4                   # patch_size
IN_CHANS = 3
IMG = GRID * PATCH          # 16x16 images
NUM_PATCHES = GRID * GRID   # L = 16
PATCH_DIM = PATCH * PATCH * IN_CHANS  # 48
EMBED_DIM = 32
NUM_HEADS = 4
DEPTH = 2                   # encoder depth
TARGET_DEPTH = 0            # target encoder depth
DEC_DIM = 16                # decoder_embed_dim
DEC_DEPTH = 1
DEC_HEADS = 2
MLP_RATIO = 2.0
TAU = 0.2
NUM_VIS = 8
L_MASK = NUM_PATCHES - NUM_VIS
AVG_SIM_COEFF = 0.1
SIM_TRG = 0.75
MASK_TARGET = True
BATCH = 2

# stacked per-block weight ordering (leading axis = depth)
BLK_KEYS = ("ln1_g", "ln1_b", "qkv_w", "qkv_b", "proj_w", "proj_b",
            "ln2_g", "ln2_b", "fc1_w", "fc1_b", "fc2_w", "fc2_b")
DEC_BLK_KEYS = ("ln_q_g", "ln_q_b", "ln_kv_g", "ln_kv_b", "q_w", "q_b",
                "kv_w", "kv_b", "proj_w", "proj_b", "ln2_g", "ln2_b",
                "fc1_w", "fc1_b", "fc2_w", "fc2_b")


# ============================ in-kernel math helpers ============================

def _ln(x, g, b, eps=1e-5):
    x = x.astype(jnp.float32)
    mu = jnp.mean(x, axis=-1, keepdims=True)
    var = jnp.mean((x - mu) ** 2, axis=-1, keepdims=True)
    return (x - mu) * jax.lax.rsqrt(var + eps) * g + b


def _mha(q_all, k_all, v_all, proj_w_ref, l, proj_b_l, num_heads):
    """Multi-head attention on (Tq, D) / (Tk, D) activations kept lane-dense.

    Per-head outputs are folded into the output projection:
      proj(concat_h o_h) == sum_h o_h @ proj_w[h*hd:(h+1)*hd, :]
    so no narrow lane concatenation is needed.
    """
    Tq, D = q_all.shape
    hd = D // num_heads
    scale = 1.0 / math.sqrt(hd)
    acc = jnp.zeros((Tq, D), jnp.float32) + proj_b_l
    for h in range(num_heads):
        qh = q_all[:, h * hd:(h + 1) * hd]
        kh = k_all[:, h * hd:(h + 1) * hd]
        vh = v_all[:, h * hd:(h + 1) * hd]
        s = jnp.einsum("td,sd->ts", qh, kh,
                       preferred_element_type=jnp.float32) * scale
        m = jnp.max(s, axis=-1, keepdims=True)
        e = jnp.exp(s - m)
        p = e * pl.reciprocal(jnp.sum(e, axis=-1, keepdims=True), approx=True)
        oh = jnp.dot(p, vh, preferred_element_type=jnp.float32)          # (Tq, hd)
        acc = acc + jnp.dot(oh, proj_w_ref[l, h * hd:(h + 1) * hd, :],
                            preferred_element_type=jnp.float32)
    return acc


def _self_block(x, l, r, num_heads):
    (ln1_g, ln1_b, qkv_w, qkv_b, proj_w, proj_b,
     ln2_g, ln2_b, fc1_w, fc1_b, fc2_w, fc2_b) = r
    D = x.shape[-1]
    h = _ln(x, ln1_g[l], ln1_b[l])
    qkv = jnp.dot(h, qkv_w[l], preferred_element_type=jnp.float32) + qkv_b[l]
    attn = _mha(qkv[:, 0:D], qkv[:, D:2 * D], qkv[:, 2 * D:3 * D],
                proj_w, l, proj_b[l], num_heads)
    x = x + attn
    h = _ln(x, ln2_g[l], ln2_b[l])
    h = jnp.dot(h, fc1_w[l], preferred_element_type=jnp.float32) + fc1_b[l]
    # TODO(synk): PyTorch nn.GELU default is exact erf; tanh approximation used here (EUP-friendly).
    h = jax.nn.gelu(h)
    h = jnp.dot(h, fc2_w[l], preferred_element_type=jnp.float32) + fc2_b[l]
    return x + h


def _cross_block(q, kv, l, r, num_heads):
    (ln_q_g, ln_q_b, ln_kv_g, ln_kv_b, q_w, q_b, kv_w, kv_b,
     proj_w, proj_b, ln2_g, ln2_b, fc1_w, fc1_b, fc2_w, fc2_b) = r
    D = q.shape[-1]
    qn = _ln(q, ln_q_g[l], ln_q_b[l])
    kvn = _ln(kv, ln_kv_g[l], ln_kv_b[l])
    qq = jnp.dot(qn, q_w[l], preferred_element_type=jnp.float32) + q_b[l]
    # fused K|V projection: single (D, 2D) matmul
    kkvv = jnp.dot(kvn, kv_w[l], preferred_element_type=jnp.float32) + kv_b[l]
    attn = _mha(qq, kkvv[:, 0:D], kkvv[:, D:2 * D], proj_w, l, proj_b[l], num_heads)
    q = q + attn
    h = _ln(q, ln2_g[l], ln2_b[l])
    h = jnp.dot(h, fc1_w[l], preferred_element_type=jnp.float32) + fc1_b[l]
    h = jax.nn.gelu(h)
    h = jnp.dot(h, fc2_w[l], preferred_element_type=jnp.float32) + fc2_b[l]
    return q + h


# ============================ fused Pallas kernels ============================

def _vit_kernel(*refs, depth, num_heads):
    """Whole ViT forward for one batch item: embed + pos + cls + blocks + norm + head."""
    pix_ref, pos_ref, embed_w, embed_b = refs[:4]
    nblk = len(BLK_KEYS) if depth > 0 else 0
    blk = refs[4:4 + nblk]
    norm_g, norm_b, head_w, head_ln_g, head_ln_b, o_ref = refs[4 + nblk:]

    # Patch embed (stride-p conv == Linear on flattened patch pixels).
    # Row 0 of pix is zeros and row 0 of pos is (cls_token+cls_pos-embed_b),
    # so row 0 of x comes out exactly as the cls token (concat-free).
    x = (jnp.dot(pix_ref[0].astype(jnp.float32), embed_w[...],
                 preferred_element_type=jnp.float32)
         + embed_b[...] + pos_ref[0].astype(jnp.float32))
    for l in range(depth):
        x = _self_block(x, l, blk, num_heads)
    x = _ln(x, norm_g[...], norm_b[...])
    # head = _build_mlp(D, D, num_layers=1, out_norm=True): Linear(no bias) + LayerNorm
    x = jnp.dot(x, head_w[...], preferred_element_type=jnp.float32)
    x = _ln(x, head_ln_g[...], head_ln_b[...])
    o_ref[0] = x.astype(o_ref.dtype)


def _decoder_kernel(*refs, depth, num_heads):
    """Whole cross-decoder forward for one batch item."""
    xvis_ref, pos_v_ref, pos_m_ref, embed_w, embed_b = refs[:5]
    nblk = len(DEC_BLK_KEYS)
    blk = refs[5:5 + nblk]
    norm_g, norm_b, head_w, head_b, o_ref = refs[5 + nblk:]

    z = (jnp.dot(xvis_ref[0].astype(jnp.float32), embed_w[...],
                 preferred_element_type=jnp.float32) + embed_b[...])     # (Tv, Dd)
    kv = z + pos_v_ref[0].astype(jnp.float32)          # pos row 0 is zero (cls row)

    # Row selections via masked reductions (no unaligned value slices needed).
    row = jax.lax.broadcasted_iota(jnp.int32, z.shape, 0)
    cls_z = jnp.sum(jnp.where(row == 0, z, 0.0), axis=0, keepdims=True)  # (1, Dd)
    # avg_vis_mask_token=True: mask queries seeded with mean of visible tokens
    mtok = jnp.sum(jnp.where(row >= 1, z, 0.0), axis=0, keepdims=True) / (z.shape[0] - 1)

    # Queries: mask queries first, cls query LAST.  Query rows are independent
    # in cross-attention / LN / MLP, so this permutation only permutes output
    # rows; the wrapper slices [:, :Lm] (== reference [:, 1:]).
    q = jnp.concatenate([mtok + pos_m_ref[0].astype(jnp.float32), cls_z], axis=0)
    for l in range(depth):
        q = _cross_block(q, kv, l, blk, num_heads)
    q = _ln(q, norm_g[...], norm_b[...])
    out = jnp.dot(q, head_w[...], preferred_element_type=jnp.float32) + head_b[...]
    o_ref[0] = out.astype(o_ref.dtype)


def _loss_kernel(pred_ref, trg_ref, vis_ref, loss_ref, sp_ref, sv_ref, st_ref,
                 *, tau, coeff, sim_trg):
    """Fused InfoNCE-patches loss + 3x avg_pairwise_sim + avg-sim penalty."""
    B, Lm, _ = pred_ref.shape
    Lv = vis_ref.shape[1]
    ce = jnp.zeros((1, 1), jnp.float32)
    sp = jnp.zeros((1, 1), jnp.float32)
    sv = jnp.zeros((1, 1), jnp.float32)
    st = jnp.zeros((1, 1), jnp.float32)
    for b in range(B):                               # B is tiny & static -> unrolled
        pred = pred_ref[b].astype(jnp.float32)       # (Lm, D)
        trg = trg_ref[b].astype(jnp.float32)         # (Lm, D)
        vis = vis_ref[b].astype(jnp.float32)         # (Lv, D)
        # ---- InfoNCE ----  pred2unit: standardize over token dim (unbiased std)
        mu = jnp.mean(pred, axis=0, keepdims=True)
        var = jnp.sum((pred - mu) ** 2, axis=0, keepdims=True) / (Lm - 1)
        predu = (pred - mu) / (jnp.sqrt(var) + 1e-4)
        pn = predu / jnp.maximum(
            jnp.sqrt(jnp.sum(predu * predu, axis=-1, keepdims=True)), 1e-12)
        tn = trg / jnp.maximum(
            jnp.sqrt(jnp.sum(trg * trg, axis=-1, keepdims=True)), 1e-12)
        s = jnp.einsum("pd,qd->pq", pn, tn,
                       preferred_element_type=jnp.float32) / tau
        m = jnp.max(s, axis=-1, keepdims=True)
        lse = m + jnp.log(jnp.sum(jnp.exp(s - m), axis=-1, keepdims=True))
        ridx = jax.lax.broadcasted_iota(jnp.int32, (Lm, Lm), 0)
        cidx = jax.lax.broadcasted_iota(jnp.int32, (Lm, Lm), 1)
        diag = jnp.sum(jnp.where(ridx == cidx, s, 0.0), axis=-1, keepdims=True)
        ce = ce + jnp.sum(lse - diag, axis=(0, 1), keepdims=True)
        # ---- avg_pairwise_sim (diagonal included, matching .mean()) ----
        pnn = pred / jnp.maximum(
            jnp.sqrt(jnp.sum(pred * pred, axis=-1, keepdims=True)), 1e-12)
        vnn = vis / jnp.maximum(
            jnp.sqrt(jnp.sum(vis * vis, axis=-1, keepdims=True)), 1e-12)
        sp = sp + jnp.sum(jnp.einsum("pd,qd->pq", pnn, pnn,
                                     preferred_element_type=jnp.float32),
                          axis=(0, 1), keepdims=True)
        sv = sv + jnp.sum(jnp.einsum("pd,qd->pq", vnn, vnn,
                                     preferred_element_type=jnp.float32),
                          axis=(0, 1), keepdims=True)
        st = st + jnp.sum(jnp.einsum("pd,qd->pq", tn, tn,
                                     preferred_element_type=jnp.float32),
                          axis=(0, 1), keepdims=True)
    sp = sp / (B * Lm * Lm)
    sv = sv / (B * Lv * Lv)
    st = st / (B * Lm * Lm)
    loss = ce / (B * Lm) * (tau * 2.0)               # F.cross_entropy mean * tau*2
    if coeff > 0:                                    # static python branch
        loss = loss + coeff * (sp - sim_trg) ** 2 + coeff * (sv - sim_trg) ** 2
    loss_ref[...] = loss
    sp_ref[...] = sp
    sv_ref[...] = sv
    st_ref[...] = st


# ============================ pallas_call wrappers ============================

def _batch_spec(a):
    nd = a.ndim
    return pl.BlockSpec((1,) + a.shape[1:], lambda i, _n=nd: (i,) + (0,) * (_n - 1))


def _rep_spec(a):
    nd = a.ndim
    return pl.BlockSpec(a.shape, lambda i, _n=nd: (0,) * _n)


def _cost(args, out_elems, flops, transcendentals):
    bytes_accessed = sum(int(a.size) * a.dtype.itemsize for a in args) + int(out_elems) * 4
    return pl.CostEstimate(flops=int(flops), transcendentals=int(transcendentals),
                           bytes_accessed=int(bytes_accessed))


def vit_forward(p, pix, pid, num_heads):
    """Fused ViT: one pallas_call per forward (grid over batch, parallel)."""
    N, L, P = pix.shape
    D = p["embed_w"].shape[1]
    T = L + 1
    blk = p["blk"]
    depth = 0 if blk is None else blk["qkv_w"].shape[0]
    hid = blk["fc1_w"].shape[2] if depth else 0

    pos = jnp.take(p["pos_embed"], pid, axis=0)                        # (N, L, D)
    # fold cls token into row 0 of extended (pix, pos):  0 @ W + b + (cls - b) = cls
    cls_row = (p["cls_token"] + p["cls_pos"] - p["embed_b"]).reshape(1, 1, D)
    pos_ext = jnp.concatenate([jnp.broadcast_to(cls_row, (N, 1, D)), pos], axis=1)
    pix_ext = jnp.concatenate([jnp.zeros((N, 1, P), pix.dtype), pix], axis=1)

    weights = [p["embed_w"], p["embed_b"].reshape(1, D)]
    if depth:
        weights += [blk[k] for k in BLK_KEYS]
    weights += [p["norm_g"].reshape(1, D), p["norm_b"].reshape(1, D), p["head_w"],
                p["head_ln_g"].reshape(1, D), p["head_ln_b"].reshape(1, D)]
    ins = [pix_ext, pos_ext] + weights

    flops_blk = 2 * T * D * 3 * D + 4 * T * T * D + 2 * T * D * D + 4 * T * D * hid
    flops = N * (2 * T * P * D + depth * flops_blk + 2 * T * D * D)
    transc = N * (depth * (num_heads * T * T + T * hid) + 2 * T * D)

    return pl.pallas_call(
        functools.partial(_vit_kernel, depth=depth, num_heads=num_heads),
        grid=(N,),
        in_specs=[_batch_spec(pix_ext), _batch_spec(pos_ext)] + [_rep_spec(w) for w in weights],
        out_specs=pl.BlockSpec((1, T, D), lambda i: (i, 0, 0)),
        out_shape=jax.ShapeDtypeStruct((N, T, D), jnp.float32),
        compiler_params=pltpu.CompilerParams(dimension_semantics=("parallel",)),
        cost_estimate=_cost(ins, N * T * D, flops, transc),
    )(*ins)


def decoder_forward(p, x_vis, pid_vis, mask_pid):
    """Fused cross-decoder; returns mask-query outputs (== reference decoder(...)[:, 1:])."""
    N, Tv, D = x_vis.shape
    Dd = p["embed_w"].shape[1]
    Lm = mask_pid.shape[1]
    blk = p["blk"]
    depth = blk["q_w"].shape[0]
    hid = blk["fc1_w"].shape[2]
    Tq = Lm + 1

    pos_v = jnp.take(p["pos_embed"], pid_vis, axis=0)                  # (N, Lv, Dd)
    pos_v_ext = jnp.concatenate([jnp.zeros((N, 1, Dd), pos_v.dtype), pos_v], axis=1)
    pos_m = jnp.take(p["pos_embed"], mask_pid, axis=0)                 # (N, Lm, Dd)

    weights = [p["embed_w"], p["embed_b"].reshape(1, Dd)]
    weights += [blk[k] for k in DEC_BLK_KEYS]
    weights += [p["norm_g"].reshape(1, Dd), p["norm_b"].reshape(1, Dd),
                p["head_w"], p["head_b"].reshape(1, -1)]
    ins = [x_vis, pos_v_ext, pos_m] + weights

    flops_blk = (2 * Tq * Dd * Dd + 4 * Tv * Dd * Dd + 4 * Tq * Tv * Dd
                 + 2 * Tq * Dd * Dd + 4 * Tq * Dd * hid)
    flops = N * (2 * Tv * D * Dd + depth * flops_blk + 2 * Tq * Dd * D)
    transc = N * depth * (DEC_HEADS * Tq * Tv + Tq * hid)

    out = pl.pallas_call(
        functools.partial(_decoder_kernel, depth=depth, num_heads=DEC_HEADS),
        grid=(N,),
        in_specs=[_batch_spec(x_vis), _batch_spec(pos_v_ext), _batch_spec(pos_m)]
                 + [_rep_spec(w) for w in weights],
        out_specs=pl.BlockSpec((1, Tq, D), lambda i: (i, 0, 0)),
        out_shape=jax.ShapeDtypeStruct((N, Tq, D), jnp.float32),
        compiler_params=pltpu.CompilerParams(dimension_semantics=("parallel",)),
        cost_estimate=_cost(ins, N * Tq * D, flops, transc),
    )(*ins)
    # kernel emits mask-query rows first, cls query last -> [:, :Lm] == reference [:, 1:]
    return out[:, :Lm]


def fused_loss(x_pred, x_trg, x_vis_patches):
    return pl.pallas_call(
        functools.partial(_loss_kernel, tau=TAU, coeff=AVG_SIM_COEFF, sim_trg=SIM_TRG),
        out_shape=tuple(jax.ShapeDtypeStruct((1, 1), jnp.float32) for _ in range(4)),
    )(x_pred, x_trg, x_vis_patches)


# ============================ model (glue + kernels) ============================

def patchify(imgs, p):
    """NCHW -> (N, L, p*p*C)   (patch_gap=0)."""
    N, C, H, W = imgs.shape
    h, w = H // p, W // p
    x = imgs.reshape(N, C, h, p, w, p)
    x = jnp.einsum("nchpwq->nhwpqc", x)
    return x.reshape(N, h * w, p * p * C)


def create_views(patch_pix, key):
    N, L, _ = patch_pix.shape
    noise = jax.random.uniform(key, (N, L))
    shuffle = jnp.argsort(noise, axis=1)
    vis_idx = shuffle[:, :NUM_VIS]
    mask_idx = shuffle[:, NUM_VIS:]
    trg_idx = mask_idx if MASK_TARGET else shuffle
    vis_pix = jnp.take_along_axis(patch_pix, vis_idx[:, :, None], axis=1)
    trg_pix = jnp.take_along_axis(patch_pix, trg_idx[:, :, None], axis=1)
    return vis_pix, vis_idx, trg_pix, trg_idx, mask_idx


def lmim_forward(params, imgs, view_key):
    patch_pix = patchify(imgs, PATCH)
    vis_pix, vis_idx, trg_pix, trg_idx, mask_idx = create_views(patch_pix, view_key)
    Lm = mask_idx.shape[-1]
    # target encoder branch is under torch.no_grad()
    x_trg = jax.lax.stop_gradient(
        vit_forward(params["target"], trg_pix, trg_idx, NUM_HEADS))[:, -Lm:]
    x_vis = vit_forward(params["encoder"], vis_pix, vis_idx, NUM_HEADS)
    x_pred = decoder_forward(params["decoder"], x_vis, vis_idx, mask_idx)
    loss_a, sp, sv, st = fused_loss(x_pred, x_trg, x_vis[:, 1:])
    loss = loss_a[0, 0]
    metrics = {"avg_sim_pred": sp[0, 0], "avg_sim_vis": sv[0, 0], "avg_sim_trg": st[0, 0]}
    return loss, metrics


# ============================ parameter init ============================

def init_params(key):
    keys = iter(jax.random.split(key, 64))

    def nrm(shape, scale=0.02):
        return scale * jax.random.normal(next(keys), shape, dtype=jnp.float32)

    def zeros(shape):
        return jnp.zeros(shape, jnp.float32)

    def ones(shape):
        return jnp.ones(shape, jnp.float32)

    def make_blocks(depth, D, hidden):
        if depth == 0:
            return None
        return dict(
            ln1_g=ones((depth, 1, D)), ln1_b=zeros((depth, 1, D)),
            qkv_w=nrm((depth, D, 3 * D)), qkv_b=zeros((depth, 1, 3 * D)),
            proj_w=nrm((depth, D, D)), proj_b=zeros((depth, 1, D)),
            ln2_g=ones((depth, 1, D)), ln2_b=zeros((depth, 1, D)),
            fc1_w=nrm((depth, D, hidden)), fc1_b=zeros((depth, 1, hidden)),
            fc2_w=nrm((depth, hidden, D)), fc2_b=zeros((depth, 1, D)),
        )

    enc = dict(
        embed_w=nrm((PATCH_DIM, EMBED_DIM)), embed_b=zeros((EMBED_DIM,)),
        pos_embed=nrm((NUM_PATCHES, EMBED_DIM)),
        cls_token=nrm((EMBED_DIM,)), cls_pos=nrm((EMBED_DIM,)),
        blk=make_blocks(DEPTH, EMBED_DIM, int(EMBED_DIM * MLP_RATIO)),
        norm_g=ones((EMBED_DIM,)), norm_b=zeros((EMBED_DIM,)),
        head_w=nrm((EMBED_DIM, EMBED_DIM)),
        head_ln_g=ones((EMBED_DIM,)), head_ln_b=zeros((EMBED_DIM,)),
    )
    # target encoder (target_depth=0): momentum-copy of the matching encoder params
    trg = dict(enc)
    trg["blk"] = make_blocks(TARGET_DEPTH, EMBED_DIM, int(EMBED_DIM * MLP_RATIO))

    dec_hidden = int(DEC_DIM * MLP_RATIO)
    dec_blk = dict(
        ln_q_g=ones((DEC_DEPTH, 1, DEC_DIM)), ln_q_b=zeros((DEC_DEPTH, 1, DEC_DIM)),
        ln_kv_g=ones((DEC_DEPTH, 1, DEC_DIM)), ln_kv_b=zeros((DEC_DEPTH, 1, DEC_DIM)),
        q_w=nrm((DEC_DEPTH, DEC_DIM, DEC_DIM)), q_b=zeros((DEC_DEPTH, 1, DEC_DIM)),
        kv_w=nrm((DEC_DEPTH, DEC_DIM, 2 * DEC_DIM)), kv_b=zeros((DEC_DEPTH, 1, 2 * DEC_DIM)),
        proj_w=nrm((DEC_DEPTH, DEC_DIM, DEC_DIM)), proj_b=zeros((DEC_DEPTH, 1, DEC_DIM)),
        ln2_g=ones((DEC_DEPTH, 1, DEC_DIM)), ln2_b=zeros((DEC_DEPTH, 1, DEC_DIM)),
        fc1_w=nrm((DEC_DEPTH, DEC_DIM, dec_hidden)), fc1_b=zeros((DEC_DEPTH, 1, dec_hidden)),
        fc2_w=nrm((DEC_DEPTH, dec_hidden, DEC_DIM)), fc2_b=zeros((DEC_DEPTH, 1, DEC_DIM)),
    )
    dec = dict(
        embed_w=nrm((EMBED_DIM, DEC_DIM)), embed_b=zeros((DEC_DIM,)),
        pos_embed=nrm((NUM_PATCHES, DEC_DIM)),
        blk=dec_blk,
        norm_g=ones((DEC_DIM,)), norm_b=zeros((DEC_DIM,)),
        head_w=nrm((DEC_DIM, EMBED_DIM)), head_b=zeros((EMBED_DIM,)),
    )
    return dict(encoder=enc, target=trg, decoder=dec)


# ============================ main ============================

if __name__ == "__main__":
    key = jax.random.PRNGKey(0)
    kp, ki, km = jax.random.split(key, 3)
    params = init_params(kp)
    imgs = jax.random.normal(ki, (BATCH, IN_CHANS, IMG, IMG), dtype=jnp.float32)

    loss, metrics = jax.jit(lmim_forward)(params, imgs, km)
    jax.block_until_ready(loss)
    assert bool(jnp.isfinite(loss)), "loss is not finite"
    _ = {k: float(v) for k, v in metrics.items()}  # .item()-equivalents
    print("KERNEL_OK")
</pallas_src>

<mosaic_0001>
module attributes {stable_mosaic.version = 11 : i64} {
  func.func @_vit_kernel(%arg0: i32, %arg1: memref<1x9x48xf32, #tpu.memory_space<vmem>>, %arg2: memref<1x9x32xf32, #tpu.memory_space<vmem>>, %arg3: memref<48x32xf32, #tpu.memory_space<vmem>>, %arg4: memref<1x32xf32, #tpu.memory_space<vmem>>, %arg5: memref<1x32xf32, #tpu.memory_space<vmem>>, %arg6: memref<1x32xf32, #tpu.memory_space<vmem>>, %arg7: memref<32x32xf32, #tpu.memory_space<vmem>>, %arg8: memref<1x32xf32, #tpu.memory_space<vmem>>, %arg9: memref<1x32xf32, #tpu.memory_space<vmem>>, %arg10: memref<1x9x32xf32, #tpu.memory_space<vmem>>) attributes {dimension_semantics = [#tpu.dimension_semantics<parallel>], iteration_bounds = array<i64: 2>, scalar_prefetch = 0 : i64, scratch_operands = 0 : i64, tpu.core_type = #tpu.core_type<tc>, window_params = [{transform_indices = @transform_0, window_bounds = array<i64: 1, 9, 48>}, {transform_indices = @transform_1, window_bounds = array<i64: 1, 9, 32>}, {pipeline_mode = #tpu.pipeline_mode<synchronous>, transform_indices = @transform_2, window_bounds = array<i64: 48, 32>}, {pipeline_mode = #tpu.pipeline_mode<synchronous>, transform_indices = @transform_3, window_bounds = array<i64: 1, 32>}, {pipeline_mode = #tpu.pipeline_mode<synchronous>, transform_indices = @transform_4, window_bounds = array<i64: 1, 32>}, {pipeline_mode = #tpu.pipeline_mode<synchronous>, transform_indices = @transform_5, window_bounds = array<i64: 1, 32>}, {pipeline_mode = #tpu.pipeline_mode<synchronous>, transform_indices = @transform_6, window_bounds = array<i64: 32, 32>}, {pipeline_mode = #tpu.pipeline_mode<synchronous>, transform_indices = @transform_7, window_bounds = array<i64: 1, 32>}, {pipeline_mode = #tpu.pipeline_mode<synchronous>, transform_indices = @transform_8, window_bounds = array<i64: 1, 32>}, {transform_indices = @transform_9, window_bounds = array<i64: 1, 9, 32>}]} {
    %c0 = arith.constant 0 : index
    %c0_0 = arith.constant 0 : index
    %c0_1 = arith.constant 0 : index
    %0 = vector.load %arg1[%c0, %c0_0, %c0_1] : memref<1x9x48xf32, #tpu.memory_space<vmem>>, vector<1x9x48xf32>
    %1 = vector.shape_cast %0 : vector<1x9x48xf32> to vector<9x48xf32>
    %c0_2 = arith.constant 0 : index
    %c0_3 = arith.constant 0 : index
    %2 = vector.load %arg3[%c0_2, %c0_3] : memref<48x32xf32, #tpu.memory_space<vmem>>, vector<48x32xf32>
    %cst = arith.constant dense<0.000000e+00> : vector<9x32xf32>
    %3 = tpu.matmul %1, %2, %cst {dimension_numbers = #tpu.dot_dimension_numbers<[1], [0], [0], [1], [0, 0, 1, 1], [], []>} : vector<9x48xf32>, vector<48x32xf32>, vector<9x32xf32> -> vector<9x32xf32>
    %c0_4 = arith.constant 0 : index
    %c0_5 = arith.constant 0 : index
    %4 = vector.load %arg4[%c0_4, %c0_5] : memref<1x32xf32, #tpu.memory_space<vmem>>, vector<1x32xf32>
    %5 = vector.broadcast %4 : vector<1x32xf32> to vector<9x32xf32>
    %6 = arith.addf %3, %5 : vector<9x32xf32>
    %c0_6 = arith.constant 0 : index
    %c0_7 = arith.constant 0 : index
    %c0_8 = arith.constant 0 : index
    %7 = vector.load %arg2[%c0_6, %c0_7, %c0_8] : memref<1x9x32xf32, #tpu.memory_space<vmem>>, vector<1x9x32xf32>
    %8 = vector.shape_cast %7 : vector<1x9x32xf32> to vector<9x32xf32>
    %9 = arith.addf %6, %8 : vector<9x32xf32>
    %c0_9 = arith.constant 0 : index
    %c0_10 = arith.constant 0 : index
    %10 = vector.load %arg5[%c0_9, %c0_10] : memref<1x32xf32, #tpu.memory_space<vmem>>, vector<1x32xf32>
    %c0_11 = arith.constant 0 : index
    %c0_12 = arith.constant 0 : index
    %11 = vector.load %arg6[%c0_11, %c0_12] : memref<1x32xf32, #tpu.memory_space<vmem>>, vector<1x32xf32>
    %cst_13 = arith.constant dense<0.000000e+00> : vector<9xf32>
    %12 = vector.multi_reduction <add>, %9, %cst_13 [1] : vector<9x32xf32> to vector<9xf32>
    %13 = vector.shape_cast %12 : vector<9xf32> to vector<9x1xf32>
    %cst_14 = arith.constant 3.200000e+01 : f32
    %14 = vector.broadcast %cst_14 : f32 to vector<9x1xf32>
    %15 = arith.divf %13, %14 : vector<9x1xf32>
    %16 = vector.broadcast %15 : vector<9x1xf32> to vector<9x32xf32>
    %17 = arith.subf %9, %16 : vector<9x32xf32>
    %18 = arith.mulf %17, %17 : vector<9x32xf32>
    %cst_15 = arith.constant dense<0.000000e+00> : vector<9xf32>
    %19 = vector.multi_reduction <add>, %18, %cst_15 [1] : vector<9x32xf32> to vector<9xf32>
    %20 = vector.shape_cast %19 : vector<9xf32> to vector<9x1xf32>
    %cst_16 = arith.constant 3.200000e+01 : f32
    %21 = vector.broadcast %cst_16 : f32 to vector<9x1xf32>
    %22 = arith.divf %20, %21 : vector<9x1xf32>
    %23 = vector.broadcast %15 : vector<9x1xf32> to vector<9x32xf32>
    %24 = arith.subf %9, %23 : vector<9x32xf32>
    %cst_17 = arith.constant 9.99999974E-6 : f32
    %25 = vector.broadcast %cst_17 : f32 to vector<9x1xf32>
    %26 = arith.addf %22, %25 : vector<9x1xf32>
    %27 = math.rsqrt %26 : vector<9x1xf32>
    %28 = vector.broadcast %27 : vector<9x1xf32> to vector<9x32xf32>
    %29 = arith.mulf %24, %28 : vector<9x32xf32>
    %30 = vector.broadcast %10 : vector<1x32xf32> to vector<9x32xf32>
    %31 = arith.mulf %29, %30 : vector<9x32xf32>
    %32 = vector.broadcast %11 : vector<1x32xf32> to vector<9x32xf32>
    %33 = arith.addf %31, %32 : vector<9x32xf32>
    %c0_18 = arith.constant 0 : index
    %c0_19 = arith.constant 0 : index
    %34 = vector.load %arg7[%c0_18, %c0_19] : memref<32x32xf32, #tpu.memory_space<vmem>>, vector<32x32xf32>
    %cst_20 = arith.constant dense<0.000000e+00> : vector<9x32xf32>
    %35 = tpu.matmul %33, %34, %cst_20 {dimension_numbers = #tpu.dot_dimension_numbers<[1], [0], [0], [1], [0, 0, 1, 1], [], []>} : vector<9x32xf32>, vector<32x32xf32>, vector<9x32xf32> -> vector<9x32xf32>
    %c0_21 = arith.constant 0 : index
    %c0_22 = arith.constant 0 : index
    %36 = vector.load %arg8[%c0_21, %c0_22] : memref<1x32xf32, #tpu.memory_space<vmem>>, vector<1x32xf32>
    %c0_23 = arith.constant 0 : index
    %c0_24 = arith.constant 0 : index
    %37 = vector.load %arg9[%c0_23, %c0_24] : memref<1x32xf32, #tpu.memory_space<vmem>>, vector<1x32xf32>
    %cst_25 = arith.constant dense<0.000000e+00> : vector<9xf32>
    %38 = vector.multi_reduction <add>, %35, %cst_25 [1] : vector<9x32xf32> to vector<9xf32>
    %39 = vector.shape_cast %38 : vector<9xf32> to vector<9x1xf32>
    %cst_26 = arith.constant 3.200000e+01 : f32
    %40 = vector.broadcast %cst_26 : f32 to vector<9x1xf32>
    %41 = arith.divf %39, %40 : vector<9x1xf32>
    %42 = vector.broadcast %41 : vector<9x1xf32> to vector<9x32xf32>
    %43 = arith.subf %35, %42 : vector<9x32xf32>
    %44 = arith.mulf %43, %43 : vector<9x32xf32>
    %cst_27 = arith.constant dense<0.000000e+00> : vector<9xf32>
    %45 = vector.multi_reduction <add>, %44, %cst_27 [1] : vector<9x32xf32> to vector<9xf32>
    %46 = vector.shape_cast %45 : vector<9xf32> to vector<9x1xf32>
    %cst_28 = arith.constant 3.200000e+01 : f32
    %47 = vector.broadcast %cst_28 : f32 to vector<9x1xf32>
    %48 = arith.divf %46, %47 : vector<9x1xf32>
    %49 = vector.broadcast %41 : vector<9x1xf32> to vector<9x32xf32>
    %50 = arith.subf %35, %49 : vector<9x32xf32>
    %cst_29 = arith.constant 9.99999974E-6 : f32
    %51 = vector.broadcast %cst_29 : f32 to vector<9x1xf32>
    %52 = arith.addf %48, %51 : vector<9x1xf32>
    %53 = math.rsqrt %52 : vector<9x1xf32>
    %54 = vector.broadcast %53 : vector<9x1xf32> to vector<9x32xf32>
    %55 = arith.mulf %50, %54 : vector<9x32xf32>
    %56 = vector.broadcast %36 : vector<1x32xf32> to vector<9x32xf32>
    %57 = arith.mulf %55, %56 : vector<9x32xf32>
    %58 = vector.broadcast %37 : vector<1x32xf32> to vector<9x32xf32>
    %59 = arith.addf %57, %58 : vector<9x32xf32>
    %c0_30 = arith.constant 0 : index
    %c0_31 = arith.constant 0 : index
    %c0_32 = arith.constant 0 : index
    %60 = vector.load %arg10[%c0_30, %c0_31, %c0_32] : memref<1x9x32xf32, #tpu.memory_space<vmem>>, vector<1x9x32xf32>
    %61 = vector.shape_cast %60 : vector<1x9x32xf32> to vector<9x32xf32>
    %62 = vector.shape_cast %59 : vector<9x32xf32> to vector<1x9x32xf32>
    tpu.vector_store %arg10[%c0_30, %c0_31, %c0_32], %62 {strides = array<i32>} : memref<1x9x32xf32, #tpu.memory_space<vmem>>, vector<1x9x32xf32>,
    return
  }
  func.func @transform_0(%arg0: i32) -> (i32, i32, i32) {
    %c0_i32 = arith.constant 0 : i32
    %c0_i32_0 = arith.constant 0 : i32
    %c0_i32_1 = arith.constant 0 : i32
    return %arg0, %c0_i32, %c0_i32_0 : i32, i32, i32
  }
  func.func @transform_1(%arg0: i32) -> (i32, i32, i32) {
    %c0_i32 = arith.constant 0 : i32
    %c0_i32_0 = arith.constant 0 : i32
    %c0_i32_1 = arith.constant 0 : i32
    return %arg0, %c0_i32, %c0_i32_0 : i32, i32, i32
  }
  func.func @transform_2(%arg0: i32) -> (i32, i32) {
    %c0_i32 = arith.constant 0 : i32
    %c0_i32_0 = arith.constant 0 : i32
    %c0_i32_1 = arith.constant 0 : i32
    return %c0_i32, %c0_i32_0 : i32, i32
  }
  func.func @transform_3(%arg0: i32) -> (i32, i32) {
    %c0_i32 = arith.constant 0 : i32
    %c0_i32_0 = arith.constant 0 : i32
    %c0_i32_1 = arith.constant 0 : i32
    return %c0_i32, %c0_i32_0 : i32, i32
  }
  func.func @transform_4(%arg0: i32) -> (i32, i32) {
    %c0_i32 = arith.constant 0 : i32
    %c0_i32_0 = arith.constant 0 : i32
    %c0_i32_1 = arith.constant 0 : i32
    return %c0_i32, %c0_i32_0 : i32, i32
  }
  func.func @transform_5(%arg0: i32) -> (i32, i32) {
    %c0_i32 = arith.constant 0 : i32
    %c0_i32_0 = arith.constant 0 : i32
    %c0_i32_1 = arith.constant 0 : i32
    return %c0_i32, %c0_i32_0 : i32, i32
  }
  func.func @transform_6(%arg0: i32) -> (i32, i32) {
    %c0_i32 = arith.constant 0 : i32
    %c0_i32_0 = arith.constant 0 : i32
    %c0_i32_1 = arith.constant 0 : i32
    return %c0_i32, %c0_i32_0 : i32, i32
  }
  func.func @transform_7(%arg0: i32) -> (i32, i32) {
    %c0_i32 = arith.constant 0 : i32
    %c0_i32_0 = arith.constant 0 : i32
    %c0_i32_1 = arith.constant 0 : i32
    return %c0_i32, %c0_i32_0 : i32, i32
  }
  func.func @transform_8(%arg0: i32) -> (i32, i32) {
    %c0_i32 = arith.constant 0 : i32
    %c0_i32_0 = arith.constant 0 : i32
    %c0_i32_1 = arith.constant 0 : i32
    return %c0_i32, %c0_i32_0 : i32, i32
  }
  func.func @transform_9(%arg0: i32) -> (i32, i32, i32) {
    %c0_i32 = arith.constant 0 : i32
    %c0_i32_0 = arith.constant 0 : i32
    %c0_i32_1 = arith.constant 0 : i32
    return %arg0, %c0_i32, %c0_i32_0 : i32, i32, i32
  }
}

module attributes {stable_mosaic.version = 11 : i64} {
  func.func @_loss_kernel(%arg0: memref<2x8x32xf32, #tpu.memory_space<vmem>>, %arg1: memref<2x8x32xf32, #tpu.memory_space<vmem>>, %arg2: memref<2x8x32xf32, #tpu.memory_space<vmem>>, %arg3: memref<1x1xf32, #tpu.memory_space<vmem>>, %arg4: memref<1x1xf32, #tpu.memory_space<vmem>>, %arg5: memref<1x1xf32, #tpu.memory_space<vmem>>, %arg6: memref<1x1xf32, #tpu.memory_space<vmem>>) attributes {dimension_semantics = [], scalar_prefetch = 0 : i64, scratch_operands = 0 : i64, tpu.core_type = #tpu.core_type<tc>} {
    %cst = arith.constant 0.000000e+00 : f32
    %0 = vector.broadcast %cst : f32 to vector<1x1xf32>
    %cst_0 = arith.constant 0.000000e+00 : f32
    %1 = vector.broadcast %cst_0 : f32 to vector<1x1xf32>
    %cst_1 = arith.constant 0.000000e+00 : f32
    %2 = vector.broadcast %cst_1 : f32 to vector<1x1xf32>
    %cst_2 = arith.constant 0.000000e+00 : f32
    %3 = vector.broadcast %cst_2 : f32 to vector<1x1xf32>
    %c0 = arith.constant 0 : index
    %c0_3 = arith.constant 0 : index
    %c0_4 = arith.constant 0 : index
    %4 = vector.load %arg0[%c0, %c0_3, %c0_4] : memref<2x8x32xf32, #tpu.memory_space<vmem>>, vector<1x8x32xf32>
    %5 = vector.shape_cast %4 : vector<1x8x32xf32> to vector<8x32xf32>
    %c0_5 = arith.constant 0 : index
    %c0_6 = arith.constant 0 : index
    %c0_7 = arith.constant 0 : index
    %6 = vector.load %arg1[%c0_5, %c0_6, %c0_7] : memref<2x8x32xf32, #tpu.memory_space<vmem>>, vector<1x8x32xf32>
    %7 = vector.shape_cast %6 : vector<1x8x32xf32> to vector<8x32xf32>
    %c0_8 = arith.constant 0 : index
    %c0_9 = arith.constant 0 : index
    %c0_10 = arith.constant 0 : index
    %8 = vector.load %arg2[%c0_8, %c0_9, %c0_10] : memref<2x8x32xf32, #tpu.memory_space<vmem>>, vector<1x8x32xf32>
    %9 = vector.shape_cast %8 : vector<1x8x32xf32> to vector<8x32xf32>
    %cst_11 = arith.constant dense<0.000000e+00> : vector<32xf32>
    %10 = vector.multi_reduction <add>, %5, %cst_11 [0] : vector<8x32xf32> to vector<32xf32>
    %11 = vector.shape_cast %10 : vector<32xf32> to vector<1x32xf32>
    %cst_12 = arith.constant 8.000000e+00 : f32
    %12 = vector.broadcast %cst_12 : f32 to vector<1x32xf32>
    %13 = arith.divf %11, %12 : vector<1x32xf32>
    %14 = vector.broadcast %13 : vector<1x32xf32> to vector<8x32xf32>
    %15 = arith.subf %5, %14 : vector<8x32xf32>
    %16 = arith.mulf %15, %15 : vector<8x32xf32>
    %cst_13 = arith.constant dense<0.000000e+00> : vector<32xf32>
    %17 = vector.multi_reduction <add>, %16, %cst_13 [0] : vector<8x32xf32> to vector<32xf32>
    %18 = vector.shape_cast %17 : vector<32xf32> to vector<1x32xf32>
    %cst_14 = arith.constant 7.000000e+00 : f32
    %19 = vector.broadcast %cst_14 : f32 to vector<1x32xf32>
    %20 = arith.divf %18, %19 : vector<1x32xf32>
    %21 = vector.broadcast %13 : vector<1x32xf32> to vector<8x32xf32>
    %22 = arith.subf %5, %21 : vector<8x32xf32>
    %23 = math.sqrt %20 : vector<1x32xf32>
    %cst_15 = arith.constant 9.99999974E-5 : f32
    %24 = vector.broadcast %cst_15 : f32 to vector<1x32xf32>
    %25 = arith.addf %23, %24 : vector<1x32xf32>
    %26 = vector.broadcast %25 : vector<1x32xf32> to vector<8x32xf32>
    %27 = arith.divf %22, %26 : vector<8x32xf32>
    %28 = arith.mulf %27, %27 : vector<8x32xf32>
    %cst_16 = arith.constant dense<0.000000e+00> : vector<8xf32>
    %29 = vector.multi_reduction <add>, %28, %cst_16 [1] : vector<8x32xf32> to vector<8xf32>
    %30 = vector.shape_cast %29 : vector<8xf32> to vector<8x1xf32>
    %31 = math.sqrt %30 : vector<8x1xf32>
    %cst_17 = arith.constant 9.99999996E-13 : f32
    %32 = vector.broadcast %cst_17 : f32 to vector<8x1xf32>
    %33 = arith.maximumf %31, %32 : vector<8x1xf32>
    %34 = vector.broadcast %33 : vector<8x1xf32> to vector<8x32xf32>
    %35 = arith.divf %27, %34 : vector<8x32xf32>
    %36 = arith.mulf %7, %7 : vector<8x32xf32>
    %cst_18 = arith.constant dense<0.000000e+00> : vector<8xf32>
    %37 = vector.multi_reduction <add>, %36, %cst_18 [1] : vector<8x32xf32> to vector<8xf32>
    %38 = vector.shape_cast %37 : vector<8xf32> to vector<8x1xf32>
    %39 = math.sqrt %38 : vector<8x1xf32>
    %cst_19 = arith.constant 9.99999996E-13 : f32
    %40 = vector.broadcast %cst_19 : f32 to vector<8x1xf32>
    %41 = arith.maximumf %39, %40 : vector<8x1xf32>
    %42 = vector.broadcast %41 : vector<8x1xf32> to vector<8x32xf32>
    %43 = arith.divf %7, %42 : vector<8x32xf32>
    "tpu.trace_start"() <{level = 10 : i32, message = "pd,qd->pq"}> : () -> ()
    %cst_20 = arith.constant dense<0.000000e+00> : vector<8x8xf32>
    %44 = tpu.matmul %35, %43, %cst_20 {dimension_numbers = #tpu.dot_dimension_numbers<[1], [1], [0], [0], [0, 0, 1, 0], [], []>} : vector<8x32xf32>, vector<8x32xf32>, vector<8x8xf32> -> vector<8x8xf32>
    "tpu.trace_stop"() : () -> ()
    %cst_21 = arith.constant 2.000000e-01 : f32
    %45 = vector.broadcast %cst_21 : f32 to vector<8x8xf32>
    %46 = arith.divf %44, %45 : vector<8x8xf32>
    %cst_22 = arith.constant dense<0xFF800000> : vector<8xf32>
    %47 = vector.multi_reduction <maximumf>, %46, %cst_22 [1] : vector<8x8xf32> to vector<8xf32>
    %48 = vector.shape_cast %47 : vector<8xf32> to vector<8x1xf32>
    %49 = vector.broadcast %48 : vector<8x1xf32> to vector<8x8xf32>
    %50 = arith.subf %46, %49 : vector<8x8xf32>
    %51 = math.exp %50 : vector<8x8xf32>
    %cst_23 = arith.constant dense<0.000000e+00> : vector<8xf32>
    %52 = vector.multi_reduction <add>, %51, %cst_23 [1] : vector<8x8xf32> to vector<8xf32>
    %53 = vector.shape_cast %52 : vector<8xf32> to vector<8x1xf32>
    %54 = math.log %53 : vector<8x1xf32>
    %55 = arith.addf %48, %54 : vector<8x1xf32>
    %56 = tpu.iota {dimensions = array<i32: 0>} : vector<8x8xi32>
    %57 = tpu.iota {dimensions = array<i32: 1>} : vector<8x8xi32>
    %58 = arith.cmpi eq, %56, %57 : vector<8x8xi32>
    %cst_24 = arith.constant 0.000000e+00 : f32
    %59 = vector.broadcast %cst_24 : f32 to vector<8x8xf32>
    %60 = arith.select %58, %46, %59 : vector<8x8xi1>, vector<8x8xf32>
    %cst_25 = arith.constant dense<0.000000e+00> : vector<8xf32>
    %61 = vector.multi_reduction <add>, %60, %cst_25 [1] : vector<8x8xf32> to vector<8xf32>
    %62 = vector.shape_cast %61 : vector<8xf32> to vector<8x1xf32>
    %63 = arith.subf %55, %62 : vector<8x1xf32>
    %64 = vector.shape_cast %63 : vector<8x1xf32> to vector<1x8x1xf32>
    %cst_26 = arith.constant dense<0.000000e+00> : vector<1xf32>
    %65 = vector.multi_reduction <add>, %64, %cst_26 [1, 2] : vector<1x8x1xf32> to vector<1xf32>
    %66 = vector.shape_cast %65 : vector<1xf32> to vector<1x1x1xf32>
    %67 = vector.extract %66[0, 0, 0] : f32 from vector<1x1x1xf32>
    %68 = vector.broadcast %67 : f32 to vector<1x1xf32>
    %69 = arith.addf %0, %68 : vector<1x1xf32>
    %70 = arith.mulf %5, %5 : vector<8x32xf32>
    %cst_27 = arith.constant dense<0.000000e+00> : vector<8xf32>
    %71 = vector.multi_reduction <add>, %70, %cst_27 [1] : vector<8x32xf32> to vector<8xf32>
    %72 = vector.shape_cast %71 : vector<8xf32> to vector<8x1xf32>
    %73 = math.sqrt %72 : vector<8x1xf32>
    %cst_28 = arith.constant 9.99999996E-13 : f32
    %74 = vector.broadcast %cst_28 : f32 to vector<8x1xf32>
    %75 = arith.maximumf %73, %74 : vector<8x1xf32>
    %76 = vector.broadcast %75 : vector<8x1xf32> to vector<8x32xf32>
    %77 = arith.divf %5, %76 : vector<8x32xf32>
    %78 = arith.mulf %9, %9 : vector<8x32xf32>
    %cst_29 = arith.constant dense<0.000000e+00> : vector<8xf32>
    %79 = vector.multi_reduction <add>, %78, %cst_29 [1] : vector<8x32xf32> to vector<8xf32>
    %80 = vector.shape_cast %79 : vector<8xf32> to vector<8x1xf32>
    %81 = math.sqrt %80 : vector<8x1xf32>
    %cst_30 = arith.constant 9.99999996E-13 : f32
    %82 = vector.broadcast %cst_30 : f32 to vector<8x1xf32>
    %83 = arith.maximumf %81, %82 : vector<8x1xf32>
    %84 = vector.broadcast %83 : vector<8x1xf32> to vector<8x32xf32>
    %85 = arith.divf %9, %84 : vector<8x32xf32>
    "tpu.trace_start"() <{level = 10 : i32, message = "pd,qd->pq"}> : () -> ()
    %cst_31 = arith.constant dense<0.000000e+00> : vector<8x8xf32>
    %86 = tpu.matmul %77, %77, %cst_31 {dimension_numbers = #tpu.dot_dimension_numbers<[1], [1], [0], [0], [0, 0, 1, 0], [], []>} : vector<8x32xf32>, vector<8x32xf32>, vector<8x8xf32> -> vector<8x8xf32>
    "tpu.trace_stop"() : () -> ()
    %87 = vector.shape_cast %86 : vector<8x8xf32> to vector<1x8x8xf32>
    %cst_32 = arith.constant dense<0.000000e+00> : vector<1xf32>
    %88 = vector.multi_reduction <add>, %87, %cst_32 [1, 2] : vector<1x8x8xf32> to vector<1xf32>
    %89 = vector.shape_cast %88 : vector<1xf32> to vector<1x1x1xf32>
    %90 = vector.extract %89[0, 0, 0] : f32 from vector<1x1x1xf32>
    %91 = vector.broadcast %90 : f32 to vector<1x1xf32>
    %92 = arith.addf %1, %91 : vector<1x1xf32>
    "tpu.trace_start"() <{level = 10 : i32, message = "pd,qd->pq"}> : () -> ()
    %cst_33 = arith.constant dense<0.000000e+00> : vector<8x8xf32>
    %93 = tpu.matmul %85, %85, %cst_33 {dimension_numbers = #tpu.dot_dimension_numbers<[1], [1], [0], [0], [0, 0, 1, 0], [], []>} : vector<8x32xf32>, vector<8x32xf32>, vector<8x8xf32> -> vector<8x8xf32>
    "tpu.trace_stop"() : () -> ()
    %94 = vector.shape_cast %93 : vector<8x8xf32> to vector<1x8x8xf32>
    %cst_34 = arith.constant dense<0.000000e+00> : vector<1xf32>
    %95 = vector.multi_reduction <add>, %94, %cst_34 [1, 2] : vector<1x8x8xf32> to vector<1xf32>
    %96 = vector.shape_cast %95 : vector<1xf32> to vector<1x1x1xf32>
    %97 = vector.extract %96[0, 0, 0] : f32 from vector<1x1x1xf32>
    %98 = vector.broadcast %97 : f32 to vector<1x1xf32>
    %99 = arith.addf %2, %98 : vector<1x1xf32>
    "tpu.trace_start"() <{level = 10 : i32, message = "pd,qd->pq"}> : () -> ()
    %cst_35 = arith.constant dense<0.000000e+00> : vector<8x8xf32>
    %100 = tpu.matmul %43, %43, %cst_35 {dimension_numbers = #tpu.dot_dimension_numbers<[1], [1], [0], [0], [0, 0, 1, 0], [], []>} : vector<8x32xf32>, vector<8x32xf32>, vector<8x8xf32> -> vector<8x8xf32>
    "tpu.trace_stop"() : () -> ()
    %101 = vector.shape_cast %100 : vector<8x8xf32> to vector<1x8x8xf32>
    %cst_36 = arith.constant dense<0.000000e+00> : vector<1xf32>
    %102 = vector.multi_reduction <add>, %101, %cst_36 [1, 2] : vector<1x8x8xf32> to vector<1xf32>
    %103 = vector.shape_cast %102 : vector<1xf32> to vector<1x1x1xf32>
    %104 = vector.extract %103[0, 0, 0] : f32 from vector<1x1x1xf32>
    %105 = vector.broadcast %104 : f32 to vector<1x1xf32>
    %106 = arith.addf %3, %105 : vector<1x1xf32>
    %c1 = arith.constant 1 : index
    %c0_37 = arith.constant 0 : index
    %c0_38 = arith.constant 0 : index
    %107 = vector.load %arg0[%c1, %c0_37, %c0_38] : memref<2x8x32xf32, #tpu.memory_space<vmem>>, vector<1x8x32xf32>
    %108 = vector.shape_cast %107 : vector<1x8x32xf32> to vector<8x32xf32>
    %c1_39 = arith.constant 1 : index
    %c0_40 = arith.constant 0 : index
    %c0_41 = arith.constant 0 : index
    %109 = vector.load %arg1[%c1_39, %c0_40, %c0_41] : memref<2x8x32xf32, #tpu.memory_space<vmem>>, vector<1x8x32xf32>
    %110 = vector.shape_cast %109 : vector<1x8x32xf32> to vector<8x32xf32>
    %c1_42 = arith.constant 1 : index
    %c0_43 = arith.constant 0 : index
    %c0_44 = arith.constant 0 : index
    %111 = vector.load %arg2[%c1_42, %c0_43, %c0_44] : memref<2x8x32xf32, #tpu.memory_space<vmem>>, vector<1x8x32xf32>
    %112 = vector.shape_cast %111 : vector<1x8x32xf32> to vector<8x32xf32>
    %cst_45 = arith.constant dense<0.000000e+00> : vector<32xf32>
    %113 = vector.multi_reduction <add>, %108, %cst_45 [0] : vector<8x32xf32> to vector<32xf32>
    %114 = vector.shape_cast %113 : vector<32xf32> to vector<1x32xf32>
    %cst_46 = arith.constant 8.000000e+00 : f32
    %115 = vector.broadcast %cst_46 : f32 to vector<1x32xf32>
    %116 = arith.divf %114, %115 : vector<1x32xf32>
    %117 = vector.broadcast %116 : vector<1x32xf32> to vector<8x32xf32>
    %118 = arith.subf %108, %117 : vector<8x32xf32>
    %119 = arith.mulf %118, %118 : vector<8x32xf32>
    %cst_47 = arith.constant dense<0.000000e+00> : vector<32xf32>
    %120 = vector.multi_reduction <add>, %119, %cst_47 [0] : vector<8x32xf32> to vector<32xf32>
    %121 = vector.shape_cast %120 : vector<32xf32> to vector<1x32xf32>
    %cst_48 = arith.constant 7.000000e+00 : f32
    %122 = vector.broadcast %cst_48 : f32 to vector<1x32xf32>
    %123 = arith.divf %121, %122 : vector<1x32xf32>
    %124 = vector.broadcast %116 : vector<1x32xf32> to vector<8x32xf32>
    %125 = arith.subf %108, %124 : vector<8x32xf32>
    %126 = math.sqrt %123 : vector<1x32xf32>
    %cst_49 = arith.constant 9.99999974E-5 : f32
    %127 = vector.broadcast %cst_49 : f32 to vector<1x32xf32>
    %128 = arith.addf %126, %127 : vector<1x32xf32>
    %129 = vector.broadcast %128 : vector<1x32xf32> to vector<8x32xf32>
    %130 = arith.divf %125, %129 : vector<8x32xf32>
    %131 = arith.mulf %130, %130 : vector<8x32xf32>
    %cst_50 = arith.constant dense<0.000000e+00> : vector<8xf32>
    %132 = vector.multi_reduction <add>, %131, %cst_50 [1] : vector<8x32xf32> to vector<8xf32>
    %133 = vector.shape_cast %132 : vector<8xf32> to vector<8x1xf32>
    %134 = math.sqrt %133 : vector<8x1xf32>
    %cst_51 = arith.constant 9.99999996E-13 : f32
    %135 = vector.broadcast %cst_51 : f32 to vector<8x1xf32>
    %136 = arith.maximumf %134, %135 : vector<8x1xf32>
    %137 = vector.broadcast %136 : vector<8x1xf32> to vector<8x32xf32>
    %138 = arith.divf %130, %137 : vector<8x32xf32>
    %139 = arith.mulf %110, %110 : vector<8x32xf32>
    %cst_52 = arith.constant dense<0.000000e+00> : vector<8xf32>
    %140 = vector.multi_reduction <add>, %139, %cst_52 [1] : vector<8x32xf32> to vector<8xf32>
    %141 = vector.shape_cast %140 : vector<8xf32> to vector<8x1xf32>
    %142 = math.sqrt %141 : vector<8x1xf32>
    %cst_53 = arith.constant 9.99999996E-13 : f32
    %143 = vector.broadcast %cst_53 : f32 to vector<8x1xf32>
    %144 = arith.maximumf %142, %143 : vector<8x1xf32>
    %145 = vector.broadcast %144 : vector<8x1xf32> to vector<8x32xf32>
    %146 = arith.divf %110, %145 : vector<8x32xf32>
    "tpu.trace_start"() <{level = 10 : i32, message = "pd,qd->pq"}> : () -> ()
    %cst_54 = arith.constant dense<0.000000e+00> : vector<8x8xf32>
    %147 = tpu.matmul %138, %146, %cst_54 {dimension_numbers = #tpu.dot_dimension_numbers<[1], [1], [0], [0], [0, 0, 1, 0], [], []>} : vector<8x32xf32>, vector<8x32xf32>, vector<8x8xf32> -> vector<8x8xf32>
    "tpu.trace_stop"() : () -> ()
    %cst_55 = arith.constant 2.000000e-01 : f32
    %148 = vector.broadcast %cst_55 : f32 to vector<8x8xf32>
    %149 = arith.divf %147, %148 : vector<8x8xf32>
    %cst_56 = arith.constant dense<0xFF800000> : vector<8xf32>
    %150 = vector.multi_reduction <maximumf>, %149, %cst_56 [1] : vector<8x8xf32> to vector<8xf32>
    %151 = vector.shape_cast %150 : vector<8xf32> to vector<8x1xf32>
    %152 = vector.broadcast %151 : vector<8x1xf32> to vector<8x8xf32>
    %153 = arith.subf %149, %152 : vector<8x8xf32>
    %154 = math.exp %153 : vector<8x8xf32>
    %cst_57 = arith.constant dense<0.000000e+00> : vector<8xf32>
    %155 = vector.multi_reduction <add>, %154, %cst_57 [1] : vector<8x8xf32> to vector<8xf32>
    %156 = vector.shape_cast %155 : vector<8xf32> to vector<8x1xf32>
    %157 = math.log %156 : vector<8x1xf32>
    %158 = arith.addf %151, %157 : vector<8x1xf32>
    %159 = tpu.iota {dimensions = array<i32: 0>} : vector<8x8xi32>
    %160 = tpu.iota {dimensions = array<i32: 1>} : vector<8x8xi32>
    %161 = arith.cmpi eq, %159, %160 : vector<8x8xi32>
    %cst_58 = arith.constant 0.000000e+00 : f32
    %162 = vector.broadcast %cst_58 : f32 to vector<8x8xf32>
    %163 = arith.select %161, %149, %162 : vector<8x8xi1>, vector<8x8xf32>
    %cst_59 = arith.constant dense<0.000000e+00> : vector<8xf32>
    %164 = vector.multi_reduction <add>, %163, %cst_59 [1] : vector<8x8xf32> to vector<8xf32>
    %165 = vector.shape_cast %164 : vector<8xf32> to vector<8x1xf32>
    %166 = arith.subf %158, %165 : vector<8x1xf32>
    %167 = vector.shape_cast %166 : vector<8x1xf32> to vector<1x8x1xf32>
    %cst_60 = arith.constant dense<0.000000e+00> : vector<1xf32>
    %168 = vector.multi_reduction <add>, %167, %cst_60 [1, 2] : vector<1x8x1xf32> to vector<1xf32>
    %169 = vector.shape_cast %168 : vector<1xf32> to vector<1x1x1xf32>
    %170 = vector.extract %169[0, 0, 0] : f32 from vector<1x1x1xf32>
    %171 = vector.broadcast %170 : f32 to vector<1x1xf32>
    %172 = arith.addf %69, %171 : vector<1x1xf32>
    %173 = arith.mulf %108, %108 : vector<8x32xf32>
    %cst_61 = arith.constant dense<0.000000e+00> : vector<8xf32>
    %174 = vector.multi_reduction <add>, %173, %cst_61 [1] : vector<8x32xf32> to vector<8xf32>
    %175 = vector.shape_cast %174 : vector<8xf32> to vector<8x1xf32>
    %176 = math.sqrt %175 : vector<8x1xf32>
    %cst_62 = arith.constant 9.99999996E-13 : f32
    %177 = vector.broadcast %cst_62 : f32 to vector<8x1xf32>
    %178 = arith.maximumf %176, %177 : vector<8x1xf32>
    %179 = vector.broadcast %178 : vector<8x1xf32> to vector<8x32xf32>
    %180 = arith.divf %108, %179 : vector<8x32xf32>
    %181 = arith.mulf %112, %112 : vector<8x32xf32>
    %cst_63 = arith.constant dense<0.000000e+00> : vector<8xf32>
    %182 = vector.multi_reduction <add>, %181, %cst_63 [1] : vector<8x32xf32> to vector<8xf32>
    %183 = vector.shape_cast %182 : vector<8xf32> to vector<8x1xf32>
    %184 = math.sqrt %183 : vector<8x1xf32>
    %cst_64 = arith.constant 9.99999996E-13 : f32
    %185 = vector.broadcast %cst_64 : f32 to vector<8x1xf32>
    %186 = arith.maximumf %184, %185 : vector<8x1xf32>
    %187 = vector.broadcast %186 : vector<8x1xf32> to vector<8x32xf32>
    %188 = arith.divf %112, %187 : vector<8x32xf32>
    "tpu.trace_start"() <{level = 10 : i32, message = "pd,qd->pq"}> : () -> ()
    %cst_65 = arith.constant dense<0.000000e+00> : vector<8x8xf32>
    %189 = tpu.matmul %180, %180, %cst_65 {dimension_numbers = #tpu.dot_dimension_numbers<[1], [1], [0], [0], [0, 0, 1, 0], [], []>} : vector<8x32xf32>, vector<8x32xf32>, vector<8x8xf32> -> vector<8x8xf32>
    "tpu.trace_stop"() : () -> ()
    %190 = vector.shape_cast %189 : vector<8x8xf32> to vector<1x8x8xf32>
    %cst_66 = arith.constant dense<0.000000e+00> : vector<1xf32>
    %191 = vector.multi_reduction <add>, %190, %cst_66 [1, 2] : vector<1x8x8xf32> to vector<1xf32>
    %192 = vector.shape_cast %191 : vector<1xf32> to vector<1x1x1xf32>
    %193 = vector.extract %192[0, 0, 0] : f32 from vector<1x1x1xf32>
    %194 = vector.broadcast %193 : f32 to vector<1x1xf32>
    %195 = arith.addf %92, %194 : vector<1x1xf32>
    "tpu.trace_start"() <{level = 10 : i32, message = "pd,qd->pq"}> : () -> ()
    %cst_67 = arith.constant dense<0.000000e+00> : vector<8x8xf32>
    %196 = tpu.matmul %188, %188, %cst_67 {dimension_numbers = #tpu.dot_dimension_numbers<[1], [1], [0], [0], [0, 0, 1, 0], [], []>} : vector<8x32xf32>, vector<8x32xf32>, vector<8x8xf32> -> vector<8x8xf32>
    "tpu.trace_stop"() : () -> ()
    %197 = vector.shape_cast %196 : vector<8x8xf32> to vector<1x8x8xf32>
    %cst_68 = arith.constant dense<0.000000e+00> : vector<1xf32>
    %198 = vector.multi_reduction <add>, %197, %cst_68 [1, 2] : vector<1x8x8xf32> to vector<1xf32>
    %199 = vector.shape_cast %198 : vector<1xf32> to vector<1x1x1xf32>
    %200 = vector.extract %199[0, 0, 0] : f32 from vector<1x1x1xf32>
    %201 = vector.broadcast %200 : f32 to vector<1x1xf32>
    %202 = arith.addf %99, %201 : vector<1x1xf32>
    "tpu.trace_start"() <{level = 10 : i32, message = "pd,qd->pq"}> : () -> ()
    %cst_69 = arith.constant dense<0.000000e+00> : vector<8x8xf32>
    %203 = tpu.matmul %146, %146, %cst_69 {dimension_numbers = #tpu.dot_dimension_numbers<[1], [1], [0], [0], [0, 0, 1, 0], [], []>} : vector<8x32xf32>, vector<8x32xf32>, vector<8x8xf32> -> vector<8x8xf32>
    "tpu.trace_stop"() : () -> ()
    %204 = vector.shape_cast %203 : vector<8x8xf32> to vector<1x8x8xf32>
    %cst_70 = arith.constant dense<0.000000e+00> : vector<1xf32>
    %205 = vector.multi_reduction <add>, %204, %cst_70 [1, 2] : vector<1x8x8xf32> to vector<1xf32>
    %206 = vector.shape_cast %205 : vector<1xf32> to vector<1x1x1xf32>
    %207 = vector.extract %206[0, 0, 0] : f32 from vector<1x1x1xf32>
    %208 = vector.broadcast %207 : f32 to vector<1x1xf32>
    %209 = arith.addf %106, %208 : vector<1x1xf32>
    %cst_71 = arith.constant 1.280000e+02 : f32
    %210 = vector.broadcast %cst_71 : f32 to vector<1x1xf32>
    %211 = arith.divf %195, %210 : vector<1x1xf32>
    %cst_72 = arith.constant 1.280000e+02 : f32
    %212 = vector.broadcast %cst_72 : f32 to vector<1x1xf32>
    %213 = arith.divf %202, %212 : vector<1x1xf32>
    %cst_73 = arith.constant 1.280000e+02 : f32
    %214 = vector.broadcast %cst_73 : f32 to vector<1x1xf32>
    %215 = arith.divf %209, %214 : vector<1x1xf32>
    %cst_74 = arith.constant 1.600000e+01 : f32
    %216 = vector.broadcast %cst_74 : f32 to vector<1x1xf32>
    %217 = arith.divf %172, %216 : vector<1x1xf32>
    %cst_75 = arith.constant 4.000000e-01 : f32
    %218 = vector.broadcast %cst_75 : f32 to vector<1x1xf32>
    %219 = arith.mulf %217, %218 : vector<1x1xf32>
    %cst_76 = arith.constant 7.500000e-01 : f32
    %220 = vector.broadcast %cst_76 : f32 to vector<1x1xf32>
    %221 = arith.subf %211, %220 : vector<1x1xf32>
    %222 = arith.mulf %221, %221 : vector<1x1xf32>
    %cst_77 = arith.constant 1.000000e-01 : f32
    %223 = vector.broadcast %cst_77 : f32 to vector<1x1xf32>
    %224 = arith.mulf %223, %222 : vector<1x1xf32>
    %225 = arith.addf %219, %224 : vector<1x1xf32>
    %cst_78 = arith.constant 7.500000e-01 : f32
    %226 = vector.broadcast %cst_78 : f32 to vector<1x1xf32>
    %227 = arith.subf %213, %226 : vector<1x1xf32>
    %228 = arith.mulf %227, %227 : vector<1x1xf32>
    %cst_79 = arith.constant 1.000000e-01 : f32
    %229 = vector.broadcast %cst_79 : f32 to vector<1x1xf32>
    %230 = arith.mulf %229, %228 : vector<1x1xf32>
    %231 = arith.addf %225, %230 : vector<1x1xf32>
    %c0_80 = arith.constant 0 : index
    %c0_81 = arith.constant 0 : index
    %232 = vector.load %arg3[%c0_80, %c0_81] : memref<1x1xf32, #tpu.memory_space<vmem>>, vector<1x1xf32>
    tpu.vector_store %arg3[%c0_80, %c0_81], %231 {strides = array<i32>} : memref<1x1xf32, #tpu.memory_space<vmem>>, vector<1x1xf32>,
    %c0_82 = arith.constant 0 : index
    %c0_83 = arith.constant 0 : index
    %233 = vector.load %arg4[%c0_82, %c0_83] : memref<1x1xf32, #tpu.memory_space<vmem>>, vector<1x1xf32>
    tpu.vector_store %arg4[%c0_82, %c0_83], %211 {strides = array<i32>} : memref<1x1xf32, #tpu.memory_space<vmem>>, vector<1x1xf32>,
    %c0_84 = arith.constant 0 : index
    %c0_85 = arith.constant 0 : index
    %234 = vector.load %arg5[%c0_84, %c0_85] : memref<1x1xf32, #tpu.memory_space<vmem>>, vector<1x1xf32>
    tpu.vector_store %arg5[%c0_84, %c0_85], %213 {strides = array<i32>} : memref<1x1xf32, #tpu.memory_space<vmem>>, vector<1x1xf32>,
    %c0_86 = arith.constant 0 : index
    %c0_87 = arith.constant 0 : index
    %235 = vector.load %arg6[%c0_86, %c0_87] : memref<1x1xf32, #tpu.memory_space<vmem>>, vector<1x1xf32>
    tpu.vector_store %arg6[%c0_86, %c0_87], %215 {strides = array<i32>} : memref<1x1xf32, #tpu.memory_space<vmem>>, vector<1x1xf32>,
    return
  }
}

module attributes {stable_mosaic.version = 11 : i64} {
  func.func @_decoder_kernel(%arg0: i32, %arg1: memref<1x9x32xf32, #tpu.memory_space<vmem>>, %arg2: memref<1x9x16xf32, #tpu.memory_space<vmem>>, %arg3: memref<1x8x16xf32, #tpu.memory_space<vmem>>, %arg4: memref<32x16xf32, #tpu.memory_space<vmem>>, %arg5: memref<1x16xf32, #tpu.memory_space<vmem>>, %arg6: memref<1x1x16xf32, #tpu.memory_space<vmem>>, %arg7: memref<1x1x16xf32, #tpu.memory_space<vmem>>, %arg8: memref<1x1x16xf32, #tpu.memory_space<vmem>>, %arg9: memref<1x1x16xf32, #tpu.memory_space<vmem>>, %arg10: memref<1x16x16xf32, #tpu.memory_space<vmem>>, %arg11: memref<1x1x16xf32, #tpu.memory_space<vmem>>, %arg12: memref<1x16x32xf32, #tpu.memory_space<vmem>>, %arg13: memref<1x1x32xf32, #tpu.memory_space<vmem>>, %arg14: memref<1x16x16xf32, #tpu.memory_space<vmem>>, %arg15: memref<1x1x16xf32, #tpu.memory_space<vmem>>, %arg16: memref<1x1x16xf32, #tpu.memory_space<vmem>>, %arg17: memref<1x1x16xf32, #tpu.memory_space<vmem>>, %arg18: memref<1x16x32xf32, #tpu.memory_space<vmem>>, %arg19: memref<1x1x32xf32, #tpu.memory_space<vmem>>, %arg20: memref<1x32x16xf32, #tpu.memory_space<vmem>>, %arg21: memref<1x1x16xf32, #tpu.memory_space<vmem>>, %arg22: memref<1x16xf32, #tpu.memory_space<vmem>>, %arg23: memref<1x16xf32, #tpu.memory_space<vmem>>, %arg24: memref<16x32xf32, #tpu.memory_space<vmem>>, %arg25: memref<1x32xf32, #tpu.memory_space<vmem>>, %arg26: memref<1x9x32xf32, #tpu.memory_space<vmem>>) attributes {dimension_semantics = [#tpu.dimension_semantics<parallel>], iteration_bounds = array<i64: 2>, scalar_prefetch = 0 : i64, scratch_operands = 0 : i64, tpu.core_type = #tpu.core_type<tc>, window_params = [{transform_indices = @transform_0, window_bounds = array<i64: 1, 9, 32>}, {transform_indices = @transform_1, window_bounds = array<i64: 1, 9, 16>}, {transform_indices = @transform_2, window_bounds = array<i64: 1, 8, 16>}, {pipeline_mode = #tpu.pipeline_mode<synchronous>, transform_indices = @transform_3, window_bounds = array<i64: 32, 16>}, {pipeline_mode = #tpu.pipeline_mode<synchronous>, transform_indices = @transform_4, window_bounds = array<i64: 1, 16>}, {pipeline_mode = #tpu.pipeline_mode<synchronous>, transform_indices = @transform_5, window_bounds = array<i64: 1, 1, 16>}, {pipeline_mode = #tpu.pipeline_mode<synchronous>, transform_indices = @transform_6, window_bounds = array<i64: 1, 1, 16>}, {pipeline_mode = #tpu.pipeline_mode<synchronous>, transform_indices = @transform_7, window_bounds = array<i64: 1, 1, 16>}, {pipeline_mode = #tpu.pipeline_mode<synchronous>, transform_indices = @transform_8, window_bounds = array<i64: 1, 1, 16>}, {pipeline_mode = #tpu.pipeline_mode<synchronous>, transform_indices = @transform_9, window_bounds = array<i64: 1, 16, 16>}, {pipeline_mode = #tpu.pipeline_mode<synchronous>, transform_indices = @transform_10, window_bounds = array<i64: 1, 1, 16>}, {pipeline_mode = #tpu.pipeline_mode<synchronous>, transform_indices = @transform_11, window_bounds = array<i64: 1, 16, 32>}, {pipeline_mode = #tpu.pipeline_mode<synchronous>, transform_indices = @transform_12, window_bounds = array<i64: 1, 1, 32>}, {pipeline_mode = #tpu.pipeline_mode<synchronous>, transform_indices = @transform_13, window_bounds = array<i64: 1, 16, 16>}, {pipeline_mode = #tpu.pipeline_mode<synchronous>, transform_indices = @transform_14, window_bounds = array<i64: 1, 1, 16>}, {pipeline_mode = #tpu.pipeline_mode<synchronous>, transform_indices = @transform_15, window_bounds = array<i64: 1, 1, 16>}, {pipeline_mode = #tpu.pipeline_mode<synchronous>, transform_indices = @transform_16, window_bounds = array<i64: 1, 1, 16>}, {pipeline_mode = #tpu.pipeline_mode<synchronous>, transform_indices = @transform_17, window_bounds = array<i64: 1, 16, 32>}, {pipeline_mode = #tpu.pipeline_mode<synchronous>, transform_indices = @transform_18, window_bounds = array<i64: 1, 1, 32>}, {pipeline_mode = #tpu.pipeline_mode<synchronous>, transform_indices = @transform_19, window_bounds = array<i64: 1, 32, 16>}, {pipeline_mode = #tpu.pipeline_mode<synchronous>, transform_indices = @transform_20, window_bounds = array<i64: 1, 1, 16>}, {pipeline_mode = #tpu.pipeline_mode<synchronous>, transform_indices = @transform_21, window_bounds = array<i64: 1, 16>}, {pipeline_mode = #tpu.pipeline_mode<synchronous>, transform_indices = @transform_22, window_bounds = array<i64: 1, 16>}, {pipeline_mode = #tpu.pipeline_mode<synchronous>, transform_indices = @transform_23, window_bounds = array<i64: 16, 32>}, {pipeline_mode = #tpu.pipeline_mode<synchronous>, transform_indices = @transform_24, window_bounds = array<i64: 1, 32>}, {transform_indices = @transform_25, window_bounds = array<i64: 1, 9, 32>}]} {
    %c0 = arith.constant 0 : index
    %c0_0 = arith.constant 0 : index
    %c0_1 = arith.constant 0 : index
    %0 = vector.load %arg1[%c0, %c0_0, %c0_1] : memref<1x9x32xf32, #tpu.memory_space<vmem>>, vector<1x9x32xf32>
    %1 = vector.shape_cast %0 : vector<1x9x32xf32> to vector<9x32xf32>
    %c0_2 = arith.constant 0 : index
    %c0_3 = arith.constant 0 : index
    %2 = vector.load %arg4[%c0_2, %c0_3] : memref<32x16xf32, #tpu.memory_space<vmem>>, vector<32x16xf32>
    %cst = arith.constant dense<0.000000e+00> : vector<9x16xf32>
    %3 = tpu.matmul %1, %2, %cst {dimension_numbers = #tpu.dot_dimension_numbers<[1], [0], [0], [1], [0, 0, 1, 1], [], []>} : vector<9x32xf32>, vector<32x16xf32>, vector<9x16xf32> -> vector<9x16xf32>
    %c0_4 = arith.constant 0 : index
    %c0_5 = arith.constant 0 : index
    %4 = vector.load %arg5[%c0_4, %c0_5] : memref<1x16xf32, #tpu.memory_space<vmem>>, vector<1x16xf32>
    %5 = vector.broadcast %4 : vector<1x16xf32> to vector<9x16xf32>
    %6 = arith.addf %3, %5 : vector<9x16xf32>
    %c0_6 = arith.constant 0 : index
    %c0_7 = arith.constant 0 : index
    %c0_8 = arith.constant 0 : index
    %7 = vector.load %arg2[%c0_6, %c0_7, %c0_8] : memref<1x9x16xf32, #tpu.memory_space<vmem>>, vector<1x9x16xf32>
    %8 = vector.shape_cast %7 : vector<1x9x16xf32> to vector<9x16xf32>
    %9 = arith.addf %6, %8 : vector<9x16xf32>
    %10 = tpu.iota {dimensions = array<i32: 0>} : vector<9x16xi32>
    %c0_i32 = arith.constant 0 : i32
    %11 = vector.broadcast %c0_i32 : i32 to vector<9x16xi32>
    %12 = arith.cmpi eq, %10, %11 : vector<9x16xi32>
    %cst_9 = arith.constant 0.000000e+00 : f32
    %13 = vector.broadcast %cst_9 : f32 to vector<9x16xf32>
    %14 = arith.select %12, %6, %13 : vector<9x16xi1>, vector<9x16xf32>
    %cst_10 = arith.constant dense<0.000000e+00> : vector<16xf32>
    %15 = vector.multi_reduction <add>, %14, %cst_10 [0] : vector<9x16xf32> to vector<16xf32>
    %16 = vector.shape_cast %15 : vector<16xf32> to vector<1x16xf32>
    %c1_i32 = arith.constant 1 : i32
    %17 = vector.broadcast %c1_i32 : i32 to vector<9x16xi32>
    %18 = arith.cmpi sge, %10, %17 : vector<9x16xi32>
    %cst_11 = arith.constant 0.000000e+00 : f32
    %19 = vector.broadcast %cst_11 : f32 to vector<9x16xf32>
    %20 = arith.select %18, %6, %19 : vector<9x16xi1>, vector<9x16xf32>
    %cst_12 = arith.constant dense<0.000000e+00> : vector<16xf32>
    %21 = vector.multi_reduction <add>, %20, %cst_12 [0] : vector<9x16xf32> to vector<16xf32>
    %22 = vector.shape_cast %21 : vector<16xf32> to vector<1x16xf32>
    %cst_13 = arith.constant 8.000000e+00 : f32
    %23 = vector.broadcast %cst_13 : f32 to vector<1x16xf32>
    %24 = arith.divf %22, %23 : vector<1x16xf32>
    %c0_14 = arith.constant 0 : index
    %c0_15 = arith.constant 0 : index
    %c0_16 = arith.constant 0 : index
    %25 = vector.load %arg3[%c0_14, %c0_15, %c0_16] : memref<1x8x16xf32, #tpu.memory_space<vmem>>, vector<1x8x16xf32>
    %26 = vector.shape_cast %25 : vector<1x8x16xf32> to vector<8x16xf32>
    %27 = vector.broadcast %24 : vector<1x16xf32> to vector<8x16xf32>
    %28 = arith.addf %27, %26 : vector<8x16xf32>
    %29 = tpu.concatenate %28, %16 in 0 : vector<8x16xf32>, vector<1x16xf32> -> vector<9x16xf32>
    %c0_17 = arith.constant 0 : index
    %c0_18 = arith.constant 0 : index
    %c0_19 = arith.constant 0 : index
    %30 = vector.load %arg6[%c0_17, %c0_18, %c0_19] : memref<1x1x16xf32, #tpu.memory_space<vmem>>, vector<1x1x16xf32>
    %31 = vector.shape_cast %30 : vector<1x1x16xf32> to vector<1x16xf32>
    %c0_20 = arith.constant 0 : index
    %c0_21 = arith.constant 0 : index
    %c0_22 = arith.constant 0 : index
    %32 = vector.load %arg7[%c0_20, %c0_21, %c0_22] : memref<1x1x16xf32, #tpu.memory_space<vmem>>, vector<1x1x16xf32>
    %33 = vector.shape_cast %32 : vector<1x1x16xf32> to vector<1x16xf32>
    %cst_23 = arith.constant dense<0.000000e+00> : vector<9xf32>
    %34 = vector.multi_reduction <add>, %29, %cst_23 [1] : vector<9x16xf32> to vector<9xf32>
    %35 = vector.shape_cast %34 : vector<9xf32> to vector<9x1xf32>
    %cst_24 = arith.constant 1.600000e+01 : f32
    %36 = vector.broadcast %cst_24 : f32 to vector<9x1xf32>
    %37 = arith.divf %35, %36 : vector<9x1xf32>
    %38 = vector.broadcast %37 : vector<9x1xf32> to vector<9x16xf32>
    %39 = arith.subf %29, %38 : vector<9x16xf32>
    %40 = arith.mulf %39, %39 : vector<9x16xf32>
    %cst_25 = arith.constant dense<0.000000e+00> : vector<9xf32>
    %41 = vector.multi_reduction <add>, %40, %cst_25 [1] : vector<9x16xf32> to vector<9xf32>
    %42 = vector.shape_cast %41 : vector<9xf32> to vector<9x1xf32>
    %cst_26 = arith.constant 1.600000e+01 : f32
    %43 = vector.broadcast %cst_26 : f32 to vector<9x1xf32>
    %44 = arith.divf %42, %43 : vector<9x1xf32>
    %45 = vector.broadcast %37 : vector<9x1xf32> to vector<9x16xf32>
    %46 = arith.subf %29, %45 : vector<9x16xf32>
    %cst_27 = arith.constant 9.99999974E-6 : f32
    %47 = vector.broadcast %cst_27 : f32 to vector<9x1xf32>
    %48 = arith.addf %44, %47 : vector<9x1xf32>
    %49 = math.rsqrt %48 : vector<9x1xf32>
    %50 = vector.broadcast %49 : vector<9x1xf32> to vector<9x16xf32>
    %51 = arith.mulf %46, %50 : vector<9x16xf32>
    %52 = vector.broadcast %31 : vector<1x16xf32> to vector<9x16xf32>
    %53 = arith.mulf %51, %52 : vector<9x16xf32>
    %54 = vector.broadcast %33 : vector<1x16xf32> to vector<9x16xf32>
    %55 = arith.addf %53, %54 : vector<9x16xf32>
    %c0_28 = arith.constant 0 : index
    %c0_29 = arith.constant 0 : index
    %c0_30 = arith.constant 0 : index
    %56 = vector.load %arg8[%c0_28, %c0_29, %c0_30] : memref<1x1x16xf32, #tpu.memory_space<vmem>>, vector<1x1x16xf32>
    %57 = vector.shape_cast %56 : vector<1x1x16xf32> to vector<1x16xf32>
    %c0_31 = arith.constant 0 : index
    %c0_32 = arith.constant 0 : index
    %c0_33 = arith.constant 0 : index
    %58 = vector.load %arg9[%c0_31, %c0_32, %c0_33] : memref<1x1x16xf32, #tpu.memory_space<vmem>>, vector<1x1x16xf32>
    %59 = vector.shape_cast %58 : vector<1x1x16xf32> to vector<1x16xf32>
    %cst_34 = arith.constant dense<0.000000e+00> : vector<9xf32>
    %60 = vector.multi_reduction <add>, %9, %cst_34 [1] : vector<9x16xf32> to vector<9xf32>
    %61 = vector.shape_cast %60 : vector<9xf32> to vector<9x1xf32>
    %cst_35 = arith.constant 1.600000e+01 : f32
    %62 = vector.broadcast %cst_35 : f32 to vector<9x1xf32>
    %63 = arith.divf %61, %62 : vector<9x1xf32>
    %64 = vector.broadcast %63 : vector<9x1xf32> to vector<9x16xf32>
    %65 = arith.subf %9, %64 : vector<9x16xf32>
    %66 = arith.mulf %65, %65 : vector<9x16xf32>
    %cst_36 = arith.constant dense<0.000000e+00> : vector<9xf32>
    %67 = vector.multi_reduction <add>, %66, %cst_36 [1] : vector<9x16xf32> to vector<9xf32>
    %68 = vector.shape_cast %67 : vector<9xf32> to vector<9x1xf32>
    %cst_37 = arith.constant 1.600000e+01 : f32
    %69 = vector.broadcast %cst_37 : f32 to vector<9x1xf32>
    %70 = arith.divf %68, %69 : vector<9x1xf32>
    %71 = vector.broadcast %63 : vector<9x1xf32> to vector<9x16xf32>
    %72 = arith.subf %9, %71 : vector<9x16xf32>
    %cst_38 = arith.constant 9.99999974E-6 : f32
    %73 = vector.broadcast %cst_38 : f32 to vector<9x1xf32>
    %74 = arith.addf %70, %73 : vector<9x1xf32>
    %75 = math.rsqrt %74 : vector<9x1xf32>
    %76 = vector.broadcast %75 : vector<9x1xf32> to vector<9x16xf32>
    %77 = arith.mulf %72, %76 : vector<9x16xf32>
    %78 = vector.broadcast %57 : vector<1x16xf32> to vector<9x16xf32>
    %79 = arith.mulf %77, %78 : vector<9x16xf32>
    %80 = vector.broadcast %59 : vector<1x16xf32> to vector<9x16xf32>
    %81 = arith.addf %79, %80 : vector<9x16xf32>
    %c0_39 = arith.constant 0 : index
    %c0_40 = arith.constant 0 : index
    %c0_41 = arith.constant 0 : index
    %82 = vector.load %arg10[%c0_39, %c0_40, %c0_41] : memref<1x16x16xf32, #tpu.memory_space<vmem>>, vector<1x16x16xf32>
    %83 = vector.shape_cast %82 : vector<1x16x16xf32> to vector<16x16xf32>
    %cst_42 = arith.constant dense<0.000000e+00> : vector<9x16xf32>
    %84 = tpu.matmul %55, %83, %cst_42 {dimension_numbers = #tpu.dot_dimension_numbers<[1], [0], [0], [1], [0, 0, 1, 1], [], []>} : vector<9x16xf32>, vector<16x16xf32>, vector<9x16xf32> -> vector<9x16xf32>
    %c0_43 = arith.constant 0 : index
    %c0_44 = arith.constant 0 : index
    %c0_45 = arith.constant 0 : index
    %85 = vector.load %arg11[%c0_43, %c0_44, %c0_45] : memref<1x1x16xf32, #tpu.memory_space<vmem>>, vector<1x1x16xf32>
    %86 = vector.shape_cast %85 : vector<1x1x16xf32> to vector<1x16xf32>
    %87 = vector.broadcast %86 : vector<1x16xf32> to vector<9x16xf32>
    %88 = arith.addf %84, %87 : vector<9x16xf32>
    %c0_46 = arith.constant 0 : index
    %c0_47 = arith.constant 0 : index
    %c0_48 = arith.constant 0 : index
    %89 = vector.load %arg12[%c0_46, %c0_47, %c0_48] : memref<1x16x32xf32, #tpu.memory_space<vmem>>, vector<1x16x32xf32>
    %90 = vector.shape_cast %89 : vector<1x16x32xf32> to vector<16x32xf32>
    %cst_49 = arith.constant dense<0.000000e+00> : vector<9x32xf32>
    %91 = tpu.matmul %81, %90, %cst_49 {dimension_numbers = #tpu.dot_dimension_numbers<[1], [0], [0], [1], [0, 0, 1, 1], [], []>} : vector<9x16xf32>, vector<16x32xf32>, vector<9x32xf32> -> vector<9x32xf32>
    %c0_50 = arith.constant 0 : index
    %c0_51 = arith.constant 0 : index
    %c0_52 = arith.constant 0 : index
    %92 = vector.load %arg13[%c0_50, %c0_51, %c0_52] : memref<1x1x32xf32, #tpu.memory_space<vmem>>, vector<1x1x32xf32>
    %93 = vector.shape_cast %92 : vector<1x1x32xf32> to vector<1x32xf32>
    %94 = vector.broadcast %93 : vector<1x32xf32> to vector<9x32xf32>
    %95 = arith.addf %91, %94 : vector<9x32xf32>
    %96 = vector.extract_strided_slice %95 {offsets = [0, 0], sizes = [9, 16], strides = [1, 1]} : vector<9x32xf32> to vector<9x16xf32>
    %97 = vector.extract_strided_slice %95 {offsets = [0, 16], sizes = [9, 16], strides = [1, 1]} : vector<9x32xf32> to vector<9x16xf32>
    %c0_53 = arith.constant 0 : index
    %c0_54 = arith.constant 0 : index
    %c0_55 = arith.constant 0 : index
    %98 = vector.load %arg15[%c0_53, %c0_54, %c0_55] : memref<1x1x16xf32, #tpu.memory_space<vmem>>, vector<1x1x16xf32>
    %99 = vector.shape_cast %98 : vector<1x1x16xf32> to vector<1x16xf32>
    %cst_56 = arith.constant 0.000000e+00 : f32
    %100 = vector.broadcast %cst_56 : f32 to vector<9x16xf32>
    %101 = vector.broadcast %99 : vector<1x16xf32> to vector<9x16xf32>
    %102 = arith.addf %100, %101 : vector<9x16xf32>
    %103 = vector.extract_strided_slice %88 {offsets = [0, 0], sizes = [9, 8], strides = [1, 1]} : vector<9x16xf32> to vector<9x8xf32>
    %104 = vector.extract_strided_slice %96 {offsets = [0, 0], sizes = [9, 8], strides = [1, 1]} : vector<9x16xf32> to vector<9x8xf32>
    %105 = vector.extract_strided_slice %97 {offsets = [0, 0], sizes = [9, 8], strides = [1, 1]} : vector<9x16xf32> to vector<9x8xf32>
    "tpu.trace_start"() <{level = 10 : i32, message = "td,sd->ts"}> : () -> ()
    %cst_57 = arith.constant dense<0.000000e+00> : vector<9x9xf32>
    %106 = tpu.matmul %103, %104, %cst_57 {dimension_numbers = #tpu.dot_dimension_numbers<[1], [1], [0], [0], [0, 0, 1, 0], [], []>} : vector<9x8xf32>, vector<9x8xf32>, vector<9x9xf32> -> vector<9x9xf32>
    "tpu.trace_stop"() : () -> ()
    %cst_58 = arith.constant 0.353553385 : f32
    %107 = vector.broadcast %cst_58 : f32 to vector<9x9xf32>
    %108 = arith.mulf %106, %107 : vector<9x9xf32>
    %cst_59 = arith.constant dense<0xFF800000> : vector<9xf32>
    %109 = vector.multi_reduction <maximumf>, %108, %cst_59 [1] : vector<9x9xf32> to vector<9xf32>
    %110 = vector.shape_cast %109 : vector<9xf32> to vector<9x1xf32>
    %111 = vector.broadcast %110 : vector<9x1xf32> to vector<9x9xf32>
    %112 = arith.subf %108, %111 : vector<9x9xf32>
    %113 = math.exp %112 : vector<9x9xf32>
    %cst_60 = arith.constant dense<0.000000e+00> : vector<9xf32>
    %114 = vector.multi_reduction <add>, %113, %cst_60 [1] : vector<9x9xf32> to vector<9xf32>
    %115 = vector.shape_cast %114 : vector<9xf32> to vector<9x1xf32>
    %116 = tpu.reciprocal %115 {approx = true} : vector<9x1xf32> -> vector<9x1xf32>
    %117 = vector.broadcast %116 : vector<9x1xf32> to vector<9x9xf32>
    %118 = arith.mulf %113, %117 : vector<9x9xf32>
    %cst_61 = arith.constant dense<0.000000e+00> : vector<9x8xf32>
    %119 = tpu.matmul %118, %105, %cst_61 {dimension_numbers = #tpu.dot_dimension_numbers<[1], [0], [0], [1], [0, 0, 1, 1], [], []>} : vector<9x9xf32>, vector<9x8xf32>, vector<9x8xf32> -> vector<9x8xf32>
    %c0_62 = arith.constant 0 : index
    %c0_63 = arith.constant 0 : index
    %c0_64 = arith.constant 0 : index
    %120 = vector.load %arg14[%c0_62, %c0_63, %c0_64] : memref<1x16x16xf32, #tpu.memory_space<vmem>>, vector<1x8x16xf32>
    %121 = vector.shape_cast %120 : vector<1x8x16xf32> to vector<8x16xf32>
    %cst_65 = arith.constant dense<0.000000e+00> : vector<9x16xf32>
    %122 = tpu.matmul %119, %121, %cst_65 {dimension_numbers = #tpu.dot_dimension_numbers<[1], [0], [0], [1], [0, 0, 1, 1], [], []>} : vector<9x8xf32>, vector<8x16xf32>, vector<9x16xf32> -> vector<9x16xf32>
    %123 = arith.addf %102, %122 : vector<9x16xf32>
    %124 = vector.extract_strided_slice %88 {offsets = [0, 8], sizes = [9, 8], strides = [1, 1]} : vector<9x16xf32> to vector<9x8xf32>
    %125 = vector.extract_strided_slice %96 {offsets = [0, 8], sizes = [9, 8], strides = [1, 1]} : vector<9x16xf32> to vector<9x8xf32>
    %126 = vector.extract_strided_slice %97 {offsets = [0, 8], sizes = [9, 8], strides = [1, 1]} : vector<9x16xf32> to vector<9x8xf32>
    "tpu.trace_start"() <{level = 10 : i32, message = "td,sd->ts"}> : () -> ()
    %cst_66 = arith.constant dense<0.000000e+00> : vector<9x9xf32>
    %127 = tpu.matmul %124, %125, %cst_66 {dimension_numbers = #tpu.dot_dimension_numbers<[1], [1], [0], [0], [0, 0, 1, 0], [], []>} : vector<9x8xf32>, vector<9x8xf32>, vector<9x9xf32> -> vector<9x9xf32>
    "tpu.trace_stop"() : () -> ()
    %cst_67 = arith.constant 0.353553385 : f32
    %128 = vector.broadcast %cst_67 : f32 to vector<9x9xf32>
    %129 = arith.mulf %127, %128 : vector<9x9xf32>
    %cst_68 = arith.constant dense<0xFF800000> : vector<9xf32>
    %130 = vector.multi_reduction <maximumf>, %129, %cst_68 [1] : vector<9x9xf32> to vector<9xf32>
    %131 = vector.shape_cast %130 : vector<9xf32> to vector<9x1xf32>
    %132 = vector.broadcast %131 : vector<9x1xf32> to vector<9x9xf32>
    %133 = arith.subf %129, %132 : vector<9x9xf32>
    %134 = math.exp %133 : vector<9x9xf32>
    %cst_69 = arith.constant dense<0.000000e+00> : vector<9xf32>
    %135 = vector.multi_reduction <add>, %134, %cst_69 [1] : vector<9x9xf32> to vector<9xf32>
    %136 = vector.shape_cast %135 : vector<9xf32> to vector<9x1xf32>
    %137 = tpu.reciprocal %136 {approx = true} : vector<9x1xf32> -> vector<9x1xf32>
    %138 = vector.broadcast %137 : vector<9x1xf32> to vector<9x9xf32>
    %139 = arith.mulf %134, %138 : vector<9x9xf32>
    %cst_70 = arith.constant dense<0.000000e+00> : vector<9x8xf32>
    %140 = tpu.matmul %139, %126, %cst_70 {dimension_numbers = #tpu.dot_dimension_numbers<[1], [0], [0], [1], [0, 0, 1, 1], [], []>} : vector<9x9xf32>, vector<9x8xf32>, vector<9x8xf32> -> vector<9x8xf32>
    %c0_71 = arith.constant 0 : index
    %c8 = arith.constant 8 : index
    %c0_72 = arith.constant 0 : index
    %141 = vector.load %arg14[%c0_71, %c8, %c0_72] : memref<1x16x16xf32, #tpu.memory_space<vmem>>, vector<1x8x16xf32>
    %142 = vector.shape_cast %141 : vector<1x8x16xf32> to vector<8x16xf32>
    %cst_73 = arith.constant dense<0.000000e+00> : vector<9x16xf32>
    %143 = tpu.matmul %140, %142, %cst_73 {dimension_numbers = #tpu.dot_dimension_numbers<[1], [0], [0], [1], [0, 0, 1, 1], [], []>} : vector<9x8xf32>, vector<8x16xf32>, vector<9x16xf32> -> vector<9x16xf32>
    %144 = arith.addf %123, %143 : vector<9x16xf32>
    %145 = arith.addf %29, %144 : vector<9x16xf32>
    %c0_74 = arith.constant 0 : index
    %c0_75 = arith.constant 0 : index
    %c0_76 = arith.constant 0 : index
    %146 = vector.load %arg16[%c0_74, %c0_75, %c0_76] : memref<1x1x16xf32, #tpu.memory_space<vmem>>, vector<1x1x16xf32>
    %147 = vector.shape_cast %146 : vector<1x1x16xf32> to vector<1x16xf32>
    %c0_77 = arith.constant 0 : index
    %c0_78 = arith.constant 0 : index
    %c0_79 = arith.constant 0 : index
    %148 = vector.load %arg17[%c0_77, %c0_78, %c0_79] : memref<1x1x16xf32, #tpu.memory_space<vmem>>, vector<1x1x16xf32>
    %149 = vector.shape_cast %148 : vector<1x1x16xf32> to vector<1x16xf32>
    %cst_80 = arith.constant dense<0.000000e+00> : vector<9xf32>
    %150 = vector.multi_reduction <add>, %145, %cst_80 [1] : vector<9x16xf32> to vector<9xf32>
    %151 = vector.shape_cast %150 : vector<9xf32> to vector<9x1xf32>
    %cst_81 = arith.constant 1.600000e+01 : f32
    %152 = vector.broadcast %cst_81 : f32 to vector<9x1xf32>
    %153 = arith.divf %151, %152 : vector<9x1xf32>
    %154 = vector.broadcast %153 : vector<9x1xf32> to vector<9x16xf32>
    %155 = arith.subf %145, %154 : vector<9x16xf32>
    %156 = arith.mulf %155, %155 : vector<9x16xf32>
    %cst_82 = arith.constant dense<0.000000e+00> : vector<9xf32>
    %157 = vector.multi_reduction <add>, %156, %cst_82 [1] : vector<9x16xf32> to vector<9xf32>
    %158 = vector.shape_cast %157 : vector<9xf32> to vector<9x1xf32>
    %cst_83 = arith.constant 1.600000e+01 : f32
    %159 = vector.broadcast %cst_83 : f32 to vector<9x1xf32>
    %160 = arith.divf %158, %159 : vector<9x1xf32>
    %161 = vector.broadcast %153 : vector<9x1xf32> to vector<9x16xf32>
    %162 = arith.subf %145, %161 : vector<9x16xf32>
    %cst_84 = arith.constant 9.99999974E-6 : f32
    %163 = vector.broadcast %cst_84 : f32 to vector<9x1xf32>
    %164 = arith.addf %160, %163 : vector<9x1xf32>
    %165 = math.rsqrt %164 : vector<9x1xf32>
    %166 = vector.broadcast %165 : vector<9x1xf32> to vector<9x16xf32>
    %167 = arith.mulf %162, %166 : vector<9x16xf32>
    %168 = vector.broadcast %147 : vector<1x16xf32> to vector<9x16xf32>
    %169 = arith.mulf %167, %168 : vector<9x16xf32>
    %170 = vector.broadcast %149 : vector<1x16xf32> to vector<9x16xf32>
    %171 = arith.addf %169, %170 : vector<9x16xf32>
    %c0_85 = arith.constant 0 : index
    %c0_86 = arith.constant 0 : index
    %c0_87 = arith.constant 0 : index
    %172 = vector.load %arg18[%c0_85, %c0_86, %c0_87] : memref<1x16x32xf32, #tpu.memory_space<vmem>>, vector<1x16x32xf32>
    %173 = vector.shape_cast %172 : vector<1x16x32xf32> to vector<16x32xf32>
    %cst_88 = arith.constant dense<0.000000e+00> : vector<9x32xf32>
    %174 = tpu.matmul %171, %173, %cst_88 {dimension_numbers = #tpu.dot_dimension_numbers<[1], [0], [0], [1], [0, 0, 1, 1], [], []>} : vector<9x16xf32>, vector<16x32xf32>, vector<9x32xf32> -> vector<9x32xf32>
    %c0_89 = arith.constant 0 : index
    %c0_90 = arith.constant 0 : index
    %c0_91 = arith.constant 0 : index
    %175 = vector.load %arg19[%c0_89, %c0_90, %c0_91] : memref<1x1x32xf32, #tpu.memory_space<vmem>>, vector<1x1x32xf32>
    %176 = vector.shape_cast %175 : vector<1x1x32xf32> to vector<1x32xf32>
    %177 = vector.broadcast %176 : vector<1x32xf32> to vector<9x32xf32>
    %178 = arith.addf %174, %177 : vector<9x32xf32>
    %179 = arith.mulf %178, %178 : vector<9x32xf32>
    %180 = arith.mulf %178, %179 : vector<9x32xf32>
    %cst_92 = arith.constant 4.471500e-02 : f32
    %181 = vector.broadcast %cst_92 : f32 to vector<9x32xf32>
    %182 = arith.mulf %181, %180 : vector<9x32xf32>
    %183 = arith.addf %178, %182 : vector<9x32xf32>
    %cst_93 = arith.constant 0.797884583 : f32
    %184 = vector.broadcast %cst_93 : f32 to vector<9x32xf32>
    %185 = arith.mulf %184, %183 : vector<9x32xf32>
    %186 = math.tanh %185 : vector<9x32xf32>
    %cst_94 = arith.constant 1.000000e+00 : f32
    %187 = vector.broadcast %cst_94 : f32 to vector<9x32xf32>
    %188 = arith.addf %187, %186 : vector<9x32xf32>
    %cst_95 = arith.constant 5.000000e-01 : f32
    %189 = vector.broadcast %cst_95 : f32 to vector<9x32xf32>
    %190 = arith.mulf %189, %188 : vector<9x32xf32>
    %191 = arith.mulf %178, %190 : vector<9x32xf32>
    %c0_96 = arith.constant 0 : index
    %c0_97 = arith.constant 0 : index
    %c0_98 = arith.constant 0 : index
    %192 = vector.load %arg20[%c0_96, %c0_97, %c0_98] : memref<1x32x16xf32, #tpu.memory_space<vmem>>, vector<1x32x16xf32>
    %193 = vector.shape_cast %192 : vector<1x32x16xf32> to vector<32x16xf32>
    %cst_99 = arith.constant dense<0.000000e+00> : vector<9x16xf32>
    %194 = tpu.matmul %191, %193, %cst_99 {dimension_numbers = #tpu.dot_dimension_numbers<[1], [0], [0], [1], [0, 0, 1, 1], [], []>} : vector<9x32xf32>, vector<32x16xf32>, vector<9x16xf32> -> vector<9x16xf32>
    %c0_100 = arith.constant 0 : index
    %c0_101 = arith.constant 0 : index
    %c0_102 = arith.constant 0 : index
    %195 = vector.load %arg21[%c0_100, %c0_101, %c0_102] : memref<1x1x16xf32, #tpu.memory_space<vmem>>, vector<1x1x16xf32>
    %196 = vector.shape_cast %195 : vector<1x1x16xf32> to vector<1x16xf32>
    %197 = vector.broadcast %196 : vector<1x16xf32> to vector<9x16xf32>
    %198 = arith.addf %194, %197 : vector<9x16xf32>
    %199 = arith.addf %145, %198 : vector<9x16xf32>
    %c0_103 = arith.constant 0 : index
    %c0_104 = arith.constant 0 : index
    %200 = vector.load %arg22[%c0_103, %c0_104] : memref<1x16xf32, #tpu.memory_space<vmem>>, vector<1x16xf32>
    %c0_105 = arith.constant 0 : index
    %c0_106 = arith.constant 0 : index
    %201 = vector.load %arg23[%c0_105, %c0_106] : memref<1x16xf32, #tpu.memory_space<vmem>>, vector<1x16xf32>
    %cst_107 = arith.constant dense<0.000000e+00> : vector<9xf32>
    %202 = vector.multi_reduction <add>, %199, %cst_107 [1] : vector<9x16xf32> to vector<9xf32>
    %203 = vector.shape_cast %202 : vector<9xf32> to vector<9x1xf32>
    %cst_108 = arith.constant 1.600000e+01 : f32
    %204 = vector.broadcast %cst_108 : f32 to vector<9x1xf32>
    %205 = arith.divf %203, %204 : vector<9x1xf32>
    %206 = vector.broadcast %205 : vector<9x1xf32> to vector<9x16xf32>
    %207 = arith.subf %199, %206 : vector<9x16xf32>
    %208 = arith.mulf %207, %207 : vector<9x16xf32>
    %cst_109 = arith.constant dense<0.000000e+00> : vector<9xf32>
    %209 = vector.multi_reduction <add>, %208, %cst_109 [1] : vector<9x16xf32> to vector<9xf32>
    %210 = vector.shape_cast %209 : vector<9xf32> to vector<9x1xf32>
    %cst_110 = arith.constant 1.600000e+01 : f32
    %211 = vector.broadcast %cst_110 : f32 to vector<9x1xf32>
    %212 = arith.divf %210, %211 : vector<9x1xf32>
    %213 = vector.broadcast %205 : vector<9x1xf32> to vector<9x16xf32>
    %214 = arith.subf %199, %213 : vector<9x16xf32>
    %cst_111 = arith.constant 9.99999974E-6 : f32
    %215 = vector.broadcast %cst_111 : f32 to vector<9x1xf32>
    %216 = arith.addf %212, %215 : vector<9x1xf32>
    %217 = math.rsqrt %216 : vector<9x1xf32>
    %218 = vector.broadcast %217 : vector<9x1xf32> to vector<9x16xf32>
    %219 = arith.mulf %214, %218 : vector<9x16xf32>
    %220 = vector.broadcast %200 : vector<1x16xf32> to vector<9x16xf32>
    %221 = arith.mulf %219, %220 : vector<9x16xf32>
    %222 = vector.broadcast %201 : vector<1x16xf32> to vector<9x16xf32>
    %223 = arith.addf %221, %222 : vector<9x16xf32>
    %c0_112 = arith.constant 0 : index
    %c0_113 = arith.constant 0 : index
    %224 = vector.load %arg24[%c0_112, %c0_113] : memref<16x32xf32, #tpu.memory_space<vmem>>, vector<16x32xf32>
    %cst_114 = arith.constant dense<0.000000e+00> : vector<9x32xf32>
    %225 = tpu.matmul %223, %224, %cst_114 {dimension_numbers = #tpu.dot_dimension_numbers<[1], [0], [0], [1], [0, 0, 1, 1], [], []>} : vector<9x16xf32>, vector<16x32xf32>, vector<9x32xf32> -> vector<9x32xf32>
    %c0_115 = arith.constant 0 : index
    %c0_116 = arith.constant 0 : index
    %226 = vector.load %arg25[%c0_115, %c0_116] : memref<1x32xf32, #tpu.memory_space<vmem>>, vector<1x32xf32>
    %227 = vector.broadcast %226 : vector<1x32xf32> to vector<9x32xf32>
    %228 = arith.addf %225, %227 : vector<9x32xf32>
    %c0_117 = arith.constant 0 : index
    %c0_118 = arith.constant 0 : index
    %c0_119 = arith.constant 0 : index
    %229 = vector.load %arg26[%c0_117, %c0_118, %c0_119] : memref<1x9x32xf32, #tpu.memory_space<vmem>>, vector<1x9x32xf32>
    %230 = vector.shape_cast %229 : vector<1x9x32xf32> to vector<9x32xf32>
    %231 = vector.shape_cast %228 : vector<9x32xf32> to vector<1x9x32xf32>
    tpu.vector_store %arg26[%c0_117, %c0_118, %c0_119], %231 {strides = array<i32>} : memref<1x9x32xf32, #tpu.memory_space<vmem>>, vector<1x9x32xf32>,
    return
  }
  func.func @transform_0(%arg0: i32) -> (i32, i32, i32) {
    %c0_i32 = arith.constant 0 : i32
    %c0_i32_0 = arith.constant 0 : i32
    %c0_i32_1 = arith.constant 0 : i32
    return %arg0, %c0_i32, %c0_i32_0 : i32, i32, i32
  }
  func.func @transform_1(%arg0: i32) -> (i32, i32, i32) {
    %c0_i32 = arith.constant 0 : i32
    %c0_i32_0 = arith.constant 0 : i32
    %c0_i32_1 = arith.constant 0 : i32
    return %arg0, %c0_i32, %c0_i32_0 : i32, i32, i32
  }
  func.func @transform_2(%arg0: i32) -> (i32, i32, i32) {
    %c0_i32 = arith.constant 0 : i32
    %c0_i32_0 = arith.constant 0 : i32
    %c0_i32_1 = arith.constant 0 : i32
    return %arg0, %c0_i32, %c0_i32_0 : i32, i32, i32
  }
  func.func @transform_3(%arg0: i32) -> (i32, i32) {
    %c0_i32 = arith.constant 0 : i32
    %c0_i32_0 = arith.constant 0 : i32
    %c0_i32_1 = arith.constant 0 : i32
    return %c0_i32, %c0_i32_0 : i32, i32
  }
  func.func @transform_4(%arg0: i32) -> (i32, i32) {
    %c0_i32 = arith.constant 0 : i32
    %c0_i32_0 = arith.constant 0 : i32
    %c0_i32_1 = arith.constant 0 : i32
    return %c0_i32, %c0_i32_0 : i32, i32
  }
  func.func @transform_5(%arg0: i32) -> (i32, i32, i32) {
    %c0_i32 = arith.constant 0 : i32
    %c0_i32_0 = arith.constant 0 : i32
    %c0_i32_1 = arith.constant 0 : i32
    %c0_i32_2 = arith.constant 0 : i32
    return %c0_i32, %c0_i32_0, %c0_i32_1 : i32, i32, i32
  }
  func.func @transform_6(%arg0: i32) -> (i32, i32, i32) {
    %c0_i32 = arith.constant 0 : i32
    %c0_i32_0 = arith.constant 0 : i32
    %c0_i32_1 = arith.constant 0 : i32
    %c0_i32_2 = arith.constant 0 : i32
    return %c0_i32, %c0_i32_0, %c0_i32_1 : i32, i32, i32
  }
  func.func @transform_7(%arg0: i32) -> (i32, i32, i32) {
    %c0_i32 = arith.constant 0 : i32
    %c0_i32_0 = arith.constant 0 : i32
    %c0_i32_1 = arith.constant 0 : i32
    %c0_i32_2 = arith.constant 0 : i32
    return %c0_i32, %c0_i32_0, %c0_i32_1 : i32, i32, i32
  }
  func.func @transform_8(%arg0: i32) -> (i32, i32, i32) {
    %c0_i32 = arith.constant 0 : i32
    %c0_i32_0 = arith.constant 0 : i32
    %c0_i32_1 = arith.constant 0 : i32
    %c0_i32_2 = arith.constant 0 : i32
    return %c0_i32, %c0_i32_0, %c0_i32_1 : i32, i32, i32
  }
  func.func @transform_9(%arg0: i32) -> (i32, i32, i32) {
    %c0_i32 = arith.constant 0 : i32
    %c0_i32_0 = arith.constant 0 : i32
    %c0_i32_1 = arith.constant 0 : i32
    %c0_i32_2 = arith.constant 0 : i32
    return %c0_i32, %c0_i32_0, %c0_i32_1 : i32, i32, i32
  }
  func.func @transform_10(%arg0: i32) -> (i32, i32, i32) {
    %c0_i32 = arith.constant 0 : i32
    %c0_i32_0 = arith.constant 0 : i32
    %c0_i32_1 = arith.constant 0 : i32
    %c0_i32_2 = arith.constant 0 : i32
    return %c0_i32, %c0_i32_0, %c0_i32_1 : i32, i32, i32
  }
  func.func @transform_11(%arg0: i32) -> (i32, i32, i32) {
    %c0_i32 = arith.constant 0 : i32
    %c0_i32_0 = arith.constant 0 : i32
    %c0_i32_1 = arith.constant 0 : i32
    %c0_i32_2 = arith.constant 0 : i32
    return %c0_i32, %c0_i32_0, %c0_i32_1 : i32, i32, i32
  }
  func.func @transform_12(%arg0: i32) -> (i32, i32, i32) {
    %c0_i32 = arith.constant 0 : i32
    %c0_i32_0 = arith.constant 0 : i32
    %c0_i32_1 = arith.constant 0 : i32
    %c0_i32_2 = arith.constant 0 : i32
    return %c0_i32, %c0_i32_0, %c0_i32_1 : i32, i32, i32
  }
  func.func @transform_13(%arg0: i32) -> (i32, i32, i32) {
    %c0_i32 = arith.constant 0 : i32
    %c0_i32_0 = arith.constant 0 : i32
    %c0_i32_1 = arith.constant 0 : i32
    %c0_i32_2 = arith.constant 0 : i32
    return %c0_i32, %c0_i32_0, %c0_i32_1 : i32, i32, i32
  }
  func.func @transform_14(%arg0: i32) -> (i32, i32, i32) {
    %c0_i32 = arith.constant 0 : i32
    %c0_i32_0 = arith.constant 0 : i32
    %c0_i32_1 = arith.constant 0 : i32
    %c0_i32_2 = arith.constant 0 : i32
    return %c0_i32, %c0_i32_0, %c0_i32_1 : i32, i32, i32
  }
  func.func @transform_15(%arg0: i32) -> (i32, i32, i32) {
    %c0_i32 = arith.constant 0 : i32
    %c0_i32_0 = arith.constant 0 : i32
    %c0_i32_1 = arith.constant 0 : i32
    %c0_i32_2 = arith.constant 0 : i32
    return %c0_i32, %c0_i32_0, %c0_i32_1 : i32, i32, i32
  }
  func.func @transform_16(%arg0: i32) -> (i32, i32, i32) {
    %c0_i32 = arith.constant 0 : i32
    %c0_i32_0 = arith.constant 0 : i32
    %c0_i32_1 = arith.constant 0 : i32
    %c0_i32_2 = arith.constant 0 : i32
    return %c0_i32, %c0_i32_0, %c0_i32_1 : i32, i32, i32
  }
  func.func @transform_17(%arg0: i32) -> (i32, i32, i32) {
    %c0_i32 = arith.constant 0 : i32
    %c0_i32_0 = arith.constant 0 : i32
    %c0_i32_1 = arith.constant 0 : i32
    %c0_i32_2 = arith.constant 0 : i32
    return %c0_i32, %c0_i32_0, %c0_i32_1 : i32, i32, i32
  }
  func.func @transform_18(%arg0: i32) -> (i32, i32, i32) {
    %c0_i32 = arith.constant 0 : i32
    %c0_i32_0 = arith.constant 0 : i32
    %c0_i32_1 = arith.constant 0 : i32
    %c0_i32_2 = arith.constant 0 : i32
    return %c0_i32, %c0_i32_0, %c0_i32_1 : i32, i32, i32
  }
  func.func @transform_19(%arg0: i32) -> (i32, i32, i32) {
    %c0_i32 = arith.constant 0 : i32
    %c0_i32_0 = arith.constant 0 : i32
    %c0_i32_1 = arith.constant 0 : i32
    %c0_i32_2 = arith.constant 0 : i32
    return %c0_i32, %c0_i32_0, %c0_i32_1 : i32, i32, i32
  }
  func.func @transform_20(%arg0: i32) -> (i32, i32, i32) {
    %c0_i32 = arith.constant 0 : i32
    %c0_i32_0 = arith.constant 0 : i32
    %c0_i32_1 = arith.constant 0 : i32
    %c0_i32_2 = arith.constant 0 : i32
    return %c0_i32, %c0_i32_0, %c0_i32_1 : i32, i32, i32
  }
  func.func @transform_21(%arg0: i32) -> (i32, i32) {
    %c0_i32 = arith.constant 0 : i32
    %c0_i32_0 = arith.constant 0 : i32
    %c0_i32_1 = arith.constant 0 : i32
    return %c0_i32, %c0_i32_0 : i32, i32
  }
  func.func @transform_22(%arg0: i32) -> (i32, i32) {
    %c0_i32 = arith.constant 0 : i32
    %c0_i32_0 = arith.constant 0 : i32
    %c0_i32_1 = arith.constant 0 : i32
    return %c0_i32, %c0_i32_0 : i32, i32
  }
  func.func @transform_23(%arg0: i32) -> (i32, i32) {
    %c0_i32 = arith.constant 0 : i32
    %c0_i32_0 = arith.constant 0 : i32
    %c0_i32_1 = arith.constant 0 : i32
    return %c0_i32, %c0_i32_0 : i32, i32
  }
  func.func @transform_24(%arg0: i32) -> (i32, i32) {
    %c0_i32 = arith.constant 0 : i32
    %c0_i32_0 = arith.constant 0 : i32
    %c0_i32_1 = arith.constant 0 : i32
    return %c0_i32, %c0_i32_0 : i32, i32
  }
  func.func @transform_25(%arg0: i32) -> (i32, i32, i32) {
    %c0_i32 = arith.constant 0 : i32
    %c0_i32_0 = arith.constant 0 : i32
    %c0_i32_1 = arith.constant 0 : i32
    return %arg0, %c0_i32, %c0_i32_0 : i32, i32, i32
  }
}

module attributes {stable_mosaic.version = 11 : i64} {
  func.func @_vit_kernel(%arg0: i32, %arg1: memref<1x9x48xf32, #tpu.memory_space<vmem>>, %arg2: memref<1x9x32xf32, #tpu.memory_space<vmem>>, %arg3: memref<48x32xf32, #tpu.memory_space<vmem>>, %arg4: memref<1x32xf32, #tpu.memory_space<vmem>>, %arg5: memref<2x1x32xf32, #tpu.memory_space<vmem>>, %arg6: memref<2x1x32xf32, #tpu.memory_space<vmem>>, %arg7: memref<2x32x96xf32, #tpu.memory_space<vmem>>, %arg8: memref<2x1x96xf32, #tpu.memory_space<vmem>>, %arg9: memref<2x32x32xf32, #tpu.memory_space<vmem>>, %arg10: memref<2x1x32xf32, #tpu.memory_space<vmem>>, %arg11: memref<2x1x32xf32, #tpu.memory_space<vmem>>, %arg12: memref<2x1x32xf32, #tpu.memory_space<vmem>>, %arg13: memref<2x32x64xf32, #tpu.memory_space<vmem>>, %arg14: memref<2x1x64xf32, #tpu.memory_space<vmem>>, %arg15: memref<2x64x32xf32, #tpu.memory_space<vmem>>, %arg16: memref<2x1x32xf32, #tpu.memory_space<vmem>>, %arg17: memref<1x32xf32, #tpu.memory_space<vmem>>, %arg18: memref<1x32xf32, #tpu.memory_space<vmem>>, %arg19: memref<32x32xf32, #tpu.memory_space<vmem>>, %arg20: memref<1x32xf32, #tpu.memory_space<vmem>>, %arg21: memref<1x32xf32, #tpu.memory_space<vmem>>, %arg22: memref<1x9x32xf32, #tpu.memory_space<vmem>>) attributes {dimension_semantics = [#tpu.dimension_semantics<parallel>], iteration_bounds = array<i64: 2>, scalar_prefetch = 0 : i64, scratch_operands = 0 : i64, tpu.core_type = #tpu.core_type<tc>, window_params = [{transform_indices = @transform_0, window_bounds = array<i64: 1, 9, 48>}, {transform_indices = @transform_1, window_bounds = array<i64: 1, 9, 32>}, {pipeline_mode = #tpu.pipeline_mode<synchronous>, transform_indices = @transform_2, window_bounds = array<i64: 48, 32>}, {pipeline_mode = #tpu.pipeline_mode<synchronous>, transform_indices = @transform_3, window_bounds = array<i64: 1, 32>}, {pipeline_mode = #tpu.pipeline_mode<synchronous>, transform_indices = @transform_4, window_bounds = array<i64: 2, 1, 32>}, {pipeline_mode = #tpu.pipeline_mode<synchronous>, transform_indices = @transform_5, window_bounds = array<i64: 2, 1, 32>}, {pipeline_mode = #tpu.pipeline_mode<synchronous>, transform_indices = @transform_6, window_bounds = array<i64: 2, 32, 96>}, {pipeline_mode = #tpu.pipeline_mode<synchronous>, transform_indices = @transform_7, window_bounds = array<i64: 2, 1, 96>}, {pipeline_mode = #tpu.pipeline_mode<synchronous>, transform_indices = @transform_8, window_bounds = array<i64: 2, 32, 32>}, {pipeline_mode = #tpu.pipeline_mode<synchronous>, transform_indices = @transform_9, window_bounds = array<i64: 2, 1, 32>}, {pipeline_mode = #tpu.pipeline_mode<synchronous>, transform_indices = @transform_10, window_bounds = array<i64: 2, 1, 32>}, {pipeline_mode = #tpu.pipeline_mode<synchronous>, transform_indices = @transform_11, window_bounds = array<i64: 2, 1, 32>}, {pipeline_mode = #tpu.pipeline_mode<synchronous>, transform_indices = @transform_12, window_bounds = array<i64: 2, 32, 64>}, {pipeline_mode = #tpu.pipeline_mode<synchronous>, transform_indices = @transform_13, window_bounds = array<i64: 2, 1, 64>}, {pipeline_mode = #tpu.pipeline_mode<synchronous>, transform_indices = @transform_14, window_bounds = array<i64: 2, 64, 32>}, {pipeline_mode = #tpu.pipeline_mode<synchronous>, transform_indices = @transform_15, window_bounds = array<i64: 2, 1, 32>}, {pipeline_mode = #tpu.pipeline_mode<synchronous>, transform_indices = @transform_16, window_bounds = array<i64: 1, 32>}, {pipeline_mode = #tpu.pipeline_mode<synchronous>, transform_indices = @transform_17, window_bounds = array<i64: 1, 32>}, {pipeline_mode = #tpu.pipeline_mode<synchronous>, transform_indices = @transform_18, window_bounds = array<i64: 32, 32>}, {pipeline_mode = #tpu.pipeline_mode<synchronous>, transform_indices = @transform_19, window_bounds = array<i64: 1, 32>}, {pipeline_mode = #tpu.pipeline_mode<synchronous>, transform_indices = @transform_20, window_bounds = array<i64: 1, 32>}, {transform_indices = @transform_21, window_bounds = array<i64: 1, 9, 32>}]} {
    %c0 = arith.constant 0 : index
    %c0_0 = arith.constant 0 : index
    %c0_1 = arith.constant 0 : index
    %0 = vector.load %arg1[%c0, %c0_0, %c0_1] : memref<1x9x48xf32, #tpu.memory_space<vmem>>, vector<1x9x48xf32>
    %1 = vector.shape_cast %0 : vector<1x9x48xf32> to vector<9x48xf32>
    %c0_2 = arith.constant 0 : index
    %c0_3 = arith.constant 0 : index
    %2 = vector.load %arg3[%c0_2, %c0_3] : memref<48x32xf32, #tpu.memory_space<vmem>>, vector<48x32xf32>
    %cst = arith.constant dense<0.000000e+00> : vector<9x32xf32>
    %3 = tpu.matmul %1, %2, %cst {dimension_numbers = #tpu.dot_dimension_numbers<[1], [0], [0], [1], [0, 0, 1, 1], [], []>} : vector<9x48xf32>, vector<48x32xf32>, vector<9x32xf32> -> vector<9x32xf32>
    %c0_4 = arith.constant 0 : index
    %c0_5 = arith.constant 0 : index
    %4 = vector.load %arg4[%c0_4, %c0_5] : memref<1x32xf32, #tpu.memory_space<vmem>>, vector<1x32xf32>
    %5 = vector.broadcast %4 : vector<1x32xf32> to vector<9x32xf32>
    %6 = arith.addf %3, %5 : vector<9x32xf32>
    %c0_6 = arith.constant 0 : index
    %c0_7 = arith.constant 0 : index
    %c0_8 = arith.constant 0 : index
    %7 = vector.load %arg2[%c0_6, %c0_7, %c0_8] : memref<1x9x32xf32, #tpu.memory_space<vmem>>, vector<1x9x32xf32>
    %8 = vector.shape_cast %7 : vector<1x9x32xf32> to vector<9x32xf32>
    %9 = arith.addf %6, %8 : vector<9x32xf32>
    %c0_9 = arith.constant 0 : index
    %c0_10 = arith.constant 0 : index
    %c0_11 = arith.constant 0 : index
    %10 = vector.load %arg5[%c0_9, %c0_10, %c0_11] : memref<2x1x32xf32, #tpu.memory_space<vmem>>, vector<1x1x32xf32>
    %11 = vector.shape_cast %10 : vector<1x1x32xf32> to vector<1x32xf32>
    %c0_12 = arith.constant 0 : index
    %c0_13 = arith.constant 0 : index
    %c0_14 = arith.constant 0 : index
    %12 = vector.load %arg6[%c0_12, %c0_13, %c0_14] : memref<2x1x32xf32, #tpu.memory_space<vmem>>, vector<1x1x32xf32>
    %13 = vector.shape_cast %12 : vector<1x1x32xf32> to vector<1x32xf32>
    %cst_15 = arith.constant dense<0.000000e+00> : vector<9xf32>
    %14 = vector.multi_reduction <add>, %9, %cst_15 [1] : vector<9x32xf32> to vector<9xf32>
    %15 = vector.shape_cast %14 : vector<9xf32> to vector<9x1xf32>
    %cst_16 = arith.constant 3.200000e+01 : f32
    %16 = vector.broadcast %cst_16 : f32 to vector<9x1xf32>
    %17 = arith.divf %15, %16 : vector<9x1xf32>
    %18 = vector.broadcast %17 : vector<9x1xf32> to vector<9x32xf32>
    %19 = arith.subf %9, %18 : vector<9x32xf32>
    %20 = arith.mulf %19, %19 : vector<9x32xf32>
    %cst_17 = arith.constant dense<0.000000e+00> : vector<9xf32>
    %21 = vector.multi_reduction <add>, %20, %cst_17 [1] : vector<9x32xf32> to vector<9xf32>
    %22 = vector.shape_cast %21 : vector<9xf32> to vector<9x1xf32>
    %cst_18 = arith.constant 3.200000e+01 : f32
    %23 = vector.broadcast %cst_18 : f32 to vector<9x1xf32>
    %24 = arith.divf %22, %23 : vector<9x1xf32>
    %25 = vector.broadcast %17 : vector<9x1xf32> to vector<9x32xf32>
    %26 = arith.subf %9, %25 : vector<9x32xf32>
    %cst_19 = arith.constant 9.99999974E-6 : f32
    %27 = vector.broadcast %cst_19 : f32 to vector<9x1xf32>
    %28 = arith.addf %24, %27 : vector<9x1xf32>
    %29 = math.rsqrt %28 : vector<9x1xf32>
    %30 = vector.broadcast %29 : vector<9x1xf32> to vector<9x32xf32>
    %31 = arith.mulf %26, %30 : vector<9x32xf32>
    %32 = vector.broadcast %11 : vector<1x32xf32> to vector<9x32xf32>
    %33 = arith.mulf %31, %32 : vector<9x32xf32>
    %34 = vector.broadcast %13 : vector<1x32xf32> to vector<9x32xf32>
    %35 = arith.addf %33, %34 : vector<9x32xf32>
    %c0_20 = arith.constant 0 : index
    %c0_21 = arith.constant 0 : index
    %c0_22 = arith.constant 0 : index
    %36 = vector.load %arg7[%c0_20, %c0_21, %c0_22] : memref<2x32x96xf32, #tpu.memory_space<vmem>>, vector<1x32x96xf32>
    %37 = vector.shape_cast %36 : vector<1x32x96xf32> to vector<32x96xf32>
    %cst_23 = arith.constant dense<0.000000e+00> : vector<9x96xf32>
    %38 = tpu.matmul %35, %37, %cst_23 {dimension_numbers = #tpu.dot_dimension_numbers<[1], [0], [0], [1], [0, 0, 1, 1], [], []>} : vector<9x32xf32>, vector<32x96xf32>, vector<9x96xf32> -> vector<9x96xf32>
    %c0_24 = arith.constant 0 : index
    %c0_25 = arith.constant 0 : index
    %c0_26 = arith.constant 0 : index
    %39 = vector.load %arg8[%c0_24, %c0_25, %c0_26] : memref<2x1x96xf32, #tpu.memory_space<vmem>>, vector<1x1x96xf32>
    %40 = vector.shape_cast %39 : vector<1x1x96xf32> to vector<1x96xf32>
    %41 = vector.broadcast %40 : vector<1x96xf32> to vector<9x96xf32>
    %42 = arith.addf %38, %41 : vector<9x96xf32>
    %43 = vector.extract_strided_slice %42 {offsets = [0, 0], sizes = [9, 32], strides = [1, 1]} : vector<9x96xf32> to vector<9x32xf32>
    %44 = vector.extract_strided_slice %42 {offsets = [0, 32], sizes = [9, 32], strides = [1, 1]} : vector<9x96xf32> to vector<9x32xf32>
    %45 = vector.extract_strided_slice %42 {offsets = [0, 64], sizes = [9, 32], strides = [1, 1]} : vector<9x96xf32> to vector<9x32xf32>
    %c0_27 = arith.constant 0 : index
    %c0_28 = arith.constant 0 : index
    %c0_29 = arith.constant 0 : index
    %46 = vector.load %arg10[%c0_27, %c0_28, %c0_29] : memref<2x1x32xf32, #tpu.memory_space<vmem>>, vector<1x1x32xf32>
    %47 = vector.shape_cast %46 : vector<1x1x32xf32> to vector<1x32xf32>
    %cst_30 = arith.constant 0.000000e+00 : f32
    %48 = vector.broadcast %cst_30 : f32 to vector<9x32xf32>
    %49 = vector.broadcast %47 : vector<1x32xf32> to vector<9x32xf32>
    %50 = arith.addf %48, %49 : vector<9x32xf32>
    %51 = vector.extract_strided_slice %43 {offsets = [0, 0], sizes = [9, 8], strides = [1, 1]} : vector<9x32xf32> to vector<9x8xf32>
    %52 = vector.extract_strided_slice %44 {offsets = [0, 0], sizes = [9, 8], strides = [1, 1]} : vector<9x32xf32> to vector<9x8xf32>
    %53 = vector.extract_strided_slice %45 {offsets = [0, 0], sizes = [9, 8], strides = [1, 1]} : vector<9x32xf32> to vector<9x8xf32>
    "tpu.trace_start"() <{level = 10 : i32, message = "td,sd->ts"}> : () -> ()
    %cst_31 = arith.constant dense<0.000000e+00> : vector<9x9xf32>
    %54 = tpu.matmul %51, %52, %cst_31 {dimension_numbers = #tpu.dot_dimension_numbers<[1], [1], [0], [0], [0, 0, 1, 0], [], []>} : vector<9x8xf32>, vector<9x8xf32>, vector<9x9xf32> -> vector<9x9xf32>
    "tpu.trace_stop"() : () -> ()
    %cst_32 = arith.constant 0.353553385 : f32
    %55 = vector.broadcast %cst_32 : f32 to vector<9x9xf32>
    %56 = arith.mulf %54, %55 : vector<9x9xf32>
    %cst_33 = arith.constant dense<0xFF800000> : vector<9xf32>
    %57 = vector.multi_reduction <maximumf>, %56, %cst_33 [1] : vector<9x9xf32> to vector<9xf32>
    %58 = vector.shape_cast %57 : vector<9xf32> to vector<9x1xf32>
    %59 = vector.broadcast %58 : vector<9x1xf32> to vector<9x9xf32>
    %60 = arith.subf %56, %59 : vector<9x9xf32>
    %61 = math.exp %60 : vector<9x9xf32>
    %cst_34 = arith.constant dense<0.000000e+00> : vector<9xf32>
    %62 = vector.multi_reduction <add>, %61, %cst_34 [1] : vector<9x9xf32> to vector<9xf32>
    %63 = vector.shape_cast %62 : vector<9xf32> to vector<9x1xf32>
    %64 = tpu.reciprocal %63 {approx = true} : vector<9x1xf32> -> vector<9x1xf32>
    %65 = vector.broadcast %64 : vector<9x1xf32> to vector<9x9xf32>
    %66 = arith.mulf %61, %65 : vector<9x9xf32>
    %cst_35 = arith.constant dense<0.000000e+00> : vector<9x8xf32>
    %67 = tpu.matmul %66, %53, %cst_35 {dimension_numbers = #tpu.dot_dimension_numbers<[1], [0], [0], [1], [0, 0, 1, 1], [], []>} : vector<9x9xf32>, vector<9x8xf32>, vector<9x8xf32> -> vector<9x8xf32>
    %c0_36 = arith.constant 0 : index
    %c0_37 = arith.constant 0 : index
    %c0_38 = arith.constant 0 : index
    %68 = vector.load %arg9[%c0_36, %c0_37, %c0_38] : memref<2x32x32xf32, #tpu.memory_space<vmem>>, vector<1x8x32xf32>
    %69 = vector.shape_cast %68 : vector<1x8x32xf32> to vector<8x32xf32>
    %cst_39 = arith.constant dense<0.000000e+00> : vector<9x32xf32>
    %70 = tpu.matmul %67, %69, %cst_39 {dimension_numbers = #tpu.dot_dimension_numbers<[1], [0], [0], [1], [0, 0, 1, 1], [], []>} : vector<9x8xf32>, vector<8x32xf32>, vector<9x32xf32> -> vector<9x32xf32>
    %71 = arith.addf %50, %70 : vector<9x32xf32>
    %72 = vector.extract_strided_slice %43 {offsets = [0, 8], sizes = [9, 8], strides = [1, 1]} : vector<9x32xf32> to vector<9x8xf32>
    %73 = vector.extract_strided_slice %44 {offsets = [0, 8], sizes = [9, 8], strides = [1, 1]} : vector<9x32xf32> to vector<9x8xf32>
    %74 = vector.extract_strided_slice %45 {offsets = [0, 8], sizes = [9, 8], strides = [1, 1]} : vector<9x32xf32> to vector<9x8xf32>
    "tpu.trace_start"() <{level = 10 : i32, message = "td,sd->ts"}> : () -> ()
    %cst_40 = arith.constant dense<0.000000e+00> : vector<9x9xf32>
    %75 = tpu.matmul %72, %73, %cst_40 {dimension_numbers = #tpu.dot_dimension_numbers<[1], [1], [0], [0], [0, 0, 1, 0], [], []>} : vector<9x8xf32>, vector<9x8xf32>, vector<9x9xf32> -> vector<9x9xf32>
    "tpu.trace_stop"() : () -> ()
    %cst_41 = arith.constant 0.353553385 : f32
    %76 = vector.broadcast %cst_41 : f32 to vector<9x9xf32>
    %77 = arith.mulf %75, %76 : vector<9x9xf32>
    %cst_42 = arith.constant dense<0xFF800000> : vector<9xf32>
    %78 = vector.multi_reduction <maximumf>, %77, %cst_42 [1] : vector<9x9xf32> to vector<9xf32>
    %79 = vector.shape_cast %78 : vector<9xf32> to vector<9x1xf32>
    %80 = vector.broadcast %79 : vector<9x1xf32> to vector<9x9xf32>
    %81 = arith.subf %77, %80 : vector<9x9xf32>
    %82 = math.exp %81 : vector<9x9xf32>
    %cst_43 = arith.constant dense<0.000000e+00> : vector<9xf32>
    %83 = vector.multi_reduction <add>, %82, %cst_43 [1] : vector<9x9xf32> to vector<9xf32>
    %84 = vector.shape_cast %83 : vector<9xf32> to vector<9x1xf32>
    %85 = tpu.reciprocal %84 {approx = true} : vector<9x1xf32> -> vector<9x1xf32>
    %86 = vector.broadcast %85 : vector<9x1xf32> to vector<9x9xf32>
    %87 = arith.mulf %82, %86 : vector<9x9xf32>
    %cst_44 = arith.constant dense<0.000000e+00> : vector<9x8xf32>
    %88 = tpu.matmul %87, %74, %cst_44 {dimension_numbers = #tpu.dot_dimension_numbers<[1], [0], [0], [1], [0, 0, 1, 1], [], []>} : vector<9x9xf32>, vector<9x8xf32>, vector<9x8xf32> -> vector<9x8xf32>
    %c0_45 = arith.constant 0 : index
    %c8 = arith.constant 8 : index
    %c0_46 = arith.constant 0 : index
    %89 = vector.load %arg9[%c0_45, %c8, %c0_46] : memref<2x32x32xf32, #tpu.memory_space<vmem>>, vector<1x8x32xf32>
    %90 = vector.shape_cast %89 : vector<1x8x32xf32> to vector<8x32xf32>
    %cst_47 = arith.constant dense<0.000000e+00> : vector<9x32xf32>
    %91 = tpu.matmul %88, %90, %cst_47 {dimension_numbers = #tpu.dot_dimension_numbers<[1], [0], [0], [1], [0, 0, 1, 1], [], []>} : vector<9x8xf32>, vector<8x32xf32>, vector<9x32xf32> -> vector<9x32xf32>
    %92 = arith.addf %71, %91 : vector<9x32xf32>
    %93 = vector.extract_strided_slice %43 {offsets = [0, 16], sizes = [9, 8], strides = [1, 1]} : vector<9x32xf32> to vector<9x8xf32>
    %94 = vector.extract_strided_slice %44 {offsets = [0, 16], sizes = [9, 8], strides = [1, 1]} : vector<9x32xf32> to vector<9x8xf32>
    %95 = vector.extract_strided_slice %45 {offsets = [0, 16], sizes = [9, 8], strides = [1, 1]} : vector<9x32xf32> to vector<9x8xf32>
    "tpu.trace_start"() <{level = 10 : i32, message = "td,sd->ts"}> : () -> ()
    %cst_48 = arith.constant dense<0.000000e+00> : vector<9x9xf32>
    %96 = tpu.matmul %93, %94, %cst_48 {dimension_numbers = #tpu.dot_dimension_numbers<[1], [1], [0], [0], [0, 0, 1, 0], [], []>} : vector<9x8xf32>, vector<9x8xf32>, vector<9x9xf32> -> vector<9x9xf32>
    "tpu.trace_stop"() : () -> ()
    %cst_49 = arith.constant 0.353553385 : f32
    %97 = vector.broadcast %cst_49 : f32 to vector<9x9xf32>
    %98 = arith.mulf %96, %97 : vector<9x9xf32>
    %cst_50 = arith.constant dense<0xFF800000> : vector<9xf32>
    %99 = vector.multi_reduction <maximumf>, %98, %cst_50 [1] : vector<9x9xf32> to vector<9xf32>
    %100 = vector.shape_cast %99 : vector<9xf32> to vector<9x1xf32>
    %101 = vector.broadcast %100 : vector<9x1xf32> to vector<9x9xf32>
    %102 = arith.subf %98, %101 : vector<9x9xf32>
    %103 = math.exp %102 : vector<9x9xf32>
    %cst_51 = arith.constant dense<0.000000e+00> : vector<9xf32>
    %104 = vector.multi_reduction <add>, %103, %cst_51 [1] : vector<9x9xf32> to vector<9xf32>
    %105 = vector.shape_cast %104 : vector<9xf32> to vector<9x1xf32>
    %106 = tpu.reciprocal %105 {approx = true} : vector<9x1xf32> -> vector<9x1xf32>
    %107 = vector.broadcast %106 : vector<9x1xf32> to vector<9x9xf32>
    %108 = arith.mulf %103, %107 : vector<9x9xf32>
    %cst_52 = arith.constant dense<0.000000e+00> : vector<9x8xf32>
    %109 = tpu.matmul %108, %95, %cst_52 {dimension_numbers = #tpu.dot_dimension_numbers<[1], [0], [0], [1], [0, 0, 1, 1], [], []>} : vector<9x9xf32>, vector<9x8xf32>, vector<9x8xf32> -> vector<9x8xf32>
    %c0_53 = arith.constant 0 : index
    %c16 = arith.constant 16 : index
    %c0_54 = arith.constant 0 : index
    %110 = vector.load %arg9[%c0_53, %c16, %c0_54] : memref<2x32x32xf32, #tpu.memory_space<vmem>>, vector<1x8x32xf32>
    %111 = vector.shape_cast %110 : vector<1x8x32xf32> to vector<8x32xf32>
    %cst_55 = arith.constant dense<0.000000e+00> : vector<9x32xf32>
    %112 = tpu.matmul %109, %111, %cst_55 {dimension_numbers = #tpu.dot_dimension_numbers<[1], [0], [0], [1], [0, 0, 1, 1], [], []>} : vector<9x8xf32>, vector<8x32xf32>, vector<9x32xf32> -> vector<9x32xf32>
    %113 = arith.addf %92, %112 : vector<9x32xf32>
    %114 = vector.extract_strided_slice %43 {offsets = [0, 24], sizes = [9, 8], strides = [1, 1]} : vector<9x32xf32> to vector<9x8xf32>
    %115 = vector.extract_strided_slice %44 {offsets = [0, 24], sizes = [9, 8], strides = [1, 1]} : vector<9x32xf32> to vector<9x8xf32>
    %116 = vector.extract_strided_slice %45 {offsets = [0, 24], sizes = [9, 8], strides = [1, 1]} : vector<9x32xf32> to vector<9x8xf32>
    "tpu.trace_start"() <{level = 10 : i32, message = "td,sd->ts"}> : () -> ()
    %cst_56 = arith.constant dense<0.000000e+00> : vector<9x9xf32>
    %117 = tpu.matmul %114, %115, %cst_56 {dimension_numbers = #tpu.dot_dimension_numbers<[1], [1], [0], [0], [0, 0, 1, 0], [], []>} : vector<9x8xf32>, vector<9x8xf32>, vector<9x9xf32> -> vector<9x9xf32>
    "tpu.trace_stop"() : () -> ()
    %cst_57 = arith.constant 0.353553385 : f32
    %118 = vector.broadcast %cst_57 : f32 to vector<9x9xf32>
    %119 = arith.mulf %117, %118 : vector<9x9xf32>
    %cst_58 = arith.constant dense<0xFF800000> : vector<9xf32>
    %120 = vector.multi_reduction <maximumf>, %119, %cst_58 [1] : vector<9x9xf32> to vector<9xf32>
    %121 = vector.shape_cast %120 : vector<9xf32> to vector<9x1xf32>
    %122 = vector.broadcast %121 : vector<9x1xf32> to vector<9x9xf32>
    %123 = arith.subf %119, %122 : vector<9x9xf32>
    %124 = math.exp %123 : vector<9x9xf32>
    %cst_59 = arith.constant dense<0.000000e+00> : vector<9xf32>
    %125 = vector.multi_reduction <add>, %124, %cst_59 [1] : vector<9x9xf32> to vector<9xf32>
    %126 = vector.shape_cast %125 : vector<9xf32> to vector<9x1xf32>
    %127 = tpu.reciprocal %126 {approx = true} : vector<9x1xf32> -> vector<9x1xf32>
    %128 = vector.broadcast %127 : vector<9x1xf32> to vector<9x9xf32>
    %129 = arith.mulf %124, %128 : vector<9x9xf32>
    %cst_60 = arith.constant dense<0.000000e+00> : vector<9x8xf32>
    %130 = tpu.matmul %129, %116, %cst_60 {dimension_numbers = #tpu.dot_dimension_numbers<[1], [0], [0], [1], [0, 0, 1, 1], [], []>} : vector<9x9xf32>, vector<9x8xf32>, vector<9x8xf32> -> vector<9x8xf32>
    %c0_61 = arith.constant 0 : index
    %c24 = arith.constant 24 : index
    %c0_62 = arith.constant 0 : index
    %131 = vector.load %arg9[%c0_61, %c24, %c0_62] : memref<2x32x32xf32, #tpu.memory_space<vmem>>, vector<1x8x32xf32>
    %132 = vector.shape_cast %131 : vector<1x8x32xf32> to vector<8x32xf32>
    %cst_63 = arith.constant dense<0.000000e+00> : vector<9x32xf32>
    %133 = tpu.matmul %130, %132, %cst_63 {dimension_numbers = #tpu.dot_dimension_numbers<[1], [0], [0], [1], [0, 0, 1, 1], [], []>} : vector<9x8xf32>, vector<8x32xf32>, vector<9x32xf32> -> vector<9x32xf32>
    %134 = arith.addf %113, %133 : vector<9x32xf32>
    %135 = arith.addf %9, %134 : vector<9x32xf32>
    %c0_64 = arith.constant 0 : index
    %c0_65 = arith.constant 0 : index
    %c0_66 = arith.constant 0 : index
    %136 = vector.load %arg11[%c0_64, %c0_65, %c0_66] : memref<2x1x32xf32, #tpu.memory_space<vmem>>, vector<1x1x32xf32>
    %137 = vector.shape_cast %136 : vector<1x1x32xf32> to vector<1x32xf32>
    %c0_67 = arith.constant 0 : index
    %c0_68 = arith.constant 0 : index
    %c0_69 = arith.constant 0 : index
    %138 = vector.load %arg12[%c0_67, %c0_68, %c0_69] : memref<2x1x32xf32, #tpu.memory_space<vmem>>, vector<1x1x32xf32>
    %139 = vector.shape_cast %138 : vector<1x1x32xf32> to vector<1x32xf32>
    %cst_70 = arith.constant dense<0.000000e+00> : vector<9xf32>
    %140 = vector.multi_reduction <add>, %135, %cst_70 [1] : vector<9x32xf32> to vector<9xf32>
    %141 = vector.shape_cast %140 : vector<9xf32> to vector<9x1xf32>
    %cst_71 = arith.constant 3.200000e+01 : f32
    %142 = vector.broadcast %cst_71 : f32 to vector<9x1xf32>
    %143 = arith.divf %141, %142 : vector<9x1xf32>
    %144 = vector.broadcast %143 : vector<9x1xf32> to vector<9x32xf32>
    %145 = arith.subf %135, %144 : vector<9x32xf32>
    %146 = arith.mulf %145, %145 : vector<9x32xf32>
    %cst_72 = arith.constant dense<0.000000e+00> : vector<9xf32>
    %147 = vector.multi_reduction <add>, %146, %cst_72 [1] : vector<9x32xf32> to vector<9xf32>
    %148 = vector.shape_cast %147 : vector<9xf32> to vector<9x1xf32>
    %cst_73 = arith.constant 3.200000e+01 : f32
    %149 = vector.broadcast %cst_73 : f32 to vector<9x1xf32>
    %150 = arith.divf %148, %149 : vector<9x1xf32>
    %151 = vector.broadcast %143 : vector<9x1xf32> to vector<9x32xf32>
    %152 = arith.subf %135, %151 : vector<9x32xf32>
    %cst_74 = arith.constant 9.99999974E-6 : f32
    %153 = vector.broadcast %cst_74 : f32 to vector<9x1xf32>
    %154 = arith.addf %150, %153 : vector<9x1xf32>
    %155 = math.rsqrt %154 : vector<9x1xf32>
    %156 = vector.broadcast %155 : vector<9x1xf32> to vector<9x32xf32>
    %157 = arith.mulf %152, %156 : vector<9x32xf32>
    %158 = vector.broadcast %137 : vector<1x32xf32> to vector<9x32xf32>
    %159 = arith.mulf %157, %158 : vector<9x32xf32>
    %160 = vector.broadcast %139 : vector<1x32xf32> to vector<9x32xf32>
    %161 = arith.addf %159, %160 : vector<9x32xf32>
    %c0_75 = arith.constant 0 : index
    %c0_76 = arith.constant 0 : index
    %c0_77 = arith.constant 0 : index
    %162 = vector.load %arg13[%c0_75, %c0_76, %c0_77] : memref<2x32x64xf32, #tpu.memory_space<vmem>>, vector<1x32x64xf32>
    %163 = vector.shape_cast %162 : vector<1x32x64xf32> to vector<32x64xf32>
    %cst_78 = arith.constant dense<0.000000e+00> : vector<9x64xf32>
    %164 = tpu.matmul %161, %163, %cst_78 {dimension_numbers = #tpu.dot_dimension_numbers<[1], [0], [0], [1], [0, 0, 1, 1], [], []>} : vector<9x32xf32>, vector<32x64xf32>, vector<9x64xf32> -> vector<9x64xf32>
    %c0_79 = arith.constant 0 : index
    %c0_80 = arith.constant 0 : index
    %c0_81 = arith.constant 0 : index
    %165 = vector.load %arg14[%c0_79, %c0_80, %c0_81] : memref<2x1x64xf32, #tpu.memory_space<vmem>>, vector<1x1x64xf32>
    %166 = vector.shape_cast %165 : vector<1x1x64xf32> to vector<1x64xf32>
    %167 = vector.broadcast %166 : vector<1x64xf32> to vector<9x64xf32>
    %168 = arith.addf %164, %167 : vector<9x64xf32>
    %169 = arith.mulf %168, %168 : vector<9x64xf32>
    %170 = arith.mulf %168, %169 : vector<9x64xf32>
    %cst_82 = arith.constant 4.471500e-02 : f32
    %171 = vector.broadcast %cst_82 : f32 to vector<9x64xf32>
    %172 = arith.mulf %171, %170 : vector<9x64xf32>
    %173 = arith.addf %168, %172 : vector<9x64xf32>
    %cst_83 = arith.constant 0.797884583 : f32
    %174 = vector.broadcast %cst_83 : f32 to vector<9x64xf32>
    %175 = arith.mulf %174, %173 : vector<9x64xf32>
    %176 = math.tanh %175 : vector<9x64xf32>
    %cst_84 = arith.constant 1.000000e+00 : f32
    %177 = vector.broadcast %cst_84 : f32 to vector<9x64xf32>
    %178 = arith.addf %177, %176 : vector<9x64xf32>
    %cst_85 = arith.constant 5.000000e-01 : f32
    %179 = vector.broadcast %cst_85 : f32 to vector<9x64xf32>
    %180 = arith.mulf %179, %178 : vector<9x64xf32>
    %181 = arith.mulf %168, %180 : vector<9x64xf32>
    %c0_86 = arith.constant 0 : index
    %c0_87 = arith.constant 0 : index
    %c0_88 = arith.constant 0 : index
    %182 = vector.load %arg15[%c0_86, %c0_87, %c0_88] : memref<2x64x32xf32, #tpu.memory_space<vmem>>, vector<1x64x32xf32>
    %183 = vector.shape_cast %182 : vector<1x64x32xf32> to vector<64x32xf32>
    %cst_89 = arith.constant dense<0.000000e+00> : vector<9x32xf32>
    %184 = tpu.matmul %181, %183, %cst_89 {dimension_numbers = #tpu.dot_dimension_numbers<[1], [0], [0], [1], [0, 0, 1, 1], [], []>} : vector<9x64xf32>, vector<64x32xf32>, vector<9x32xf32> -> vector<9x32xf32>
    %c0_90 = arith.constant 0 : index
    %c0_91 = arith.constant 0 : index
    %c0_92 = arith.constant 0 : index
    %185 = vector.load %arg16[%c0_90, %c0_91, %c0_92] : memref<2x1x32xf32, #tpu.memory_space<vmem>>, vector<1x1x32xf32>
    %186 = vector.shape_cast %185 : vector<1x1x32xf32> to vector<1x32xf32>
    %187 = vector.broadcast %186 : vector<1x32xf32> to vector<9x32xf32>
    %188 = arith.addf %184, %187 : vector<9x32xf32>
    %189 = arith.addf %135, %188 : vector<9x32xf32>
    %c1 = arith.constant 1 : index
    %c0_93 = arith.constant 0 : index
    %c0_94 = arith.constant 0 : index
    %190 = vector.load %arg5[%c1, %c0_93, %c0_94] : memref<2x1x32xf32, #tpu.memory_space<vmem>>, vector<1x1x32xf32>
    %191 = vector.shape_cast %190 : vector<1x1x32xf32> to vector<1x32xf32>
    %c1_95 = arith.constant 1 : index
    %c0_96 = arith.constant 0 : index
    %c0_97 = arith.constant 0 : index
    %192 = vector.load %arg6[%c1_95, %c0_96, %c0_97] : memref<2x1x32xf32, #tpu.memory_space<vmem>>, vector<1x1x32xf32>
    %193 = vector.shape_cast %192 : vector<1x1x32xf32> to vector<1x32xf32>
    %cst_98 = arith.constant dense<0.000000e+00> : vector<9xf32>
    %194 = vector.multi_reduction <add>, %189, %cst_98 [1] : vector<9x32xf32> to vector<9xf32>
    %195 = vector.shape_cast %194 : vector<9xf32> to vector<9x1xf32>
    %cst_99 = arith.constant 3.200000e+01 : f32
    %196 = vector.broadcast %cst_99 : f32 to vector<9x1xf32>
    %197 = arith.divf %195, %196 : vector<9x1xf32>
    %198 = vector.broadcast %197 : vector<9x1xf32> to vector<9x32xf32>
    %199 = arith.subf %189, %198 : vector<9x32xf32>
    %200 = arith.mulf %199, %199 : vector<9x32xf32>
    %cst_100 = arith.constant dense<0.000000e+00> : vector<9xf32>
    %201 = vector.multi_reduction <add>, %200, %cst_100 [1] : vector<9x32xf32> to vector<9xf32>
    %202 = vector.shape_cast %201 : vector<9xf32> to vector<9x1xf32>
    %cst_101 = arith.constant 3.200000e+01 : f32
    %203 = vector.broadcast %cst_101 : f32 to vector<9x1xf32>
    %204 = arith.divf %202, %203 : vector<9x1xf32>
    %205 = vector.broadcast %197 : vector<9x1xf32> to vector<9x32xf32>
    %206 = arith.subf %189, %205 : vector<9x32xf32>
    %cst_102 = arith.constant 9.99999974E-6 : f32
    %207 = vector.broadcast %cst_102 : f32 to vector<9x1xf32>
    %208 = arith.addf %204, %207 : vector<9x1xf32>
    %209 = math.rsqrt %208 : vector<9x1xf32>
    %210 = vector.broadcast %209 : vector<9x1xf32> to vector<9x32xf32>
    %211 = arith.mulf %206, %210 : vector<9x32xf32>
    %212 = vector.broadcast %191 : vector<1x32xf32> to vector<9x32xf32>
    %213 = arith.mulf %211, %212 : vector<9x32xf32>
    %214 = vector.broadcast %193 : vector<1x32xf32> to vector<9x32xf32>
    %215 = arith.addf %213, %214 : vector<9x32xf32>
    %c1_103 = arith.constant 1 : index
    %c0_104 = arith.constant 0 : index
    %c0_105 = arith.constant 0 : index
    %216 = vector.load %arg7[%c1_103, %c0_104, %c0_105] : memref<2x32x96xf32, #tpu.memory_space<vmem>>, vector<1x32x96xf32>
    %217 = vector.shape_cast %216 : vector<1x32x96xf32> to vector<32x96xf32>
    %cst_106 = arith.constant dense<0.000000e+00> : vector<9x96xf32>
    %218 = tpu.matmul %215, %217, %cst_106 {dimension_numbers = #tpu.dot_dimension_numbers<[1], [0], [0], [1], [0, 0, 1, 1], [], []>} : vector<9x32xf32>, vector<32x96xf32>, vector<9x96xf32> -> vector<9x96xf32>
    %c1_107 = arith.constant 1 : index
    %c0_108 = arith.constant 0 : index
    %c0_109 = arith.constant 0 : index
    %219 = vector.load %arg8[%c1_107, %c0_108, %c0_109] : memref<2x1x96xf32, #tpu.memory_space<vmem>>, vector<1x1x96xf32>
    %220 = vector.shape_cast %219 : vector<1x1x96xf32> to vector<1x96xf32>
    %221 = vector.broadcast %220 : vector<1x96xf32> to vector<9x96xf32>
    %222 = arith.addf %218, %221 : vector<9x96xf32>
    %223 = vector.extract_strided_slice %222 {offsets = [0, 0], sizes = [9, 32], strides = [1, 1]} : vector<9x96xf32> to vector<9x32xf32>
    %224 = vector.extract_strided_slice %222 {offsets = [0, 32], sizes = [9, 32], strides = [1, 1]} : vector<9x96xf32> to vector<9x32xf32>
    %225 = vector.extract_strided_slice %222 {offsets = [0, 64], sizes = [9, 32], strides = [1, 1]} : vector<9x96xf32> to vector<9x32xf32>
    %c1_110 = arith.constant 1 : index
    %c0_111 = arith.constant 0 : index
    %c0_112 = arith.constant 0 : index
    %226 = vector.load %arg10[%c1_110, %c0_111, %c0_112] : memref<2x1x32xf32, #tpu.memory_space<vmem>>, vector<1x1x32xf32>
    %227 = vector.shape_cast %226 : vector<1x1x32xf32> to vector<1x32xf32>
    %cst_113 = arith.constant 0.000000e+00 : f32
    %228 = vector.broadcast %cst_113 : f32 to vector<9x32xf32>
    %229 = vector.broadcast %227 : vector<1x32xf32> to vector<9x32xf32>
    %230 = arith.addf %228, %229 : vector<9x32xf32>
    %231 = vector.extract_strided_slice %223 {offsets = [0, 0], sizes = [9, 8], strides = [1, 1]} : vector<9x32xf32> to vector<9x8xf32>
    %232 = vector.extract_strided_slice %224 {offsets = [0, 0], sizes = [9, 8], strides = [1, 1]} : vector<9x32xf32> to vector<9x8xf32>
    %233 = vector.extract_strided_slice %225 {offsets = [0, 0], sizes = [9, 8], strides = [1, 1]} : vector<9x32xf32> to vector<9x8xf32>
    "tpu.trace_start"() <{level = 10 : i32, message = "td,sd->ts"}> : () -> ()
    %cst_114 = arith.constant dense<0.000000e+00> : vector<9x9xf32>
    %234 = tpu.matmul %231, %232, %cst_114 {dimension_numbers = #tpu.dot_dimension_numbers<[1], [1], [0], [0], [0, 0, 1, 0], [], []>} : vector<9x8xf32>, vector<9x8xf32>, vector<9x9xf32> -> vector<9x9xf32>
    "tpu.trace_stop"() : () -> ()
    %cst_115 = arith.constant 0.353553385 : f32
    %235 = vector.broadcast %cst_115 : f32 to vector<9x9xf32>
    %236 = arith.mulf %234, %235 : vector<9x9xf32>
    %cst_116 = arith.constant dense<0xFF800000> : vector<9xf32>
    %237 = vector.multi_reduction <maximumf>, %236, %cst_116 [1] : vector<9x9xf32> to vector<9xf32>
    %238 = vector.shape_cast %237 : vector<9xf32> to vector<9x1xf32>
    %239 = vector.broadcast %238 : vector<9x1xf32> to vector<9x9xf32>
    %240 = arith.subf %236, %239 : vector<9x9xf32>
    %241 = math.exp %240 : vector<9x9xf32>
    %cst_117 = arith.constant dense<0.000000e+00> : vector<9xf32>
    %242 = vector.multi_reduction <add>, %241, %cst_117 [1] : vector<9x9xf32> to vector<9xf32>
    %243 = vector.shape_cast %242 : vector<9xf32> to vector<9x1xf32>
    %244 = tpu.reciprocal %243 {approx = true} : vector<9x1xf32> -> vector<9x1xf32>
    %245 = vector.broadcast %244 : vector<9x1xf32> to vector<9x9xf32>
    %246 = arith.mulf %241, %245 : vector<9x9xf32>
    %cst_118 = arith.constant dense<0.000000e+00> : vector<9x8xf32>
    %247 = tpu.matmul %246, %233, %cst_118 {dimension_numbers = #tpu.dot_dimension_numbers<[1], [0], [0], [1], [0, 0, 1, 1], [], []>} : vector<9x9xf32>, vector<9x8xf32>, vector<9x8xf32> -> vector<9x8xf32>
    %c1_119 = arith.constant 1 : index
    %c0_120 = arith.constant 0 : index
    %c0_121 = arith.constant 0 : index
    %248 = vector.load %arg9[%c1_119, %c0_120, %c0_121] : memref<2x32x32xf32, #tpu.memory_space<vmem>>, vector<1x8x32xf32>
    %249 = vector.shape_cast %248 : vector<1x8x32xf32> to vector<8x32xf32>
    %cst_122 = arith.constant dense<0.000000e+00> : vector<9x32xf32>
    %250 = tpu.matmul %247, %249, %cst_122 {dimension_numbers = #tpu.dot_dimension_numbers<[1], [0], [0], [1], [0, 0, 1, 1], [], []>} : vector<9x8xf32>, vector<8x32xf32>, vector<9x32xf32> -> vector<9x32xf32>
    %251 = arith.addf %230, %250 : vector<9x32xf32>
    %252 = vector.extract_strided_slice %223 {offsets = [0, 8], sizes = [9, 8], strides = [1, 1]} : vector<9x32xf32> to vector<9x8xf32>
    %253 = vector.extract_strided_slice %224 {offsets = [0, 8], sizes = [9, 8], strides = [1, 1]} : vector<9x32xf32> to vector<9x8xf32>
    %254 = vector.extract_strided_slice %225 {offsets = [0, 8], sizes = [9, 8], strides = [1, 1]} : vector<9x32xf32> to vector<9x8xf32>
    "tpu.trace_start"() <{level = 10 : i32, message = "td,sd->ts"}> : () -> ()
    %cst_123 = arith.constant dense<0.000000e+00> : vector<9x9xf32>
    %255 = tpu.matmul %252, %253, %cst_123 {dimension_numbers = #tpu.dot_dimension_numbers<[1], [1], [0], [0], [0, 0, 1, 0], [], []>} : vector<9x8xf32>, vector<9x8xf32>, vector<9x9xf32> -> vector<9x9xf32>
    "tpu.trace_stop"() : () -> ()
    %cst_124 = arith.constant 0.353553385 : f32
    %256 = vector.broadcast %cst_124 : f32 to vector<9x9xf32>
    %257 = arith.mulf %255, %256 : vector<9x9xf32>
    %cst_125 = arith.constant dense<0xFF800000> : vector<9xf32>
    %258 = vector.multi_reduction <maximumf>, %257, %cst_125 [1] : vector<9x9xf32> to vector<9xf32>
    %259 = vector.shape_cast %258 : vector<9xf32> to vector<9x1xf32>
    %260 = vector.broadcast %259 : vector<9x1xf32> to vector<9x9xf32>
    %261 = arith.subf %257, %260 : vector<9x9xf32>
    %262 = math.exp %261 : vector<9x9xf32>
    %cst_126 = arith.constant dense<0.000000e+00> : vector<9xf32>
    %263 = vector.multi_reduction <add>, %262, %cst_126 [1] : vector<9x9xf32> to vector<9xf32>
    %264 = vector.shape_cast %263 : vector<9xf32> to vector<9x1xf32>
    %265 = tpu.reciprocal %264 {approx = true} : vector<9x1xf32> -> vector<9x1xf32>
    %266 = vector.broadcast %265 : vector<9x1xf32> to vector<9x9xf32>
    %267 = arith.mulf %262, %266 : vector<9x9xf32>
    %cst_127 = arith.constant dense<0.000000e+00> : vector<9x8xf32>
    %268 = tpu.matmul %267, %254, %cst_127 {dimension_numbers = #tpu.dot_dimension_numbers<[1], [0], [0], [1], [0, 0, 1, 1], [], []>} : vector<9x9xf32>, vector<9x8xf32>, vector<9x8xf32> -> vector<9x8xf32>
    %c1_128 = arith.constant 1 : index
    %c8_129 = arith.constant 8 : index
    %c0_130 = arith.constant 0 : index
    %269 = vector.load %arg9[%c1_128, %c8_129, %c0_130] : memref<2x32x32xf32, #tpu.memory_space<vmem>>, vector<1x8x32xf32>
    %270 = vector.shape_cast %269 : vector<1x8x32xf32> to vector<8x32xf32>
    %cst_131 = arith.constant dense<0.000000e+00> : vector<9x32xf32>
    %271 = tpu.matmul %268, %270, %cst_131 {dimension_numbers = #tpu.dot_dimension_numbers<[1], [0], [0], [1], [0, 0, 1, 1], [], []>} : vector<9x8xf32>, vector<8x32xf32>, vector<9x32xf32> -> vector<9x32xf32>
    %272 = arith.addf %251, %271 : vector<9x32xf32>
    %273 = vector.extract_strided_slice %223 {offsets = [0, 16], sizes = [9, 8], strides = [1, 1]} : vector<9x32xf32> to vector<9x8xf32>
    %274 = vector.extract_strided_slice %224 {offsets = [0, 16], sizes = [9, 8], strides = [1, 1]} : vector<9x32xf32> to vector<9x8xf32>
    %275 = vector.extract_strided_slice %225 {offsets = [0, 16], sizes = [9, 8], strides = [1, 1]} : vector<9x32xf32> to vector<9x8xf32>
    "tpu.trace_start"() <{level = 10 : i32, message = "td,sd->ts"}> : () -> ()
    %cst_132 = arith.constant dense<0.000000e+00> : vector<9x9xf32>
    %276 = tpu.matmul %273, %274, %cst_132 {dimension_numbers = #tpu.dot_dimension_numbers<[1], [1], [0], [0], [0, 0, 1, 0], [], []>} : vector<9x8xf32>, vector<9x8xf32>, vector<9x9xf32> -> vector<9x9xf32>
    "tpu.trace_stop"() : () -> ()
    %cst_133 = arith.constant 0.353553385 : f32
    %277 = vector.broadcast %cst_133 : f32 to vector<9x9xf32>
    %278 = arith.mulf %276, %277 : vector<9x9xf32>
    %cst_134 = arith.constant dense<0xFF800000> : vector<9xf32>
    %279 = vector.multi_reduction <maximumf>, %278, %cst_134 [1] : vector<9x9xf32> to vector<9xf32>
    %280 = vector.shape_cast %279 : vector<9xf32> to vector<9x1xf32>
    %281 = vector.broadcast %280 : vector<9x1xf32> to vector<9x9xf32>
    %282 = arith.subf %278, %281 : vector<9x9xf32>
    %283 = math.exp %282 : vector<9x9xf32>
    %cst_135 = arith.constant dense<0.000000e+00> : vector<9xf32>
    %284 = vector.multi_reduction <add>, %283, %cst_135 [1] : vector<9x9xf32> to vector<9xf32>
    %285 = vector.shape_cast %284 : vector<9xf32> to vector<9x1xf32>
    %286 = tpu.reciprocal %285 {approx = true} : vector<9x1xf32> -> vector<9x1xf32>
    %287 = vector.broadcast %286 : vector<9x1xf32> to vector<9x9xf32>
    %288 = arith.mulf %283, %287 : vector<9x9xf32>
    %cst_136 = arith.constant dense<0.000000e+00> : vector<9x8xf32>
    %289 = tpu.matmul %288, %275, %cst_136 {dimension_numbers = #tpu.dot_dimension_numbers<[1], [0], [0], [1], [0, 0, 1, 1], [], []>} : vector<9x9xf32>, vector<9x8xf32>, vector<9x8xf32> -> vector<9x8xf32>
    %c1_137 = arith.constant 1 : index
    %c16_138 = arith.constant 16 : index
    %c0_139 = arith.constant 0 : index
    %290 = vector.load %arg9[%c1_137, %c16_138, %c0_139] : memref<2x32x32xf32, #tpu.memory_space<vmem>>, vector<1x8x32xf32>
    %291 = vector.shape_cast %290 : vector<1x8x32xf32> to vector<8x32xf32>
    %cst_140 = arith.constant dense<0.000000e+00> : vector<9x32xf32>
    %292 = tpu.matmul %289, %291, %cst_140 {dimension_numbers = #tpu.dot_dimension_numbers<[1], [0], [0], [1], [0, 0, 1, 1], [], []>} : vector<9x8xf32>, vector<8x32xf32>, vector<9x32xf32> -> vector<9x32xf32>
    %293 = arith.addf %272, %292 : vector<9x32xf32>
    %294 = vector.extract_strided_slice %223 {offsets = [0, 24], sizes = [9, 8], strides = [1, 1]} : vector<9x32xf32> to vector<9x8xf32>
    %295 = vector.extract_strided_slice %224 {offsets = [0, 24], sizes = [9, 8], strides = [1, 1]} : vector<9x32xf32> to vector<9x8xf32>
    %296 = vector.extract_strided_slice %225 {offsets = [0, 24], sizes = [9, 8], strides = [1, 1]} : vector<9x32xf32> to vector<9x8xf32>
    "tpu.trace_start"() <{level = 10 : i32, message = "td,sd->ts"}> : () -> ()
    %cst_141 = arith.constant dense<0.000000e+00> : vector<9x9xf32>
    %297 = tpu.matmul %294, %295, %cst_141 {dimension_numbers = #tpu.dot_dimension_numbers<[1], [1], [0], [0], [0, 0, 1, 0], [], []>} : vector<9x8xf32>, vector<9x8xf32>, vector<9x9xf32> -> vector<9x9xf32>
    "tpu.trace_stop"() : () -> ()
    %cst_142 = arith.constant 0.353553385 : f32
    %298 = vector.broadcast %cst_142 : f32 to vector<9x9xf32>
    %299 = arith.mulf %297, %298 : vector<9x9xf32>
    %cst_143 = arith.constant dense<0xFF800000> : vector<9xf32>
    %300 = vector.multi_reduction <maximumf>, %299, %cst_143 [1] : vector<9x9xf32> to vector<9xf32>
    %301 = vector.shape_cast %300 : vector<9xf32> to vector<9x1xf32>
    %302 = vector.broadcast %301 : vector<9x1xf32> to vector<9x9xf32>
    %303 = arith.subf %299, %302 : vector<9x9xf32>
    %304 = math.exp %303 : vector<9x9xf32>
    %cst_144 = arith.constant dense<0.000000e+00> : vector<9xf32>
    %305 = vector.multi_reduction <add>, %304, %cst_144 [1] : vector<9x9xf32> to vector<9xf32>
    %306 = vector.shape_cast %305 : vector<9xf32> to vector<9x1xf32>
    %307 = tpu.reciprocal %306 {approx = true} : vector<9x1xf32> -> vector<9x1xf32>
    %308 = vector.broadcast %307 : vector<9x1xf32> to vector<9x9xf32>
    %309 = arith.mulf %304, %308 : vector<9x9xf32>
    %cst_145 = arith.constant dense<0.000000e+00> : vector<9x8xf32>
    %310 = tpu.matmul %309, %296, %cst_145 {dimension_numbers = #tpu.dot_dimension_numbers<[1], [0], [0], [1], [0, 0, 1, 1], [], []>} : vector<9x9xf32>, vector<9x8xf32>, vector<9x8xf32> -> vector<9x8xf32>
    %c1_146 = arith.constant 1 : index
    %c24_147 = arith.constant 24 : index
    %c0_148 = arith.constant 0 : index
    %311 = vector.load %arg9[%c1_146, %c24_147, %c0_148] : memref<2x32x32xf32, #tpu.memory_space<vmem>>, vector<1x8x32xf32>
    %312 = vector.shape_cast %311 : vector<1x8x32xf32> to vector<8x32xf32>
    %cst_149 = arith.constant dense<0.000000e+00> : vector<9x32xf32>
    %313 = tpu.matmul %310, %312, %cst_149 {dimension_numbers = #tpu.dot_dimension_numbers<[1], [0], [0], [1], [0, 0, 1, 1], [], []>} : vector<9x8xf32>, vector<8x32xf32>, vector<9x32xf32> -> vector<9x32xf32>
    %314 = arith.addf %293, %313 : vector<9x32xf32>
    %315 = arith.addf %189, %314 : vector<9x32xf32>
    %c1_150 = arith.constant 1 : index
    %c0_151 = arith.constant 0 : index
    %c0_152 = arith.constant 0 : index
    %316 = vector.load %arg11[%c1_150, %c0_151, %c0_152] : memref<2x1x32xf32, #tpu.memory_space<vmem>>, vector<1x1x32xf32>
    %317 = vector.shape_cast %316 : vector<1x1x32xf32> to vector<1x32xf32>
    %c1_153 = arith.constant 1 : index
    %c0_154 = arith.constant 0 : index
    %c0_155 = arith.constant 0 : index
    %318 = vector.load %arg12[%c1_153, %c0_154, %c0_155] : memref<2x1x32xf32, #tpu.memory_space<vmem>>, vector<1x1x32xf32>
    %319 = vector.shape_cast %318 : vector<1x1x32xf32> to vector<1x32xf32>
    %cst_156 = arith.constant dense<0.000000e+00> : vector<9xf32>
    %320 = vector.multi_reduction <add>, %315, %cst_156 [1] : vector<9x32xf32> to vector<9xf32>
    %321 = vector.shape_cast %320 : vector<9xf32> to vector<9x1xf32>
    %cst_157 = arith.constant 3.200000e+01 : f32
    %322 = vector.broadcast %cst_157 : f32 to vector<9x1xf32>
    %323 = arith.divf %321, %322 : vector<9x1xf32>
    %324 = vector.broadcast %323 : vector<9x1xf32> to vector<9x32xf32>
    %325 = arith.subf %315, %324 : vector<9x32xf32>
    %326 = arith.mulf %325, %325 : vector<9x32xf32>
    %cst_158 = arith.constant dense<0.000000e+00> : vector<9xf32>
    %327 = vector.multi_reduction <add>, %326, %cst_158 [1] : vector<9x32xf32> to vector<9xf32>
    %328 = vector.shape_cast %327 : vector<9xf32> to vector<9x1xf32>
    %cst_159 = arith.constant 3.200000e+01 : f32
    %329 = vector.broadcast %cst_159 : f32 to vector<9x1xf32>
    %330 = arith.divf %328, %329 : vector<9x1xf32>
    %331 = vector.broadcast %323 : vector<9x1xf32> to vector<9x32xf32>
    %332 = arith.subf %315, %331 : vector<9x32xf32>
    %cst_160 = arith.constant 9.99999974E-6 : f32
    %333 = vector.broadcast %cst_160 : f32 to vector<9x1xf32>
    %334 = arith.addf %330, %333 : vector<9x1xf32>
    %335 = math.rsqrt %334 : vector<9x1xf32>
    %336 = vector.broadcast %335 : vector<9x1xf32> to vector<9x32xf32>
    %337 = arith.mulf %332, %336 : vector<9x32xf32>
    %338 = vector.broadcast %317 : vector<1x32xf32> to vector<9x32xf32>
    %339 = arith.mulf %337, %338 : vector<9x32xf32>
    %340 = vector.broadcast %319 : vector<1x32xf32> to vector<9x32xf32>
    %341 = arith.addf %339, %340 : vector<9x32xf32>
    %c1_161 = arith.constant 1 : index
    %c0_162 = arith.constant 0 : index
    %c0_163 = arith.constant 0 : index
    %342 = vector.load %arg13[%c1_161, %c0_162, %c0_163] : memref<2x32x64xf32, #tpu.memory_space<vmem>>, vector<1x32x64xf32>
    %343 = vector.shape_cast %342 : vector<1x32x64xf32> to vector<32x64xf32>
    %cst_164 = arith.constant dense<0.000000e+00> : vector<9x64xf32>
    %344 = tpu.matmul %341, %343, %cst_164 {dimension_numbers = #tpu.dot_dimension_numbers<[1], [0], [0], [1], [0, 0, 1, 1], [], []>} : vector<9x32xf32>, vector<32x64xf32>, vector<9x64xf32> -> vector<9x64xf32>
    %c1_165 = arith.constant 1 : index
    %c0_166 = arith.constant 0 : index
    %c0_167 = arith.constant 0 : index
    %345 = vector.load %arg14[%c1_165, %c0_166, %c0_167] : memref<2x1x64xf32, #tpu.memory_space<vmem>>, vector<1x1x64xf32>
    %346 = vector.shape_cast %345 : vector<1x1x64xf32> to vector<1x64xf32>
    %347 = vector.broadcast %346 : vector<1x64xf32> to vector<9x64xf32>
    %348 = arith.addf %344, %347 : vector<9x64xf32>
    %349 = arith.mulf %348, %348 : vector<9x64xf32>
    %350 = arith.mulf %348, %349 : vector<9x64xf32>
    %cst_168 = arith.constant 4.471500e-02 : f32
    %351 = vector.broadcast %cst_168 : f32 to vector<9x64xf32>
    %352 = arith.mulf %351, %350 : vector<9x64xf32>
    %353 = arith.addf %348, %352 : vector<9x64xf32>
    %cst_169 = arith.constant 0.797884583 : f32
    %354 = vector.broadcast %cst_169 : f32 to vector<9x64xf32>
    %355 = arith.mulf %354, %353 : vector<9x64xf32>
    %356 = math.tanh %355 : vector<9x64xf32>
    %cst_170 = arith.constant 1.000000e+00 : f32
    %357 = vector.broadcast %cst_170 : f32 to vector<9x64xf32>
    %358 = arith.addf %357, %356 : vector<9x64xf32>
    %cst_171 = arith.constant 5.000000e-01 : f32
    %359 = vector.broadcast %cst_171 : f32 to vector<9x64xf32>
    %360 = arith.mulf %359, %358 : vector<9x64xf32>
    %361 = arith.mulf %348, %360 : vector<9x64xf32>
    %c1_172 = arith.constant 1 : index
    %c0_173 = arith.constant 0 : index
    %c0_174 = arith.constant 0 : index
    %362 = vector.load %arg15[%c1_172, %c0_173, %c0_174] : memref<2x64x32xf32, #tpu.memory_space<vmem>>, vector<1x64x32xf32>
    %363 = vector.shape_cast %362 : vector<1x64x32xf32> to vector<64x32xf32>
    %cst_175 = arith.constant dense<0.000000e+00> : vector<9x32xf32>
    %364 = tpu.matmul %361, %363, %cst_175 {dimension_numbers = #tpu.dot_dimension_numbers<[1], [0], [0], [1], [0, 0, 1, 1], [], []>} : vector<9x64xf32>, vector<64x32xf32>, vector<9x32xf32> -> vector<9x32xf32>
    %c1_176 = arith.constant 1 : index
    %c0_177 = arith.constant 0 : index
    %c0_178 = arith.constant 0 : index
    %365 = vector.load %arg16[%c1_176, %c0_177, %c0_178] : memref<2x1x32xf32, #tpu.memory_space<vmem>>, vector<1x1x32xf32>
    %366 = vector.shape_cast %365 : vector<1x1x32xf32> to vector<1x32xf32>
    %367 = vector.broadcast %366 : vector<1x32xf32> to vector<9x32xf32>
    %368 = arith.addf %364, %367 : vector<9x32xf32>
    %369 = arith.addf %315, %368 : vector<9x32xf32>
    %c0_179 = arith.constant 0 : index
    %c0_180 = arith.constant 0 : index
    %370 = vector.load %arg17[%c0_179, %c0_180] : memref<1x32xf32, #tpu.memory_space<vmem>>, vector<1x32xf32>
    %c0_181 = arith.constant 0 : index
    %c0_182 = arith.constant 0 : index
    %371 = vector.load %arg18[%c0_181, %c0_182] : memref<1x32xf32, #tpu.memory_space<vmem>>, vector<1x32xf32>
    %cst_183 = arith.constant dense<0.000000e+00> : vector<9xf32>
    %372 = vector.multi_reduction <add>, %369, %cst_183 [1] : vector<9x32xf32> to vector<9xf32>
    %373 = vector.shape_cast %372 : vector<9xf32> to vector<9x1xf32>
    %cst_184 = arith.constant 3.200000e+01 : f32
    %374 = vector.broadcast %cst_184 : f32 to vector<9x1xf32>
    %375 = arith.divf %373, %374 : vector<9x1xf32>
    %376 = vector.broadcast %375 : vector<9x1xf32> to vector<9x32xf32>
    %377 = arith.subf %369, %376 : vector<9x32xf32>
    %378 = arith.mulf %377, %377 : vector<9x32xf32>
    %cst_185 = arith.constant dense<0.000000e+00> : vector<9xf32>
    %379 = vector.multi_reduction <add>, %378, %cst_185 [1] : vector<9x32xf32> to vector<9xf32>
    %380 = vector.shape_cast %379 : vector<9xf32> to vector<9x1xf32>
    %cst_186 = arith.constant 3.200000e+01 : f32
    %381 = vector.broadcast %cst_186 : f32 to vector<9x1xf32>
    %382 = arith.divf %380, %381 : vector<9x1xf32>
    %383 = vector.broadcast %375 : vector<9x1xf32> to vector<9x32xf32>
    %384 = arith.subf %369, %383 : vector<9x32xf32>
    %cst_187 = arith.constant 9.99999974E-6 : f32
    %385 = vector.broadcast %cst_187 : f32 to vector<9x1xf32>
    %386 = arith.addf %382, %385 : vector<9x1xf32>
    %387 = math.rsqrt %386 : vector<9x1xf32>
    %388 = vector.broadcast %387 : vector<9x1xf32> to vector<9x32xf32>
    %389 = arith.mulf %384, %388 : vector<9x32xf32>
    %390 = vector.broadcast %370 : vector<1x32xf32> to vector<9x32xf32>
    %391 = arith.mulf %389, %390 : vector<9x32xf32>
    %392 = vector.broadcast %371 : vector<1x32xf32> to vector<9x32xf32>
    %393 = arith.addf %391, %392 : vector<9x32xf32>
    %c0_188 = arith.constant 0 : index
    %c0_189 = arith.constant 0 : index
    %394 = vector.load %arg19[%c0_188, %c0_189] : memref<32x32xf32, #tpu.memory_space<vmem>>, vector<32x32xf32>
    %cst_190 = arith.constant dense<0.000000e+00> : vector<9x32xf32>
    %395 = tpu.matmul %393, %394, %cst_190 {dimension_numbers = #tpu.dot_dimension_numbers<[1], [0], [0], [1], [0, 0, 1, 1], [], []>} : vector<9x32xf32>, vector<32x32xf32>, vector<9x32xf32> -> vector<9x32xf32>
    %c0_191 = arith.constant 0 : index
    %c0_192 = arith.constant 0 : index
    %396 = vector.load %arg20[%c0_191, %c0_192] : memref<1x32xf32, #tpu.memory_space<vmem>>, vector<1x32xf32>
    %c0_193 = arith.constant 0 : index
    %c0_194 = arith.constant 0 : index
    %397 = vector.load %arg21[%c0_193, %c0_194] : memref<1x32xf32, #tpu.memory_space<vmem>>, vector<1x32xf32>
    %cst_195 = arith.constant dense<0.000000e+00> : vector<9xf32>
    %398 = vector.multi_reduction <add>, %395, %cst_195 [1] : vector<9x32xf32> to vector<9xf32>
    %399 = vector.shape_cast %398 : vector<9xf32> to vector<9x1xf32>
    %cst_196 = arith.constant 3.200000e+01 : f32
    %400 = vector.broadcast %cst_196 : f32 to vector<9x1xf32>
    %401 = arith.divf %399, %400 : vector<9x1xf32>
    %402 = vector.broadcast %401 : vector<9x1xf32> to vector<9x32xf32>
    %403 = arith.subf %395, %402 : vector<9x32xf32>
    %404 = arith.mulf %403, %403 : vector<9x32xf32>
    %cst_197 = arith.constant dense<0.000000e+00> : vector<9xf32>
    %405 = vector.multi_reduction <add>, %404, %cst_197 [1] : vector<9x32xf32> to vector<9xf32>
    %406 = vector.shape_cast %405 : vector<9xf32> to vector<9x1xf32>
    %cst_198 = arith.constant 3.200000e+01 : f32
    %407 = vector.broadcast %cst_198 : f32 to vector<9x1xf32>
    %408 = arith.divf %406, %407 : vector<9x1xf32>
    %409 = vector.broadcast %401 : vector<9x1xf32> to vector<9x32xf32>
    %410 = arith.subf %395, %409 : vector<9x32xf32>
    %cst_199 = arith.constant 9.99999974E-6 : f32
    %411 = vector.broadcast %cst_199 : f32 to vector<9x1xf32>
    %412 = arith.addf %408, %411 : vector<9x1xf32>
    %413 = math.rsqrt %412 : vector<9x1xf32>
    %414 = vector.broadcast %413 : vector<9x1xf32> to vector<9x32xf32>
    %415 = arith.mulf %410, %414 : vector<9x32xf32>
    %416 = vector.broadcast %396 : vector<1x32xf32> to vector<9x32xf32>
    %417 = arith.mulf %415, %416 : vector<9x32xf32>
    %418 = vector.broadcast %397 : vector<1x32xf32> to vector<9x32xf32>
    %419 = arith.addf %417, %418 : vector<9x32xf32>
    %c0_200 = arith.constant 0 : index
    %c0_201 = arith.constant 0 : index
    %c0_202 = arith.constant 0 : index
    %420 = vector.load %arg22[%c0_200, %c0_201, %c0_202] : memref<1x9x32xf32, #tpu.memory_space<vmem>>, vector<1x9x32xf32>
    %421 = vector.shape_cast %420 : vector<1x9x32xf32> to vector<9x32xf32>
    %422 = vector.shape_cast %419 : vector<9x32xf32> to vector<1x9x32xf32>
    tpu.vector_store %arg22[%c0_200, %c0_201, %c0_202], %422 {strides = array<i32>} : memref<1x9x32xf32, #tpu.memory_space<vmem>>, vector<1x9x32xf32>,
    return
  }
  func.func @transform_0(%arg0: i32) -> (i32, i32, i32) {
    %c0_i32 = arith.constant 0 : i32
    %c0_i32_0 = arith.constant 0 : i32
    %c0_i32_1 = arith.constant 0 : i32
    return %arg0, %c0_i32, %c0_i32_0 : i32, i32, i32
  }
  func.func @transform_1(%arg0: i32) -> (i32, i32, i32) {
    %c0_i32 = arith.constant 0 : i32
    %c0_i32_0 = arith.constant 0 : i32
    %c0_i32_1 = arith.constant 0 : i32
    return %arg0, %c0_i32, %c0_i32_0 : i32, i32, i32
  }
  func.func @transform_2(%arg0: i32) -> (i32, i32) {
    %c0_i32 = arith.constant 0 : i32
    %c0_i32_0 = arith.constant 0 : i32
    %c0_i32_1 = arith.constant 0 : i32
    return %c0_i32, %c0_i32_0 : i32, i32
  }
  func.func @transform_3(%arg0: i32) -> (i32, i32) {
    %c0_i32 = arith.constant 0 : i32
    %c0_i32_0 = arith.constant 0 : i32
    %c0_i32_1 = arith.constant 0 : i32
    return %c0_i32, %c0_i32_0 : i32, i32
  }
  func.func @transform_4(%arg0: i32) -> (i32, i32, i32) {
    %c0_i32 = arith.constant 0 : i32
    %c0_i32_0 = arith.constant 0 : i32
    %c0_i32_1 = arith.constant 0 : i32
    %c0_i32_2 = arith.constant 0 : i32
    return %c0_i32, %c0_i32_0, %c0_i32_1 : i32, i32, i32
  }
  func.func @transform_5(%arg0: i32) -> (i32, i32, i32) {
    %c0_i32 = arith.constant 0 : i32
    %c0_i32_0 = arith.constant 0 : i32
    %c0_i32_1 = arith.constant 0 : i32
    %c0_i32_2 = arith.constant 0 : i32
    return %c0_i32, %c0_i32_0, %c0_i32_1 : i32, i32, i32
  }
  func.func @transform_6(%arg0: i32) -> (i32, i32, i32) {
    %c0_i32 = arith.constant 0 : i32
    %c0_i32_0 = arith.constant 0 : i32
    %c0_i32_1 = arith.constant 0 : i32
    %c0_i32_2 = arith.constant 0 : i32
    return %c0_i32, %c0_i32_0, %c0_i32_1 : i32, i32, i32
  }
  func.func @transform_7(%arg0: i32) -> (i32, i32, i32) {
    %c0_i32 = arith.constant 0 : i32
    %c0_i32_0 = arith.constant 0 : i32
    %c0_i32_1 = arith.constant 0 : i32
    %c0_i32_2 = arith.constant 0 : i32
    return %c0_i32, %c0_i32_0, %c0_i32_1 : i32, i32, i32
  }
  func.func @transform_8(%arg0: i32) -> (i32, i32, i32) {
    %c0_i32 = arith.constant 0 : i32
    %c0_i32_0 = arith.constant 0 : i32
    %c0_i32_1 = arith.constant 0 : i32
    %c0_i32_2 = arith.constant 0 : i32
    return %c0_i32, %c0_i32_0, %c0_i32_1 : i32, i32, i32
  }
  func.func @transform_9(%arg0: i32) -> (i32, i32, i32) {
    %c0_i32 = arith.constant 0 : i32
    %c0_i32_0 = arith.constant 0 : i32
    %c0_i32_1 = arith.constant 0 : i32
    %c0_i32_2 = arith.constant 0 : i32
    return %c0_i32, %c0_i32_0, %c0_i32_1 : i32, i32, i32
  }
  func.func @transform_10(%arg0: i32) -> (i32, i32, i32) {
    %c0_i32 = arith.constant 0 : i32
    %c0_i32_0 = arith.constant 0 : i32
    %c0_i32_1 = arith.constant 0 : i32
    %c0_i32_2 = arith.constant 0 : i32
    return %c0_i32, %c0_i32_0, %c0_i32_1 : i32, i32, i32
  }
  func.func @transform_11(%arg0: i32) -> (i32, i32, i32) {
    %c0_i32 = arith.constant 0 : i32
    %c0_i32_0 = arith.constant 0 : i32
    %c0_i32_1 = arith.constant 0 : i32
    %c0_i32_2 = arith.constant 0 : i32
    return %c0_i32, %c0_i32_0, %c0_i32_1 : i32, i32, i32
  }
  func.func @transform_12(%arg0: i32) -> (i32, i32, i32) {
    %c0_i32 = arith.constant 0 : i32
    %c0_i32_0 = arith.constant 0 : i32
    %c0_i32_1 = arith.constant 0 : i32
    %c0_i32_2 = arith.constant 0 : i32
    return %c0_i32, %c0_i32_0, %c0_i32_1 : i32, i32, i32
  }
  func.func @transform_13(%arg0: i32) -> (i32, i32, i32) {
    %c0_i32 = arith.constant 0 : i32
    %c0_i32_0 = arith.constant 0 : i32
    %c0_i32_1 = arith.constant 0 : i32
    %c0_i32_2 = arith.constant 0 : i32
    return %c0_i32, %c0_i32_0, %c0_i32_1 : i32, i32, i32
  }
  func.func @transform_14(%arg0: i32) -> (i32, i32, i32) {
    %c0_i32 = arith.constant 0 : i32
    %c0_i32_0 = arith.constant 0 : i32
    %c0_i32_1 = arith.constant 0 : i32
    %c0_i32_2 = arith.constant 0 : i32
    return %c0_i32, %c0_i32_0, %c0_i32_1 : i32, i32, i32
  }
  func.func @transform_15(%arg0: i32) -> (i32, i32, i32) {
    %c0_i32 = arith.constant 0 : i32
    %c0_i32_0 = arith.constant 0 : i32
    %c0_i32_1 = arith.constant 0 : i32
    %c0_i32_2 = arith.constant 0 : i32
    return %c0_i32, %c0_i32_0, %c0_i32_1 : i32, i32, i32
  }
  func.func @transform_16(%arg0: i32) -> (i32, i32) {
    %c0_i32 = arith.constant 0 : i32
    %c0_i32_0 = arith.constant 0 : i32
    %c0_i32_1 = arith.constant 0 : i32
    return %c0_i32, %c0_i32_0 : i32, i32
  }
  func.func @transform_17(%arg0: i32) -> (i32, i32) {
    %c0_i32 = arith.constant 0 : i32
    %c0_i32_0 = arith.constant 0 : i32
    %c0_i32_1 = arith.constant 0 : i32
    return %c0_i32, %c0_i32_0 : i32, i32
  }
  func.func @transform_18(%arg0: i32) -> (i32, i32) {
    %c0_i32 = arith.constant 0 : i32
    %c0_i32_0 = arith.constant 0 : i32
    %c0_i32_1 = arith.constant 0 : i32
    return %c0_i32, %c0_i32_0 : i32, i32
  }
  func.func @transform_19(%arg0: i32) -> (i32, i32) {
    %c0_i32 = arith.constant 0 : i32
    %c0_i32_0 = arith.constant 0 : i32
    %c0_i32_1 = arith.constant 0 : i32
    return %c0_i32, %c0_i32_0 : i32, i32
  }
  func.func @transform_20(%arg0: i32) -> (i32, i32) {
    %c0_i32 = arith.constant 0 : i32
    %c0_i32_0 = arith.constant 0 : i32
    %c0_i32_1 = arith.constant 0 : i32
    return %c0_i32, %c0_i32_0 : i32, i32
  }
  func.func @transform_21(%arg0: i32) -> (i32, i32, i32) {
    %c0_i32 = arith.constant 0 : i32
    %c0_i32_0 = arith.constant 0 : i32
    %c0_i32_1 = arith.constant 0 : i32
    return %arg0, %c0_i32, %c0_i32_0 : i32, i32, i32
  }
}

</mosaic_0001>

<llo_original>
// kernel: lmim_forward.6
$region0: #{lmim_forward.6}
  #allocation0 [shape = 'u32[]', space=smem, size = 0x4, offset = 0x4, fixed_abs, tag = 'smem constant byte address 0x4 - core index']
  #allocation1 [shape = 'u32[144,128]{1,0:T(1,128)}', space=vmem, size = 0x12000, scoped, tag = 'internal scratch']
  %s0 = inlined_call_operand.vmem [shape: f32[2,9,48], index: 0, kind: input, shape index: {}]
  %s1 = inlined_call_operand.vmem [shape: f32[2,9,32], index: 1, kind: input, shape index: {}]
  %s2 = inlined_call_operand.vmem [shape: f32[48,32], index: 2, kind: input, shape index: {}]
  %s3 = inlined_call_operand.vmem [shape: f32[1,32], index: 3, kind: input, shape index: {}]
  %s4 = inlined_call_operand.vmem [shape: f32[1,32], index: 4, kind: input, shape index: {}]
  %s5 = inlined_call_operand.vmem [shape: f32[1,32], index: 5, kind: input, shape index: {}]
  %s6 = inlined_call_operand.vmem [shape: f32[32,32], index: 6, kind: input, shape index: {}]
  %s7 = inlined_call_operand.vmem [shape: f32[1,32], index: 7, kind: input, shape index: {}]
  %s8 = inlined_call_operand.vmem [shape: f32[1,32], index: 8, kind: input, shape index: {}]
  %s9 = inlined_call_operand.vmem [shape: f32[2,9,32], index: 9, kind: output, shape index: {}]
  %s10 = sld [smem:[#allocation0]]
  $region69: #{lmim_forward.6} parent=0
    _
  %s12 = ssub.s32 1, %s10
  %s13 = scalar_select 0, %s12, %s10
  loop: start=0, step=1, limit=4
  $region2: #{lmim_forward.6} parent=0 // loop_pre_header
    _
  $region3: #{lmim_forward.6} parent=0 // loop_header
    %s15 = sphi 0, %s19
    %p16 = scmp.ge.s32.totalorder %s15, 4
    %s25 = sphi 0, %s27
    %s28 = sphi 0, %s25
    %s29 = sphi 0, %s28
    %s45 = sphi 0, %s29
    %s51 = sphi 0, %s53
    %s54 = sphi 0, %s51
    %s55 = sphi 0, %s54
    %s71 = sphi 0, %s55
    %s75 = sphi 0, %s75
    %s77 = sphi 0, %s75
    %s78 = sphi 0, %s77
    %s92 = sphi 0, %s78
    %s96 = sphi 0, %s96
    %s98 = sphi 0, %s96
    %s99 = sphi 0, %s98
    %s113 = sphi 0, %s99
    %s117 = sphi 0, %s117
    %s119 = sphi 0, %s117
    %s120 = sphi 0, %s119
    %s134 = sphi 0, %s120
    %s138 = sphi 0, %s138
    %s140 = sphi 0, %s138
    %s141 = sphi 0, %s140
    %s155 = sphi 0, %s141
    %s159 = sphi 0, %s159
    %s161 = sphi 0, %s159
    %s162 = sphi 0, %s161
    %s176 = sphi 0, %s162
    %s180 = sphi 0, %s180
    %s182 = sphi 0, %s180
    %s183 = sphi 0, %s182
    %s197 = sphi 0, %s183
    %s201 = sphi 0, %s201
    %s203 = sphi 0, %s201
    %s204 = sphi 0, %s203
    %s218 = sphi 0, %s204
    %s224 = sphi 0, %s226
    %s227 = sphi 0, %s224
    %s228 = sphi 0, %s227
    %s244 = sphi 0, %s228
  $region4: #{lmim_forward.6} parent=0 // loop_header_branch
    %18 = sbr.rel (%p16) target = $region8
  $region5: #{lmim_forward.6} parent=0 // loop_body
    %s20 = ssub.s32 %s15, 1
    %s21 = ssub.s32 %s15, 2
    %s22 = sadd.s32 %s15, 1
    %s23 = ssub.s32 %s15, %s22
    %p24 = scmp.eq.s32.totalorder %s23, 0
    %s26 = sadd.s32 %s25, 1
    %s27 = scalar_select %p24, %s25, %s26
    %p30 = pneg %p24
    %p31 = scmp.eq.s32.totalorder %s15, 1
    %p32 = por %p30, %p31
    %p33 = scmp.ne.s32.totalorder %s25, %s28
    %p34 = scmp.eq.s32.totalorder %s15, 0
    %p35 = por %p33, %p34
    %p36 = scmp.ne.s32.totalorder %s25, %s28
    %p37 = scmp.eq.s32.totalorder %s20, 1
    %p38 = por %p36, %p37
    %p39 = scmp.ne.s32.totalorder %s28, %s29
    %p40 = scmp.eq.s32.totalorder %s20, 0
    %p41 = por %p39, %p40
    %p42 = scmp.ne.s32.totalorder %s28, %s29
    %p43 = scmp.eq.s32.totalorder %s21, 1
    %p44 = por %p42, %p43
    %p46 = scmp.ne.s32.totalorder %s29, %s45
    %p47 = scmp.eq.s32.totalorder %s21, 0
    %p48 = por %p46, %p47
    %s49 = ssub.s32 %s15, %s22
    %p50 = scmp.eq.s32.totalorder %s49, 0
    %s52 = sadd.s32 %s51, 1
    %s53 = scalar_select %p50, %s51, %s52
    %p56 = pneg %p50
    %p57 = scmp.eq.s32.totalorder %s15, 1
    %p58 = por %p56, %p57
    %p59 = scmp.ne.s32.totalorder %s51, %s54
    %p60 = scmp.eq.s32.totalorder %s15, 0
    %p61 = por %p59, %p60
    %p62 = scmp.ne.s32.totalorder %s51, %s54
    %p63 = scmp.eq.s32.totalorder %s20, 1
    %p64 = por %p62, %p63
    %p65 = scmp.ne.s32.totalorder %s54, %s55
    %p66 = scmp.eq.s32.totalorder %s20, 0
    %p67 = por %p65, %p66
    %p68 = scmp.ne.s32.totalorder %s54, %s55
    %p69 = scmp.eq.s32.totalorder %s21, 1
    %p70 = por %p68, %p69
    %p72 = scmp.ne.s32.totalorder %s55, %s71
    %p73 = scmp.eq.s32.totalorder %s21, 0
    %p74 = por %p72, %p73
    %s76 = sadd.s32 %s75, 1
    %p79 = scmp.eq.s32.totalorder %s15, 1
    %p80 = scmp.ne.s32.totalorder %s75, %s77
    %p81 = scmp.eq.s32.totalorder %s15, 0
    %p82 = por %p80, %p81
    %p83 = scmp.ne.s32.totalorder %s75, %s77
    %p84 = scmp.eq.s32.totalorder %s20, 1
    %p85 = por %p83, %p84
    %p86 = scmp.ne.s32.totalorder %s77, %s78
    %p87 = scmp.eq.s32.totalorder %s20, 0
    %p88 = por %p86, %p87
    %p89 = scmp.ne.s32.totalorder %s77, %s78
    %p90 = scmp.eq.s32.totalorder %s21, 1
    %p91 = por %p89, %p90
    %p93 = scmp.ne.s32.totalorder %s78, %s92
    %p94 = scmp.eq.s32.totalorder %s21, 0
    %p95 = por %p93, %p94
    %s97 = sadd.s32 %s96, 1
    %p100 = scmp.eq.s32.totalorder %s15, 1
    %p101 = scmp.ne.s32.totalorder %s96, %s98
    %p102 = scmp.eq.s32.totalorder %s15, 0
    %p103 = por %p101, %p102
    %p104 = scmp.ne.s32.totalorder %s96, %s98
    %p105 = scmp.eq.s32.totalorder %s20, 1
    %p106 = por %p104, %p105
    %p107 = scmp.ne.s32.totalorder %s98, %s99
    %p108 = scmp.eq.s32.totalorder %s20, 0
    %p109 = por %p107, %p108
    %p110 = scmp.ne.s32.totalorder %s98, %s99
    %p111 = scmp.eq.s32.totalorder %s21, 1
    %p112 = por %p110, %p111
    %p114 = scmp.ne.s32.totalorder %s99, %s113
    %p115 = scmp.eq.s32.totalorder %s21, 0
    %p116 = por %p114, %p115
    %s118 = sadd.s32 %s117, 1
    %p121 = scmp.eq.s32.totalorder %s15, 1
    %p122 = scmp.ne.s32.totalorder %s117, %s119
    %p123 = scmp.eq.s32.totalorder %s15, 0
    %p124 = por %p122, %p123
    %p125 = scmp.ne.s32.totalorder %s117, %s119
    %p126 = scmp.eq.s32.totalorder %s20, 1
    %p127 = por %p125, %p126
    %p128 = scmp.ne.s32.totalorder %s119, %s120
    %p129 = scmp.eq.s32.totalorder %s20, 0
    %p130 = por %p128, %p129
    %p131 = scmp.ne.s32.totalorder %s119, %s120
    %p132 = scmp.eq.s32.totalorder %s21, 1
    %p133 = por %p131, %p132
    %p135 = scmp.ne.s32.totalorder %s120, %s134
    %p136 = scmp.eq.s32.totalorder %s21, 0
    %p137 = por %p135, %p136
    %s139 = sadd.s32 %s138, 1
    %p142 = scmp.eq.s32.totalorder %s15, 1
    %p143 = scmp.ne.s32.totalorder %s138, %s140
    %p144 = scmp.eq.s32.totalorder %s15, 0
    %p145 = por %p143, %p144
    %p146 = scmp.ne.s32.totalorder %s138, %s140
    %p147 = scmp.eq.s32.totalorder %s20, 1
    %p148 = por %p146, %p147
    %p149 = scmp.ne.s32.totalorder %s140, %s141
    %p150 = scmp.eq.s32.totalorder %s20, 0
    %p151 = por %p149, %p150
    %p152 = scmp.ne.s32.totalorder %s140, %s141
    %p153 = scmp.eq.s32.totalorder %s21, 1
    %p154 = por %p152, %p153
    %p156 = scmp.ne.s32.totalorder %s141, %s155
    %p157 = scmp.eq.s32.totalorder %s21, 0
    %p158 = por %p156, %p157
    %s160 = sadd.s32 %s159, 1
    %p163 = scmp.eq.s32.totalorder %s15, 1
    %p164 = scmp.ne.s32.totalorder %s159, %s161
    %p165 = scmp.eq.s32.totalorder %s15, 0
    %p166 = por %p164, %p165
    %p167 = scmp.ne.s32.totalorder %s159, %s161
    %p168 = scmp.eq.s32.totalorder %s20, 1
    %p169 = por %p167, %p168
    %p170 = scmp.ne.s32.totalorder %s161, %s162
    %p171 = scmp.eq.s32.totalorder %s20, 0
    %p172 = por %p170, %p171
    %p173 = scmp.ne.s32.totalorder %s161, %s162
    %p174 = scmp.eq.s32.totalorder %s21, 1
    %p175 = por %p173, %p174
    %p177 = scmp.ne.s32.totalorder %s162, %s176
    %p178 = scmp.eq.s32.totalorder %s21, 0
    %p179 = por %p177, %p178
    %s181 = sadd.s32 %s180, 1
    %p184 = scmp.eq.s32.totalorder %s15, 1
    %p185 = scmp.ne.s32.totalorder %s180, %s182
    %p186 = scmp.eq.s32.totalorder %s15, 0
    %p187 = por %p185, %p186
    %p188 = scmp.ne.s32.totalorder %s180, %s182
    %p189 = scmp.eq.s32.totalorder %s20, 1
    %p190 = por %p188, %p189
    %p191 = scmp.ne.s32.totalorder %s182, %s183
    %p192 = scmp.eq.s32.totalorder %s20, 0
    %p193 = por %p191, %p192
    %p194 = scmp.ne.s32.totalorder %s182, %s183
    %p195 = scmp.eq.s32.totalorder %s21, 1
    %p196 = por %p194, %p195
    %p198 = scmp.ne.s32.totalorder %s183, %s197
    %p199 = scmp.eq.s32.totalorder %s21, 0
    %p200 = por %p198, %p199
    %s202 = sadd.s32 %s201, 1
    %p205 = scmp.eq.s32.totalorder %s15, 1
    %p206 = scmp.ne.s32.totalorder %s201, %s203
    %p207 = scmp.eq.s32.totalorder %s15, 0
    %p208 = por %p206, %p207
    %p209 = scmp.ne.s32.totalorder %s201, %s203
    %p210 = scmp.eq.s32.totalorder %s20, 1
    %p211 = por %p209, %p210
    %p212 = scmp.ne.s32.totalorder %s203, %s204
    %p213 = scmp.eq.s32.totalorder %s20, 0
    %p214 = por %p212, %p213
    %p215 = scmp.ne.s32.totalorder %s203, %s204
    %p216 = scmp.eq.s32.totalorder %s21, 1
    %p217 = por %p215, %p216
    %p219 = scmp.ne.s32.totalorder %s204, %s218
    %p220 = scmp.eq.s32.totalorder %s21, 0
    %p221 = por %p219, %p220
    %s222 = ssub.s32 %s15, %s22
    %p223 = scmp.eq.s32.totalorder %s222, 0
    %s225 = sadd.s32 %s224, 1
    %s226 = scalar_select %p223, %s224, %s225
    %p229 = pneg %p223
    %p230 = scmp.eq.s32.totalorder %s15, 1
    %p231 = por %p229, %p230
    %p232 = scmp.ne.s32.totalorder %s224, %s227
    %p233 = scmp.eq.s32.totalorder %s15, 0
    %p234 = por %p232, %p233
    %p235 = scmp.ne.s32.totalorder %s224, %s227
    %p236 = scmp.eq.s32.totalorder %s20, 1
    %p237 = por %p235, %p236
    %p238 = scmp.ne.s32.totalorder %s227, %s228
    %p239 = scmp.eq.s32.totalorder %s20, 0
    %p240 = por %p238, %p239
    %p241 = scmp.ne.s32.totalorder %s227, %s228
    %p242 = scmp.eq.s32.totalorder %s21, 1
    %p243 = por %p241, %p242
    %p245 = scmp.ne.s32.totalorder %s228, %s244
    %p246 = scmp.eq.s32.totalorder %s21, 0
    %p247 = por %p245, %p246
    %p248 = scmp.le.s32.totalorder 1, %s15
    %p249 = scmp.lt.s32.totalorder %s15, 3
    %p250 = pnand %p248, %p249
    %p251 = pneg %p250
    // Predicated region
    $region9: #{lmim_forward.6} parent=5 // pred_check
      _
    $region10: #{lmim_forward.6} parent=5 // pred_check_branch
      %253 = sbr.rel (%p250) target = $region12
    $region11: #{lmim_forward.6} parent=5 // pred_region
      %s254 = ssub.s32 %s15, 1
      // Predicated region
      $region13: #{lmim_forward.6} parent=11 // pred_check
        %p255 = pneg %p88
      $region14: #{lmim_forward.6} parent=11 // pred_check_branch
        %257 = sbr.rel (%p255) target = $region16
      $region15: #{lmim_forward.6} parent=11 // pred_region
        _
      $region16: #{lmim_forward.6} parent=11 // pred_fallthru
        _
      // Predicated region
      $region17: #{lmim_forward.6} parent=11 // pred_check
        %p258 = pneg %p109
      $region18: #{lmim_forward.6} parent=11 // pred_check_branch
        %260 = sbr.rel (%p258) target = $region20
      $region19: #{lmim_forward.6} parent=11 // pred_region
        _
      $region20: #{lmim_forward.6} parent=11 // pred_fallthru
        _
      // Predicated region
      $region21: #{lmim_forward.6} parent=11 // pred_check
        %p261 = pneg %p130
      $region22: #{lmim_forward.6} parent=11 // pred_check_branch
        %263 = sbr.rel (%p261) target = $region24
      $region23: #{lmim_forward.6} parent=11 // pred_region
        _
      $region24: #{lmim_forward.6} parent=11 // pred_fallthru
        _
      // Predicated region
      $region25: #{lmim_forward.6} parent=11 // pred_check
        %p264 = pneg %p151
      $region26: #{lmim_forward.6} parent=11 // pred_check_branch
        %266 = sbr.rel (%p264) target = $region28
      $region27: #{lmim_forward.6} parent=11 // pred_region
        _
      $region28: #{lmim_forward.6} parent=11 // pred_fallthru
        _
      // Predicated region
      $region29: #{lmim_forward.6} parent=11 // pred_check
        %p267 = pneg %p172
      $region30: #{lmim_forward.6} parent=11 // pred_check_branch
        %269 = sbr.rel (%p267) target = $region32
      $region31: #{lmim_forward.6} parent=11 // pred_region
        _
      $region32: #{lmim_forward.6} parent=11 // pred_fallthru
        _
      // Predicated region
      $region33: #{lmim_forward.6} parent=11 // pred_check
        %p270 = pneg %p193
      $region34: #{lmim_forward.6} parent=11 // pred_check_branch
        %272 = sbr.rel (%p270) target = $region36
      $region35: #{lmim_forward.6} parent=11 // pred_region
        _
      $region36: #{lmim_forward.6} parent=11 // pred_fallthru
        _
      // Predicated region
      $region37: #{lmim_forward.6} parent=11 // pred_check
        %p273 = pneg %p214
      $region38: #{lmim_forward.6} parent=11 // pred_check_branch
        %275 = sbr.rel (%p273) target = $region40
      $region39: #{lmim_forward.6} parent=11 // pred_region
        _
      $region40: #{lmim_forward.6} parent=11 // pred_fallthru
        _
    $region12: #{lmim_forward.6} parent=5 // pred_fallthru
      _
    %p276 = scmp.lt.s32.totalorder %s15, 2
    // Predicated region
    $region41: #{lmim_forward.6} parent=5 // pred_check
      %p277 = pneg %p276
    $region42: #{lmim_forward.6} parent=5 // pred_check_branch
      %279 = sbr.rel (%p277) target = $region44
    $region43: #{lmim_forward.6} parent=5 // pred_region
      // Predicated region
      $region45: #{lmim_forward.6} parent=43 // pred_check
        %p280 = pneg %p35
      $region46: #{lmim_forward.6} parent=43 // pred_check_branch
        %282 = sbr.rel (%p280) target = $region48
      $region47: #{lmim_forward.6} parent=43 // pred_region
        %p283 = scmp.lt.s32.totalorder %s15, 1
        %s284 = scalar_select %p283, %s15, 1
        %s285 = smul.addr %s284, 2
        %s286 = smul.addr %s285, 8
        %s287 = scalar_lea.vmem %s0, %s286
      $region48: #{lmim_forward.6} parent=43 // pred_fallthru
        _
      // Predicated region
      $region49: #{lmim_forward.6} parent=43 // pred_check
        %p288 = pneg %p61
      $region50: #{lmim_forward.6} parent=43 // pred_check_branch
        %290 = sbr.rel (%p288) target = $region52
      $region51: #{lmim_forward.6} parent=43 // pred_region
        %p291 = scmp.lt.s32.totalorder %s15, 1
        %s292 = scalar_select %p291, %s15, 1
        %s293 = smul.addr %s292, 2
        %s294 = smul.addr %s293, 8
        %s295 = scalar_lea.vmem %s1, %s294
      $region52: #{lmim_forward.6} parent=43 // pred_fallthru
        _
    $region44: #{lmim_forward.6} parent=5 // pred_fallthru
      _
    %p296 = scmp.le.s32.totalorder 1, %s15
    %p297 = scmp.lt.s32.totalorder %s15, 3
    %p298 = pnand %p296, %p297
    %p299 = pneg %p298
    // Predicated region
    $region53: #{lmim_forward.6} parent=5 // pred_check
      _
    $region54: #{lmim_forward.6} parent=5 // pred_check_branch
      %301 = sbr.rel (%p298) target = $region56
    $region55: #{lmim_forward.6} parent=5 // pred_region
      %s302 = ssub.s32 %s15, 1
      %p303 = scmp.lt.s32.totalorder %s20, 1
      %s304 = scalar_select %p303, %s20, 1
      %s305 = smul.addr %s304, 2
      %s306 = smul.addr %s305, 8
      %s307 = scalar_lea.vmem %s0, %s306
      %p308 = pneg %p41
      %p309 = pneg %p38
      %p310 = scmp.lt.s32.totalorder %s20, 1
      %s311 = scalar_select %p310, %s20, 1
      %s312 = smul.addr %s311, 2
      %s313 = smul.addr %s312, 8
      %s314 = scalar_lea.vmem %s1, %s313
      %p315 = pneg %p67
      %p316 = pneg %p64
      %p317 = pneg %p88
      %p318 = pneg %p85
      %p319 = pneg %p109
      %p320 = pneg %p106
      %p321 = pneg %p130
      %p322 = pneg %p127
      %p323 = pneg %p151
      %p324 = pneg %p148
      %p325 = pneg %p172
      %p326 = pneg %p169
      %p327 = pneg %p193
      %p328 = pneg %p190
      %p329 = pneg %p214
      %p330 = pneg %p211
      %p331 = pneg %p240
      %p332 = pneg %p237
      %p333 = scmp.lt.s32.totalorder %s20, 1
      %s334 = scalar_select %p333, %s20, 1
      %s335 = smul.addr %s334, 2
      %s336 = smul.addr %s335, 8
      %s337 = scalar_lea.vmem %s9, %s336
      %p338 = scmp.lt.s32.totalorder %s20, 1
      %s339 = scalar_select %p338, %s20, 1
      %s340 = smul.addr %s339, 2
      %s341 = smul.addr %s340, 8
      %s342 = scalar_lea.vmem %s0, %s341
      %p343 = scmp.lt.s32.totalorder %s20, 1
      %s344 = scalar_select %p343, %s20, 1
      %s345 = smul.addr %s344, 2
      %s346 = smul.addr %s345, 8
      %s347 = scalar_lea.vmem %s1, %s346
      %p348 = scmp.lt.s32.totalorder %s20, 1
      %s349 = scalar_select %p348, %s20, 1
      %s350 = smul.addr %s349, 2
      %s351 = smul.addr %s350, 8
      %s352 = scalar_lea.vmem %s9, %s351
      %v353 = vld [vmem:[%s342] sm:$0xff]
      %v354 = vld [vmem:[%s342 + $0x8] sm:$0x1]
      %v355 = vld [vmem:[%s2] sm:$0xff]
      %v356 = vld [vmem:[%s2 + $0x8] sm:$0xff]
      %v357 = vld [vmem:[%s2 + $0x10] sm:$0xff]
      %v358 = vld [vmem:[%s2 + $0x18] sm:$0xff]
      %v359 = vld [vmem:[%s2 + $0x20] sm:$0xff]
      %v360 = vld [vmem:[%s2 + $0x28] sm:$0xff]
      %v361 = vld [vmem:[%s3] sm:$0x1]
      %v363 = vlaneseq
      %v364 = vshrl.u32 %v363, 7
      %v365 = vsub.s32 0, %v364
      %v366 = vrot.slane %v361, %v365
      %vm368 = vcmask 392192
      %v370 = vsel %vm368, %v353, 0
      %v373 = vsel %vm368, %v354, 0
      %375 = vmatprep.subr.mxu0 0.0
      %376 = vmatpush1.msra.mxu0 %v355
      %377 = vmatprep.subr.mxu0 0.0
      %378 = vmatpush1.msra.mxu0 %v356
      %379 = vmatprep.subr.mxu0 0.0
      %380 = vmatpush1.msra.mxu0 %v357
      %381 = vmatprep.subr.mxu0 0.0
      %382 = vmatpush1.msra.mxu0 %v358
      %383 = vmatprep.subr.mxu0 0.0
      %384 = vmatpush1.msra.mxu0 %v359
      %385 = vmatprep.subr.mxu0 0.0
      %386 = vmatpush1.msra.mxu0 %v360
      %387 = vmatprep.subr.mxu0 0.0
      %388 = vmatpush1.msra.mxu0 0.0
      %389 = vmatprep.subr.mxu0 0.0
      %390 = vmatpush1.msra.mxu0 0.0
      %391 = vmatprep.subr.mxu0 0.0
      %392 = vmatpush1.msra.mxu0 0.0
      %393 = vmatprep.subr.mxu0 0.0
      %394 = vmatpush1.msra.mxu0 0.0
      %395 = vmatprep.subr.mxu0 0.0
      %396 = vmatpush1.msra.mxu0 0.0
      %397 = vmatprep.subr.mxu0 0.0
      %398 = vmatpush1.msra.mxu0 0.0
      %399 = vmatprep.subr.mxu0 0.0
      %400 = vmatpush1.msra.mxu0 0.0
      %401 = vmatprep.subr.mxu0 0.0
      %402 = vmatpush1.msra.mxu0 0.0
      %403 = vmatprep.subr.mxu0 0.0
      %404 = vmatpush1.msra.mxu0 0.0
      %405 = vmatprep.subr.mxu0 0.0
      %406 = vmatpush1.msra.mxu0 0.0
      %407 = vmatprep.subr.mxu0 0.0
      %408 = vmatpush1.msra.mxu0 0.0
      %409 = vmatprep.subr.mxu0 0.0
      %410 = vmatpush1.msra.mxu0 0.0
      %411 = vmatprep.subr.mxu0 0.0
      %412 = vmatpush1.msra.mxu0 0.0
      %413 = vmatprep.subr.mxu0 0.0
      %414 = vmatpush1.msra.mxu0 0.0
      %415 = vmatprep.subr.mxu0 0.0
      %416 = vmatpush1.msra.mxu0 0.0
      %417 = vmatprep.subr.mxu0 0.0
      %418 = vmatpush1.msra.mxu0 0.0
      %419 = vmatprep.subr.mxu0 0.0
      %420 = vmatpush1.msra.mxu0 0.0
      %421 = vmatprep.subr.mxu0 0.0
      %422 = vmatpush1.msra.mxu0 0.0
      %423 = vmatprep.subr.mxu0 0.0
      %424 = vmatpush1.msra.mxu0 0.0
      %425 = vmatprep.subr.mxu0 0.0
      %426 = vmatpush1.msra.mxu0 0.0
      %427 = vmatprep.subr.mxu0 0.0
      %428 = vmatpush1.msra.mxu0 0.0
      %429 = vmatprep.subr.mxu0 0.0
      %430 = vmatpush1.msra.mxu0 0.0
      %431 = vmatprep.subr.mxu0 0.0
      %432 = vmatpush1.msra.mxu0 0.0
      %433 = vmatprep.subr.mxu0 0.0
      %434 = vmatpush1.msra.mxu0 0.0
      %435 = vmatprep.subr.mxu0 0.0
      %436 = vmatpush1.msra.mxu0 0.0
      %437 = vmatprep.subr.mxu0 0.0
      %438 = vmatpush1.msra.mxu0 0.0
      %439 = vmatprep.mubr.f32.mxu0 0.0
      %440 = vmatmul.mubr.f32.gmra.mrb[0].mxu0 %v370
      %v441 = vpop.f32.mrb[0].mxu0
      %v442 = vadd.f32 %v366, %v441
      %v443 = vpop.f32.mrb[0].mxu0
      %444 = vmatprep.mubr.f32.mxu0 0.0
      %445 = vmatmul.mubr.f32.gmra.mrb[0].mxu0 %v373
      %v446 = vpop.f32.mrb[0].mxu0
      %v447 = vadd.f32 %v366, %v446
      %v448 = vpop.f32.mrb[0].mxu0
      %449 = vdwg.mxu0
      %v450 = vld [vmem:[%s347] sm:$0xff]
      %v451 = vld [vmem:[%s347 + $0x8] sm:$0x1]
      %v452 = vadd.f32 %v442, %v450
      %v453 = vadd.f32 %v447, %v451
      %v454 = vld [vmem:[%s4] sm:$0x1]
      %v455 = vld [vmem:[%s5] sm:$0x1]
      %vm456 = vcmask 261120
      %v457 = vsel %vm456, %v452, 0.0
      %458 = vadd.xlane.f32.xlu0 %v457
      %v459 = vpop.xlane.xlu0 %458
      %vm460 = vcmask 253952
      %v461 = vsel %vm460, %v453, 0.0
      %462 = vadd.xlane.f32.xlu0 %v461
      %v463 = vpop.xlane.xlu0 %462
      %v464 = vrcp.pop 32.0
      %v465 = vmul.f32 %v459, %v464
      %v466 = vmul.f32 %v463, %v464
      %v467 = vsub.f32 %v452, %v465
      %v468 = vsub.f32 %v453, %v466
      %v469 = vmul.f32 %v467, %v467
      %v470 = vmul.f32 %v468, %v468
      %v471 = vsel %vm456, %v469, 0.0
      %472 = vadd.xlane.f32.xlu0 %v471
      %v473 = vpop.xlane.xlu0 %472
      %v474 = vsel %vm460, %v470, 0.0
      %475 = vadd.xlane.f32.xlu0 %v474
      %v476 = vpop.xlane.xlu0 %475
      %v477 = vmul.f32 %v473, %v464
      %v478 = vmul.f32 %v476, %v464
      %v479 = vadd.f32 %v477, 1e-05
      %v480 = vadd.f32 %v478, 1e-05
      %v481 = vrsqrt.pop %v479
      %v482 = vrsqrt.pop %v480
      %v483 = vmul.f32 %v467, %v481
      %v484 = vmul.f32 %v468, %v482
      %v486 = vlaneseq
      %v487 = vshrl.u32 %v486, 7
      %v488 = vsub.s32 0, %v487
      %v489 = vrot.slane %v454, %v488
      %v491 = vmul.f32 %v483, %v489
      %v492 = vmul.f32 %v484, %v489
      %v494 = vlaneseq
      %v495 = vshrl.u32 %v494, 7
      %v496 = vsub.s32 0, %v495
      %v497 = vrot.slane %v455, %v496
      %v499 = vadd.f32 %v491, %v497
      %v500 = vadd.f32 %v492, %v497
      %v501 = vld [vmem:[%s6] sm:$0xff]
      %v502 = vld [vmem:[%s6 + $0x8] sm:$0xff]
      %v503 = vld [vmem:[%s6 + $0x10] sm:$0xff]
      %v504 = vld [vmem:[%s6 + $0x18] sm:$0xff]
      %v506 = vsel %vm456, %v499, 0
      %v509 = vsel %vm456, %v500, 0
      %511 = vmatprep.subr.mxu0 0.0
      %512 = vmatpush1.msra.mxu0 %v501
      %513 = vmatprep.subr.mxu0 0.0
      %514 = vmatpush1.msra.mxu0 %v502
      %515 = vmatprep.subr.mxu0 0.0
      %516 = vmatpush1.msra.mxu0 %v503
      %517 = vmatprep.subr.mxu0 0.0
      %518 = vmatpush1.msra.mxu0 %v504
      %519 = vmatprep.subr.mxu0 0.0
      %520 = vmatpush1.msra.mxu0 0.0
      %521 = vmatprep.subr.mxu0 0.0
      %522 = vmatpush1.msra.mxu0 0.0
      %523 = vmatprep.subr.mxu0 0.0
      %524 = vmatpush1.msra.mxu0 0.0
      %525 = vmatprep.subr.mxu0 0.0
      %526 = vmatpush1.msra.mxu0 0.0
      %527 = vmatprep.subr.mxu0 0.0
      %528 = vmatpush1.msra.mxu0 0.0
      %529 = vmatprep.subr.mxu0 0.0
      %530 = vmatpush1.msra.mxu0 0.0
      %531 = vmatprep.subr.mxu0 0.0
      %532 = vmatpush1.msra.mxu0 0.0
      %533 = vmatprep.subr.mxu0 0.0
      %534 = vmatpush1.msra.mxu0 0.0
      %535 = vmatprep.subr.mxu0 0.0
      %536 = vmatpush1.msra.mxu0 0.0
      %537 = vmatprep.subr.mxu0 0.0
      %538 = vmatpush1.msra.mxu0 0.0
      %539 = vmatprep.subr.mxu0 0.0
      %540 = vmatpush1.msra.mxu0 0.0
      %541 = vmatprep.subr.mxu0 0.0
      %542 = vmatpush1.msra.mxu0 0.0
      %543 = vmatprep.subr.mxu0 0.0
      %544 = vmatpush1.msra.mxu0 0.0
      %545 = vmatprep.subr.mxu0 0.0
      %546 = vmatpush1.msra.mxu0 0.0
      %547 = vmatprep.subr.mxu0 0.0
      %548 = vmatpush1.msra.mxu0 0.0
      %549 = vmatprep.subr.mxu0 0.0
      %550 = vmatpush1.msra.mxu0 0.0
      %551 = vmatprep.subr.mxu0 0.0
      %552 = vmatpush1.msra.mxu0 0.0
      %553 = vmatprep.subr.mxu0 0.0
      %554 = vmatpush1.msra.mxu0 0.0
      %555 = vmatprep.subr.mxu0 0.0
      %556 = vmatpush1.msra.mxu0 0.0
      %557 = vmatprep.subr.mxu0 0.0
      %558 = vmatpush1.msra.mxu0 0.0
      %559 = vmatprep.subr.mxu0 0.0
      %560 = vmatpush1.msra.mxu0 0.0
      %561 = vmatprep.subr.mxu0 0.0
      %562 = vmatpush1.msra.mxu0 0.0
      %563 = vmatprep.subr.mxu0 0.0
      %564 = vmatpush1.msra.mxu0 0.0
      %565 = vmatprep.subr.mxu0 0.0
      %566 = vmatpush1.msra.mxu0 0.0
      %567 = vmatprep.subr.mxu0 0.0
      %568 = vmatpush1.msra.mxu0 0.0
      %569 = vmatprep.subr.mxu0 0.0
      %570 = vmatpush1.msra.mxu0 0.0
      %571 = vmatprep.subr.mxu0 0.0
      %572 = vmatpush1.msra.mxu0 0.0
      %573 = vmatprep.subr.mxu0 0.0
      %574 = vmatpush1.msra.mxu0 0.0
      %575 = vmatprep.mubr.f32.mxu0 0.0
      %576 = vmatmul.mubr.f32.gmra.mrb[0].mxu0 %v506
      %v577 = vpop.f32.mrb[0].mxu0
      %v578 = vadd.f32 0.0, %v577
      %v579 = vpop.f32.mrb[0].mxu0
      %580 = vmatprep.mubr.f32.mxu0 0.0
      %581 = vmatmul.mubr.f32.gmra.mrb[0].mxu0 %v509
      %v582 = vpop.f32.mrb[0].mxu0
      %v583 = vadd.f32 0.0, %v582
      %v584 = vpop.f32.mrb[0].mxu0
      %585 = vdwg.mxu0
      %v586 = vld [vmem:[%s7] sm:$0x1]
      %v587 = vld [vmem:[%s8] sm:$0x1]
      %v588 = vsel %vm456, %v578, 0.0
      %589 = vadd.xlane.f32.xlu0 %v588
      %v590 = vpop.xlane.xlu0 %589
      %v591 = vsel %vm460, %v583, 0.0
      %592 = vadd.xlane.f32.xlu0 %v591
      %v593 = vpop.xlane.xlu0 %592
      %v594 = vmul.f32 %v590, %v464
      %v595 = vmul.f32 %v593, %v464
      %v596 = vsub.f32 %v578, %v594
      %v597 = vsub.f32 %v583, %v595
      %v598 = vmul.f32 %v596, %v596
      %v599 = vmul.f32 %v597, %v597
      %v600 = vsel %vm456, %v598, 0.0
      %601 = vadd.xlane.f32.xlu0 %v600
      %v602 = vpop.xlane.xlu0 %601
      %v603 = vsel %vm460, %v599, 0.0
      %604 = vadd.xlane.f32.xlu0 %v603
      %v605 = vpop.xlane.xlu0 %604
      %v606 = vmul.f32 %v602, %v464
      %v607 = vmul.f32 %v605, %v464
      %v608 = vadd.f32 %v606, 1e-05
      %v609 = vadd.f32 %v607, 1e-05
      %v610 = vrsqrt.pop %v608
      %v611 = vrsqrt.pop %v609
      %v612 = vmul.f32 %v596, %v610
      %v613 = vmul.f32 %v597, %v611
      %v615 = vlaneseq
      %v616 = vshrl.u32 %v615, 7
      %v617 = vsub.s32 0, %v616
      %v618 = vrot.slane %v586, %v617
      %v620 = vmul.f32 %v612, %v618
      %v621 = vmul.f32 %v613, %v618
      %v623 = vlaneseq
      %v624 = vshrl.u32 %v623, 7
      %v625 = vsub.s32 0, %v624
      %v626 = vrot.slane %v587, %v625
      %v628 = vadd.f32 %v620, %v626
      %v629 = vadd.f32 %v621, %v626
      %630 = vst.msk [vmem:[%s352] sm:$0xff] %vm456, %v628
      %631 = vst.msk [vmem:[%s352 + $0x8] sm:$0x1] %vm460, %v629
      %p632 = scmp.lt.s32.totalorder %s20, 1
      %s633 = scalar_select %p632, %s20, 1
      %s634 = smul.addr %s633, 2
      %s635 = smul.addr %s634, 8
      %s636 = scalar_lea.vmem %s9, %s635
      // Predicated region
      $region57: #{lmim_forward.6} parent=55 // pred_check
        %p637 = pneg %p237
      $region58: #{lmim_forward.6} parent=55 // pred_check_branch
        %639 = sbr.rel (%p637) target = $region60
      $region59: #{lmim_forward.6} parent=55 // pred_region
        _
      $region60: #{lmim_forward.6} parent=55 // pred_fallthru
        _
    $region56: #{lmim_forward.6} parent=5 // pred_fallthru
      _
    %p640 = scmp.le.s32.totalorder 2, %s15
    // Predicated region
    $region61: #{lmim_forward.6} parent=5 // pred_check
      %p641 = pneg %p640
    $region62: #{lmim_forward.6} parent=5 // pred_check_branch
      %643 = sbr.rel (%p641) target = $region64
    $region63: #{lmim_forward.6} parent=5 // pred_region
      %s644 = ssub.s32 %s15, 2
      // Predicated region
      $region65: #{lmim_forward.6} parent=63 // pred_check
        %p645 = pneg %p243
      $region66: #{lmim_forward.6} parent=63 // pred_check_branch
        %647 = sbr.rel (%p645) target = $region68
      $region67: #{lmim_forward.6} parent=63 // pred_region
        %p648 = scmp.lt.s32.totalorder %s21, 1
        %s649 = scalar_select %p648, %s21, 1
        %s650 = smul.addr %s649, 2
        %s651 = smul.addr %s650, 8
        %s652 = scalar_lea.vmem %s9, %s651
      $region68: #{lmim_forward.6} parent=63 // pred_fallthru
        _
    $region64: #{lmim_forward.6} parent=5 // pred_fallthru
      _
  $region6: #{lmim_forward.6} parent=0 // loop_footer
    %s19 = sadd.s32 1, %s15
  $region7: #{lmim_forward.6} parent=0 // loop_footer_branch
    %14 = sbr.rel target = $region3
  $region8: #{lmim_forward.6} parent=0 // loop_exit
    _

// kernel: lmim_forward.7
$region0: #{lmim_forward.7}
  #allocation0 [shape = 'u32[]', space=smem, size = 0x4, offset = 0x4, fixed_abs, tag = 'smem constant byte address 0x4 - core index']
  #allocation1 [shape = 'u32[144,128]{1,0:T(1,128)}', space=vmem, size = 0x12000, scoped, tag = 'internal scratch']
  %s0 = inlined_call_operand.vmem [shape: f32[2,8,32], index: 0, kind: input, shape index: {}]
  %s1 = inlined_call_operand.vmem [shape: f32[2,8,32], index: 1, kind: input, shape index: {}]
  %s2 = inlined_call_operand.vmem [shape: f32[2,8,32], index: 2, kind: input, shape index: {}]
  %s3 = inlined_call_operand.hbm [shape: f32[1,1], index: 3, kind: output, shape index: {0}]
  %s4 = inlined_call_operand.hbm [shape: f32[1,1], index: 4, kind: output, shape index: {1}]
  %s5 = inlined_call_operand.hbm [shape: f32[1,1], index: 5, kind: output, shape index: {2}]
  %s6 = inlined_call_operand.hbm [shape: f32[1,1], index: 6, kind: output, shape index: {3}]
  %7 = xla_tuple %s3, %s4, %s5, %s6
  %s8 = sld [smem:[#allocation0]]
  $region46: #{lmim_forward.7} parent=0
    _
  %s10 = ssub.s32 1, %s8
  %s11 = scalar_select 0, %s10, %s8
  $region1: #{lmim_forward.7} parent=0
    #allocation2 [shape = 'u8[512]{0}', space=vmem, size = 0x400, scoped, tag = 'output window, operand 0, single buffered']
    #allocation3 [shape = 's32[1]{0}', space=sflag, size = 0x4, scoped, tag = 'scoped memory for lmim_forward.7']
    #allocation4 [shape = 'u8[512]{0}', space=vmem, size = 0x400, scoped, tag = 'output window, operand 1, single buffered']
    #allocation5 [shape = 's32[1]{0}', space=sflag, size = 0x4, scoped, tag = 'scoped memory for lmim_forward.7']
    #allocation6 [shape = 'u8[512]{0}', space=vmem, size = 0x400, scoped, tag = 'output window, operand 2, single buffered']
    #allocation7 [shape = 'u8[512]{0}', space=vmem, size = 0x400, scoped, tag = 'output window, operand 3, single buffered']
    #allocation8 [shape = 's32[1]{0}', space=sflag, size = 0x4, scoped, tag = 'scoped memory for lmim_forward.7']
    %12 = vsyncpa [#allocation3], 0
    %13 = vsyncpa [#allocation5], 0
    %14 = vsyncpa [#allocation8], 0
    // Predicated region
    $region2: #{lmim_forward.7} parent=1 // pred_check
      _
    $region3: #{lmim_forward.7} parent=1 // pred_check_branch
      %16 = sbr.rel (0) target = $region5
    $region4: #{lmim_forward.7} parent=1 // pred_region
      _
    $region5: #{lmim_forward.7} parent=1 // pred_fallthru
      _
    // Predicated region
    $region6: #{lmim_forward.7} parent=1 // pred_check
      _
    $region7: #{lmim_forward.7} parent=1 // pred_check_branch
      %18 = sbr.rel (0) target = $region9
    $region8: #{lmim_forward.7} parent=1 // pred_region
      _
    $region9: #{lmim_forward.7} parent=1 // pred_fallthru
      _
    // Predicated region
    $region10: #{lmim_forward.7} parent=1 // pred_check
      _
    $region11: #{lmim_forward.7} parent=1 // pred_check_branch
      %20 = sbr.rel (0) target = $region13
    $region12: #{lmim_forward.7} parent=1 // pred_region
      _
    $region13: #{lmim_forward.7} parent=1 // pred_fallthru
      _
    %v21 = vld [vmem:[%s0] sm:$0xff]
    %v22 = vld [vmem:[%s1] sm:$0xff]
    %v23 = vld [vmem:[%s2] sm:$0xff]
    %vm24 = vcmask 261120
    %v25 = vsel %vm24, %v21, 0.0
    %v26 = vrot.slane %v25, 4
    %v27 = vadd.f32 %v25, %v26
    %v28 = vrot.slane %v27, 2
    %v29 = vadd.f32 %v27, %v28
    %v30 = vrot.slane %v29, 1
    %v31 = vadd.f32 %v29, %v30
    %v32 = vrcp.pop 8.0
    %v33 = vmul.f32 %v31, %v32
    %v34 = vsub.f32 %v21, %v33
    %v35 = vmul.f32 %v34, %v34
    %v36 = vsel %vm24, %v35, 0.0
    %v37 = vrot.slane %v36, 4
    %v38 = vadd.f32 %v36, %v37
    %v39 = vrot.slane %v38, 2
    %v40 = vadd.f32 %v38, %v39
    %v41 = vrot.slane %v40, 1
    %v42 = vadd.f32 %v40, %v41
    %v43 = vrcp.pop 7.0
    %v44 = vmul.f32 %v42, %v43
    %v45 = vrsqrt.pop %v44
    %v46 = vmul.f32 %v44, %v45
    %vm47 = vcmp.eq.f32.partialorder %v44, inf
    %v48 = vsel %vm47, %v44, %v46
    %vm49 = vcmp.eq.f32.partialorder %v44, 0.0
    %v50 = vand.u32 %v44, 2147483648
    %v51 = vsel %vm49, %v50, %v48
    %v52 = vadd.f32 %v51, 0.0001
    %v53 = vrcp.pop %v52
    %v54 = vmul.f32 %v34, %v53
    %v55 = vmul.f32 %v54, %v54
    %v56 = vsel %vm24, %v55, 0.0
    %57 = vadd.xlane.f32.xlu0 %v56
    %v58 = vpop.xlane.xlu0 %57
    %v59 = vrsqrt.pop %v58
    %v60 = vmul.f32 %v58, %v59
    %vm61 = vcmp.eq.f32.partialorder %v58, inf
    %v62 = vsel %vm61, %v58, %v60
    %vm63 = vcmp.eq.f32.partialorder %v58, 0.0
    %v64 = vand.u32 %v58, 2147483648
    %v65 = vsel %vm63, %v64, %v62
    %v66 = vmax.f32 %v65, 1e-12
    %v67 = vrcp.pop %v66
    %v68 = vmul.f32 %v54, %v67
    %v69 = vmul.f32 %v22, %v22
    %v70 = vsel %vm24, %v69, 0.0
    %71 = vadd.xlane.f32.xlu0 %v70
    %v72 = vpop.xlane.xlu0 %71
    %v73 = vrsqrt.pop %v72
    %v74 = vmul.f32 %v72, %v73
    %vm75 = vcmp.eq.f32.partialorder %v72, inf
    %v76 = vsel %vm75, %v72, %v74
    %vm77 = vcmp.eq.f32.partialorder %v72, 0.0
    %v78 = vand.u32 %v72, 2147483648
    %v79 = vsel %vm77, %v78, %v76
    %v80 = vmax.f32 %v79, 1e-12
    %v81 = vrcp.pop %v80
    %v82 = vmul.f32 %v22, %v81
    %v84 = vsel %vm24, %v68, 0
    %v87 = vsel %vm24, %v82, 0
    %89 = vmatprep.subr.mxu0 0.0
    %90 = vmatpush1.xpose.msra.mxu0 %v87
    %91 = vmatprep.subr.mxu0 0.0
    %92 = vmatpush1.xpose.msra.mxu0 0.0
    %93 = vmatprep.subr.mxu0 0.0
    %94 = vmatpush1.xpose.msra.mxu0 0.0
    %95 = vmatprep.subr.mxu0 0.0
    %96 = vmatpush1.xpose.msra.mxu0 0.0
    %97 = vmatprep.subr.mxu0 0.0
    %98 = vmatpush1.xpose.msra.mxu0 0.0
    %99 = vmatprep.subr.mxu0 0.0
    %100 = vmatpush1.xpose.msra.mxu0 0.0
    %101 = vmatprep.subr.mxu0 0.0
    %102 = vmatpush1.xpose.msra.mxu0 0.0
    %103 = vmatprep.subr.mxu0 0.0
    %104 = vmatpush1.xpose.msra.mxu0 0.0
    %105 = vmatprep.subr.mxu0 0.0
    %106 = vmatpush1.xpose.msra.mxu0 0.0
    %107 = vmatprep.subr.mxu0 0.0
    %108 = vmatpush1.xpose.msra.mxu0 0.0
    %109 = vmatprep.subr.mxu0 0.0
    %110 = vmatpush1.xpose.msra.mxu0 0.0
    %111 = vmatprep.subr.mxu0 0.0
    %112 = vmatpush1.xpose.msra.mxu0 0.0
    %113 = vmatprep.subr.mxu0 0.0
    %114 = vmatpush1.xpose.msra.mxu0 0.0
    %115 = vmatprep.subr.mxu0 0.0
    %116 = vmatpush1.xpose.msra.mxu0 0.0
    %117 = vmatprep.subr.mxu0 0.0
    %118 = vmatpush1.xpose.msra.mxu0 0.0
    %119 = vmatprep.subr.mxu0 0.0
    %120 = vmatpush1.xpose.msra.mxu0 0.0
    %121 = vmatprep.subr.mxu0 0.0
    %122 = vmatpush1.xpose.msra.mxu0 0.0
    %123 = vmatprep.subr.mxu0 0.0
    %124 = vmatpush1.xpose.msra.mxu0 0.0
    %125 = vmatprep.subr.mxu0 0.0
    %126 = vmatpush1.xpose.msra.mxu0 0.0
    %127 = vmatprep.subr.mxu0 0.0
    %128 = vmatpush1.xpose.msra.mxu0 0.0
    %129 = vmatprep.subr.mxu0 0.0
    %130 = vmatpush1.xpose.msra.mxu0 0.0
    %131 = vmatprep.subr.mxu0 0.0
    %132 = vmatpush1.xpose.msra.mxu0 0.0
    %133 = vmatprep.subr.mxu0 0.0
    %134 = vmatpush1.xpose.msra.mxu0 0.0
    %135 = vmatprep.subr.mxu0 0.0
    %136 = vmatpush1.xpose.msra.mxu0 0.0
    %137 = vmatprep.subr.mxu0 0.0
    %138 = vmatpush1.xpose.msra.mxu0 0.0
    %139 = vmatprep.subr.mxu0 0.0
    %140 = vmatpush1.xpose.msra.mxu0 0.0
    %141 = vmatprep.subr.mxu0 0.0
    %142 = vmatpush1.xpose.msra.mxu0 0.0
    %143 = vmatprep.subr.mxu0 0.0
    %144 = vmatpush1.xpose.msra.mxu0 0.0
    %145 = vmatprep.subr.mxu0 0.0
    %146 = vmatpush1.xpose.msra.mxu0 0.0
    %147 = vmatprep.subr.mxu0 0.0
    %148 = vmatpush1.xpose.msra.mxu0 0.0
    %149 = vmatprep.subr.mxu0 0.0
    %150 = vmatpush1.xpose.msra.mxu0 0.0
    %151 = vmatprep.subr.mxu0 0.0
    %152 = vmatpush1.xpose.msra.mxu0 0.0
    %153 = vmatprep.mubr.f32.mxu0 0.0
    %154 = vmatmul.mubr.f32.gmra.mrb[0].mxu0 %v84
    %v155 = vpop.f32.mrb[0].mxu0
    %v156 = vadd.f32 0.0, %v155
    %v157 = vpop.f32.mrb[0].mxu0
    %158 = vdwg.mxu0
    %v159 = vrcp.pop 0.2
    %v160 = vmul.f32 %v156, %v159
    %vm161 = vcmask 64512
    %v162 = vsel %vm161, %v160, -inf
    %163 = vmax.xlane.f32.xlu0 %v162
    %v164 = vpop.xlane.xlu0 %163
    %v165 = vsub.f32 %v160, %v164
    %v166 = vmul.f32 %v165, 1.442695
    %v167 = vpow.pop %v166
    %v168 = vsel %vm161, %v167, 0.0
    %169 = vadd.xlane.f32.xlu0 %v168
    %v170 = vpop.xlane.xlu0 %169
    %v171 = vlog2.pop %v170
    %v172 = vmul.f32 %v171, 0.6931472
    %v173 = vadd.f32 %v164, %v172
    %v174 = vlaneseq
    %v175 = vshrl.u32 %v174, 7
    %v176 = vlaneseq
    %v177 = vand.u32 %v176, 127
    %vm178 = vcmp.eq.s32.totalorder %v175, %v177
    %v179 = vsel %vm178, %v160, 0.0
    %v180 = vsel %vm161, %v179, 0.0
    %181 = vadd.xlane.f32.xlu0 %v180
    %v182 = vpop.xlane.xlu0 %181
    %v183 = vsub.f32 %v173, %v182
    %vm184 = vcmask 7168
    %v185 = vsel %vm184, %v183, 0.0
    %186 = vadd.xlane.f32.xlu0 %v185
    %v187 = vpop.xlane.xlu0 %186
    %v188 = vrot.slane %v187, 4
    %v189 = vadd.f32 %v187, %v188
    %v190 = vrot.slane %v189, 2
    %v191 = vadd.f32 %v189, %v190
    %v192 = vrot.slane %v191, 1
    %v193 = vadd.f32 %v191, %v192
    %s194 = vtos %v193
    %v195 = vstv %s194
    %v196 = vadd.f32 %v195, 0.0
    %v197 = vmul.f32 %v21, %v21
    %v198 = vsel %vm24, %v197, 0.0
    %199 = vadd.xlane.f32.xlu0 %v198
    %v200 = vpop.xlane.xlu0 %199
    %v201 = vrsqrt.pop %v200
    %v202 = vmul.f32 %v200, %v201
    %vm203 = vcmp.eq.f32.partialorder %v200, inf
    %v204 = vsel %vm203, %v200, %v202
    %vm205 = vcmp.eq.f32.partialorder %v200, 0.0
    %v206 = vand.u32 %v200, 2147483648
    %v207 = vsel %vm205, %v206, %v204
    %v208 = vmax.f32 %v207, 1e-12
    %v209 = vrcp.pop %v208
    %v210 = vmul.f32 %v21, %v209
    %v211 = vmul.f32 %v23, %v23
    %v212 = vsel %vm24, %v211, 0.0
    %213 = vadd.xlane.f32.xlu0 %v212
    %v214 = vpop.xlane.xlu0 %213
    %v215 = vrsqrt.pop %v214
    %v216 = vmul.f32 %v214, %v215
    %vm217 = vcmp.eq.f32.partialorder %v214, inf
    %v218 = vsel %vm217, %v214, %v216
    %vm219 = vcmp.eq.f32.partialorder %v214, 0.0
    %v220 = vand.u32 %v214, 2147483648
    %v221 = vsel %vm219, %v220, %v218
    %v222 = vmax.f32 %v221, 1e-12
    %v223 = vrcp.pop %v222
    %v224 = vmul.f32 %v23, %v223
    %v226 = vsel %vm24, %v210, 0
    %228 = vmatprep.subr.mxu0 0.0
    %229 = vmatpush1.xpose.msra.mxu0 %v226
    %230 = vmatprep.subr.mxu0 0.0
    %231 = vmatpush1.xpose.msra.mxu0 0.0
    %232 = vmatprep.subr.mxu0 0.0
    %233 = vmatpush1.xpose.msra.mxu0 0.0
    %234 = vmatprep.subr.mxu0 0.0
    %235 = vmatpush1.xpose.msra.mxu0 0.0
    %236 = vmatprep.subr.mxu0 0.0
    %237 = vmatpush1.xpose.msra.mxu0 0.0
    %238 = vmatprep.subr.mxu0 0.0
    %239 = vmatpush1.xpose.msra.mxu0 0.0
    %240 = vmatprep.subr.mxu0 0.0
    %241 = vmatpush1.xpose.msra.mxu0 0.0
    %242 = vmatprep.subr.mxu0 0.0
    %243 = vmatpush1.xpose.msra.mxu0 0.0
    %244 = vmatprep.subr.mxu0 0.0
    %245 = vmatpush1.xpose.msra.mxu0 0.0
    %246 = vmatprep.subr.mxu0 0.0
    %247 = vmatpush1.xpose.msra.mxu0 0.0
    %248 = vmatprep.subr.mxu0 0.0
    %249 = vmatpush1.xpose.msra.mxu0 0.0
    %250 = vmatprep.subr.mxu0 0.0
    %251 = vmatpush1.xpose.msra.mxu0 0.0
    %252 = vmatprep.subr.mxu0 0.0
    %253 = vmatpush1.xpose.msra.mxu0 0.0
    %254 = vmatprep.subr.mxu0 0.0
    %255 = vmatpush1.xpose.msra.mxu0 0.0
    %256 = vmatprep.subr.mxu0 0.0
    %257 = vmatpush1.xpose.msra.mxu0 0.0
    %258 = vmatprep.subr.mxu0 0.0
    %259 = vmatpush1.xpose.msra.mxu0 0.0
    %260 = vmatprep.subr.mxu0 0.0
    %261 = vmatpush1.xpose.msra.mxu0 0.0
    %262 = vmatprep.subr.mxu0 0.0
    %263 = vmatpush1.xpose.msra.mxu0 0.0
    %264 = vmatprep.subr.mxu0 0.0
    %265 = vmatpush1.xpose.msra.mxu0 0.0
    %266 = vmatprep.subr.mxu0 0.0
    %267 = vmatpush1.xpose.msra.mxu0 0.0
    %268 = vmatprep.subr.mxu0 0.0
    %269 = vmatpush1.xpose.msra.mxu0 0.0
    %270 = vmatprep.subr.mxu0 0.0
    %271 = vmatpush1.xpose.msra.mxu0 0.0
    %272 = vmatprep.subr.mxu0 0.0
    %273 = vmatpush1.xpose.msra.mxu0 0.0
    %274 = vmatprep.subr.mxu0 0.0
    %275 = vmatpush1.xpose.msra.mxu0 0.0
    %276 = vmatprep.subr.mxu0 0.0
    %277 = vmatpush1.xpose.msra.mxu0 0.0
    %278 = vmatprep.subr.mxu0 0.0
    %279 = vmatpush1.xpose.msra.mxu0 0.0
    %280 = vmatprep.subr.mxu0 0.0
    %281 = vmatpush1.xpose.msra.mxu0 0.0
    %282 = vmatprep.subr.mxu0 0.0
    %283 = vmatpush1.xpose.msra.mxu0 0.0
    %284 = vmatprep.subr.mxu0 0.0
    %285 = vmatpush1.xpose.msra.mxu0 0.0
    %286 = vmatprep.subr.mxu0 0.0
    %287 = vmatpush1.xpose.msra.mxu0 0.0
    %288 = vmatprep.subr.mxu0 0.0
    %289 = vmatpush1.xpose.msra.mxu0 0.0
    %290 = vmatprep.subr.mxu0 0.0
    %291 = vmatpush1.xpose.msra.mxu0 0.0
    %292 = vmatprep.mubr.f32.mxu0 0.0
    %293 = vmatmul.mubr.f32.gmra.mrb[0].mxu0 %v226
    %v294 = vpop.f32.mrb[0].mxu0
    %v295 = vadd.f32 0.0, %v294
    %v296 = vpop.f32.mrb[0].mxu0
    %297 = vdwg.mxu0
    %v298 = vsel %vm161, %v295, 0.0
    %299 = vadd.xlane.f32.xlu0 %v298
    %v300 = vpop.xlane.xlu0 %299
    %v301 = vrot.slane %v300, 4
    %v302 = vadd.f32 %v300, %v301
    %v303 = vrot.slane %v302, 2
    %v304 = vadd.f32 %v302, %v303
    %v305 = vrot.slane %v304, 1
    %v306 = vadd.f32 %v304, %v305
    %s307 = vtos %v306
    %v308 = vstv %s307
    %v309 = vadd.f32 %v308, 0.0
    %v311 = vsel %vm24, %v224, 0
    %313 = vmatprep.subr.mxu0 0.0
    %314 = vmatpush1.xpose.msra.mxu0 %v311
    %315 = vmatprep.subr.mxu0 0.0
    %316 = vmatpush1.xpose.msra.mxu0 0.0
    %317 = vmatprep.subr.mxu0 0.0
    %318 = vmatpush1.xpose.msra.mxu0 0.0
    %319 = vmatprep.subr.mxu0 0.0
    %320 = vmatpush1.xpose.msra.mxu0 0.0
    %321 = vmatprep.subr.mxu0 0.0
    %322 = vmatpush1.xpose.msra.mxu0 0.0
    %323 = vmatprep.subr.mxu0 0.0
    %324 = vmatpush1.xpose.msra.mxu0 0.0
    %325 = vmatprep.subr.mxu0 0.0
    %326 = vmatpush1.xpose.msra.mxu0 0.0
    %327 = vmatprep.subr.mxu0 0.0
    %328 = vmatpush1.xpose.msra.mxu0 0.0
    %329 = vmatprep.subr.mxu0 0.0
    %330 = vmatpush1.xpose.msra.mxu0 0.0
    %331 = vmatprep.subr.mxu0 0.0
    %332 = vmatpush1.xpose.msra.mxu0 0.0
    %333 = vmatprep.subr.mxu0 0.0
    %334 = vmatpush1.xpose.msra.mxu0 0.0
    %335 = vmatprep.subr.mxu0 0.0
    %336 = vmatpush1.xpose.msra.mxu0 0.0
    %337 = vmatprep.subr.mxu0 0.0
    %338 = vmatpush1.xpose.msra.mxu0 0.0
    %339 = vmatprep.subr.mxu0 0.0
    %340 = vmatpush1.xpose.msra.mxu0 0.0
    %341 = vmatprep.subr.mxu0 0.0
    %342 = vmatpush1.xpose.msra.mxu0 0.0
    %343 = vmatprep.subr.mxu0 0.0
    %344 = vmatpush1.xpose.msra.mxu0 0.0
    %345 = vmatprep.subr.mxu0 0.0
    %346 = vmatpush1.xpose.msra.mxu0 0.0
    %347 = vmatprep.subr.mxu0 0.0
    %348 = vmatpush1.xpose.msra.mxu0 0.0
    %349 = vmatprep.subr.mxu0 0.0
    %350 = vmatpush1.xpose.msra.mxu0 0.0
    %351 = vmatprep.subr.mxu0 0.0
    %352 = vmatpush1.xpose.msra.mxu0 0.0
    %353 = vmatprep.subr.mxu0 0.0
    %354 = vmatpush1.xpose.msra.mxu0 0.0
    %355 = vmatprep.subr.mxu0 0.0
    %356 = vmatpush1.xpose.msra.mxu0 0.0
    %357 = vmatprep.subr.mxu0 0.0
    %358 = vmatpush1.xpose.msra.mxu0 0.0
    %359 = vmatprep.subr.mxu0 0.0
    %360 = vmatpush1.xpose.msra.mxu0 0.0
    %361 = vmatprep.subr.mxu0 0.0
    %362 = vmatpush1.xpose.msra.mxu0 0.0
    %363 = vmatprep.subr.mxu0 0.0
    %364 = vmatpush1.xpose.msra.mxu0 0.0
    %365 = vmatprep.subr.mxu0 0.0
    %366 = vmatpush1.xpose.msra.mxu0 0.0
    %367 = vmatprep.subr.mxu0 0.0
    %368 = vmatpush1.xpose.msra.mxu0 0.0
    %369 = vmatprep.subr.mxu0 0.0
    %370 = vmatpush1.xpose.msra.mxu0 0.0
    %371 = vmatprep.subr.mxu0 0.0
    %372 = vmatpush1.xpose.msra.mxu0 0.0
    %373 = vmatprep.subr.mxu0 0.0
    %374 = vmatpush1.xpose.msra.mxu0 0.0
    %375 = vmatprep.subr.mxu0 0.0
    %376 = vmatpush1.xpose.msra.mxu0 0.0
    %377 = vmatprep.mubr.f32.mxu0 0.0
    %378 = vmatmul.mubr.f32.gmra.mrb[0].mxu0 %v311
    %v379 = vpop.f32.mrb[0].mxu0
    %v380 = vadd.f32 0.0, %v379
    %v381 = vpop.f32.mrb[0].mxu0
    %382 = vdwg.mxu0
    %v383 = vsel %vm161, %v380, 0.0
    %384 = vadd.xlane.f32.xlu0 %v383
    %v385 = vpop.xlane.xlu0 %384
    %v386 = vrot.slane %v385, 4
    %v387 = vadd.f32 %v385, %v386
    %v388 = vrot.slane %v387, 2
    %v389 = vadd.f32 %v387, %v388
    %v390 = vrot.slane %v389, 1
    %v391 = vadd.f32 %v389, %v390
    %s392 = vtos %v391
    %v393 = vstv %s392
    %v394 = vadd.f32 %v393, 0.0
    %395 = vmatprep.subr.mxu0 0.0
    %396 = vmatpush1.xpose.msra.mxu0 %v87
    %397 = vmatprep.subr.mxu0 0.0
    %398 = vmatpush1.xpose.msra.mxu0 0.0
    %399 = vmatprep.subr.mxu0 0.0
    %400 = vmatpush1.xpose.msra.mxu0 0.0
    %401 = vmatprep.subr.mxu0 0.0
    %402 = vmatpush1.xpose.msra.mxu0 0.0
    %403 = vmatprep.subr.mxu0 0.0
    %404 = vmatpush1.xpose.msra.mxu0 0.0
    %405 = vmatprep.subr.mxu0 0.0
    %406 = vmatpush1.xpose.msra.mxu0 0.0
    %407 = vmatprep.subr.mxu0 0.0
    %408 = vmatpush1.xpose.msra.mxu0 0.0
    %409 = vmatprep.subr.mxu0 0.0
    %410 = vmatpush1.xpose.msra.mxu0 0.0
    %411 = vmatprep.subr.mxu0 0.0
    %412 = vmatpush1.xpose.msra.mxu0 0.0
    %413 = vmatprep.subr.mxu0 0.0
    %414 = vmatpush1.xpose.msra.mxu0 0.0
    %415 = vmatprep.subr.mxu0 0.0
    %416 = vmatpush1.xpose.msra.mxu0 0.0
    %417 = vmatprep.subr.mxu0 0.0
    %418 = vmatpush1.xpose.msra.mxu0 0.0
    %419 = vmatprep.subr.mxu0 0.0
    %420 = vmatpush1.xpose.msra.mxu0 0.0
    %421 = vmatprep.subr.mxu0 0.0
    %422 = vmatpush1.xpose.msra.mxu0 0.0
    %423 = vmatprep.subr.mxu0 0.0
    %424 = vmatpush1.xpose.msra.mxu0 0.0
    %425 = vmatprep.subr.mxu0 0.0
    %426 = vmatpush1.xpose.msra.mxu0 0.0
    %427 = vmatprep.subr.mxu0 0.0
    %428 = vmatpush1.xpose.msra.mxu0 0.0
    %429 = vmatprep.subr.mxu0 0.0
    %430 = vmatpush1.xpose.msra.mxu0 0.0
    %431 = vmatprep.subr.mxu0 0.0
    %432 = vmatpush1.xpose.msra.mxu0 0.0
    %433 = vmatprep.subr.mxu0 0.0
    %434 = vmatpush1.xpose.msra.mxu0 0.0
    %435 = vmatprep.subr.mxu0 0.0
    %436 = vmatpush1.xpose.msra.mxu0 0.0
    %437 = vmatprep.subr.mxu0 0.0
    %438 = vmatpush1.xpose.msra.mxu0 0.0
    %439 = vmatprep.subr.mxu0 0.0
    %440 = vmatpush1.xpose.msra.mxu0 0.0
    %441 = vmatprep.subr.mxu0 0.0
    %442 = vmatpush1.xpose.msra.mxu0 0.0
    %443 = vmatprep.subr.mxu0 0.0
    %444 = vmatpush1.xpose.msra.mxu0 0.0
    %445 = vmatprep.subr.mxu0 0.0
    %446 = vmatpush1.xpose.msra.mxu0 0.0
    %447 = vmatprep.subr.mxu0 0.0
    %448 = vmatpush1.xpose.msra.mxu0 0.0
    %449 = vmatprep.subr.mxu0 0.0
    %450 = vmatpush1.xpose.msra.mxu0 0.0
    %451 = vmatprep.subr.mxu0 0.0
    %452 = vmatpush1.xpose.msra.mxu0 0.0
    %453 = vmatprep.subr.mxu0 0.0
    %454 = vmatpush1.xpose.msra.mxu0 0.0
    %455 = vmatprep.subr.mxu0 0.0
    %456 = vmatpush1.xpose.msra.mxu0 0.0
    %457 = vmatprep.subr.mxu0 0.0
    %458 = vmatpush1.xpose.msra.mxu0 0.0
    %459 = vmatprep.mubr.f32.mxu0 0.0
    %460 = vmatmul.mubr.f32.gmra.mrb[0].mxu0 %v87
    %v461 = vpop.f32.mrb[0].mxu0
    %v462 = vadd.f32 0.0, %v461
    %v463 = vpop.f32.mrb[0].mxu0
    %464 = vdwg.mxu0
    %v465 = vsel %vm161, %v462, 0.0
    %466 = vadd.xlane.f32.xlu0 %v465
    %v467 = vpop.xlane.xlu0 %466
    %v468 = vrot.slane %v467, 4
    %v469 = vadd.f32 %v467, %v468
    %v470 = vrot.slane %v469, 2
    %v471 = vadd.f32 %v469, %v470
    %v472 = vrot.slane %v471, 1
    %v473 = vadd.f32 %v471, %v472
    %s474 = vtos %v473
    %v475 = vstv %s474
    %v476 = vadd.f32 %v475, 0.0
    %s477 = scalar_lea.vmem %s0, 8
    %v478 = vld [vmem:[%s477] sm:$0xff]
    %s479 = scalar_lea.vmem %s1, 8
    %v480 = vld [vmem:[%s479] sm:$0xff]
    %s481 = scalar_lea.vmem %s2, 8
    %v482 = vld [vmem:[%s481] sm:$0xff]
    %v483 = vsel %vm24, %v478, 0.0
    %v484 = vrot.slane %v483, 4
    %v485 = vadd.f32 %v483, %v484
    %v486 = vrot.slane %v485, 2
    %v487 = vadd.f32 %v485, %v486
    %v488 = vrot.slane %v487, 1
    %v489 = vadd.f32 %v487, %v488
    %v490 = vmul.f32 %v489, %v32
    %v491 = vsub.f32 %v478, %v490
    %v492 = vmul.f32 %v491, %v491
    %v493 = vsel %vm24, %v492, 0.0
    %v494 = vrot.slane %v493, 4
    %v495 = vadd.f32 %v493, %v494
    %v496 = vrot.slane %v495, 2
    %v497 = vadd.f32 %v495, %v496
    %v498 = vrot.slane %v497, 1
    %v499 = vadd.f32 %v497, %v498
    %v500 = vmul.f32 %v499, %v43
    %v501 = vrsqrt.pop %v500
    %v502 = vmul.f32 %v500, %v501
    %vm503 = vcmp.eq.f32.partialorder %v500, inf
    %v504 = vsel %vm503, %v500, %v502
    %vm505 = vcmp.eq.f32.partialorder %v500, 0.0
    %v506 = vand.u32 %v500, 2147483648
    %v507 = vsel %vm505, %v506, %v504
    %v508 = vadd.f32 %v507, 0.0001
    %v509 = vrcp.pop %v508
    %v510 = vmul.f32 %v491, %v509
    %v511 = vmul.f32 %v510, %v510
    %v512 = vsel %vm24, %v511, 0.0
    %513 = vadd.xlane.f32.xlu0 %v512
    %v514 = vpop.xlane.xlu0 %513
    %v515 = vrsqrt.pop %v514
    %v516 = vmul.f32 %v514, %v515
    %vm517 = vcmp.eq.f32.partialorder %v514, inf
    %v518 = vsel %vm517, %v514, %v516
    %vm519 = vcmp.eq.f32.partialorder %v514, 0.0
    %v520 = vand.u32 %v514, 2147483648
    %v521 = vsel %vm519, %v520, %v518
    %v522 = vmax.f32 %v521, 1e-12
    %v523 = vrcp.pop %v522
    %v524 = vmul.f32 %v510, %v523
    %v525 = vmul.f32 %v480, %v480
    %v526 = vsel %vm24, %v525, 0.0
    %527 = vadd.xlane.f32.xlu0 %v526
    %v528 = vpop.xlane.xlu0 %527
    %v529 = vrsqrt.pop %v528
    %v530 = vmul.f32 %v528, %v529
    %vm531 = vcmp.eq.f32.partialorder %v528, inf
    %v532 = vsel %vm531, %v528, %v530
    %vm533 = vcmp.eq.f32.partialorder %v528, 0.0
    %v534 = vand.u32 %v528, 2147483648
    %v535 = vsel %vm533, %v534, %v532
    %v536 = vmax.f32 %v535, 1e-12
    %v537 = vrcp.pop %v536
    %v538 = vmul.f32 %v480, %v537
    %v540 = vsel %vm24, %v524, 0
    %v543 = vsel %vm24, %v538, 0
    %545 = vmatprep.subr.mxu0 0.0
    %546 = vmatpush1.xpose.msra.mxu0 %v543
    %547 = vmatprep.subr.mxu0 0.0
    %548 = vmatpush1.xpose.msra.mxu0 0.0
    %549 = vmatprep.subr.mxu0 0.0
    %550 = vmatpush1.xpose.msra.mxu0 0.0
    %551 = vmatprep.subr.mxu0 0.0
    %552 = vmatpush1.xpose.msra.mxu0 0.0
    %553 = vmatprep.subr.mxu0 0.0
    %554 = vmatpush1.xpose.msra.mxu0 0.0
    %555 = vmatprep.subr.mxu0 0.0
    %556 = vmatpush1.xpose.msra.mxu0 0.0
    %557 = vmatprep.subr.mxu0 0.0
    %558 = vmatpush1.xpose.msra.mxu0 0.0
    %559 = vmatprep.subr.mxu0 0.0
    %560 = vmatpush1.xpose.msra.mxu0 0.0
    %561 = vmatprep.subr.mxu0 0.0
    %562 = vmatpush1.xpose.msra.mxu0 0.0
    %563 = vmatprep.subr.mxu0 0.0
    %564 = vmatpush1.xpose.msra.mxu0 0.0
    %565 = vmatprep.subr.mxu0 0.0
    %566 = vmatpush1.xpose.msra.mxu0 0.0
    %567 = vmatprep.subr.mxu0 0.0
    %568 = vmatpush1.xpose.msra.mxu0 0.0
    %569 = vmatprep.subr.mxu0 0.0
    %570 = vmatpush1.xpose.msra.mxu0 0.0
    %571 = vmatprep.subr.mxu0 0.0
    %572 = vmatpush1.xpose.msra.mxu0 0.0
    %573 = vmatprep.subr.mxu0 0.0
    %574 = vmatpush1.xpose.msra.mxu0 0.0
    %575 = vmatprep.subr.mxu0 0.0
    %576 = vmatpush1.xpose.msra.mxu0 0.0
    %577 = vmatprep.subr.mxu0 0.0
    %578 = vmatpush1.xpose.msra.mxu0 0.0
    %579 = vmatprep.subr.mxu0 0.0
    %580 = vmatpush1.xpose.msra.mxu0 0.0
    %581 = vmatprep.subr.mxu0 0.0
    %582 = vmatpush1.xpose.msra.mxu0 0.0
    %583 = vmatprep.subr.mxu0 0.0
    %584 = vmatpush1.xpose.msra.mxu0 0.0
    %585 = vmatprep.subr.mxu0 0.0
    %586 = vmatpush1.xpose.msra.mxu0 0.0
    %587 = vmatprep.subr.mxu0 0.0
    %588 = vmatpush1.xpose.msra.mxu0 0.0
    %589 = vmatprep.subr.mxu0 0.0
    %590 = vmatpush1.xpose.msra.mxu0 0.0
    %591 = vmatprep.subr.mxu0 0.0
    %592 = vmatpush1.xpose.msra.mxu0 0.0
    %593 = vmatprep.subr.mxu0 0.0
    %594 = vmatpush1.xpose.msra.mxu0 0.0
    %595 = vmatprep.subr.mxu0 0.0
    %596 = vmatpush1.xpose.msra.mxu0 0.0
    %597 = vmatprep.subr.mxu0 0.0
    %598 = vmatpush1.xpose.msra.mxu0 0.0
    %599 = vmatprep.subr.mxu0 0.0
    %600 = vmatpush1.xpose.msra.mxu0 0.0
    %601 = vmatprep.subr.mxu0 0.0
    %602 = vmatpush1.xpose.msra.mxu0 0.0
    %603 = vmatprep.subr.mxu0 0.0
    %604 = vmatpush1.xpose.msra.mxu0 0.0
    %605 = vmatprep.subr.mxu0 0.0
    %606 = vmatpush1.xpose.msra.mxu0 0.0
    %607 = vmatprep.subr.mxu0 0.0
    %608 = vmatpush1.xpose.msra.mxu0 0.0
    %609 = vmatprep.mubr.f32.mxu0 0.0
    %610 = vmatmul.mubr.f32.gmra.mrb[0].mxu0 %v540
    %v611 = vpop.f32.mrb[0].mxu0
    %v612 = vadd.f32 0.0, %v611
    %v613 = vpop.f32.mrb[0].mxu0
    %614 = vdwg.mxu0
    %v615 = vmul.f32 %v612, %v159
    %v616 = vsel %vm161, %v615, -inf
    %617 = vmax.xlane.f32.xlu0 %v616
    %v618 = vpop.xlane.xlu0 %617
    %v619 = vsub.f32 %v615, %v618
    %v620 = vmul.f32 %v619, 1.442695
    %v621 = vpow.pop %v620
    %v622 = vsel %vm161, %v621, 0.0
    %623 = vadd.xlane.f32.xlu0 %v622
    %v624 = vpop.xlane.xlu0 %623
    %v625 = vlog2.pop %v624
    %v626 = vmul.f32 %v625, 0.6931472
    %v627 = vadd.f32 %v618, %v626
    %v628 = vsel %vm178, %v615, 0.0
    %v629 = vsel %vm161, %v628, 0.0
    %630 = vadd.xlane.f32.xlu0 %v629
    %v631 = vpop.xlane.xlu0 %630
    %v632 = vsub.f32 %v627, %v631
    %v633 = vsel %vm184, %v632, 0.0
    %634 = vadd.xlane.f32.xlu0 %v633
    %v635 = vpop.xlane.xlu0 %634
    %v636 = vrot.slane %v635, 4
    %v637 = vadd.f32 %v635, %v636
    %v638 = vrot.slane %v637, 2
    %v639 = vadd.f32 %v637, %v638
    %v640 = vrot.slane %v639, 1
    %v641 = vadd.f32 %v639, %v640
    %s642 = vtos %v641
    %v643 = vstv %s642
    %v644 = vadd.f32 %v196, %v643
    %v645 = vmul.f32 %v478, %v478
    %v646 = vsel %vm24, %v645, 0.0
    %647 = vadd.xlane.f32.xlu0 %v646
    %v648 = vpop.xlane.xlu0 %647
    %v649 = vrsqrt.pop %v648
    %v650 = vmul.f32 %v648, %v649
    %vm651 = vcmp.eq.f32.partialorder %v648, inf
    %v652 = vsel %vm651, %v648, %v650
    %vm653 = vcmp.eq.f32.partialorder %v648, 0.0
    %v654 = vand.u32 %v648, 2147483648
    %v655 = vsel %vm653, %v654, %v652
    %v656 = vmax.f32 %v655, 1e-12
    %v657 = vrcp.pop %v656
    %v658 = vmul.f32 %v478, %v657
    %v659 = vmul.f32 %v482, %v482
    %v660 = vsel %vm24, %v659, 0.0
    %661 = vadd.xlane.f32.xlu0 %v660
    %v662 = vpop.xlane.xlu0 %661
    %v663 = vrsqrt.pop %v662
    %v664 = vmul.f32 %v662, %v663
    %vm665 = vcmp.eq.f32.partialorder %v662, inf
    %v666 = vsel %vm665, %v662, %v664
    %vm667 = vcmp.eq.f32.partialorder %v662, 0.0
    %v668 = vand.u32 %v662, 2147483648
    %v669 = vsel %vm667, %v668, %v666
    %v670 = vmax.f32 %v669, 1e-12
    %v671 = vrcp.pop %v670
    %v672 = vmul.f32 %v482, %v671
    %v674 = vsel %vm24, %v658, 0
    %676 = vmatprep.subr.mxu0 0.0
    %677 = vmatpush1.xpose.msra.mxu0 %v674
    %678 = vmatprep.subr.mxu0 0.0
    %679 = vmatpush1.xpose.msra.mxu0 0.0
    %680 = vmatprep.subr.mxu0 0.0
    %681 = vmatpush1.xpose.msra.mxu0 0.0
    %682 = vmatprep.subr.mxu0 0.0
    %683 = vmatpush1.xpose.msra.mxu0 0.0
    %684 = vmatprep.subr.mxu0 0.0
    %685 = vmatpush1.xpose.msra.mxu0 0.0
    %686 = vmatprep.subr.mxu0 0.0
    %687 = vmatpush1.xpose.msra.mxu0 0.0
    %688 = vmatprep.subr.mxu0 0.0
    %689 = vmatpush1.xpose.msra.mxu0 0.0
    %690 = vmatprep.subr.mxu0 0.0
    %691 = vmatpush1.xpose.msra.mxu0 0.0
    %692 = vmatprep.subr.mxu0 0.0
    %693 = vmatpush1.xpose.msra.mxu0 0.0
    %694 = vmatprep.subr.mxu0 0.0
    %695 = vmatpush1.xpose.msra.mxu0 0.0
    %696 = vmatprep.subr.mxu0 0.0
    %697 = vmatpush1.xpose.msra.mxu0 0.0
    %698 = vmatprep.subr.mxu0 0.0
    %699 = vmatpush1.xpose.msra.mxu0 0.0
    %700 = vmatprep.subr.mxu0 0.0
    %701 = vmatpush1.xpose.msra.mxu0 0.0
    %702 = vmatprep.subr.mxu0 0.0
    %703 = vmatpush1.xpose.msra.mxu0 0.0
    %704 = vmatprep.subr.mxu0 0.0
    %705 = vmatpush1.xpose.msra.mxu0 0.0
    %706 = vmatprep.subr.mxu0 0.0
    %707 = vmatpush1.xpose.msra.mxu0 0.0
    %708 = vmatprep.subr.mxu0 0.0
    %709 = vmatpush1.xpose.msra.mxu0 0.0
    %710 = vmatprep.subr.mxu0 0.0
    %711 = vmatpush1.xpose.msra.mxu0 0.0
    %712 = vmatprep.subr.mxu0 0.0
    %713 = vmatpush1.xpose.msra.mxu0 0.0
    %714 = vmatprep.subr.mxu0 0.0
    %715 = vmatpush1.xpose.msra.mxu0 0.0
    %716 = vmatprep.subr.mxu0 0.0
    %717 = vmatpush1.xpose.msra.mxu0 0.0
    %718 = vmatprep.subr.mxu0 0.0
    %719 = vmatpush1.xpose.msra.mxu0 0.0
    %720 = vmatprep.subr.mxu0 0.0
    %721 = vmatpush1.xpose.msra.mxu0 0.0
    %722 = vmatprep.subr.mxu0 0.0
    %723 = vmatpush1.xpose.msra.mxu0 0.0
    %724 = vmatprep.subr.mxu0 0.0
    %725 = vmatpush1.xpose.msra.mxu0 0.0
    %726 = vmatprep.subr.mxu0 0.0
    %727 = vmatpush1.xpose.msra.mxu0 0.0
    %728 = vmatprep.subr.mxu0 0.0
    %729 = vmatpush1.xpose.msra.mxu0 0.0
    %730 = vmatprep.subr.mxu0 0.0
    %731 = vmatpush1.xpose.msra.mxu0 0.0
    %732 = vmatprep.subr.mxu0 0.0
    %733 = vmatpush1.xpose.msra.mxu0 0.0
    %734 = vmatprep.subr.mxu0 0.0
    %735 = vmatpush1.xpose.msra.mxu0 0.0
    %736 = vmatprep.subr.mxu0 0.0
    %737 = vmatpush1.xpose.msra.mxu0 0.0
    %738 = vmatprep.subr.mxu0 0.0
    %739 = vmatpush1.xpose.msra.mxu0 0.0
    %740 = vmatprep.mubr.f32.mxu0 0.0
    %741 = vmatmul.mubr.f32.gmra.mrb[0].mxu0 %v674
    %v742 = vpop.f32.mrb[0].mxu0
    %v743 = vadd.f32 0.0, %v742
    %v744 = vpop.f32.mrb[0].mxu0
    %745 = vdwg.mxu0
    %v746 = vsel %vm161, %v743, 0.0
    %747 = vadd.xlane.f32.xlu0 %v746
    %v748 = vpop.xlane.xlu0 %747
    %v749 = vrot.slane %v748, 4
    %v750 = vadd.f32 %v748, %v749
    %v751 = vrot.slane %v750, 2
    %v752 = vadd.f32 %v750, %v751
    %v753 = vrot.slane %v752, 1
    %v754 = vadd.f32 %v752, %v753
    %s755 = vtos %v754
    %v756 = vstv %s755
    %v757 = vadd.f32 %v309, %v756
    %v759 = vsel %vm24, %v672, 0
    %761 = vmatprep.subr.mxu0 0.0
    %762 = vmatpush1.xpose.msra.mxu0 %v759
    %763 = vmatprep.subr.mxu0 0.0
    %764 = vmatpush1.xpose.msra.mxu0 0.0
    %765 = vmatprep.subr.mxu0 0.0
    %766 = vmatpush1.xpose.msra.mxu0 0.0
    %767 = vmatprep.subr.mxu0 0.0
    %768 = vmatpush1.xpose.msra.mxu0 0.0
    %769 = vmatprep.subr.mxu0 0.0
    %770 = vmatpush1.xpose.msra.mxu0 0.0
    %771 = vmatprep.subr.mxu0 0.0
    %772 = vmatpush1.xpose.msra.mxu0 0.0
    %773 = vmatprep.subr.mxu0 0.0
    %774 = vmatpush1.xpose.msra.mxu0 0.0
    %775 = vmatprep.subr.mxu0 0.0
    %776 = vmatpush1.xpose.msra.mxu0 0.0
    %777 = vmatprep.subr.mxu0 0.0
    %778 = vmatpush1.xpose.msra.mxu0 0.0
    %779 = vmatprep.subr.mxu0 0.0
    %780 = vmatpush1.xpose.msra.mxu0 0.0
    %781 = vmatprep.subr.mxu0 0.0
    %782 = vmatpush1.xpose.msra.mxu0 0.0
    %783 = vmatprep.subr.mxu0 0.0
    %784 = vmatpush1.xpose.msra.mxu0 0.0
    %785 = vmatprep.subr.mxu0 0.0
    %786 = vmatpush1.xpose.msra.mxu0 0.0
    %787 = vmatprep.subr.mxu0 0.0
    %788 = vmatpush1.xpose.msra.mxu0 0.0
    %789 = vmatprep.subr.mxu0 0.0
    %790 = vmatpush1.xpose.msra.mxu0 0.0
    %791 = vmatprep.subr.mxu0 0.0
    %792 = vmatpush1.xpose.msra.mxu0 0.0
    %793 = vmatprep.subr.mxu0 0.0
    %794 = vmatpush1.xpose.msra.mxu0 0.0
    %795 = vmatprep.subr.mxu0 0.0
    %796 = vmatpush1.xpose.msra.mxu0 0.0
    %797 = vmatprep.subr.mxu0 0.0
    %798 = vmatpush1.xpose.msra.mxu0 0.0
    %799 = vmatprep.subr.mxu0 0.0
    %800 = vmatpush1.xpose.msra.mxu0 0.0
    %801 = vmatprep.subr.mxu0 0.0
    %802 = vmatpush1.xpose.msra.mxu0 0.0
    %803 = vmatprep.subr.mxu0 0.0
    %804 = vmatpush1.xpose.msra.mxu0 0.0
    %805 = vmatprep.subr.mxu0 0.0
    %806 = vmatpush1.xpose.msra.mxu0 0.0
    %807 = vmatprep.subr.mxu0 0.0
    %808 = vmatpush1.xpose.msra.mxu0 0.0
    %809 = vmatprep.subr.mxu0 0.0
    %810 = vmatpush1.xpose.msra.mxu0 0.0
    %811 = vmatprep.subr.mxu0 0.0
    %812 = vmatpush1.xpose.msra.mxu0 0.0
    %813 = vmatprep.subr.mxu0 0.0
    %814 = vmatpush1.xpose.msra.mxu0 0.0
    %815 = vmatprep.subr.mxu0 0.0
    %816 = vmatpush1.xpose.msra.mxu0 0.0
    %817 = vmatprep.subr.mxu0 0.0
    %818 = vmatpush1.xpose.msra.mxu0 0.0
    %819 = vmatprep.subr.mxu0 0.0
    %820 = vmatpush1.xpose.msra.mxu0 0.0
    %821 = vmatprep.subr.mxu0 0.0
    %822 = vmatpush1.xpose.msra.mxu0 0.0
    %823 = vmatprep.subr.mxu0 0.0
    %824 = vmatpush1.xpose.msra.mxu0 0.0
    %825 = vmatprep.mubr.f32.mxu0 0.0
    %826 = vmatmul.mubr.f32.gmra.mrb[0].mxu0 %v759
    %v827 = vpop.f32.mrb[0].mxu0
    %v828 = vadd.f32 0.0, %v827
    %v829 = vpop.f32.mrb[0].mxu0
    %830 = vdwg.mxu0
    %v831 = vsel %vm161, %v828, 0.0
    %832 = vadd.xlane.f32.xlu0 %v831
    %v833 = vpop.xlane.xlu0 %832
    %v834 = vrot.slane %v833, 4
    %v835 = vadd.f32 %v833, %v834
    %v836 = vrot.slane %v835, 2
    %v837 = vadd.f32 %v835, %v836
    %v838 = vrot.slane %v837, 1
    %v839 = vadd.f32 %v837, %v838
    %s840 = vtos %v839
    %v841 = vstv %s840
    %v842 = vadd.f32 %v394, %v841
    %843 = vmatprep.subr.mxu0 0.0
    %844 = vmatpush1.xpose.msra.mxu0 %v543
    %845 = vmatprep.subr.mxu0 0.0
    %846 = vmatpush1.xpose.msra.mxu0 0.0
    %847 = vmatprep.subr.mxu0 0.0
    %848 = vmatpush1.xpose.msra.mxu0 0.0
    %849 = vmatprep.subr.mxu0 0.0
    %850 = vmatpush1.xpose.msra.mxu0 0.0
    %851 = vmatprep.subr.mxu0 0.0
    %852 = vmatpush1.xpose.msra.mxu0 0.0
    %853 = vmatprep.subr.mxu0 0.0
    %854 = vmatpush1.xpose.msra.mxu0 0.0
    %855 = vmatprep.subr.mxu0 0.0
    %856 = vmatpush1.xpose.msra.mxu0 0.0
    %857 = vmatprep.subr.mxu0 0.0
    %858 = vmatpush1.xpose.msra.mxu0 0.0
    %859 = vmatprep.subr.mxu0 0.0
    %860 = vmatpush1.xpose.msra.mxu0 0.0
    %861 = vmatprep.subr.mxu0 0.0
    %862 = vmatpush1.xpose.msra.mxu0 0.0
    %863 = vmatprep.subr.mxu0 0.0
    %864 = vmatpush1.xpose.msra.mxu0 0.0
    %865 = vmatprep.subr.mxu0 0.0
    %866 = vmatpush1.xpose.msra.mxu0 0.0
    %867 = vmatprep.subr.mxu0 0.0
    %868 = vmatpush1.xpose.msra.mxu0 0.0
    %869 = vmatprep.subr.mxu0 0.0
    %870 = vmatpush1.xpose.msra.mxu0 0.0
    %871 = vmatprep.subr.mxu0 0.0
    %872 = vmatpush1.xpose.msra.mxu0 0.0
    %873 = vmatprep.subr.mxu0 0.0
    %874 = vmatpush1.xpose.msra.mxu0 0.0
    %875 = vmatprep.subr.mxu0 0.0
    %876 = vmatpush1.xpose.msra.mxu0 0.0
    %877 = vmatprep.subr.mxu0 0.0
    %878 = vmatpush1.xpose.msra.mxu0 0.0
    %879 = vmatprep.subr.mxu0 0.0
    %880 = vmatpush1.xpose.msra.mxu0 0.0
    %881 = vmatprep.subr.mxu0 0.0
    %882 = vmatpush1.xpose.msra.mxu0 0.0
    %883 = vmatprep.subr.mxu0 0.0
    %884 = vmatpush1.xpose.msra.mxu0 0.0
    %885 = vmatprep.subr.mxu0 0.0
    %886 = vmatpush1.xpose.msra.mxu0 0.0
    %887 = vmatprep.subr.mxu0 0.0
    %888 = vmatpush1.xpose.msra.mxu0 0.0
    %889 = vmatprep.subr.mxu0 0.0
    %890 = vmatpush1.xpose.msra.mxu0 0.0
    %891 = vmatprep.subr.mxu0 0.0
    %892 = vmatpush1.xpose.msra.mxu0 0.0
    %893 = vmatprep.subr.mxu0 0.0
    %894 = vmatpush1.xpose.msra.mxu0 0.0
    %895 = vmatprep.subr.mxu0 0.0
    %896 = vmatpush1.xpose.msra.mxu0 0.0
    %897 = vmatprep.subr.mxu0 0.0
    %898 = vmatpush1.xpose.msra.mxu0 0.0
    %899 = vmatprep.subr.mxu0 0.0
    %900 = vmatpush1.xpose.msra.mxu0 0.0
    %901 = vmatprep.subr.mxu0 0.0
    %902 = vmatpush1.xpose.msra.mxu0 0.0
    %903 = vmatprep.subr.mxu0 0.0
    %904 = vmatpush1.xpose.msra.mxu0 0.0
    %905 = vmatprep.subr.mxu0 0.0
    %906 = vmatpush1.xpose.msra.mxu0 0.0
    %907 = vmatprep.mubr.f32.mxu0 0.0
    %908 = vmatmul.mubr.f32.gmra.mrb[0].mxu0 %v543
    %v909 = vpop.f32.mrb[0].mxu0
    %v910 = vadd.f32 0.0, %v909
    %v911 = vpop.f32.mrb[0].mxu0
    %912 = vdwg.mxu0
    %v913 = vsel %vm161, %v910, 0.0
    %914 = vadd.xlane.f32.xlu0 %v913
    %v915 = vpop.xlane.xlu0 %914
    %v916 = vrot.slane %v915, 4
    %v917 = vadd.f32 %v915, %v916
    %v918 = vrot.slane %v917, 2
    %v919 = vadd.f32 %v917, %v918
    %v920 = vrot.slane %v919, 1
    %v921 = vadd.f32 %v919, %v920
    %s922 = vtos %v921
    %v923 = vstv %s922
    %v924 = vadd.f32 %v476, %v923
    %v925 = vrcp.pop 128.0
    %v926 = vmul.f32 %v757, %v925
    %v927 = vmul.f32 %v842, %v925
    %v928 = vmul.f32 %v924, %v925
    %v929 = vrcp.pop 16.0
    %v930 = vmul.f32 %v644, %v929
    %v931 = vmul.f32 %v930, 0.4
    %v932 = vsub.f32 %v926, 0.75
    %v933 = vmul.f32 %v932, %v932
    %v934 = vmul.f32 %v933, 0.1
    %v935 = vadd.f32 %v931, %v934
    %v936 = vsub.f32 %v927, 0.75
    %v937 = vmul.f32 %v936, %v936
    %v938 = vmul.f32 %v937, 0.1
    %v939 = vadd.f32 %v935, %v938
    %vm940 = vcmask 0
    %941 = vst.msk [vmem:[#allocation2] sm:$0x1] %vm940, %v939
    %942 = vst.msk [vmem:[#allocation4] sm:$0x1] %vm940, %v926
    %943 = vst.msk [vmem:[#allocation6] sm:$0x1] %vm940, %v927
    %944 = vst.msk [vmem:[#allocation7] sm:$0x1] %vm940, %v928
    // Predicated region
    $region14: #{lmim_forward.7} parent=1 // pred_check
      _
    $region15: #{lmim_forward.7} parent=1 // pred_check_branch
      %946 = sbr.rel (0) target = $region17
    $region16: #{lmim_forward.7} parent=1 // pred_region
      %s948 = ssub.s32 16, 16
      %949 = vsyncadd [#allocation3], %s948
      %s951 = sshll.u32 [#allocation2], 4
      %s952 = int_to_ptr.vmem [resolvable:$true] %s951
      %954 = dma.vmem_to_hbm [thread:$0]  %s952, 16, %s3, [#allocation3]
    $region17: #{lmim_forward.7} parent=1 // pred_fallthru
      _
    // Predicated region
    $region18: #{lmim_forward.7} parent=1 // pred_check
      _
    $region19: #{lmim_forward.7} parent=1 // pred_check_branch
      %956 = sbr.rel (0) target = $region21
    $region20: #{lmim_forward.7} parent=1 // pred_region
      %s958 = ssub.s32 16, 16
      %959 = vsyncadd [#allocation5], %s958
      %s961 = sshll.u32 [#allocation4], 4
      %s962 = int_to_ptr.vmem [resolvable:$true] %s961
      %964 = dma.vmem_to_hbm [thread:$0]  %s962, 16, %s4, [#allocation5]
    $region21: #{lmim_forward.7} parent=1 // pred_fallthru
      _
    // Predicated region
    $region22: #{lmim_forward.7} parent=1 // pred_check
      _
    $region23: #{lmim_forward.7} parent=1 // pred_check_branch
      %966 = sbr.rel (0) target = $region25
    $region24: #{lmim_forward.7} parent=1 // pred_region
      %s968 = ssub.s32 16, 16
      %969 = vsyncadd [#allocation5], %s968
      %s971 = sshll.u32 [#allocation6], 4
      %s972 = int_to_ptr.vmem [resolvable:$true] %s971
      %974 = dma.vmem_to_hbm [thread:$0]  %s972, 16, %s5, [#allocation5]
    $region25: #{lmim_forward.7} parent=1 // pred_fallthru
      _
    // Predicated region
    $region26: #{lmim_forward.7} parent=1 // pred_check
      _
    $region27: #{lmim_forward.7} parent=1 // pred_check_branch
      %976 = sbr.rel (0) target = $region29
    $region28: #{lmim_forward.7} parent=1 // pred_region
      %s978 = ssub.s32 16, 16
      %979 = vsyncadd [#allocation8], %s978
      %s981 = sshll.u32 [#allocation7], 4
      %s982 = int_to_ptr.vmem [resolvable:$true] %s981
      %984 = dma.vmem_to_hbm [thread:$0]  %s982, 16, %s6, [#allocation8]
    $region29: #{lmim_forward.7} parent=1 // pred_fallthru
      _
    // Predicated region
    $region30: #{lmim_forward.7} parent=1 // pred_check
      _
    $region31: #{lmim_forward.7} parent=1 // pred_check_branch
      %986 = sbr.rel (0) target = $region33
    $region32: #{lmim_forward.7} parent=1 // pred_region
      %987 = dma.done [#allocation3], 16
    $region33: #{lmim_forward.7} parent=1 // pred_fallthru
      _
    // Predicated region
    $region34: #{lmim_forward.7} parent=1 // pred_check
      _
    $region35: #{lmim_forward.7} parent=1 // pred_check_branch
      %989 = sbr.rel (0) target = $region37
    $region36: #{lmim_forward.7} parent=1 // pred_region
      %990 = dma.done [#allocation5], 16
    $region37: #{lmim_forward.7} parent=1 // pred_fallthru
      _
    // Predicated region
    $region38: #{lmim_forward.7} parent=1 // pred_check
      _
    $region39: #{lmim_forward.7} parent=1 // pred_check_branch
      %992 = sbr.rel (0) target = $region41
    $region40: #{lmim_forward.7} parent=1 // pred_region
      %993 = dma.done [#allocation5], 16
    $region41: #{lmim_forward.7} parent=1 // pred_fallthru
      _
    // Predicated region
    $region42: #{lmim_forward.7} parent=1 // pred_check
      _
    $region43: #{lmim_forward.7} parent=1 // pred_check_branch
      %995 = sbr.rel (0) target = $region45
    $region44: #{lmim_forward.7} parent=1 // pred_region
      %996 = dma.done [#allocation8], 16
    $region45: #{lmim_forward.7} parent=1 // pred_fallthru
      _
    %997 = vsyncpa [#allocation3], 1
    %998 = vsyncpa [#allocation5], 1
    %999 = vsyncpa [#allocation8], 1

// kernel: lmim_forward.5
$region0: #{lmim_forward.5}
  #allocation0 [shape = 'u32[]', space=smem, size = 0x4, offset = 0x4, fixed_abs, tag = 'smem constant byte address 0x4 - core index']
  #allocation1 [shape = 'u32[144,128]{1,0:T(1,128)}', space=vmem, size = 0x12000, scoped, tag = 'internal scratch']
  %s0 = inlined_call_operand.vmem [shape: f32[2,9,32], index: 0, kind: input, shape index: {}]
  %s1 = inlined_call_operand.vmem [shape: f32[2,9,16], index: 1, kind: input, shape index: {}]
  %s2 = inlined_call_operand.vmem [shape: f32[2,8,16], index: 2, kind: input, shape index: {}]
  %s3 = inlined_call_operand.vmem [shape: f32[32,16], index: 3, kind: input, shape index: {}]
  %s4 = inlined_call_operand.vmem [shape: f32[1,16], index: 4, kind: input, shape index: {}]
  %s5 = inlined_call_operand.vmem [shape: f32[1,1,16], index: 5, kind: input, shape index: {}]
  %s6 = inlined_call_operand.vmem [shape: f32[1,1,16], index: 6, kind: input, shape index: {}]
  %s7 = inlined_call_operand.vmem [shape: f32[1,1,16], index: 7, kind: input, shape index: {}]
  %s8 = inlined_call_operand.vmem [shape: f32[1,1,16], index: 8, kind: input, shape index: {}]
  %s9 = inlined_call_operand.vmem [shape: f32[1,16,16], index: 9, kind: input, shape index: {}]
  %s10 = inlined_call_operand.vmem [shape: f32[1,1,16], index: 10, kind: input, shape index: {}]
  %s11 = inlined_call_operand.vmem [shape: f32[1,16,32], index: 11, kind: input, shape index: {}]
  %s12 = inlined_call_operand.vmem [shape: f32[1,1,32], index: 12, kind: input, shape index: {}]
  %s13 = inlined_call_operand.vmem [shape: f32[1,16,16], index: 13, kind: input, shape index: {}]
  %s14 = inlined_call_operand.vmem [shape: f32[1,1,16], index: 14, kind: input, shape index: {}]
  %s15 = inlined_call_operand.vmem [shape: f32[1,1,16], index: 15, kind: input, shape index: {}]
  %s16 = inlined_call_operand.vmem [shape: f32[1,1,16], index: 16, kind: input, shape index: {}]
  %s17 = inlined_call_operand.vmem [shape: f32[1,16,32], index: 17, kind: input, shape index: {}]
  %s18 = inlined_call_operand.vmem [shape: f32[1,1,32], index: 18, kind: input, shape index: {}]
  %s19 = inlined_call_operand.vmem [shape: f32[1,32,16], index: 19, kind: input, shape index: {}]
  %s20 = inlined_call_operand.vmem [shape: f32[1,1,16], index: 20, kind: input, shape index: {}]
  %s21 = inlined_call_operand.vmem [shape: f32[1,16], index: 21, kind: input, shape index: {}]
  %s22 = inlined_call_operand.vmem [shape: f32[1,16], index: 22, kind: input, shape index: {}]
  %s23 = inlined_call_operand.vmem [shape: f32[16,32], index: 23, kind: input, shape index: {}]
  %s24 = inlined_call_operand.vmem [shape: f32[1,32], index: 24, kind: input, shape index: {}]
  %s25 = inlined_call_operand.vmem [shape: f32[2,9,32], index: 25, kind: output, shape index: {}]
  %s26 = sld [smem:[#allocation0]]
  $region133: #{lmim_forward.5} parent=0
    _
  %s28 = ssub.s32 1, %s26
  %s29 = scalar_select 0, %s28, %s26
  loop: start=0, step=1, limit=4
  $region2: #{lmim_forward.5} parent=0 // loop_pre_header
    _
  $region3: #{lmim_forward.5} parent=0 // loop_header
    %s31 = sphi 0, %s35
    %p32 = scmp.ge.s32.totalorder %s31, 4
    %s41 = sphi 0, %s43
    %s44 = sphi 0, %s41
    %s45 = sphi 0, %s44
    %s61 = sphi 0, %s45
    %s67 = sphi 0, %s69
    %s70 = sphi 0, %s67
    %s71 = sphi 0, %s70
    %s87 = sphi 0, %s71
    %s93 = sphi 0, %s95
    %s96 = sphi 0, %s93
    %s97 = sphi 0, %s96
    %s113 = sphi 0, %s97
    %s117 = sphi 0, %s117
    %s119 = sphi 0, %s117
    %s120 = sphi 0, %s119
    %s134 = sphi 0, %s120
    %s138 = sphi 0, %s138
    %s140 = sphi 0, %s138
    %s141 = sphi 0, %s140
    %s155 = sphi 0, %s141
    %s159 = sphi 0, %s159
    %s161 = sphi 0, %s159
    %s162 = sphi 0, %s161
    %s176 = sphi 0, %s162
    %s180 = sphi 0, %s180
    %s182 = sphi 0, %s180
    %s183 = sphi 0, %s182
    %s197 = sphi 0, %s183
    %s201 = sphi 0, %s201
    %s203 = sphi 0, %s201
    %s204 = sphi 0, %s203
    %s218 = sphi 0, %s204
    %s222 = sphi 0, %s222
    %s224 = sphi 0, %s222
    %s225 = sphi 0, %s224
    %s239 = sphi 0, %s225
    %s243 = sphi 0, %s243
    %s245 = sphi 0, %s243
    %s246 = sphi 0, %s245
    %s260 = sphi 0, %s246
    %s264 = sphi 0, %s264
    %s266 = sphi 0, %s264
    %s267 = sphi 0, %s266
    %s281 = sphi 0, %s267
    %s285 = sphi 0, %s285
    %s287 = sphi 0, %s285
    %s288 = sphi 0, %s287
    %s302 = sphi 0, %s288
    %s306 = sphi 0, %s306
    %s308 = sphi 0, %s306
    %s309 = sphi 0, %s308
    %s323 = sphi 0, %s309
    %s327 = sphi 0, %s327
    %s329 = sphi 0, %s327
    %s330 = sphi 0, %s329
    %s344 = sphi 0, %s330
    %s348 = sphi 0, %s348
    %s350 = sphi 0, %s348
    %s351 = sphi 0, %s350
    %s365 = sphi 0, %s351
    %s369 = sphi 0, %s369
    %s371 = sphi 0, %s369
    %s372 = sphi 0, %s371
    %s386 = sphi 0, %s372
    %s390 = sphi 0, %s390
    %s392 = sphi 0, %s390
    %s393 = sphi 0, %s392
    %s407 = sphi 0, %s393
    %s411 = sphi 0, %s411
    %s413 = sphi 0, %s411
    %s414 = sphi 0, %s413
    %s428 = sphi 0, %s414
    %s432 = sphi 0, %s432
    %s434 = sphi 0, %s432
    %s435 = sphi 0, %s434
    %s449 = sphi 0, %s435
    %s453 = sphi 0, %s453
    %s455 = sphi 0, %s453
    %s456 = sphi 0, %s455
    %s470 = sphi 0, %s456
    %s474 = sphi 0, %s474
    %s476 = sphi 0, %s474
    %s477 = sphi 0, %s476
    %s491 = sphi 0, %s477
    %s495 = sphi 0, %s495
    %s497 = sphi 0, %s495
    %s498 = sphi 0, %s497
    %s512 = sphi 0, %s498
    %s516 = sphi 0, %s516
    %s518 = sphi 0, %s516
    %s519 = sphi 0, %s518
    %s533 = sphi 0, %s519
    %s537 = sphi 0, %s537
    %s539 = sphi 0, %s537
    %s540 = sphi 0, %s539
    %s554 = sphi 0, %s540
    %s558 = sphi 0, %s558
    %s560 = sphi 0, %s558
    %s561 = sphi 0, %s560
    %s575 = sphi 0, %s561
    %s581 = sphi 0, %s583
    %s584 = sphi 0, %s581
    %s585 = sphi 0, %s584
    %s601 = sphi 0, %s585
  $region4: #{lmim_forward.5} parent=0 // loop_header_branch
    %34 = sbr.rel (%p32) target = $region8
  $region5: #{lmim_forward.5} parent=0 // loop_body
    %s36 = ssub.s32 %s31, 1
    %s37 = ssub.s32 %s31, 2
    %s38 = sadd.s32 %s31, 1
    %s39 = ssub.s32 %s31, %s38
    %p40 = scmp.eq.s32.totalorder %s39, 0
    %s42 = sadd.s32 %s41, 1
    %s43 = scalar_select %p40, %s41, %s42
    %p46 = pneg %p40
    %p47 = scmp.eq.s32.totalorder %s31, 1
    %p48 = por %p46, %p47
    %p49 = scmp.ne.s32.totalorder %s41, %s44
    %p50 = scmp.eq.s32.totalorder %s31, 0
    %p51 = por %p49, %p50
    %p52 = scmp.ne.s32.totalorder %s41, %s44
    %p53 = scmp.eq.s32.totalorder %s36, 1
    %p54 = por %p52, %p53
    %p55 = scmp.ne.s32.totalorder %s44, %s45
    %p56 = scmp.eq.s32.totalorder %s36, 0
    %p57 = por %p55, %p56
    %p58 = scmp.ne.s32.totalorder %s44, %s45
    %p59 = scmp.eq.s32.totalorder %s37, 1
    %p60 = por %p58, %p59
    %p62 = scmp.ne.s32.totalorder %s45, %s61
    %p63 = scmp.eq.s32.totalorder %s37, 0
    %p64 = por %p62, %p63
    %s65 = ssub.s32 %s31, %s38
    %p66 = scmp.eq.s32.totalorder %s65, 0
    %s68 = sadd.s32 %s67, 1
    %s69 = scalar_select %p66, %s67, %s68
    %p72 = pneg %p66
    %p73 = scmp.eq.s32.totalorder %s31, 1
    %p74 = por %p72, %p73
    %p75 = scmp.ne.s32.totalorder %s67, %s70
    %p76 = scmp.eq.s32.totalorder %s31, 0
    %p77 = por %p75, %p76
    %p78 = scmp.ne.s32.totalorder %s67, %s70
    %p79 = scmp.eq.s32.totalorder %s36, 1
    %p80 = por %p78, %p79
    %p81 = scmp.ne.s32.totalorder %s70, %s71
    %p82 = scmp.eq.s32.totalorder %s36, 0
    %p83 = por %p81, %p82
    %p84 = scmp.ne.s32.totalorder %s70, %s71
    %p85 = scmp.eq.s32.totalorder %s37, 1
    %p86 = por %p84, %p85
    %p88 = scmp.ne.s32.totalorder %s71, %s87
    %p89 = scmp.eq.s32.totalorder %s37, 0
    %p90 = por %p88, %p89
    %s91 = ssub.s32 %s31, %s38
    %p92 = scmp.eq.s32.totalorder %s91, 0
    %s94 = sadd.s32 %s93, 1
    %s95 = scalar_select %p92, %s93, %s94
    %p98 = pneg %p92
    %p99 = scmp.eq.s32.totalorder %s31, 1
    %p100 = por %p98, %p99
    %p101 = scmp.ne.s32.totalorder %s93, %s96
    %p102 = scmp.eq.s32.totalorder %s31, 0
    %p103 = por %p101, %p102
    %p104 = scmp.ne.s32.totalorder %s93, %s96
    %p105 = scmp.eq.s32.totalorder %s36, 1
    %p106 = por %p104, %p105
    %p107 = scmp.ne.s32.totalorder %s96, %s97
    %p108 = scmp.eq.s32.totalorder %s36, 0
    %p109 = por %p107, %p108
    %p110 = scmp.ne.s32.totalorder %s96, %s97
    %p111 = scmp.eq.s32.totalorder %s37, 1
    %p112 = por %p110, %p111
    %p114 = scmp.ne.s32.totalorder %s97, %s113
    %p115 = scmp.eq.s32.totalorder %s37, 0
    %p116 = por %p114, %p115
    %s118 = sadd.s32 %s117, 1
    %p121 = scmp.eq.s32.totalorder %s31, 1
    %p122 = scmp.ne.s32.totalorder %s117, %s119
    %p123 = scmp.eq.s32.totalorder %s31, 0
    %p124 = por %p122, %p123
    %p125 = scmp.ne.s32.totalorder %s117, %s119
    %p126 = scmp.eq.s32.totalorder %s36, 1
    %p127 = por %p125, %p126
    %p128 = scmp.ne.s32.totalorder %s119, %s120
    %p129 = scmp.eq.s32.totalorder %s36, 0
    %p130 = por %p128, %p129
    %p131 = scmp.ne.s32.totalorder %s119, %s120
    %p132 = scmp.eq.s32.totalorder %s37, 1
    %p133 = por %p131, %p132
    %p135 = scmp.ne.s32.totalorder %s120, %s134
    %p136 = scmp.eq.s32.totalorder %s37, 0
    %p137 = por %p135, %p136
    %s139 = sadd.s32 %s138, 1
    %p142 = scmp.eq.s32.totalorder %s31, 1
    %p143 = scmp.ne.s32.totalorder %s138, %s140
    %p144 = scmp.eq.s32.totalorder %s31, 0
    %p145 = por %p143, %p144
    %p146 = scmp.ne.s32.totalorder %s138, %s140
    %p147 = scmp.eq.s32.totalorder %s36, 1
    %p148 = por %p146, %p147
    %p149 = scmp.ne.s32.totalorder %s140, %s141
    %p150 = scmp.eq.s32.totalorder %s36, 0
    %p151 = por %p149, %p150
    %p152 = scmp.ne.s32.totalorder %s140, %s141
    %p153 = scmp.eq.s32.totalorder %s37, 1
    %p154 = por %p152, %p153
    %p156 = scmp.ne.s32.totalorder %s141, %s155
    %p157 = scmp.eq.s32.totalorder %s37, 0
    %p158 = por %p156, %p157
    %s160 = sadd.s32 %s159, 1
    %p163 = scmp.eq.s32.totalorder %s31, 1
    %p164 = scmp.ne.s32.totalorder %s159, %s161
    %p165 = scmp.eq.s32.totalorder %s31, 0
    %p166 = por %p164, %p165
    %p167 = scmp.ne.s32.totalorder %s159, %s161
    %p168 = scmp.eq.s32.totalorder %s36, 1
    %p169 = por %p167, %p168
    %p170 = scmp.ne.s32.totalorder %s161, %s162
    %p171 = scmp.eq.s32.totalorder %s36, 0
    %p172 = por %p170, %p171
    %p173 = scmp.ne.s32.totalorder %s161, %s162
    %p174 = scmp.eq.s32.totalorder %s37, 1
    %p175 = por %p173, %p174
    %p177 = scmp.ne.s32.totalorder %s162, %s176
    %p178 = scmp.eq.s32.totalorder %s37, 0
    %p179 = por %p177, %p178
    %s181 = sadd.s32 %s180, 1
    %p184 = scmp.eq.s32.totalorder %s31, 1
    %p185 = scmp.ne.s32.totalorder %s180, %s182
    %p186 = scmp.eq.s32.totalorder %s31, 0
    %p187 = por %p185, %p186
    %p188 = scmp.ne.s32.totalorder %s180, %s182
    %p189 = scmp.eq.s32.totalorder %s36, 1
    %p190 = por %p188, %p189
    %p191 = scmp.ne.s32.totalorder %s182, %s183
    %p192 = scmp.eq.s32.totalorder %s36, 0
    %p193 = por %p191, %p192
    %p194 = scmp.ne.s32.totalorder %s182, %s183
    %p195 = scmp.eq.s32.totalorder %s37, 1
    %p196 = por %p194, %p195
    %p198 = scmp.ne.s32.totalorder %s183, %s197
    %p199 = scmp.eq.s32.totalorder %s37, 0
    %p200 = por %p198, %p199
    %s202 = sadd.s32 %s201, 1
    %p205 = scmp.eq.s32.totalorder %s31, 1
    %p206 = scmp.ne.s32.totalorder %s201, %s203
    %p207 = scmp.eq.s32.totalorder %s31, 0
    %p208 = por %p206, %p207
    %p209 = scmp.ne.s32.totalorder %s201, %s203
    %p210 = scmp.eq.s32.totalorder %s36, 1
    %p211 = por %p209, %p210
    %p212 = scmp.ne.s32.totalorder %s203, %s204
    %p213 = scmp.eq.s32.totalorder %s36, 0
    %p214 = por %p212, %p213
    %p215 = scmp.ne.s32.totalorder %s203, %s204
    %p216 = scmp.eq.s32.totalorder %s37, 1
    %p217 = por %p215, %p216
    %p219 = scmp.ne.s32.totalorder %s204, %s218
    %p220 = scmp.eq.s32.totalorder %s37, 0
    %p221 = por %p219, %p220
    %s223 = sadd.s32 %s222, 1
    %p226 = scmp.eq.s32.totalorder %s31, 1
    %p227 = scmp.ne.s32.totalorder %s222, %s224
    %p228 = scmp.eq.s32.totalorder %s31, 0
    %p229 = por %p227, %p228
    %p230 = scmp.ne.s32.totalorder %s222, %s224
    %p231 = scmp.eq.s32.totalorder %s36, 1
    %p232 = por %p230, %p231
    %p233 = scmp.ne.s32.totalorder %s224, %s225
    %p234 = scmp.eq.s32.totalorder %s36, 0
    %p235 = por %p233, %p234
    %p236 = scmp.ne.s32.totalorder %s224, %s225
    %p237 = scmp.eq.s32.totalorder %s37, 1
    %p238 = por %p236, %p237
    %p240 = scmp.ne.s32.totalorder %s225, %s239
    %p241 = scmp.eq.s32.totalorder %s37, 0
    %p242 = por %p240, %p241
    %s244 = sadd.s32 %s243, 1
    %p247 = scmp.eq.s32.totalorder %s31, 1
    %p248 = scmp.ne.s32.totalorder %s243, %s245
    %p249 = scmp.eq.s32.totalorder %s31, 0
    %p250 = por %p248, %p249
    %p251 = scmp.ne.s32.totalorder %s243, %s245
    %p252 = scmp.eq.s32.totalorder %s36, 1
    %p253 = por %p251, %p252
    %p254 = scmp.ne.s32.totalorder %s245, %s246
    %p255 = scmp.eq.s32.totalorder %s36, 0
    %p256 = por %p254, %p255
    %p257 = scmp.ne.s32.totalorder %s245, %s246
    %p258 = scmp.eq.s32.totalorder %s37, 1
    %p259 = por %p257, %p258
    %p261 = scmp.ne.s32.totalorder %s246, %s260
    %p262 = scmp.eq.s32.totalorder %s37, 0
    %p263 = por %p261, %p262
    %s265 = sadd.s32 %s264, 1
    %p268 = scmp.eq.s32.totalorder %s31, 1
    %p269 = scmp.ne.s32.totalorder %s264, %s266
    %p270 = scmp.eq.s32.totalorder %s31, 0
    %p271 = por %p269, %p270
    %p272 = scmp.ne.s32.totalorder %s264, %s266
    %p273 = scmp.eq.s32.totalorder %s36, 1
    %p274 = por %p272, %p273
    %p275 = scmp.ne.s32.totalorder %s266, %s267
    %p276 = scmp.eq.s32.totalorder %s36, 0
    %p277 = por %p275, %p276
    %p278 = scmp.ne.s32.totalorder %s266, %s267
    %p279 = scmp.eq.s32.totalorder %s37, 1
    %p280 = por %p278, %p279
    %p282 = scmp.ne.s32.totalorder %s267, %s281
    %p283 = scmp.eq.s32.totalorder %s37, 0
    %p284 = por %p282, %p283
    %s286 = sadd.s32 %s285, 1
    %p289 = scmp.eq.s32.totalorder %s31, 1
    %p290 = scmp.ne.s32.totalorder %s285, %s287
    %p291 = scmp.eq.s32.totalorder %s31, 0
    %p292 = por %p290, %p291
    %p293 = scmp.ne.s32.totalorder %s285, %s287
    %p294 = scmp.eq.s32.totalorder %s36, 1
    %p295 = por %p293, %p294
    %p296 = scmp.ne.s32.totalorder %s287, %s288
    %p297 = scmp.eq.s32.totalorder %s36, 0
    %p298 = por %p296, %p297
    %p299 = scmp.ne.s32.totalorder %s287, %s288
    %p300 = scmp.eq.s32.totalorder %s37, 1
    %p301 = por %p299, %p300
    %p303 = scmp.ne.s32.totalorder %s288, %s302
    %p304 = scmp.eq.s32.totalorder %s37, 0
    %p305 = por %p303, %p304
    %s307 = sadd.s32 %s306, 1
    %p310 = scmp.eq.s32.totalorder %s31, 1
    %p311 = scmp.ne.s32.totalorder %s306, %s308
    %p312 = scmp.eq.s32.totalorder %s31, 0
    %p313 = por %p311, %p312
    %p314 = scmp.ne.s32.totalorder %s306, %s308
    %p315 = scmp.eq.s32.totalorder %s36, 1
    %p316 = por %p314, %p315
    %p317 = scmp.ne.s32.totalorder %s308, %s309
    %p318 = scmp.eq.s32.totalorder %s36, 0
    %p319 = por %p317, %p318
    %p320 = scmp.ne.s32.totalorder %s308, %s309
    %p321 = scmp.eq.s32.totalorder %s37, 1
    %p322 = por %p320, %p321
    %p324 = scmp.ne.s32.totalorder %s309, %s323
    %p325 = scmp.eq.s32.totalorder %s37, 0
    %p326 = por %p324, %p325
    %s328 = sadd.s32 %s327, 1
    %p331 = scmp.eq.s32.totalorder %s31, 1
    %p332 = scmp.ne.s32.totalorder %s327, %s329
    %p333 = scmp.eq.s32.totalorder %s31, 0
    %p334 = por %p332, %p333
    %p335 = scmp.ne.s32.totalorder %s327, %s329
    %p336 = scmp.eq.s32.totalorder %s36, 1
    %p337 = por %p335, %p336
    %p338 = scmp.ne.s32.totalorder %s329, %s330
    %p339 = scmp.eq.s32.totalorder %s36, 0
    %p340 = por %p338, %p339
    %p341 = scmp.ne.s32.totalorder %s329, %s330
    %p342 = scmp.eq.s32.totalorder %s37, 1
    %p343 = por %p341, %p342
    %p345 = scmp.ne.s32.totalorder %s330, %s344
    %p346 = scmp.eq.s32.totalorder %s37, 0
    %p347 = por %p345, %p346
    %s349 = sadd.s32 %s348, 1
    %p352 = scmp.eq.s32.totalorder %s31, 1
    %p353 = scmp.ne.s32.totalorder %s348, %s350
    %p354 = scmp.eq.s32.totalorder %s31, 0
    %p355 = por %p353, %p354
    %p356 = scmp.ne.s32.totalorder %s348, %s350
    %p357 = scmp.eq.s32.totalorder %s36, 1
    %p358 = por %p356, %p357
    %p359 = scmp.ne.s32.totalorder %s350, %s351
    %p360 = scmp.eq.s32.totalorder %s36, 0
    %p361 = por %p359, %p360
    %p362 = scmp.ne.s32.totalorder %s350, %s351
    %p363 = scmp.eq.s32.totalorder %s37, 1
    %p364 = por %p362, %p363
    %p366 = scmp.ne.s32.totalorder %s351, %s365
    %p367 = scmp.eq.s32.totalorder %s37, 0
    %p368 = por %p366, %p367
    %s370 = sadd.s32 %s369, 1
    %p373 = scmp.eq.s32.totalorder %s31, 1
    %p374 = scmp.ne.s32.totalorder %s369, %s371
    %p375 = scmp.eq.s32.totalorder %s31, 0
    %p376 = por %p374, %p375
    %p377 = scmp.ne.s32.totalorder %s369, %s371
    %p378 = scmp.eq.s32.totalorder %s36, 1
    %p379 = por %p377, %p378
    %p380 = scmp.ne.s32.totalorder %s371, %s372
    %p381 = scmp.eq.s32.totalorder %s36, 0
    %p382 = por %p380, %p381
    %p383 = scmp.ne.s32.totalorder %s371, %s372
    %p384 = scmp.eq.s32.totalorder %s37, 1
    %p385 = por %p383, %p384
    %p387 = scmp.ne.s32.totalorder %s372, %s386
    %p388 = scmp.eq.s32.totalorder %s37, 0
    %p389 = por %p387, %p388
    %s391 = sadd.s32 %s390, 1
    %p394 = scmp.eq.s32.totalorder %s31, 1
    %p395 = scmp.ne.s32.totalorder %s390, %s392
    %p396 = scmp.eq.s32.totalorder %s31, 0
    %p397 = por %p395, %p396
    %p398 = scmp.ne.s32.totalorder %s390, %s392
    %p399 = scmp.eq.s32.totalorder %s36, 1
    %p400 = por %p398, %p399
    %p401 = scmp.ne.s32.totalorder %s392, %s393
    %p402 = scmp.eq.s32.totalorder %s36, 0
    %p403 = por %p401, %p402
    %p404 = scmp.ne.s32.totalorder %s392, %s393
    %p405 = scmp.eq.s32.totalorder %s37, 1
    %p406 = por %p404, %p405
    %p408 = scmp.ne.s32.totalorder %s393, %s407
    %p409 = scmp.eq.s32.totalorder %s37, 0
    %p410 = por %p408, %p409
    %s412 = sadd.s32 %s411, 1
    %p415 = scmp.eq.s32.totalorder %s31, 1
    %p416 = scmp.ne.s32.totalorder %s411, %s413
    %p417 = scmp.eq.s32.totalorder %s31, 0
    %p418 = por %p416, %p417
    %p419 = scmp.ne.s32.totalorder %s411, %s413
    %p420 = scmp.eq.s32.totalorder %s36, 1
    %p421 = por %p419, %p420
    %p422 = scmp.ne.s32.totalorder %s413, %s414
    %p423 = scmp.eq.s32.totalorder %s36, 0
    %p424 = por %p422, %p423
    %p425 = scmp.ne.s32.totalorder %s413, %s414
    %p426 = scmp.eq.s32.totalorder %s37, 1
    %p427 = por %p425, %p426
    %p429 = scmp.ne.s32.totalorder %s414, %s428
    %p430 = scmp.eq.s32.totalorder %s37, 0
    %p431 = por %p429, %p430
    %s433 = sadd.s32 %s432, 1
    %p436 = scmp.eq.s32.totalorder %s31, 1
    %p437 = scmp.ne.s32.totalorder %s432, %s434
    %p438 = scmp.eq.s32.totalorder %s31, 0
    %p439 = por %p437, %p438
    %p440 = scmp.ne.s32.totalorder %s432, %s434
    %p441 = scmp.eq.s32.totalorder %s36, 1
    %p442 = por %p440, %p441
    %p443 = scmp.ne.s32.totalorder %s434, %s435
    %p444 = scmp.eq.s32.totalorder %s36, 0
    %p445 = por %p443, %p444
    %p446 = scmp.ne.s32.totalorder %s434, %s435
    %p447 = scmp.eq.s32.totalorder %s37, 1
    %p448 = por %p446, %p447
    %p450 = scmp.ne.s32.totalorder %s435, %s449
    %p451 = scmp.eq.s32.totalorder %s37, 0
    %p452 = por %p450, %p451
    %s454 = sadd.s32 %s453, 1
    %p457 = scmp.eq.s32.totalorder %s31, 1
    %p458 = scmp.ne.s32.totalorder %s453, %s455
    %p459 = scmp.eq.s32.totalorder %s31, 0
    %p460 = por %p458, %p459
    %p461 = scmp.ne.s32.totalorder %s453, %s455
    %p462 = scmp.eq.s32.totalorder %s36, 1
    %p463 = por %p461, %p462
    %p464 = scmp.ne.s32.totalorder %s455, %s456
    %p465 = scmp.eq.s32.totalorder %s36, 0
    %p466 = por %p464, %p465
    %p467 = scmp.ne.s32.totalorder %s455, %s456
    %p468 = scmp.eq.s32.totalorder %s37, 1
    %p469 = por %p467, %p468
    %p471 = scmp.ne.s32.totalorder %s456, %s470
    %p472 = scmp.eq.s32.totalorder %s37, 0
    %p473 = por %p471, %p472
    %s475 = sadd.s32 %s474, 1
    %p478 = scmp.eq.s32.totalorder %s31, 1
    %p479 = scmp.ne.s32.totalorder %s474, %s476
    %p480 = scmp.eq.s32.totalorder %s31, 0
    %p481 = por %p479, %p480
    %p482 = scmp.ne.s32.totalorder %s474, %s476
    %p483 = scmp.eq.s32.totalorder %s36, 1
    %p484 = por %p482, %p483
    %p485 = scmp.ne.s32.totalorder %s476, %s477
    %p486 = scmp.eq.s32.totalorder %s36, 0
    %p487 = por %p485, %p486
    %p488 = scmp.ne.s32.totalorder %s476, %s477
    %p489 = scmp.eq.s32.totalorder %s37, 1
    %p490 = por %p488, %p489
    %p492 = scmp.ne.s32.totalorder %s477, %s491
    %p493 = scmp.eq.s32.totalorder %s37, 0
    %p494 = por %p492, %p493
    %s496 = sadd.s32 %s495, 1
    %p499 = scmp.eq.s32.totalorder %s31, 1
    %p500 = scmp.ne.s32.totalorder %s495, %s497
    %p501 = scmp.eq.s32.totalorder %s31, 0
    %p502 = por %p500, %p501
    %p503 = scmp.ne.s32.totalorder %s495, %s497
    %p504 = scmp.eq.s32.totalorder %s36, 1
    %p505 = por %p503, %p504
    %p506 = scmp.ne.s32.totalorder %s497, %s498
    %p507 = scmp.eq.s32.totalorder %s36, 0
    %p508 = por %p506, %p507
    %p509 = scmp.ne.s32.totalorder %s497, %s498
    %p510 = scmp.eq.s32.totalorder %s37, 1
    %p511 = por %p509, %p510
    %p513 = scmp.ne.s32.totalorder %s498, %s512
    %p514 = scmp.eq.s32.totalorder %s37, 0
    %p515 = por %p513, %p514
    %s517 = sadd.s32 %s516, 1
    %p520 = scmp.eq.s32.totalorder %s31, 1
    %p521 = scmp.ne.s32.totalorder %s516, %s518
    %p522 = scmp.eq.s32.totalorder %s31, 0
    %p523 = por %p521, %p522
    %p524 = scmp.ne.s32.totalorder %s516, %s518
    %p525 = scmp.eq.s32.totalorder %s36, 1
    %p526 = por %p524, %p525
    %p527 = scmp.ne.s32.totalorder %s518, %s519
    %p528 = scmp.eq.s32.totalorder %s36, 0
    %p529 = por %p527, %p528
    %p530 = scmp.ne.s32.totalorder %s518, %s519
    %p531 = scmp.eq.s32.totalorder %s37, 1
    %p532 = por %p530, %p531
    %p534 = scmp.ne.s32.totalorder %s519, %s533
    %p535 = scmp.eq.s32.totalorder %s37, 0
    %p536 = por %p534, %p535
    %s538 = sadd.s32 %s537, 1
    %p541 = scmp.eq.s32.totalorder %s31, 1
    %p542 = scmp.ne.s32.totalorder %s537, %s539
    %p543 = scmp.eq.s32.totalorder %s31, 0
    %p544 = por %p542, %p543
    %p545 = scmp.ne.s32.totalorder %s537, %s539
    %p546 = scmp.eq.s32.totalorder %s36, 1
    %p547 = por %p545, %p546
    %p548 = scmp.ne.s32.totalorder %s539, %s540
    %p549 = scmp.eq.s32.totalorder %s36, 0
    %p550 = por %p548, %p549
    %p551 = scmp.ne.s32.totalorder %s539, %s540
    %p552 = scmp.eq.s32.totalorder %s37, 1
    %p553 = por %p551, %p552
    %p555 = scmp.ne.s32.totalorder %s540, %s554
    %p556 = scmp.eq.s32.totalorder %s37, 0
    %p557 = por %p555, %p556
    %s559 = sadd.s32 %s558, 1
    %p562 = scmp.eq.s32.totalorder %s31, 1
    %p563 = scmp.ne.s32.totalorder %s558, %s560
    %p564 = scmp.eq.s32.totalorder %s31, 0
    %p565 = por %p563, %p564
    %p566 = scmp.ne.s32.totalorder %s558, %s560
    %p567 = scmp.eq.s32.totalorder %s36, 1
    %p568 = por %p566, %p567
    %p569 = scmp.ne.s32.totalorder %s560, %s561
    %p570 = scmp.eq.s32.totalorder %s36, 0
    %p571 = por %p569, %p570
    %p572 = scmp.ne.s32.totalorder %s560, %s561
    %p573 = scmp.eq.s32.totalorder %s37, 1
    %p574 = por %p572, %p573
    %p576 = scmp.ne.s32.totalorder %s561, %s575
    %p577 = scmp.eq.s32.totalorder %s37, 0
    %p578 = por %p576, %p577
    %s579 = ssub.s32 %s31, %s38
    %p580 = scmp.eq.s32.totalorder %s579, 0
    %s582 = sadd.s32 %s581, 1
    %s583 = scalar_select %p580, %s581, %s582
    %p586 = pneg %p580
    %p587 = scmp.eq.s32.totalorder %s31, 1
    %p588 = por %p586, %p587
    %p589 = scmp.ne.s32.totalorder %s581, %s584
    %p590 = scmp.eq.s32.totalorder %s31, 0
    %p591 = por %p589, %p590
    %p592 = scmp.ne.s32.totalorder %s581, %s584
    %p593 = scmp.eq.s32.totalorder %s36, 1
    %p594 = por %p592, %p593
    %p595 = scmp.ne.s32.totalorder %s584, %s585
    %p596 = scmp.eq.s32.totalorder %s36, 0
    %p597 = por %p595, %p596
    %p598 = scmp.ne.s32.totalorder %s584, %s585
    %p599 = scmp.eq.s32.totalorder %s37, 1
    %p600 = por %p598, %p599
    %p602 = scmp.ne.s32.totalorder %s585, %s601
    %p603 = scmp.eq.s32.totalorder %s37, 0
    %p604 = por %p602, %p603
    %p605 = scmp.le.s32.totalorder 1, %s31
    %p606 = scmp.lt.s32.totalorder %s31, 3
    %p607 = pnand %p605, %p606
    %p608 = pneg %p607
    // Predicated region
    $region9: #{lmim_forward.5} parent=5 // pred_check
      _
    $region10: #{lmim_forward.5} parent=5 // pred_check_branch
      %610 = sbr.rel (%p607) target = $region12
    $region11: #{lmim_forward.5} parent=5 // pred_region
      %s611 = ssub.s32 %s31, 1
      // Predicated region
      $region13: #{lmim_forward.5} parent=11 // pred_check
        %p612 = pneg %p130
      $region14: #{lmim_forward.5} parent=11 // pred_check_branch
        %614 = sbr.rel (%p612) target = $region16
      $region15: #{lmim_forward.5} parent=11 // pred_region
        _
      $region16: #{lmim_forward.5} parent=11 // pred_fallthru
        _
      // Predicated region
      $region17: #{lmim_forward.5} parent=11 // pred_check
        %p615 = pneg %p151
      $region18: #{lmim_forward.5} parent=11 // pred_check_branch
        %617 = sbr.rel (%p615) target = $region20
      $region19: #{lmim_forward.5} parent=11 // pred_region
        _
      $region20: #{lmim_forward.5} parent=11 // pred_fallthru
        _
      // Predicated region
      $region21: #{lmim_forward.5} parent=11 // pred_check
        %p618 = pneg %p172
      $region22: #{lmim_forward.5} parent=11 // pred_check_branch
        %620 = sbr.rel (%p618) target = $region24
      $region23: #{lmim_forward.5} parent=11 // pred_region
        _
      $region24: #{lmim_forward.5} parent=11 // pred_fallthru
        _
      // Predicated region
      $region25: #{lmim_forward.5} parent=11 // pred_check
        %p621 = pneg %p193
      $region26: #{lmim_forward.5} parent=11 // pred_check_branch
        %623 = sbr.rel (%p621) target = $region28
      $region27: #{lmim_forward.5} parent=11 // pred_region
        _
      $region28: #{lmim_forward.5} parent=11 // pred_fallthru
        _
      // Predicated region
      $region29: #{lmim_forward.5} parent=11 // pred_check
        %p624 = pneg %p214
      $region30: #{lmim_forward.5} parent=11 // pred_check_branch
        %626 = sbr.rel (%p624) target = $region32
      $region31: #{lmim_forward.5} parent=11 // pred_region
        _
      $region32: #{lmim_forward.5} parent=11 // pred_fallthru
        _
      // Predicated region
      $region33: #{lmim_forward.5} parent=11 // pred_check
        %p627 = pneg %p235
      $region34: #{lmim_forward.5} parent=11 // pred_check_branch
        %629 = sbr.rel (%p627) target = $region36
      $region35: #{lmim_forward.5} parent=11 // pred_region
        _
      $region36: #{lmim_forward.5} parent=11 // pred_fallthru
        _
      // Predicated region
      $region37: #{lmim_forward.5} parent=11 // pred_check
        %p630 = pneg %p256
      $region38: #{lmim_forward.5} parent=11 // pred_check_branch
        %632 = sbr.rel (%p630) target = $region40
      $region39: #{lmim_forward.5} parent=11 // pred_region
        _
      $region40: #{lmim_forward.5} parent=11 // pred_fallthru
        _
      // Predicated region
      $region41: #{lmim_forward.5} parent=11 // pred_check
        %p633 = pneg %p277
      $region42: #{lmim_forward.5} parent=11 // pred_check_branch
        %635 = sbr.rel (%p633) target = $region44
      $region43: #{lmim_forward.5} parent=11 // pred_region
        _
      $region44: #{lmim_forward.5} parent=11 // pred_fallthru
        _
      // Predicated region
      $region45: #{lmim_forward.5} parent=11 // pred_check
        %p636 = pneg %p298
      $region46: #{lmim_forward.5} parent=11 // pred_check_branch
        %638 = sbr.rel (%p636) target = $region48
      $region47: #{lmim_forward.5} parent=11 // pred_region
        _
      $region48: #{lmim_forward.5} parent=11 // pred_fallthru
        _
      // Predicated region
      $region49: #{lmim_forward.5} parent=11 // pred_check
        %p639 = pneg %p319
      $region50: #{lmim_forward.5} parent=11 // pred_check_branch
        %641 = sbr.rel (%p639) target = $region52
      $region51: #{lmim_forward.5} parent=11 // pred_region
        _
      $region52: #{lmim_forward.5} parent=11 // pred_fallthru
        _
      // Predicated region
      $region53: #{lmim_forward.5} parent=11 // pred_check
        %p642 = pneg %p340
      $region54: #{lmim_forward.5} parent=11 // pred_check_branch
        %644 = sbr.rel (%p642) target = $region56
      $region55: #{lmim_forward.5} parent=11 // pred_region
        _
      $region56: #{lmim_forward.5} parent=11 // pred_fallthru
        _
      // Predicated region
      $region57: #{lmim_forward.5} parent=11 // pred_check
        %p645 = pneg %p361
      $region58: #{lmim_forward.5} parent=11 // pred_check_branch
        %647 = sbr.rel (%p645) target = $region60
      $region59: #{lmim_forward.5} parent=11 // pred_region
        _
      $region60: #{lmim_forward.5} parent=11 // pred_fallthru
        _
      // Predicated region
      $region61: #{lmim_forward.5} parent=11 // pred_check
        %p648 = pneg %p382
      $region62: #{lmim_forward.5} parent=11 // pred_check_branch
        %650 = sbr.rel (%p648) target = $region64
      $region63: #{lmim_forward.5} parent=11 // pred_region
        _
      $region64: #{lmim_forward.5} parent=11 // pred_fallthru
        _
      // Predicated region
      $region65: #{lmim_forward.5} parent=11 // pred_check
        %p651 = pneg %p403
      $region66: #{lmim_forward.5} parent=11 // pred_check_branch
        %653 = sbr.rel (%p651) target = $region68
      $region67: #{lmim_forward.5} parent=11 // pred_region
        _
      $region68: #{lmim_forward.5} parent=11 // pred_fallthru
        _
      // Predicated region
      $region69: #{lmim_forward.5} parent=11 // pred_check
        %p654 = pneg %p424
      $region70: #{lmim_forward.5} parent=11 // pred_check_branch
        %656 = sbr.rel (%p654) target = $region72
      $region71: #{lmim_forward.5} parent=11 // pred_region
        _
      $region72: #{lmim_forward.5} parent=11 // pred_fallthru
        _
      // Predicated region
      $region73: #{lmim_forward.5} parent=11 // pred_check
        %p657 = pneg %p445
      $region74: #{lmim_forward.5} parent=11 // pred_check_branch
        %659 = sbr.rel (%p657) target = $region76
      $region75: #{lmim_forward.5} parent=11 // pred_region
        _
      $region76: #{lmim_forward.5} parent=11 // pred_fallthru
        _
      // Predicated region
      $region77: #{lmim_forward.5} parent=11 // pred_check
        %p660 = pneg %p466
      $region78: #{lmim_forward.5} parent=11 // pred_check_branch
        %662 = sbr.rel (%p660) target = $region80
      $region79: #{lmim_forward.5} parent=11 // pred_region
        _
      $region80: #{lmim_forward.5} parent=11 // pred_fallthru
        _
      // Predicated region
      $region81: #{lmim_forward.5} parent=11 // pred_check
        %p663 = pneg %p487
      $region82: #{lmim_forward.5} parent=11 // pred_check_branch
        %665 = sbr.rel (%p663) target = $region84
      $region83: #{lmim_forward.5} parent=11 // pred_region
        _
      $region84: #{lmim_forward.5} parent=11 // pred_fallthru
        _
      // Predicated region
      $region85: #{lmim_forward.5} parent=11 // pred_check
        %p666 = pneg %p508
      $region86: #{lmim_forward.5} parent=11 // pred_check_branch
        %668 = sbr.rel (%p666) target = $region88
      $region87: #{lmim_forward.5} parent=11 // pred_region
        _
      $region88: #{lmim_forward.5} parent=11 // pred_fallthru
        _
      // Predicated region
      $region89: #{lmim_forward.5} parent=11 // pred_check
        %p669 = pneg %p529
      $region90: #{lmim_forward.5} parent=11 // pred_check_branch
        %671 = sbr.rel (%p669) target = $region92
      $region91: #{lmim_forward.5} parent=11 // pred_region
        _
      $region92: #{lmim_forward.5} parent=11 // pred_fallthru
        _
      // Predicated region
      $region93: #{lmim_forward.5} parent=11 // pred_check
        %p672 = pneg %p550
      $region94: #{lmim_forward.5} parent=11 // pred_check_branch
        %674 = sbr.rel (%p672) target = $region96
      $region95: #{lmim_forward.5} parent=11 // pred_region
        _
      $region96: #{lmim_forward.5} parent=11 // pred_fallthru
        _
      // Predicated region
      $region97: #{lmim_forward.5} parent=11 // pred_check
        %p675 = pneg %p571
      $region98: #{lmim_forward.5} parent=11 // pred_check_branch
        %677 = sbr.rel (%p675) target = $region100
      $region99: #{lmim_forward.5} parent=11 // pred_region
        _
      $region100: #{lmim_forward.5} parent=11 // pred_fallthru
        _
    $region12: #{lmim_forward.5} parent=5 // pred_fallthru
      _
    %p678 = scmp.lt.s32.totalorder %s31, 2
    // Predicated region
    $region101: #{lmim_forward.5} parent=5 // pred_check
      %p679 = pneg %p678
    $region102: #{lmim_forward.5} parent=5 // pred_check_branch
      %681 = sbr.rel (%p679) target = $region104
    $region103: #{lmim_forward.5} parent=5 // pred_region
      // Predicated region
      $region105: #{lmim_forward.5} parent=103 // pred_check
        %p682 = pneg %p51
      $region106: #{lmim_forward.5} parent=103 // pred_check_branch
        %684 = sbr.rel (%p682) target = $region108
      $region107: #{lmim_forward.5} parent=103 // pred_region
        %p685 = scmp.lt.s32.totalorder %s31, 1
        %s686 = scalar_select %p685, %s31, 1
        %s687 = smul.addr %s686, 2
        %s688 = smul.addr %s687, 8
        %s689 = scalar_lea.vmem %s0, %s688
      $region108: #{lmim_forward.5} parent=103 // pred_fallthru
        _
      // Predicated region
      $region109: #{lmim_forward.5} parent=103 // pred_check
        %p690 = pneg %p77
      $region110: #{lmim_forward.5} parent=103 // pred_check_branch
        %692 = sbr.rel (%p690) target = $region112
      $region111: #{lmim_forward.5} parent=103 // pred_region
        %p693 = scmp.lt.s32.totalorder %s31, 1
        %s694 = scalar_select %p693, %s31, 1
        %s695 = smul.addr %s694, 2
        %s696 = smul.addr %s695, 8
        %s697 = scalar_lea.vmem %s1, %s696
      $region112: #{lmim_forward.5} parent=103 // pred_fallthru
        _
      // Predicated region
      $region113: #{lmim_forward.5} parent=103 // pred_check
        %p698 = pneg %p103
      $region114: #{lmim_forward.5} parent=103 // pred_check_branch
        %700 = sbr.rel (%p698) target = $region116
      $region115: #{lmim_forward.5} parent=103 // pred_region
        %p701 = scmp.lt.s32.totalorder %s31, 1
        %s702 = scalar_select %p701, %s31, 1
        %s703 = smul.addr %s702, 8
        %s704 = scalar_lea.vmem %s2, %s703
      $region116: #{lmim_forward.5} parent=103 // pred_fallthru
        _
    $region104: #{lmim_forward.5} parent=5 // pred_fallthru
      _
    %p705 = scmp.le.s32.totalorder 1, %s31
    %p706 = scmp.lt.s32.totalorder %s31, 3
    %p707 = pnand %p705, %p706
    %p708 = pneg %p707
    // Predicated region
    $region117: #{lmim_forward.5} parent=5 // pred_check
      _
    $region118: #{lmim_forward.5} parent=5 // pred_check_branch
      %710 = sbr.rel (%p707) target = $region120
    $region119: #{lmim_forward.5} parent=5 // pred_region
      %s711 = ssub.s32 %s31, 1
      %p712 = scmp.lt.s32.totalorder %s36, 1
      %s713 = scalar_select %p712, %s36, 1
      %s714 = smul.addr %s713, 2
      %s715 = smul.addr %s714, 8
      %s716 = scalar_lea.vmem %s0, %s715
      %p717 = pneg %p57
      %p718 = pneg %p54
      %p719 = scmp.lt.s32.totalorder %s36, 1
      %s720 = scalar_select %p719, %s36, 1
      %s721 = smul.addr %s720, 2
      %s722 = smul.addr %s721, 8
      %s723 = scalar_lea.vmem %s1, %s722
      %p724 = pneg %p83
      %p725 = pneg %p80
      %p726 = scmp.lt.s32.totalorder %s36, 1
      %s727 = scalar_select %p726, %s36, 1
      %s728 = smul.addr %s727, 8
      %s729 = scalar_lea.vmem %s2, %s728
      %p730 = pneg %p109
      %p731 = pneg %p106
      %p732 = pneg %p130
      %p733 = pneg %p127
      %p734 = pneg %p151
      %p735 = pneg %p148
      %p736 = pneg %p172
      %p737 = pneg %p169
      %p738 = pneg %p193
      %p739 = pneg %p190
      %p740 = pneg %p214
      %p741 = pneg %p211
      %p742 = pneg %p235
      %p743 = pneg %p232
      %p744 = pneg %p256
      %p745 = pneg %p253
      %p746 = pneg %p277
      %p747 = pneg %p274
      %p748 = pneg %p298
      %p749 = pneg %p295
      %p750 = pneg %p319
      %p751 = pneg %p316
      %p752 = pneg %p340
      %p753 = pneg %p337
      %p754 = pneg %p361
      %p755 = pneg %p358
      %p756 = pneg %p382
      %p757 = pneg %p379
      %p758 = pneg %p403
      %p759 = pneg %p400
      %p760 = pneg %p424
      %p761 = pneg %p421
      %p762 = pneg %p445
      %p763 = pneg %p442
      %p764 = pneg %p466
      %p765 = pneg %p463
      %p766 = pneg %p487
      %p767 = pneg %p484
      %p768 = pneg %p508
      %p769 = pneg %p505
      %p770 = pneg %p529
      %p771 = pneg %p526
      %p772 = pneg %p550
      %p773 = pneg %p547
      %p774 = pneg %p571
      %p775 = pneg %p568
      %p776 = pneg %p597
      %p777 = pneg %p594
      %p778 = scmp.lt.s32.totalorder %s36, 1
      %s779 = scalar_select %p778, %s36, 1
      %s780 = smul.addr %s779, 2
      %s781 = smul.addr %s780, 8
      %s782 = scalar_lea.vmem %s25, %s781
      %p783 = scmp.lt.s32.totalorder %s36, 1
      %s784 = scalar_select %p783, %s36, 1
      %s785 = smul.addr %s784, 2
      %s786 = smul.addr %s785, 8
      %s787 = scalar_lea.vmem %s0, %s786
      %p788 = scmp.lt.s32.totalorder %s36, 1
      %s789 = scalar_select %p788, %s36, 1
      %s790 = smul.addr %s789, 2
      %s791 = smul.addr %s790, 8
      %s792 = scalar_lea.vmem %s1, %s791
      %p793 = scmp.lt.s32.totalorder %s36, 1
      %s794 = scalar_select %p793, %s36, 1
      %s795 = smul.addr %s794, 8
      %s796 = scalar_lea.vmem %s2, %s795
      %p797 = scmp.lt.s32.totalorder %s36, 1
      %s798 = scalar_select %p797, %s36, 1
      %s799 = smul.addr %s798, 2
      %s800 = smul.addr %s799, 8
      %s801 = scalar_lea.vmem %s25, %s800
      %v802 = vld [vmem:[%s787] sm:$0xff]
      %v803 = vld [vmem:[%s787 + $0x8] sm:$0x1]
      %v804 = vld [vmem:[%s3] sm:$0xff]
      %v805 = vld [vmem:[%s3 + $0x8] sm:$0xff]
      %v806 = vld [vmem:[%s3 + $0x10] sm:$0xff]
      %v807 = vld [vmem:[%s3 + $0x18] sm:$0xff]
      %v808 = vld [vmem:[%s4] sm:$0x1]
      %v810 = vlaneseq
      %v811 = vshrl.u32 %v810, 7
      %v812 = vsub.s32 0, %v811
      %v813 = vrot.slane %v808, %v812
      %vm815 = vcmask 261120
      %v817 = vsel %vm815, %v802, 0
      %v820 = vsel %vm815, %v803, 0
      %822 = vmatprep.subr.mxu0 0.0
      %823 = vmatpush1.msra.mxu0 %v804
      %824 = vmatprep.subr.mxu0 0.0
      %825 = vmatpush1.msra.mxu0 %v805
      %826 = vmatprep.subr.mxu0 0.0
      %827 = vmatpush1.msra.mxu0 %v806
      %828 = vmatprep.subr.mxu0 0.0
      %829 = vmatpush1.msra.mxu0 %v807
      %830 = vmatprep.subr.mxu0 0.0
      %831 = vmatpush1.msra.mxu0 0.0
      %832 = vmatprep.subr.mxu0 0.0
      %833 = vmatpush1.msra.mxu0 0.0
      %834 = vmatprep.subr.mxu0 0.0
      %835 = vmatpush1.msra.mxu0 0.0
      %836 = vmatprep.subr.mxu0 0.0
      %837 = vmatpush1.msra.mxu0 0.0
      %838 = vmatprep.subr.mxu0 0.0
      %839 = vmatpush1.msra.mxu0 0.0
      %840 = vmatprep.subr.mxu0 0.0
      %841 = vmatpush1.msra.mxu0 0.0
      %842 = vmatprep.subr.mxu0 0.0
      %843 = vmatpush1.msra.mxu0 0.0
      %844 = vmatprep.subr.mxu0 0.0
      %845 = vmatpush1.msra.mxu0 0.0
      %846 = vmatprep.subr.mxu0 0.0
      %847 = vmatpush1.msra.mxu0 0.0
      %848 = vmatprep.subr.mxu0 0.0
      %849 = vmatpush1.msra.mxu0 0.0
      %850 = vmatprep.subr.mxu0 0.0
      %851 = vmatpush1.msra.mxu0 0.0
      %852 = vmatprep.subr.mxu0 0.0
      %853 = vmatpush1.msra.mxu0 0.0
      %854 = vmatprep.subr.mxu0 0.0
      %855 = vmatpush1.msra.mxu0 0.0
      %856 = vmatprep.subr.mxu0 0.0
      %857 = vmatpush1.msra.mxu0 0.0
      %858 = vmatprep.subr.mxu0 0.0
      %859 = vmatpush1.msra.mxu0 0.0
      %860 = vmatprep.subr.mxu0 0.0
      %861 = vmatpush1.msra.mxu0 0.0
      %862 = vmatprep.subr.mxu0 0.0
      %863 = vmatpush1.msra.mxu0 0.0
      %864 = vmatprep.subr.mxu0 0.0
      %865 = vmatpush1.msra.mxu0 0.0
      %866 = vmatprep.subr.mxu0 0.0
      %867 = vmatpush1.msra.mxu0 0.0
      %868 = vmatprep.subr.mxu0 0.0
      %869 = vmatpush1.msra.mxu0 0.0
      %870 = vmatprep.subr.mxu0 0.0
      %871 = vmatpush1.msra.mxu0 0.0
      %872 = vmatprep.subr.mxu0 0.0
      %873 = vmatpush1.msra.mxu0 0.0
      %874 = vmatprep.subr.mxu0 0.0
      %875 = vmatpush1.msra.mxu0 0.0
      %876 = vmatprep.subr.mxu0 0.0
      %877 = vmatpush1.msra.mxu0 0.0
      %878 = vmatprep.subr.mxu0 0.0
      %879 = vmatpush1.msra.mxu0 0.0
      %880 = vmatprep.subr.mxu0 0.0
      %881 = vmatpush1.msra.mxu0 0.0
      %882 = vmatprep.subr.mxu0 0.0
      %883 = vmatpush1.msra.mxu0 0.0
      %884 = vmatprep.subr.mxu0 0.0
      %885 = vmatpush1.msra.mxu0 0.0
      %886 = vmatprep.mubr.f32.mxu0 0.0
      %887 = vmatmul.mubr.f32.gmra.mrb[0].mxu0 %v817
      %v888 = vpop.f32.mrb[0].mxu0
      %v889 = vadd.f32 %v813, %v888
      %v890 = vpop.f32.mrb[0].mxu0
      %891 = vmatprep.mubr.f32.mxu0 0.0
      %892 = vmatmul.mubr.f32.gmra.mrb[0].mxu0 %v820
      %v893 = vpop.f32.mrb[0].mxu0
      %v894 = vadd.f32 %v813, %v893
      %v895 = vpop.f32.mrb[0].mxu0
      %896 = vdwg.mxu0
      %v897 = vld [vmem:[%s792] sm:$0xff]
      %v898 = vld [vmem:[%s792 + $0x8] sm:$0x1]
      %v899 = vadd.f32 %v889, %v897
      %v900 = vadd.f32 %v894, %v898
      %v901 = vlaneseq
      %v902 = vshrl.u32 %v901, 7
      %v903 = vadd.s32 %v902, 8
      %vm904 = vcmp.eq.s32.totalorder %v902, 0
      %vm905 = vcmp.eq.s32.totalorder %v903, 0
      %v906 = vsel %vm904, %v889, 0.0
      %v907 = vsel %vm905, %v894, 0.0
      %vm908 = vcmask 130048
      %v909 = vsel %vm908, %v906, 0.0
      %vm910 = vcmask 122880
      %v911 = vsel %vm910, %v907, 0.0
      %v912 = vadd.f32 %v909, %v911
      %v913 = vrot.slane %v912, 4
      %v914 = vadd.f32 %v912, %v913
      %v915 = vrot.slane %v914, 2
      %v916 = vadd.f32 %v914, %v915
      %v917 = vrot.slane %v916, 1
      %v918 = vadd.f32 %v916, %v917
      %vm919 = vcmp.ge.s32.totalorder %v902, 1
      %vm920 = vcmp.ge.s32.totalorder %v903, 1
      %v921 = vsel %vm919, %v889, 0.0
      %v922 = vsel %vm920, %v894, 0.0
      %v923 = vsel %vm908, %v921, 0.0
      %v924 = vsel %vm910, %v922, 0.0
      %v925 = vadd.f32 %v923, %v924
      %v926 = vrot.slane %v925, 4
      %v927 = vadd.f32 %v925, %v926
      %v928 = vrot.slane %v927, 2
      %v929 = vadd.f32 %v927, %v928
      %v930 = vrot.slane %v929, 1
      %v931 = vadd.f32 %v929, %v930
      %v932 = vrcp.pop 8.0
      %v933 = vmul.f32 %v931, %v932
      %v934 = vld [vmem:[%s796] sm:$0xff]
      %v935 = vadd.f32 %v933, %v934
      %v936 = vld [vmem:[%s5] sm:$0x1]
      %v937 = vld [vmem:[%s6] sm:$0x1]
      %v938 = vsel %vm908, %v935, 0.0
      %939 = vadd.xlane.f32.xlu0 %v938
      %v940 = vpop.xlane.xlu0 %939
      %v941 = vsel %vm910, %v918, 0.0
      %942 = vadd.xlane.f32.xlu0 %v941
      %v943 = vpop.xlane.xlu0 %942
      %v944 = vrcp.pop 16.0
      %v945 = vmul.f32 %v940, %v944
      %v946 = vmul.f32 %v943, %v944
      %v947 = vsub.f32 %v935, %v945
      %v948 = vsub.f32 %v918, %v946
      %v949 = vmul.f32 %v947, %v947
      %v950 = vmul.f32 %v948, %v948
      %v951 = vsel %vm908, %v949, 0.0
      %952 = vadd.xlane.f32.xlu0 %v951
      %v953 = vpop.xlane.xlu0 %952
      %v954 = vsel %vm910, %v950, 0.0
      %955 = vadd.xlane.f32.xlu0 %v954
      %v956 = vpop.xlane.xlu0 %955
      %v957 = vmul.f32 %v953, %v944
      %v958 = vmul.f32 %v956, %v944
      %v959 = vadd.f32 %v957, 1e-05
      %v960 = vadd.f32 %v958, 1e-05
      %v961 = vrsqrt.pop %v959
      %v962 = vrsqrt.pop %v960
      %v963 = vmul.f32 %v947, %v961
      %v964 = vmul.f32 %v948, %v962
      %v966 = vlaneseq
      %v967 = vshrl.u32 %v966, 7
      %v968 = vsub.s32 0, %v967
      %v969 = vrot.slane %v936, %v968
      %v971 = vmul.f32 %v963, %v969
      %v972 = vmul.f32 %v964, %v969
      %v974 = vlaneseq
      %v975 = vshrl.u32 %v974, 7
      %v976 = vsub.s32 0, %v975
      %v977 = vrot.slane %v937, %v976
      %v979 = vadd.f32 %v971, %v977
      %v980 = vadd.f32 %v972, %v977
      %v981 = vld [vmem:[%s7] sm:$0x1]
      %v982 = vld [vmem:[%s8] sm:$0x1]
      %v983 = vsel %vm908, %v899, 0.0
      %984 = vadd.xlane.f32.xlu0 %v983
      %v985 = vpop.xlane.xlu0 %984
      %v986 = vsel %vm910, %v900, 0.0
      %987 = vadd.xlane.f32.xlu0 %v986
      %v988 = vpop.xlane.xlu0 %987
      %v989 = vmul.f32 %v985, %v944
      %v990 = vmul.f32 %v988, %v944
      %v991 = vsub.f32 %v899, %v989
      %v992 = vsub.f32 %v900, %v990
      %v993 = vmul.f32 %v991, %v991
      %v994 = vmul.f32 %v992, %v992
      %v995 = vsel %vm908, %v993, 0.0
      %996 = vadd.xlane.f32.xlu0 %v995
      %v997 = vpop.xlane.xlu0 %996
      %v998 = vsel %vm910, %v994, 0.0
      %999 = vadd.xlane.f32.xlu0 %v998
      %v1000 = vpop.xlane.xlu0 %999
      %v1001 = vmul.f32 %v997, %v944
      %v1002 = vmul.f32 %v1000, %v944
      %v1003 = vadd.f32 %v1001, 1e-05
      %v1004 = vadd.f32 %v1002, 1e-05
      %v1005 = vrsqrt.pop %v1003
      %v1006 = vrsqrt.pop %v1004
      %v1007 = vmul.f32 %v991, %v1005
      %v1008 = vmul.f32 %v992, %v1006
      %v1010 = vlaneseq
      %v1011 = vshrl.u32 %v1010, 7
      %v1012 = vsub.s32 0, %v1011
      %v1013 = vrot.slane %v981, %v1012
      %v1015 = vmul.f32 %v1007, %v1013
      %v1016 = vmul.f32 %v1008, %v1013
      %v1018 = vlaneseq
      %v1019 = vshrl.u32 %v1018, 7
      %v1020 = vsub.s32 0, %v1019
      %v1021 = vrot.slane %v982, %v1020
      %v1023 = vadd.f32 %v1015, %v1021
      %v1024 = vadd.f32 %v1016, %v1021
      %v1025 = vld [vmem:[%s9] sm:$0xff]
      %v1026 = vld [vmem:[%s9 + $0x8] sm:$0xff]
      %v1027 = vld [vmem:[%s10] sm:$0x1]
      %v1029 = vlaneseq
      %v1030 = vshrl.u32 %v1029, 7
      %v1031 = vsub.s32 0, %v1030
      %v1032 = vrot.slane %v1027, %v1031
      %v1035 = vsel %vm908, %v979, 0
      %v1038 = vsel %vm908, %v980, 0
      %1040 = vmatprep.subr.mxu0 0.0
      %1041 = vmatpush1.msra.mxu0 %v1025
      %1042 = vmatprep.subr.mxu0 0.0
      %1043 = vmatpush1.msra.mxu0 %v1026
      %1044 = vmatprep.subr.mxu0 0.0
      %1045 = vmatpush1.msra.mxu0 0.0
      %1046 = vmatprep.subr.mxu0 0.0
      %1047 = vmatpush1.msra.mxu0 0.0
      %1048 = vmatprep.subr.mxu0 0.0
      %1049 = vmatpush1.msra.mxu0 0.0
      %1050 = vmatprep.subr.mxu0 0.0
      %1051 = vmatpush1.msra.mxu0 0.0
      %1052 = vmatprep.subr.mxu0 0.0
      %1053 = vmatpush1.msra.mxu0 0.0
      %1054 = vmatprep.subr.mxu0 0.0
      %1055 = vmatpush1.msra.mxu0 0.0
      %1056 = vmatprep.subr.mxu0 0.0
      %1057 = vmatpush1.msra.mxu0 0.0
      %1058 = vmatprep.subr.mxu0 0.0
      %1059 = vmatpush1.msra.mxu0 0.0
      %1060 = vmatprep.subr.mxu0 0.0
      %1061 = vmatpush1.msra.mxu0 0.0
      %1062 = vmatprep.subr.mxu0 0.0
      %1063 = vmatpush1.msra.mxu0 0.0
      %1064 = vmatprep.subr.mxu0 0.0
      %1065 = vmatpush1.msra.mxu0 0.0
      %1066 = vmatprep.subr.mxu0 0.0
      %1067 = vmatpush1.msra.mxu0 0.0
      %1068 = vmatprep.subr.mxu0 0.0
      %1069 = vmatpush1.msra.mxu0 0.0
      %1070 = vmatprep.subr.mxu0 0.0
      %1071 = vmatpush1.msra.mxu0 0.0
      %1072 = vmatprep.subr.mxu0 0.0
      %1073 = vmatpush1.msra.mxu0 0.0
      %1074 = vmatprep.subr.mxu0 0.0
      %1075 = vmatpush1.msra.mxu0 0.0
      %1076 = vmatprep.subr.mxu0 0.0
      %1077 = vmatpush1.msra.mxu0 0.0
      %1078 = vmatprep.subr.mxu0 0.0
      %1079 = vmatpush1.msra.mxu0 0.0
      %1080 = vmatprep.subr.mxu0 0.0
      %1081 = vmatpush1.msra.mxu0 0.0
      %1082 = vmatprep.subr.mxu0 0.0
      %1083 = vmatpush1.msra.mxu0 0.0
      %1084 = vmatprep.subr.mxu0 0.0
      %1085 = vmatpush1.msra.mxu0 0.0
      %1086 = vmatprep.subr.mxu0 0.0
      %1087 = vmatpush1.msra.mxu0 0.0
      %1088 = vmatprep.subr.mxu0 0.0
      %1089 = vmatpush1.msra.mxu0 0.0
      %1090 = vmatprep.subr.mxu0 0.0
      %1091 = vmatpush1.msra.mxu0 0.0
      %1092 = vmatprep.subr.mxu0 0.0
      %1093 = vmatpush1.msra.mxu0 0.0
      %1094 = vmatprep.subr.mxu0 0.0
      %1095 = vmatpush1.msra.mxu0 0.0
      %1096 = vmatprep.subr.mxu0 0.0
      %1097 = vmatpush1.msra.mxu0 0.0
      %1098 = vmatprep.subr.mxu0 0.0
      %1099 = vmatpush1.msra.mxu0 0.0
      %1100 = vmatprep.subr.mxu0 0.0
      %1101 = vmatpush1.msra.mxu0 0.0
      %1102 = vmatprep.subr.mxu0 0.0
      %1103 = vmatpush1.msra.mxu0 0.0
      %1104 = vmatprep.mubr.f32.mxu0 0.0
      %1105 = vmatmul.mubr.f32.gmra.mrb[0].mxu0 %v1035
      %v1106 = vpop.f32.mrb[0].mxu0
      %v1107 = vadd.f32 %v1032, %v1106
      %v1108 = vpop.f32.mrb[0].mxu0
      %1109 = vmatprep.mubr.f32.mxu0 0.0
      %1110 = vmatmul.mubr.f32.gmra.mrb[0].mxu0 %v1038
      %v1111 = vpop.f32.mrb[0].mxu0
      %v1112 = vadd.f32 %v1032, %v1111
      %v1113 = vpop.f32.mrb[0].mxu0
      %1114 = vdwg.mxu0
      %v1115 = vld [vmem:[%s11] sm:$0xff]
      %v1116 = vld [vmem:[%s11 + $0x8] sm:$0xff]
      %v1117 = vld [vmem:[%s12] sm:$0x1]
      %v1119 = vlaneseq
      %v1120 = vshrl.u32 %v1119, 7
      %v1121 = vsub.s32 0, %v1120
      %v1122 = vrot.slane %v1117, %v1121
      %v1125 = vsel %vm908, %v1023, 0
      %v1128 = vsel %vm908, %v1024, 0
      %1130 = vmatprep.subr.mxu0 0.0
      %1131 = vmatpush1.msra.mxu0 %v1115
      %1132 = vmatprep.subr.mxu0 0.0
      %1133 = vmatpush1.msra.mxu0 %v1116
      %1134 = vmatprep.subr.mxu0 0.0
      %1135 = vmatpush1.msra.mxu0 0.0
      %1136 = vmatprep.subr.mxu0 0.0
      %1137 = vmatpush1.msra.mxu0 0.0
      %1138 = vmatprep.subr.mxu0 0.0
      %1139 = vmatpush1.msra.mxu0 0.0
      %1140 = vmatprep.subr.mxu0 0.0
      %1141 = vmatpush1.msra.mxu0 0.0
      %1142 = vmatprep.subr.mxu0 0.0
      %1143 = vmatpush1.msra.mxu0 0.0
      %1144 = vmatprep.subr.mxu0 0.0
      %1145 = vmatpush1.msra.mxu0 0.0
      %1146 = vmatprep.subr.mxu0 0.0
      %1147 = vmatpush1.msra.mxu0 0.0
      %1148 = vmatprep.subr.mxu0 0.0
      %1149 = vmatpush1.msra.mxu0 0.0
      %1150 = vmatprep.subr.mxu0 0.0
      %1151 = vmatpush1.msra.mxu0 0.0
      %1152 = vmatprep.subr.mxu0 0.0
      %1153 = vmatpush1.msra.mxu0 0.0
      %1154 = vmatprep.subr.mxu0 0.0
      %1155 = vmatpush1.msra.mxu0 0.0
      %1156 = vmatprep.subr.mxu0 0.0
      %1157 = vmatpush1.msra.mxu0 0.0
      %1158 = vmatprep.subr.mxu0 0.0
      %1159 = vmatpush1.msra.mxu0 0.0
      %1160 = vmatprep.subr.mxu0 0.0
      %1161 = vmatpush1.msra.mxu0 0.0
      %1162 = vmatprep.subr.mxu0 0.0
      %1163 = vmatpush1.msra.mxu0 0.0
      %1164 = vmatprep.subr.mxu0 0.0
      %1165 = vmatpush1.msra.mxu0 0.0
      %1166 = vmatprep.subr.mxu0 0.0
      %1167 = vmatpush1.msra.mxu0 0.0
      %1168 = vmatprep.subr.mxu0 0.0
      %1169 = vmatpush1.msra.mxu0 0.0
      %1170 = vmatprep.subr.mxu0 0.0
      %1171 = vmatpush1.msra.mxu0 0.0
      %1172 = vmatprep.subr.mxu0 0.0
      %1173 = vmatpush1.msra.mxu0 0.0
      %1174 = vmatprep.subr.mxu0 0.0
      %1175 = vmatpush1.msra.mxu0 0.0
      %1176 = vmatprep.subr.mxu0 0.0
      %1177 = vmatpush1.msra.mxu0 0.0
      %1178 = vmatprep.subr.mxu0 0.0
      %1179 = vmatpush1.msra.mxu0 0.0
      %1180 = vmatprep.subr.mxu0 0.0
      %1181 = vmatpush1.msra.mxu0 0.0
      %1182 = vmatprep.subr.mxu0 0.0
      %1183 = vmatpush1.msra.mxu0 0.0
      %1184 = vmatprep.subr.mxu0 0.0
      %1185 = vmatpush1.msra.mxu0 0.0
      %1186 = vmatprep.subr.mxu0 0.0
      %1187 = vmatpush1.msra.mxu0 0.0
      %1188 = vmatprep.subr.mxu0 0.0
      %1189 = vmatpush1.msra.mxu0 0.0
      %1190 = vmatprep.subr.mxu0 0.0
      %1191 = vmatpush1.msra.mxu0 0.0
      %1192 = vmatprep.subr.mxu0 0.0
      %1193 = vmatpush1.msra.mxu0 0.0
      %1194 = vmatprep.mubr.f32.mxu0 0.0
      %1195 = vmatmul.mubr.f32.gmra.mrb[0].mxu0 %v1125
      %v1196 = vpop.f32.mrb[0].mxu0
      %v1197 = vadd.f32 %v1122, %v1196
      %v1198 = vpop.f32.mrb[0].mxu0
      %1199 = vmatprep.mubr.f32.mxu0 0.0
      %1200 = vmatmul.mubr.f32.gmra.mrb[0].mxu0 %v1128
      %v1201 = vpop.f32.mrb[0].mxu0
      %v1202 = vadd.f32 %v1122, %v1201
      %v1203 = vpop.f32.mrb[0].mxu0
      %1204 = vdwg.mxu0
      %v1205 = vld [vmem:[%s14] sm:$0x1]
      %v1207 = vlaneseq
      %v1208 = vshrl.u32 %v1207, 7
      %v1209 = vsub.s32 0, %v1208
      %v1210 = vrot.slane %v1205, %v1209
      %v1212 = vadd.f32 %v1210, 0.0
      %vm1213 = vcmask 64512
      %v1215 = vsel %vm1213, %v1107, 0
      %v1218 = vsel %vm1213, %v1112, 0
      %v1221 = vsel %vm1213, %v1197, 0
      %v1224 = vsel %vm1213, %v1202, 0
      %1226 = vmatprep.subr.mxu0 0.0
      %1227 = vmatpush1.xpose.msra.mxu0 %v1221
      %1228 = vmatprep.subr.mxu0 0.0
      %1229 = vmatpush1.xpose.msra.mxu0 %v1224
      %1230 = vmatprep.subr.mxu0 0.0
      %1231 = vmatpush1.xpose.msra.mxu0 0.0
      %1232 = vmatprep.subr.mxu0 0.0
      %1233 = vmatpush1.xpose.msra.mxu0 0.0
      %1234 = vmatprep.subr.mxu0 0.0
      %1235 = vmatpush1.xpose.msra.mxu0 0.0
      %1236 = vmatprep.subr.mxu0 0.0
      %1237 = vmatpush1.xpose.msra.mxu0 0.0
      %1238 = vmatprep.subr.mxu0 0.0
      %1239 = vmatpush1.xpose.msra.mxu0 0.0
      %1240 = vmatprep.subr.mxu0 0.0
      %1241 = vmatpush1.xpose.msra.mxu0 0.0
      %1242 = vmatprep.subr.mxu0 0.0
      %1243 = vmatpush1.xpose.msra.mxu0 0.0
      %1244 = vmatprep.subr.mxu0 0.0
      %1245 = vmatpush1.xpose.msra.mxu0 0.0
      %1246 = vmatprep.subr.mxu0 0.0
      %1247 = vmatpush1.xpose.msra.mxu0 0.0
      %1248 = vmatprep.subr.mxu0 0.0
      %1249 = vmatpush1.xpose.msra.mxu0 0.0
      %1250 = vmatprep.subr.mxu0 0.0
      %1251 = vmatpush1.xpose.msra.mxu0 0.0
      %1252 = vmatprep.subr.mxu0 0.0
      %1253 = vmatpush1.xpose.msra.mxu0 0.0
      %1254 = vmatprep.subr.mxu0 0.0
      %1255 = vmatpush1.xpose.msra.mxu0 0.0
      %1256 = vmatprep.subr.mxu0 0.0
      %1257 = vmatpush1.xpose.msra.mxu0 0.0
      %1258 = vmatprep.subr.mxu0 0.0
      %1259 = vmatpush1.xpose.msra.mxu0 0.0
      %1260 = vmatprep.subr.mxu0 0.0
      %1261 = vmatpush1.xpose.msra.mxu0 0.0
      %1262 = vmatprep.subr.mxu0 0.0
      %1263 = vmatpush1.xpose.msra.mxu0 0.0
      %1264 = vmatprep.subr.mxu0 0.0
      %1265 = vmatpush1.xpose.msra.mxu0 0.0
      %1266 = vmatprep.subr.mxu0 0.0
      %1267 = vmatpush1.xpose.msra.mxu0 0.0
      %1268 = vmatprep.subr.mxu0 0.0
      %1269 = vmatpush1.xpose.msra.mxu0 0.0
      %1270 = vmatprep.subr.mxu0 0.0
      %1271 = vmatpush1.xpose.msra.mxu0 0.0
      %1272 = vmatprep.subr.mxu0 0.0
      %1273 = vmatpush1.xpose.msra.mxu0 0.0
      %1274 = vmatprep.subr.mxu0 0.0
      %1275 = vmatpush1.xpose.msra.mxu0 0.0
      %1276 = vmatprep.subr.mxu0 0.0
      %1277 = vmatpush1.xpose.msra.mxu0 0.0
      %1278 = vmatprep.subr.mxu0 0.0
      %1279 = vmatpush1.xpose.msra.mxu0 0.0
      %1280 = vmatprep.subr.mxu0 0.0
      %1281 = vmatpush1.xpose.msra.mxu0 0.0
      %1282 = vmatprep.subr.mxu0 0.0
      %1283 = vmatpush1.xpose.msra.mxu0 0.0
      %1284 = vmatprep.subr.mxu0 0.0
      %1285 = vmatpush1.xpose.msra.mxu0 0.0
      %1286 = vmatprep.subr.mxu0 0.0
      %1287 = vmatpush1.xpose.msra.mxu0 0.0
      %1288 = vmatprep.subr.mxu0 0.0
      %1289 = vmatpush1.xpose.msra.mxu0 0.0
      %1290 = vmatprep.mubr.f32.mxu0 0.0
      %1291 = vmatmul.mubr.f32.gmra.mrb[0].mxu0 %v1215
      %v1292 = vpop.f32.mrb[0].mxu0
      %v1293 = vadd.f32 0.0, %v1292
      %v1294 = vpop.f32.mrb[0].mxu0
      %1295 = vmatprep.mubr.f32.mxu0 0.0
      %1296 = vmatmul.mubr.f32.gmra.mrb[0].mxu0 %v1218
      %v1297 = vpop.f32.mrb[0].mxu0
      %v1298 = vadd.f32 0.0, %v1297
      %v1299 = vpop.f32.mrb[0].mxu0
      %1300 = vdwg.mxu0
      %v1301 = vmul.f32 %v1293, 0.35355338
      %v1302 = vmul.f32 %v1298, 0.35355338
      %vm1303 = vcmask 72704
      %v1304 = vsel %vm1303, %v1301, -inf
      %1305 = vmax.xlane.f32.xlu0 %v1304
      %v1306 = vpop.xlane.xlu0 %1305
      %vm1307 = vcmask 65536
      %v1308 = vsel %vm1307, %v1302, -inf
      %1309 = vmax.xlane.f32.xlu0 %v1308
      %v1310 = vpop.xlane.xlu0 %1309
      %v1311 = vsub.f32 %v1301, %v1306
      %v1312 = vsub.f32 %v1302, %v1310
      %v1313 = vmul.f32 %v1311, 1.442695
      %v1314 = vpow.pop %v1313
      %v1315 = vmul.f32 %v1312, 1.442695
      %v1316 = vpow.pop %v1315
      %v1317 = vsel %vm1303, %v1314, 0.0
      %1318 = vadd.xlane.f32.xlu0 %v1317
      %v1319 = vpop.xlane.xlu0 %1318
      %v1320 = vsel %vm1307, %v1316, 0.0
      %1321 = vadd.xlane.f32.xlu0 %v1320
      %v1322 = vpop.xlane.xlu0 %1321
      %v1323 = vrcp.pop %v1319
      %v1324 = vrcp.pop %v1322
      %v1325 = vmul.f32 %v1314, %v1323
      %v1326 = vmul.f32 %v1316, %v1324
      %1327 = vrot.lane.b32.xlu0 %v1197, 112
      %v1328 = vpop.permute.xlu0 %1327
      %1329 = vrot.lane.b32.xlu0 %v1202, 112
      %v1330 = vpop.permute.xlu0 %1329
      %v1333 = vsel %vm1303, %v1325, 0
      %v1336 = vsel %vm1303, %v1326, 0
      %vm1338 = vcmask 1040384
      %v1339 = vsel %vm1338, %v1330, 0
      %1341 = vmatprep.subr.mxu0 0.0
      %1342 = vmatpush1.msra.mxu0 %v1328
      %1343 = vmatprep.subr.mxu0 0.0
      %1344 = vmatpush1.msra.mxu0 %v1339
      %1345 = vmatprep.subr.mxu0 0.0
      %1346 = vmatpush1.msra.mxu0 0.0
      %1347 = vmatprep.subr.mxu0 0.0
      %1348 = vmatpush1.msra.mxu0 0.0
      %1349 = vmatprep.subr.mxu0 0.0
      %1350 = vmatpush1.msra.mxu0 0.0
      %1351 = vmatprep.subr.mxu0 0.0
      %1352 = vmatpush1.msra.mxu0 0.0
      %1353 = vmatprep.subr.mxu0 0.0
      %1354 = vmatpush1.msra.mxu0 0.0
      %1355 = vmatprep.subr.mxu0 0.0
      %1356 = vmatpush1.msra.mxu0 0.0
      %1357 = vmatprep.subr.mxu0 0.0
      %1358 = vmatpush1.msra.mxu0 0.0
      %1359 = vmatprep.subr.mxu0 0.0
      %1360 = vmatpush1.msra.mxu0 0.0
      %1361 = vmatprep.subr.mxu0 0.0
      %1362 = vmatpush1.msra.mxu0 0.0
      %1363 = vmatprep.subr.mxu0 0.0
      %1364 = vmatpush1.msra.mxu0 0.0
      %1365 = vmatprep.subr.mxu0 0.0
      %1366 = vmatpush1.msra.mxu0 0.0
      %1367 = vmatprep.subr.mxu0 0.0
      %1368 = vmatpush1.msra.mxu0 0.0
      %1369 = vmatprep.subr.mxu0 0.0
      %1370 = vmatpush1.msra.mxu0 0.0
      %1371 = vmatprep.subr.mxu0 0.0
      %1372 = vmatpush1.msra.mxu0 0.0
      %1373 = vmatprep.subr.mxu0 0.0
      %1374 = vmatpush1.msra.mxu0 0.0
      %1375 = vmatprep.subr.mxu0 0.0
      %1376 = vmatpush1.msra.mxu0 0.0
      %1377 = vmatprep.subr.mxu0 0.0
      %1378 = vmatpush1.msra.mxu0 0.0
      %1379 = vmatprep.subr.mxu0 0.0
      %1380 = vmatpush1.msra.mxu0 0.0
      %1381 = vmatprep.subr.mxu0 0.0
      %1382 = vmatpush1.msra.mxu0 0.0
      %1383 = vmatprep.subr.mxu0 0.0
      %1384 = vmatpush1.msra.mxu0 0.0
      %1385 = vmatprep.subr.mxu0 0.0
      %1386 = vmatpush1.msra.mxu0 0.0
      %1387 = vmatprep.subr.mxu0 0.0
      %1388 = vmatpush1.msra.mxu0 0.0
      %1389 = vmatprep.subr.mxu0 0.0
      %1390 = vmatpush1.msra.mxu0 0.0
      %1391 = vmatprep.subr.mxu0 0.0
      %1392 = vmatpush1.msra.mxu0 0.0
      %1393 = vmatprep.subr.mxu0 0.0
      %1394 = vmatpush1.msra.mxu0 0.0
      %1395 = vmatprep.subr.mxu0 0.0
      %1396 = vmatpush1.msra.mxu0 0.0
      %1397 = vmatprep.subr.mxu0 0.0
      %1398 = vmatpush1.msra.mxu0 0.0
      %1399 = vmatprep.subr.mxu0 0.0
      %1400 = vmatpush1.msra.mxu0 0.0
      %1401 = vmatprep.subr.mxu0 0.0
      %1402 = vmatpush1.msra.mxu0 0.0
      %1403 = vmatprep.subr.mxu0 0.0
      %1404 = vmatpush1.msra.mxu0 0.0
      %1405 = vmatprep.mubr.f32.mxu0 0.0
      %1406 = vmatmul.mubr.f32.gmra.mrb[0].mxu0 %v1333
      %v1407 = vpop.f32.mrb[0].mxu0
      %v1408 = vadd.f32 0.0, %v1407
      %v1409 = vpop.f32.mrb[0].mxu0
      %1410 = vmatprep.mubr.f32.mxu0 0.0
      %1411 = vmatmul.mubr.f32.gmra.mrb[0].mxu0 %v1336
      %v1412 = vpop.f32.mrb[0].mxu0
      %v1413 = vadd.f32 0.0, %v1412
      %v1414 = vpop.f32.mrb[0].mxu0
      %1415 = vdwg.mxu0
      %v1416 = vld [vmem:[%s13] sm:$0xff]
      %v1418 = vsel %vm1213, %v1408, 0
      %v1421 = vsel %vm1213, %v1413, 0
      %1423 = vmatprep.subr.mxu0 0.0
      %1424 = vmatpush1.msra.mxu0 %v1416
      %1425 = vmatprep.subr.mxu0 0.0
      %1426 = vmatpush1.msra.mxu0 0.0
      %1427 = vmatprep.subr.mxu0 0.0
      %1428 = vmatpush1.msra.mxu0 0.0
      %1429 = vmatprep.subr.mxu0 0.0
      %1430 = vmatpush1.msra.mxu0 0.0
      %1431 = vmatprep.subr.mxu0 0.0
      %1432 = vmatpush1.msra.mxu0 0.0
      %1433 = vmatprep.subr.mxu0 0.0
      %1434 = vmatpush1.msra.mxu0 0.0
      %1435 = vmatprep.subr.mxu0 0.0
      %1436 = vmatpush1.msra.mxu0 0.0
      %1437 = vmatprep.subr.mxu0 0.0
      %1438 = vmatpush1.msra.mxu0 0.0
      %1439 = vmatprep.subr.mxu0 0.0
      %1440 = vmatpush1.msra.mxu0 0.0
      %1441 = vmatprep.subr.mxu0 0.0
      %1442 = vmatpush1.msra.mxu0 0.0
      %1443 = vmatprep.subr.mxu0 0.0
      %1444 = vmatpush1.msra.mxu0 0.0
      %1445 = vmatprep.subr.mxu0 0.0
      %1446 = vmatpush1.msra.mxu0 0.0
      %1447 = vmatprep.subr.mxu0 0.0
      %1448 = vmatpush1.msra.mxu0 0.0
      %1449 = vmatprep.subr.mxu0 0.0
      %1450 = vmatpush1.msra.mxu0 0.0
      %1451 = vmatprep.subr.mxu0 0.0
      %1452 = vmatpush1.msra.mxu0 0.0
      %1453 = vmatprep.subr.mxu0 0.0
      %1454 = vmatpush1.msra.mxu0 0.0
      %1455 = vmatprep.subr.mxu0 0.0
      %1456 = vmatpush1.msra.mxu0 0.0
      %1457 = vmatprep.subr.mxu0 0.0
      %1458 = vmatpush1.msra.mxu0 0.0
      %1459 = vmatprep.subr.mxu0 0.0
      %1460 = vmatpush1.msra.mxu0 0.0
      %1461 = vmatprep.subr.mxu0 0.0
      %1462 = vmatpush1.msra.mxu0 0.0
      %1463 = vmatprep.subr.mxu0 0.0
      %1464 = vmatpush1.msra.mxu0 0.0
      %1465 = vmatprep.subr.mxu0 0.0
      %1466 = vmatpush1.msra.mxu0 0.0
      %1467 = vmatprep.subr.mxu0 0.0
      %1468 = vmatpush1.msra.mxu0 0.0
      %1469 = vmatprep.subr.mxu0 0.0
      %1470 = vmatpush1.msra.mxu0 0.0
      %1471 = vmatprep.subr.mxu0 0.0
      %1472 = vmatpush1.msra.mxu0 0.0
      %1473 = vmatprep.subr.mxu0 0.0
      %1474 = vmatpush1.msra.mxu0 0.0
      %1475 = vmatprep.subr.mxu0 0.0
      %1476 = vmatpush1.msra.mxu0 0.0
      %1477 = vmatprep.subr.mxu0 0.0
      %1478 = vmatpush1.msra.mxu0 0.0
      %1479 = vmatprep.subr.mxu0 0.0
      %1480 = vmatpush1.msra.mxu0 0.0
      %1481 = vmatprep.subr.mxu0 0.0
      %1482 = vmatpush1.msra.mxu0 0.0
      %1483 = vmatprep.subr.mxu0 0.0
      %1484 = vmatpush1.msra.mxu0 0.0
      %1485 = vmatprep.subr.mxu0 0.0
      %1486 = vmatpush1.msra.mxu0 0.0
      %1487 = vmatprep.mubr.f32.mxu0 0.0
      %1488 = vmatmul.mubr.f32.gmra.mrb[0].mxu0 %v1418
      %v1489 = vpop.f32.mrb[0].mxu0
      %v1490 = vadd.f32 0.0, %v1489
      %v1491 = vpop.f32.mrb[0].mxu0
      %1492 = vmatprep.mubr.f32.mxu0 0.0
      %1493 = vmatmul.mubr.f32.gmra.mrb[0].mxu0 %v1421
      %v1494 = vpop.f32.mrb[0].mxu0
      %v1495 = vadd.f32 0.0, %v1494
      %v1496 = vpop.f32.mrb[0].mxu0
      %1497 = vdwg.mxu0
      %v1498 = vadd.f32 %v1212, %v1490
      %v1499 = vadd.f32 %v1212, %v1495
      %1500 = vrot.lane.b32.xlu0 %v1107, 120
      %v1501 = vpop.permute.xlu0 %1500
      %1502 = vrot.lane.b32.xlu0 %v1112, 120
      %v1503 = vpop.permute.xlu0 %1502
      %1504 = vrot.lane.b32.xlu0 %v1197, 120
      %v1505 = vpop.permute.xlu0 %1504
      %1506 = vrot.lane.b32.xlu0 %v1202, 120
      %v1507 = vpop.permute.xlu0 %1506
      %v1508 = vsel %vm1213, %v1501, 0
      %v1510 = vsel %vm1213, %v1503, 0
      %v1512 = vsel %vm1213, %v1505, 0
      %v1514 = vsel %vm1213, %v1507, 0
      %1516 = vmatprep.subr.mxu0 0.0
      %1517 = vmatpush1.xpose.msra.mxu0 %v1512
      %1518 = vmatprep.subr.mxu0 0.0
      %1519 = vmatpush1.xpose.msra.mxu0 %v1514
      %1520 = vmatprep.subr.mxu0 0.0
      %1521 = vmatpush1.xpose.msra.mxu0 0.0
      %1522 = vmatprep.subr.mxu0 0.0
      %1523 = vmatpush1.xpose.msra.mxu0 0.0
      %1524 = vmatprep.subr.mxu0 0.0
      %1525 = vmatpush1.xpose.msra.mxu0 0.0
      %1526 = vmatprep.subr.mxu0 0.0
      %1527 = vmatpush1.xpose.msra.mxu0 0.0
      %1528 = vmatprep.subr.mxu0 0.0
      %1529 = vmatpush1.xpose.msra.mxu0 0.0
      %1530 = vmatprep.subr.mxu0 0.0
      %1531 = vmatpush1.xpose.msra.mxu0 0.0
      %1532 = vmatprep.subr.mxu0 0.0
      %1533 = vmatpush1.xpose.msra.mxu0 0.0
      %1534 = vmatprep.subr.mxu0 0.0
      %1535 = vmatpush1.xpose.msra.mxu0 0.0
      %1536 = vmatprep.subr.mxu0 0.0
      %1537 = vmatpush1.xpose.msra.mxu0 0.0
      %1538 = vmatprep.subr.mxu0 0.0
      %1539 = vmatpush1.xpose.msra.mxu0 0.0
      %1540 = vmatprep.subr.mxu0 0.0
      %1541 = vmatpush1.xpose.msra.mxu0 0.0
      %1542 = vmatprep.subr.mxu0 0.0
      %1543 = vmatpush1.xpose.msra.mxu0 0.0
      %1544 = vmatprep.subr.mxu0 0.0
      %1545 = vmatpush1.xpose.msra.mxu0 0.0
      %1546 = vmatprep.subr.mxu0 0.0
      %1547 = vmatpush1.xpose.msra.mxu0 0.0
      %1548 = vmatprep.subr.mxu0 0.0
      %1549 = vmatpush1.xpose.msra.mxu0 0.0
      %1550 = vmatprep.subr.mxu0 0.0
      %1551 = vmatpush1.xpose.msra.mxu0 0.0
      %1552 = vmatprep.subr.mxu0 0.0
      %1553 = vmatpush1.xpose.msra.mxu0 0.0
      %1554 = vmatprep.subr.mxu0 0.0
      %1555 = vmatpush1.xpose.msra.mxu0 0.0
      %1556 = vmatprep.subr.mxu0 0.0
      %1557 = vmatpush1.xpose.msra.mxu0 0.0
      %1558 = vmatprep.subr.mxu0 0.0
      %1559 = vmatpush1.xpose.msra.mxu0 0.0
      %1560 = vmatprep.subr.mxu0 0.0
      %1561 = vmatpush1.xpose.msra.mxu0 0.0
      %1562 = vmatprep.subr.mxu0 0.0
      %1563 = vmatpush1.xpose.msra.mxu0 0.0
      %1564 = vmatprep.subr.mxu0 0.0
      %1565 = vmatpush1.xpose.msra.mxu0 0.0
      %1566 = vmatprep.subr.mxu0 0.0
      %1567 = vmatpush1.xpose.msra.mxu0 0.0
      %1568 = vmatprep.subr.mxu0 0.0
      %1569 = vmatpush1.xpose.msra.mxu0 0.0
      %1570 = vmatprep.subr.mxu0 0.0
      %1571 = vmatpush1.xpose.msra.mxu0 0.0
      %1572 = vmatprep.subr.mxu0 0.0
      %1573 = vmatpush1.xpose.msra.mxu0 0.0
      %1574 = vmatprep.subr.mxu0 0.0
      %1575 = vmatpush1.xpose.msra.mxu0 0.0
      %1576 = vmatprep.subr.mxu0 0.0
      %1577 = vmatpush1.xpose.msra.mxu0 0.0
      %1578 = vmatprep.subr.mxu0 0.0
      %1579 = vmatpush1.xpose.msra.mxu0 0.0
      %1580 = vmatprep.mubr.f32.mxu0 0.0
      %1581 = vmatmul.mubr.f32.gmra.mrb[0].mxu0 %v1508
      %v1582 = vpop.f32.mrb[0].mxu0
      %v1583 = vadd.f32 0.0, %v1582
      %v1584 = vpop.f32.mrb[0].mxu0
      %1585 = vmatprep.mubr.f32.mxu0 0.0
      %1586 = vmatmul.mubr.f32.gmra.mrb[0].mxu0 %v1510
      %v1587 = vpop.f32.mrb[0].mxu0
      %v1588 = vadd.f32 0.0, %v1587
      %v1589 = vpop.f32.mrb[0].mxu0
      %1590 = vdwg.mxu0
      %v1591 = vmul.f32 %v1583, 0.35355338
      %v1592 = vmul.f32 %v1588, 0.35355338
      %v1593 = vsel %vm1303, %v1591, -inf
      %1594 = vmax.xlane.f32.xlu0 %v1593
      %v1595 = vpop.xlane.xlu0 %1594
      %v1596 = vsel %vm1307, %v1592, -inf
      %1597 = vmax.xlane.f32.xlu0 %v1596
      %v1598 = vpop.xlane.xlu0 %1597
      %v1599 = vsub.f32 %v1591, %v1595
      %v1600 = vsub.f32 %v1592, %v1598
      %v1601 = vmul.f32 %v1599, 1.442695
      %v1602 = vpow.pop %v1601
      %v1603 = vmul.f32 %v1600, 1.442695
      %v1604 = vpow.pop %v1603
      %v1605 = vsel %vm1303, %v1602, 0.0
      %1606 = vadd.xlane.f32.xlu0 %v1605
      %v1607 = vpop.xlane.xlu0 %1606
      %v1608 = vsel %vm1307, %v1604, 0.0
      %1609 = vadd.xlane.f32.xlu0 %v1608
      %v1610 = vpop.xlane.xlu0 %1609
      %v1611 = vrcp.pop %v1607
      %v1612 = vrcp.pop %v1610
      %v1613 = vmul.f32 %v1602, %v1611
      %v1614 = vmul.f32 %v1604, %v1612
      %1615 = vrot.lane.b32.xlu0 %v1197, 104
      %v1616 = vpop.permute.xlu0 %1615
      %1617 = vrot.lane.b32.xlu0 %v1202, 104
      %v1618 = vpop.permute.xlu0 %1617
      %v1621 = vsel %vm1303, %v1613, 0
      %v1624 = vsel %vm1303, %v1614, 0
      %v1626 = vsel %vm1338, %v1618, 0
      %1628 = vmatprep.subr.mxu0 0.0
      %1629 = vmatpush1.msra.mxu0 %v1616
      %1630 = vmatprep.subr.mxu0 0.0
      %1631 = vmatpush1.msra.mxu0 %v1626
      %1632 = vmatprep.subr.mxu0 0.0
      %1633 = vmatpush1.msra.mxu0 0.0
      %1634 = vmatprep.subr.mxu0 0.0
      %1635 = vmatpush1.msra.mxu0 0.0
      %1636 = vmatprep.subr.mxu0 0.0
      %1637 = vmatpush1.msra.mxu0 0.0
      %1638 = vmatprep.subr.mxu0 0.0
      %1639 = vmatpush1.msra.mxu0 0.0
      %1640 = vmatprep.subr.mxu0 0.0
      %1641 = vmatpush1.msra.mxu0 0.0
      %1642 = vmatprep.subr.mxu0 0.0
      %1643 = vmatpush1.msra.mxu0 0.0
      %1644 = vmatprep.subr.mxu0 0.0
      %1645 = vmatpush1.msra.mxu0 0.0
      %1646 = vmatprep.subr.mxu0 0.0
      %1647 = vmatpush1.msra.mxu0 0.0
      %1648 = vmatprep.subr.mxu0 0.0
      %1649 = vmatpush1.msra.mxu0 0.0
      %1650 = vmatprep.subr.mxu0 0.0
      %1651 = vmatpush1.msra.mxu0 0.0
      %1652 = vmatprep.subr.mxu0 0.0
      %1653 = vmatpush1.msra.mxu0 0.0
      %1654 = vmatprep.subr.mxu0 0.0
      %1655 = vmatpush1.msra.mxu0 0.0
      %1656 = vmatprep.subr.mxu0 0.0
      %1657 = vmatpush1.msra.mxu0 0.0
      %1658 = vmatprep.subr.mxu0 0.0
      %1659 = vmatpush1.msra.mxu0 0.0
      %1660 = vmatprep.subr.mxu0 0.0
      %1661 = vmatpush1.msra.mxu0 0.0
      %1662 = vmatprep.subr.mxu0 0.0
      %1663 = vmatpush1.msra.mxu0 0.0
      %1664 = vmatprep.subr.mxu0 0.0
      %1665 = vmatpush1.msra.mxu0 0.0
      %1666 = vmatprep.subr.mxu0 0.0
      %1667 = vmatpush1.msra.mxu0 0.0
      %1668 = vmatprep.subr.mxu0 0.0
      %1669 = vmatpush1.msra.mxu0 0.0
      %1670 = vmatprep.subr.mxu0 0.0
      %1671 = vmatpush1.msra.mxu0 0.0
      %1672 = vmatprep.subr.mxu0 0.0
      %1673 = vmatpush1.msra.mxu0 0.0
      %1674 = vmatprep.subr.mxu0 0.0
      %1675 = vmatpush1.msra.mxu0 0.0
      %1676 = vmatprep.subr.mxu0 0.0
      %1677 = vmatpush1.msra.mxu0 0.0
      %1678 = vmatprep.subr.mxu0 0.0
      %1679 = vmatpush1.msra.mxu0 0.0
      %1680 = vmatprep.subr.mxu0 0.0
      %1681 = vmatpush1.msra.mxu0 0.0
      %1682 = vmatprep.subr.mxu0 0.0
      %1683 = vmatpush1.msra.mxu0 0.0
      %1684 = vmatprep.subr.mxu0 0.0
      %1685 = vmatpush1.msra.mxu0 0.0
      %1686 = vmatprep.subr.mxu0 0.0
      %1687 = vmatpush1.msra.mxu0 0.0
      %1688 = vmatprep.subr.mxu0 0.0
      %1689 = vmatpush1.msra.mxu0 0.0
      %1690 = vmatprep.subr.mxu0 0.0
      %1691 = vmatpush1.msra.mxu0 0.0
      %1692 = vmatprep.mubr.f32.mxu0 0.0
      %1693 = vmatmul.mubr.f32.gmra.mrb[0].mxu0 %v1621
      %v1694 = vpop.f32.mrb[0].mxu0
      %v1695 = vadd.f32 0.0, %v1694
      %v1696 = vpop.f32.mrb[0].mxu0
      %1697 = vmatprep.mubr.f32.mxu0 0.0
      %1698 = vmatmul.mubr.f32.gmra.mrb[0].mxu0 %v1624
      %v1699 = vpop.f32.mrb[0].mxu0
      %v1700 = vadd.f32 0.0, %v1699
      %v1701 = vpop.f32.mrb[0].mxu0
      %1702 = vdwg.mxu0
      %v1703 = vld [vmem:[%s13 + $0x8] sm:$0xff]
      %v1705 = vsel %vm1213, %v1695, 0
      %v1708 = vsel %vm1213, %v1700, 0
      %1710 = vmatprep.subr.mxu0 0.0
      %1711 = vmatpush1.msra.mxu0 %v1703
      %1712 = vmatprep.subr.mxu0 0.0
      %1713 = vmatpush1.msra.mxu0 0.0
      %1714 = vmatprep.subr.mxu0 0.0
      %1715 = vmatpush1.msra.mxu0 0.0
      %1716 = vmatprep.subr.mxu0 0.0
      %1717 = vmatpush1.msra.mxu0 0.0
      %1718 = vmatprep.subr.mxu0 0.0
      %1719 = vmatpush1.msra.mxu0 0.0
      %1720 = vmatprep.subr.mxu0 0.0
      %1721 = vmatpush1.msra.mxu0 0.0
      %1722 = vmatprep.subr.mxu0 0.0
      %1723 = vmatpush1.msra.mxu0 0.0
      %1724 = vmatprep.subr.mxu0 0.0
      %1725 = vmatpush1.msra.mxu0 0.0
      %1726 = vmatprep.subr.mxu0 0.0
      %1727 = vmatpush1.msra.mxu0 0.0
      %1728 = vmatprep.subr.mxu0 0.0
      %1729 = vmatpush1.msra.mxu0 0.0
      %1730 = vmatprep.subr.mxu0 0.0
      %1731 = vmatpush1.msra.mxu0 0.0
      %1732 = vmatprep.subr.mxu0 0.0
      %1733 = vmatpush1.msra.mxu0 0.0
      %1734 = vmatprep.subr.mxu0 0.0
      %1735 = vmatpush1.msra.mxu0 0.0
      %1736 = vmatprep.subr.mxu0 0.0
      %1737 = vmatpush1.msra.mxu0 0.0
      %1738 = vmatprep.subr.mxu0 0.0
      %1739 = vmatpush1.msra.mxu0 0.0
      %1740 = vmatprep.subr.mxu0 0.0
      %1741 = vmatpush1.msra.mxu0 0.0
      %1742 = vmatprep.subr.mxu0 0.0
      %1743 = vmatpush1.msra.mxu0 0.0
      %1744 = vmatprep.subr.mxu0 0.0
      %1745 = vmatpush1.msra.mxu0 0.0
      %1746 = vmatprep.subr.mxu0 0.0
      %1747 = vmatpush1.msra.mxu0 0.0
      %1748 = vmatprep.subr.mxu0 0.0
      %1749 = vmatpush1.msra.mxu0 0.0
      %1750 = vmatprep.subr.mxu0 0.0
      %1751 = vmatpush1.msra.mxu0 0.0
      %1752 = vmatprep.subr.mxu0 0.0
      %1753 = vmatpush1.msra.mxu0 0.0
      %1754 = vmatprep.subr.mxu0 0.0
      %1755 = vmatpush1.msra.mxu0 0.0
      %1756 = vmatprep.subr.mxu0 0.0
      %1757 = vmatpush1.msra.mxu0 0.0
      %1758 = vmatprep.subr.mxu0 0.0
      %1759 = vmatpush1.msra.mxu0 0.0
      %1760 = vmatprep.subr.mxu0 0.0
      %1761 = vmatpush1.msra.mxu0 0.0
      %1762 = vmatprep.subr.mxu0 0.0
      %1763 = vmatpush1.msra.mxu0 0.0
      %1764 = vmatprep.subr.mxu0 0.0
      %1765 = vmatpush1.msra.mxu0 0.0
      %1766 = vmatprep.subr.mxu0 0.0
      %1767 = vmatpush1.msra.mxu0 0.0
      %1768 = vmatprep.subr.mxu0 0.0
      %1769 = vmatpush1.msra.mxu0 0.0
      %1770 = vmatprep.subr.mxu0 0.0
      %1771 = vmatpush1.msra.mxu0 0.0
      %1772 = vmatprep.subr.mxu0 0.0
      %1773 = vmatpush1.msra.mxu0 0.0
      %1774 = vmatprep.mubr.f32.mxu0 0.0
      %1775 = vmatmul.mubr.f32.gmra.mrb[0].mxu0 %v1705
      %v1776 = vpop.f32.mrb[0].mxu0
      %v1777 = vadd.f32 0.0, %v1776
      %v1778 = vpop.f32.mrb[0].mxu0
      %1779 = vmatprep.mubr.f32.mxu0 0.0
      %1780 = vmatmul.mubr.f32.gmra.mrb[0].mxu0 %v1708
      %v1781 = vpop.f32.mrb[0].mxu0
      %v1782 = vadd.f32 0.0, %v1781
      %v1783 = vpop.f32.mrb[0].mxu0
      %1784 = vdwg.mxu0
      %v1785 = vadd.f32 %v1498, %v1777
      %v1786 = vadd.f32 %v1499, %v1782
      %v1787 = vadd.f32 %v935, %v1785
      %v1788 = vadd.f32 %v918, %v1786
      %v1789 = vld [vmem:[%s15] sm:$0x1]
      %v1790 = vld [vmem:[%s16] sm:$0x1]
      %v1791 = vsel %vm908, %v1787, 0.0
      %1792 = vadd.xlane.f32.xlu0 %v1791
      %v1793 = vpop.xlane.xlu0 %1792
      %v1794 = vsel %vm910, %v1788, 0.0
      %1795 = vadd.xlane.f32.xlu0 %v1794
      %v1796 = vpop.xlane.xlu0 %1795
      %v1797 = vmul.f32 %v1793, %v944
      %v1798 = vmul.f32 %v1796, %v944
      %v1799 = vsub.f32 %v1787, %v1797
      %v1800 = vsub.f32 %v1788, %v1798
      %v1801 = vmul.f32 %v1799, %v1799
      %v1802 = vmul.f32 %v1800, %v1800
      %v1803 = vsel %vm908, %v1801, 0.0
      %1804 = vadd.xlane.f32.xlu0 %v1803
      %v1805 = vpop.xlane.xlu0 %1804
      %v1806 = vsel %vm910, %v1802, 0.0
      %1807 = vadd.xlane.f32.xlu0 %v1806
      %v1808 = vpop.xlane.xlu0 %1807
      %v1809 = vmul.f32 %v1805, %v944
      %v1810 = vmul.f32 %v1808, %v944
      %v1811 = vadd.f32 %v1809, 1e-05
      %v1812 = vadd.f32 %v1810, 1e-05
      %v1813 = vrsqrt.pop %v1811
      %v1814 = vrsqrt.pop %v1812
      %v1815 = vmul.f32 %v1799, %v1813
      %v1816 = vmul.f32 %v1800, %v1814
      %v1818 = vlaneseq
      %v1819 = vshrl.u32 %v1818, 7
      %v1820 = vsub.s32 0, %v1819
      %v1821 = vrot.slane %v1789, %v1820
      %v1823 = vmul.f32 %v1815, %v1821
      %v1824 = vmul.f32 %v1816, %v1821
      %v1826 = vlaneseq
      %v1827 = vshrl.u32 %v1826, 7
      %v1828 = vsub.s32 0, %v1827
      %v1829 = vrot.slane %v1790, %v1828
      %v1831 = vadd.f32 %v1823, %v1829
      %v1832 = vadd.f32 %v1824, %v1829
      %v1833 = vld [vmem:[%s17] sm:$0xff]
      %v1834 = vld [vmem:[%s17 + $0x8] sm:$0xff]
      %v1835 = vld [vmem:[%s18] sm:$0x1]
      %v1837 = vlaneseq
      %v1838 = vshrl.u32 %v1837, 7
      %v1839 = vsub.s32 0, %v1838
      %v1840 = vrot.slane %v1835, %v1839
      %v1843 = vsel %vm908, %v1831, 0
      %v1846 = vsel %vm908, %v1832, 0
      %1848 = vmatprep.subr.mxu0 0.0
      %1849 = vmatpush1.msra.mxu0 %v1833
      %1850 = vmatprep.subr.mxu0 0.0
      %1851 = vmatpush1.msra.mxu0 %v1834
      %1852 = vmatprep.subr.mxu0 0.0
      %1853 = vmatpush1.msra.mxu0 0.0
      %1854 = vmatprep.subr.mxu0 0.0
      %1855 = vmatpush1.msra.mxu0 0.0
      %1856 = vmatprep.subr.mxu0 0.0
      %1857 = vmatpush1.msra.mxu0 0.0
      %1858 = vmatprep.subr.mxu0 0.0
      %1859 = vmatpush1.msra.mxu0 0.0
      %1860 = vmatprep.subr.mxu0 0.0
      %1861 = vmatpush1.msra.mxu0 0.0
      %1862 = vmatprep.subr.mxu0 0.0
      %1863 = vmatpush1.msra.mxu0 0.0
      %1864 = vmatprep.subr.mxu0 0.0
      %1865 = vmatpush1.msra.mxu0 0.0
      %1866 = vmatprep.subr.mxu0 0.0
      %1867 = vmatpush1.msra.mxu0 0.0
      %1868 = vmatprep.subr.mxu0 0.0
      %1869 = vmatpush1.msra.mxu0 0.0
      %1870 = vmatprep.subr.mxu0 0.0
      %1871 = vmatpush1.msra.mxu0 0.0
      %1872 = vmatprep.subr.mxu0 0.0
      %1873 = vmatpush1.msra.mxu0 0.0
      %1874 = vmatprep.subr.mxu0 0.0
      %1875 = vmatpush1.msra.mxu0 0.0
      %1876 = vmatprep.subr.mxu0 0.0
      %1877 = vmatpush1.msra.mxu0 0.0
      %1878 = vmatprep.subr.mxu0 0.0
      %1879 = vmatpush1.msra.mxu0 0.0
      %1880 = vmatprep.subr.mxu0 0.0
      %1881 = vmatpush1.msra.mxu0 0.0
      %1882 = vmatprep.subr.mxu0 0.0
      %1883 = vmatpush1.msra.mxu0 0.0
      %1884 = vmatprep.subr.mxu0 0.0
      %1885 = vmatpush1.msra.mxu0 0.0
      %1886 = vmatprep.subr.mxu0 0.0
      %1887 = vmatpush1.msra.mxu0 0.0
      %1888 = vmatprep.subr.mxu0 0.0
      %1889 = vmatpush1.msra.mxu0 0.0
      %1890 = vmatprep.subr.mxu0 0.0
      %1891 = vmatpush1.msra.mxu0 0.0
      %1892 = vmatprep.subr.mxu0 0.0
      %1893 = vmatpush1.msra.mxu0 0.0
      %1894 = vmatprep.subr.mxu0 0.0
      %1895 = vmatpush1.msra.mxu0 0.0
      %1896 = vmatprep.subr.mxu0 0.0
      %1897 = vmatpush1.msra.mxu0 0.0
      %1898 = vmatprep.subr.mxu0 0.0
      %1899 = vmatpush1.msra.mxu0 0.0
      %1900 = vmatprep.subr.mxu0 0.0
      %1901 = vmatpush1.msra.mxu0 0.0
      %1902 = vmatprep.subr.mxu0 0.0
      %1903 = vmatpush1.msra.mxu0 0.0
      %1904 = vmatprep.subr.mxu0 0.0
      %1905 = vmatpush1.msra.mxu0 0.0
      %1906 = vmatprep.subr.mxu0 0.0
      %1907 = vmatpush1.msra.mxu0 0.0
      %1908 = vmatprep.subr.mxu0 0.0
      %1909 = vmatpush1.msra.mxu0 0.0
      %1910 = vmatprep.subr.mxu0 0.0
      %1911 = vmatpush1.msra.mxu0 0.0
      %1912 = vmatprep.mubr.f32.mxu0 0.0
      %1913 = vmatmul.mubr.f32.gmra.mrb[0].mxu0 %v1843
      %v1914 = vpop.f32.mrb[0].mxu0
      %v1915 = vadd.f32 %v1840, %v1914
      %v1916 = vpop.f32.mrb[0].mxu0
      %1917 = vmatprep.mubr.f32.mxu0 0.0
      %1918 = vmatmul.mubr.f32.gmra.mrb[0].mxu0 %v1846
      %v1919 = vpop.f32.mrb[0].mxu0
      %v1920 = vadd.f32 %v1840, %v1919
      %v1921 = vpop.f32.mrb[0].mxu0
      %1922 = vdwg.mxu0
      %v1923 = vmul.f32 %v1915, %v1915
      %v1924 = vmul.f32 %v1920, %v1920
      %v1925 = vmul.f32 %v1915, %v1923
      %v1926 = vmul.f32 %v1920, %v1924
      %v1927 = vmul.f32 %v1925, 0.044715
      %v1928 = vmul.f32 %v1926, 0.044715
      %v1929 = vadd.f32 %v1915, %v1927
      %v1930 = vadd.f32 %v1920, %v1928
      %v1931 = vmul.f32 %v1929, 0.7978846
      %v1932 = vmul.f32 %v1930, 0.7978846
      %v1933 = vtanh.pop %v1931
      %v1934 = vtanh.pop %v1932
      %v1935 = vadd.f32 %v1933, 1.0
      %v1936 = vadd.f32 %v1934, 1.0
      %v1937 = vmul.f32 %v1935, 0.5
      %v1938 = vmul.f32 %v1936, 0.5
      %v1939 = vmul.f32 %v1915, %v1937
      %v1940 = vmul.f32 %v1920, %v1938
      %v1941 = vld [vmem:[%s19] sm:$0xff]
      %v1942 = vld [vmem:[%s19 + $0x8] sm:$0xff]
      %v1943 = vld [vmem:[%s19 + $0x10] sm:$0xff]
      %v1944 = vld [vmem:[%s19 + $0x18] sm:$0xff]
      %v1945 = vld [vmem:[%s20] sm:$0x1]
      %v1947 = vlaneseq
      %v1948 = vshrl.u32 %v1947, 7
      %v1949 = vsub.s32 0, %v1948
      %v1950 = vrot.slane %v1945, %v1949
      %v1953 = vsel %vm815, %v1939, 0
      %v1956 = vsel %vm815, %v1940, 0
      %1958 = vmatprep.subr.mxu0 0.0
      %1959 = vmatpush1.msra.mxu0 %v1941
      %1960 = vmatprep.subr.mxu0 0.0
      %1961 = vmatpush1.msra.mxu0 %v1942
      %1962 = vmatprep.subr.mxu0 0.0
      %1963 = vmatpush1.msra.mxu0 %v1943
      %1964 = vmatprep.subr.mxu0 0.0
      %1965 = vmatpush1.msra.mxu0 %v1944
      %1966 = vmatprep.subr.mxu0 0.0
      %1967 = vmatpush1.msra.mxu0 0.0
      %1968 = vmatprep.subr.mxu0 0.0
      %1969 = vmatpush1.msra.mxu0 0.0
      %1970 = vmatprep.subr.mxu0 0.0
      %1971 = vmatpush1.msra.mxu0 0.0
      %1972 = vmatprep.subr.mxu0 0.0
      %1973 = vmatpush1.msra.mxu0 0.0
      %1974 = vmatprep.subr.mxu0 0.0
      %1975 = vmatpush1.msra.mxu0 0.0
      %1976 = vmatprep.subr.mxu0 0.0
      %1977 = vmatpush1.msra.mxu0 0.0
      %1978 = vmatprep.subr.mxu0 0.0
      %1979 = vmatpush1.msra.mxu0 0.0
      %1980 = vmatprep.subr.mxu0 0.0
      %1981 = vmatpush1.msra.mxu0 0.0
      %1982 = vmatprep.subr.mxu0 0.0
      %1983 = vmatpush1.msra.mxu0 0.0
      %1984 = vmatprep.subr.mxu0 0.0
      %1985 = vmatpush1.msra.mxu0 0.0
      %1986 = vmatprep.subr.mxu0 0.0
      %1987 = vmatpush1.msra.mxu0 0.0
      %1988 = vmatprep.subr.mxu0 0.0
      %1989 = vmatpush1.msra.mxu0 0.0
      %1990 = vmatprep.subr.mxu0 0.0
      %1991 = vmatpush1.msra.mxu0 0.0
      %1992 = vmatprep.subr.mxu0 0.0
      %1993 = vmatpush1.msra.mxu0 0.0
      %1994 = vmatprep.subr.mxu0 0.0
      %1995 = vmatpush1.msra.mxu0 0.0
      %1996 = vmatprep.subr.mxu0 0.0
      %1997 = vmatpush1.msra.mxu0 0.0
      %1998 = vmatprep.subr.mxu0 0.0
      %1999 = vmatpush1.msra.mxu0 0.0
      %2000 = vmatprep.subr.mxu0 0.0
      %2001 = vmatpush1.msra.mxu0 0.0
      %2002 = vmatprep.subr.mxu0 0.0
      %2003 = vmatpush1.msra.mxu0 0.0
      %2004 = vmatprep.subr.mxu0 0.0
      %2005 = vmatpush1.msra.mxu0 0.0
      %2006 = vmatprep.subr.mxu0 0.0
      %2007 = vmatpush1.msra.mxu0 0.0
      %2008 = vmatprep.subr.mxu0 0.0
      %2009 = vmatpush1.msra.mxu0 0.0
      %2010 = vmatprep.subr.mxu0 0.0
      %2011 = vmatpush1.msra.mxu0 0.0
      %2012 = vmatprep.subr.mxu0 0.0
      %2013 = vmatpush1.msra.mxu0 0.0
      %2014 = vmatprep.subr.mxu0 0.0
      %2015 = vmatpush1.msra.mxu0 0.0
      %2016 = vmatprep.subr.mxu0 0.0
      %2017 = vmatpush1.msra.mxu0 0.0
      %2018 = vmatprep.subr.mxu0 0.0
      %2019 = vmatpush1.msra.mxu0 0.0
      %2020 = vmatprep.subr.mxu0 0.0
      %2021 = vmatpush1.msra.mxu0 0.0
      %2022 = vmatprep.mubr.f32.mxu0 0.0
      %2023 = vmatmul.mubr.f32.gmra.mrb[0].mxu0 %v1953
      %v2024 = vpop.f32.mrb[0].mxu0
      %v2025 = vadd.f32 %v1950, %v2024
      %v2026 = vpop.f32.mrb[0].mxu0
      %2027 = vmatprep.mubr.f32.mxu0 0.0
      %2028 = vmatmul.mubr.f32.gmra.mrb[0].mxu0 %v1956
      %v2029 = vpop.f32.mrb[0].mxu0
      %v2030 = vadd.f32 %v1950, %v2029
      %v2031 = vpop.f32.mrb[0].mxu0
      %2032 = vdwg.mxu0
      %v2033 = vadd.f32 %v1787, %v2025
      %v2034 = vadd.f32 %v1788, %v2030
      %v2035 = vld [vmem:[%s21] sm:$0x1]
      %v2036 = vld [vmem:[%s22] sm:$0x1]
      %v2037 = vsel %vm908, %v2033, 0.0
      %2038 = vadd.xlane.f32.xlu0 %v2037
      %v2039 = vpop.xlane.xlu0 %2038
      %v2040 = vsel %vm910, %v2034, 0.0
      %2041 = vadd.xlane.f32.xlu0 %v2040
      %v2042 = vpop.xlane.xlu0 %2041
      %v2043 = vmul.f32 %v2039, %v944
      %v2044 = vmul.f32 %v2042, %v944
      %v2045 = vsub.f32 %v2033, %v2043
      %v2046 = vsub.f32 %v2034, %v2044
      %v2047 = vmul.f32 %v2045, %v2045
      %v2048 = vmul.f32 %v2046, %v2046
      %v2049 = vsel %vm908, %v2047, 0.0
      %2050 = vadd.xlane.f32.xlu0 %v2049
      %v2051 = vpop.xlane.xlu0 %2050
      %v2052 = vsel %vm910, %v2048, 0.0
      %2053 = vadd.xlane.f32.xlu0 %v2052
      %v2054 = vpop.xlane.xlu0 %2053
      %v2055 = vmul.f32 %v2051, %v944
      %v2056 = vmul.f32 %v2054, %v944
      %v2057 = vadd.f32 %v2055, 1e-05
      %v2058 = vadd.f32 %v2056, 1e-05
      %v2059 = vrsqrt.pop %v2057
      %v2060 = vrsqrt.pop %v2058
      %v2061 = vmul.f32 %v2045, %v2059
      %v2062 = vmul.f32 %v2046, %v2060
      %v2064 = vlaneseq
      %v2065 = vshrl.u32 %v2064, 7
      %v2066 = vsub.s32 0, %v2065
      %v2067 = vrot.slane %v2035, %v2066
      %v2069 = vmul.f32 %v2061, %v2067
      %v2070 = vmul.f32 %v2062, %v2067
      %v2072 = vlaneseq
      %v2073 = vshrl.u32 %v2072, 7
      %v2074 = vsub.s32 0, %v2073
      %v2075 = vrot.slane %v2036, %v2074
      %v2077 = vadd.f32 %v2069, %v2075
      %v2078 = vadd.f32 %v2070, %v2075
      %v2079 = vld [vmem:[%s23] sm:$0xff]
      %v2080 = vld [vmem:[%s23 + $0x8] sm:$0xff]
      %v2081 = vld [vmem:[%s24] sm:$0x1]
      %v2083 = vlaneseq
      %v2084 = vshrl.u32 %v2083, 7
      %v2085 = vsub.s32 0, %v2084
      %v2086 = vrot.slane %v2081, %v2085
      %v2089 = vsel %vm908, %v2077, 0
      %v2092 = vsel %vm908, %v2078, 0
      %2094 = vmatprep.subr.mxu0 0.0
      %2095 = vmatpush1.msra.mxu0 %v2079
      %2096 = vmatprep.subr.mxu0 0.0
      %2097 = vmatpush1.msra.mxu0 %v2080
      %2098 = vmatprep.subr.mxu0 0.0
      %2099 = vmatpush1.msra.mxu0 0.0
      %2100 = vmatprep.subr.mxu0 0.0
      %2101 = vmatpush1.msra.mxu0 0.0
      %2102 = vmatprep.subr.mxu0 0.0
      %2103 = vmatpush1.msra.mxu0 0.0
      %2104 = vmatprep.subr.mxu0 0.0
      %2105 = vmatpush1.msra.mxu0 0.0
      %2106 = vmatprep.subr.mxu0 0.0
      %2107 = vmatpush1.msra.mxu0 0.0
      %2108 = vmatprep.subr.mxu0 0.0
      %2109 = vmatpush1.msra.mxu0 0.0
      %2110 = vmatprep.subr.mxu0 0.0
      %2111 = vmatpush1.msra.mxu0 0.0
      %2112 = vmatprep.subr.mxu0 0.0
      %2113 = vmatpush1.msra.mxu0 0.0
      %2114 = vmatprep.subr.mxu0 0.0
      %2115 = vmatpush1.msra.mxu0 0.0
      %2116 = vmatprep.subr.mxu0 0.0
      %2117 = vmatpush1.msra.mxu0 0.0
      %2118 = vmatprep.subr.mxu0 0.0
      %2119 = vmatpush1.msra.mxu0 0.0
      %2120 = vmatprep.subr.mxu0 0.0
      %2121 = vmatpush1.msra.mxu0 0.0
      %2122 = vmatprep.subr.mxu0 0.0
      %2123 = vmatpush1.msra.mxu0 0.0
      %2124 = vmatprep.subr.mxu0 0.0
      %2125 = vmatpush1.msra.mxu0 0.0
      %2126 = vmatprep.subr.mxu0 0.0
      %2127 = vmatpush1.msra.mxu0 0.0
      %2128 = vmatprep.subr.mxu0 0.0
      %2129 = vmatpush1.msra.mxu0 0.0
      %2130 = vmatprep.subr.mxu0 0.0
      %2131 = vmatpush1.msra.mxu0 0.0
      %2132 = vmatprep.subr.mxu0 0.0
      %2133 = vmatpush1.msra.mxu0 0.0
      %2134 = vmatprep.subr.mxu0 0.0
      %2135 = vmatpush1.msra.mxu0 0.0
      %2136 = vmatprep.subr.mxu0 0.0
      %2137 = vmatpush1.msra.mxu0 0.0
      %2138 = vmatprep.subr.mxu0 0.0
      %2139 = vmatpush1.msra.mxu0 0.0
      %2140 = vmatprep.subr.mxu0 0.0
      %2141 = vmatpush1.msra.mxu0 0.0
      %2142 = vmatprep.subr.mxu0 0.0
      %2143 = vmatpush1.msra.mxu0 0.0
      %2144 = vmatprep.subr.mxu0 0.0
      %2145 = vmatpush1.msra.mxu0 0.0
      %2146 = vmatprep.subr.mxu0 0.0
      %2147 = vmatpush1.msra.mxu0 0.0
      %2148 = vmatprep.subr.mxu0 0.0
      %2149 = vmatpush1.msra.mxu0 0.0
      %2150 = vmatprep.subr.mxu0 0.0
      %2151 = vmatpush1.msra.mxu0 0.0
      %2152 = vmatprep.subr.mxu0 0.0
      %2153 = vmatpush1.msra.mxu0 0.0
      %2154 = vmatprep.subr.mxu0 0.0
      %2155 = vmatpush1.msra.mxu0 0.0
      %2156 = vmatprep.subr.mxu0 0.0
      %2157 = vmatpush1.msra.mxu0 0.0
      %2158 = vmatprep.mubr.f32.mxu0 0.0
      %2159 = vmatmul.mubr.f32.gmra.mrb[0].mxu0 %v2089
      %v2160 = vpop.f32.mrb[0].mxu0
      %v2161 = vadd.f32 %v2086, %v2160
      %v2162 = vpop.f32.mrb[0].mxu0
      %2163 = vmatprep.mubr.f32.mxu0 0.0
      %2164 = vmatmul.mubr.f32.gmra.mrb[0].mxu0 %v2092
      %v2165 = vpop.f32.mrb[0].mxu0
      %v2166 = vadd.f32 %v2086, %v2165
      %v2167 = vpop.f32.mrb[0].mxu0
      %2168 = vdwg.mxu0
      %2169 = vst.msk [vmem:[%s801] sm:$0xff] %vm815, %v2161
      %vm2170 = vcmask 253952
      %2171 = vst.msk [vmem:[%s801 + $0x8] sm:$0x1] %vm2170, %v2166
      %p2172 = scmp.lt.s32.totalorder %s36, 1
      %s2173 = scalar_select %p2172, %s36, 1
      %s2174 = smul.addr %s2173, 2
      %s2175 = smul.addr %s2174, 8
      %s2176 = scalar_lea.vmem %s25, %s2175
      // Predicated region
      $region121: #{lmim_forward.5} parent=119 // pred_check
        %p2177 = pneg %p594
      $region122: #{lmim_forward.5} parent=119 // pred_check_branch
        %2179 = sbr.rel (%p2177) target = $region124
      $region123: #{lmim_forward.5} parent=119 // pred_region
        _
      $region124: #{lmim_forward.5} parent=119 // pred_fallthru
        _
    $region120: #{lmim_forward.5} parent=5 // pred_fallthru
      _
    %p2180 = scmp.le.s32.totalorder 2, %s31
    // Predicated region
    $region125: #{lmim_forward.5} parent=5 // pred_check
      %p2181 = pneg %p2180
    $region126: #{lmim_forward.5} parent=5 // pred_check_branch
      %2183 = sbr.rel (%p2181) target = $region128
    $region127: #{lmim_forward.5} parent=5 // pred_region
      %s2184 = ssub.s32 %s31, 2
      // Predicated region
      $region129: #{lmim_forward.5} parent=127 // pred_check
        %p2185 = pneg %p600
      $region130: #{lmim_forward.5} parent=127 // pred_check_branch
        %2187 = sbr.rel (%p2185) target = $region132
      $region131: #{lmim_forward.5} parent=127 // pred_region
        %p2188 = scmp.lt.s32.totalorder %s37, 1
        %s2189 = scalar_select %p2188, %s37, 1
        %s2190 = smul.addr %s2189, 2
        %s2191 = smul.addr %s2190, 8
        %s2192 = scalar_lea.vmem %s25, %s2191
      $region132: #{lmim_forward.5} parent=127 // pred_fallthru
        _
    $region128: #{lmim_forward.5} parent=5 // pred_fallthru
      _
  $region6: #{lmim_forward.5} parent=0 // loop_footer
    %s35 = sadd.s32 1, %s31
  $region7: #{lmim_forward.5} parent=0 // loop_footer_branch
    %30 = sbr.rel target = $region3
  $region8: #{lmim_forward.5} parent=0 // loop_exit
    _

// kernel: lmim_forward.4
$region0: #{lmim_forward.4}
  #allocation0 [shape = 'u32[]', space=smem, size = 0x4, offset = 0x4, fixed_abs, tag = 'smem constant byte address 0x4 - core index']
  #allocation1 [shape = 'u32[144,128]{1,0:T(1,128)}', space=vmem, size = 0x12000, scoped, tag = 'internal scratch']
  %s0 = inlined_call_operand.vmem [shape: f32[2,9,48], index: 0, kind: input, shape index: {}]
  %s1 = inlined_call_operand.vmem [shape: f32[2,9,32], index: 1, kind: input, shape index: {}]
  %s2 = inlined_call_operand.vmem [shape: f32[48,32], index: 2, kind: input, shape index: {}]
  %s3 = inlined_call_operand.vmem [shape: f32[1,32], index: 3, kind: input, shape index: {}]
  %s4 = inlined_call_operand.vmem [shape: f32[2,1,32], index: 4, kind: input, shape index: {}]
  %s5 = inlined_call_operand.vmem [shape: f32[2,1,32], index: 5, kind: input, shape index: {}]
  %s6 = inlined_call_operand.vmem [shape: f32[2,32,96], index: 6, kind: input, shape index: {}]
  %s7 = inlined_call_operand.vmem [shape: f32[2,1,96], index: 7, kind: input, shape index: {}]
  %s8 = inlined_call_operand.vmem [shape: f32[2,32,32], index: 8, kind: input, shape index: {}]
  %s9 = inlined_call_operand.vmem [shape: f32[2,1,32], index: 9, kind: input, shape index: {}]
  %s10 = inlined_call_operand.vmem [shape: f32[2,1,32], index: 10, kind: input, shape index: {}]
  %s11 = inlined_call_operand.vmem [shape: f32[2,1,32], index: 11, kind: input, shape index: {}]
  %s12 = inlined_call_operand.vmem [shape: f32[2,32,64], index: 12, kind: input, shape index: {}]
  %s13 = inlined_call_operand.vmem [shape: f32[2,1,64], index: 13, kind: input, shape index: {}]
  %s14 = inlined_call_operand.vmem [shape: f32[2,64,32], index: 14, kind: input, shape index: {}]
  %s15 = inlined_call_operand.vmem [shape: f32[2,1,32], index: 15, kind: input, shape index: {}]
  %s16 = inlined_call_operand.vmem [shape: f32[1,32], index: 16, kind: input, shape index: {}]
  %s17 = inlined_call_operand.vmem [shape: f32[1,32], index: 17, kind: input, shape index: {}]
  %s18 = inlined_call_operand.vmem [shape: f32[32,32], index: 18, kind: input, shape index: {}]
  %s19 = inlined_call_operand.vmem [shape: f32[1,32], index: 19, kind: input, shape index: {}]
  %s20 = inlined_call_operand.vmem [shape: f32[1,32], index: 20, kind: input, shape index: {}]
  %s21 = inlined_call_operand.vmem [shape: f32[2,9,32], index: 21, kind: output, shape index: {}]
  %s22 = sld [smem:[#allocation0]]
  $region117: #{lmim_forward.4} parent=0
    _
  %s24 = ssub.s32 1, %s22
  %s25 = scalar_select 0, %s24, %s22
  loop: start=0, step=1, limit=4
  $region2: #{lmim_forward.4} parent=0 // loop_pre_header
    _
  $region3: #{lmim_forward.4} parent=0 // loop_header
    %s27 = sphi 0, %s31
    %p28 = scmp.ge.s32.totalorder %s27, 4
    %s37 = sphi 0, %s39
    %s40 = sphi 0, %s37
    %s41 = sphi 0, %s40
    %s57 = sphi 0, %s41
    %s63 = sphi 0, %s65
    %s66 = sphi 0, %s63
    %s67 = sphi 0, %s66
    %s83 = sphi 0, %s67
    %s87 = sphi 0, %s87
    %s89 = sphi 0, %s87
    %s90 = sphi 0, %s89
    %s104 = sphi 0, %s90
    %s108 = sphi 0, %s108
    %s110 = sphi 0, %s108
    %s111 = sphi 0, %s110
    %s125 = sphi 0, %s111
    %s129 = sphi 0, %s129
    %s131 = sphi 0, %s129
    %s132 = sphi 0, %s131
    %s146 = sphi 0, %s132
    %s150 = sphi 0, %s150
    %s152 = sphi 0, %s150
    %s153 = sphi 0, %s152
    %s167 = sphi 0, %s153
    %s171 = sphi 0, %s171
    %s173 = sphi 0, %s171
    %s174 = sphi 0, %s173
    %s188 = sphi 0, %s174
    %s192 = sphi 0, %s192
    %s194 = sphi 0, %s192
    %s195 = sphi 0, %s194
    %s209 = sphi 0, %s195
    %s213 = sphi 0, %s213
    %s215 = sphi 0, %s213
    %s216 = sphi 0, %s215
    %s230 = sphi 0, %s216
    %s234 = sphi 0, %s234
    %s236 = sphi 0, %s234
    %s237 = sphi 0, %s236
    %s251 = sphi 0, %s237
    %s255 = sphi 0, %s255
    %s257 = sphi 0, %s255
    %s258 = sphi 0, %s257
    %s272 = sphi 0, %s258
    %s276 = sphi 0, %s276
    %s278 = sphi 0, %s276
    %s279 = sphi 0, %s278
    %s293 = sphi 0, %s279
    %s297 = sphi 0, %s297
    %s299 = sphi 0, %s297
    %s300 = sphi 0, %s299
    %s314 = sphi 0, %s300
    %s318 = sphi 0, %s318
    %s320 = sphi 0, %s318
    %s321 = sphi 0, %s320
    %s335 = sphi 0, %s321
    %s339 = sphi 0, %s339
    %s341 = sphi 0, %s339
    %s342 = sphi 0, %s341
    %s356 = sphi 0, %s342
    %s360 = sphi 0, %s360
    %s362 = sphi 0, %s360
    %s363 = sphi 0, %s362
    %s377 = sphi 0, %s363
    %s381 = sphi 0, %s381
    %s383 = sphi 0, %s381
    %s384 = sphi 0, %s383
    %s398 = sphi 0, %s384
    %s402 = sphi 0, %s402
    %s404 = sphi 0, %s402
    %s405 = sphi 0, %s404
    %s419 = sphi 0, %s405
    %s423 = sphi 0, %s423
    %s425 = sphi 0, %s423
    %s426 = sphi 0, %s425
    %s440 = sphi 0, %s426
    %s444 = sphi 0, %s444
    %s446 = sphi 0, %s444
    %s447 = sphi 0, %s446
    %s461 = sphi 0, %s447
    %s465 = sphi 0, %s465
    %s467 = sphi 0, %s465
    %s468 = sphi 0, %s467
    %s482 = sphi 0, %s468
    %s488 = sphi 0, %s490
    %s491 = sphi 0, %s488
    %s492 = sphi 0, %s491
    %s508 = sphi 0, %s492
  $region4: #{lmim_forward.4} parent=0 // loop_header_branch
    %30 = sbr.rel (%p28) target = $region8
  $region5: #{lmim_forward.4} parent=0 // loop_body
    %s32 = ssub.s32 %s27, 1
    %s33 = ssub.s32 %s27, 2
    %s34 = sadd.s32 %s27, 1
    %s35 = ssub.s32 %s27, %s34
    %p36 = scmp.eq.s32.totalorder %s35, 0
    %s38 = sadd.s32 %s37, 1
    %s39 = scalar_select %p36, %s37, %s38
    %p42 = pneg %p36
    %p43 = scmp.eq.s32.totalorder %s27, 1
    %p44 = por %p42, %p43
    %p45 = scmp.ne.s32.totalorder %s37, %s40
    %p46 = scmp.eq.s32.totalorder %s27, 0
    %p47 = por %p45, %p46
    %p48 = scmp.ne.s32.totalorder %s37, %s40
    %p49 = scmp.eq.s32.totalorder %s32, 1
    %p50 = por %p48, %p49
    %p51 = scmp.ne.s32.totalorder %s40, %s41
    %p52 = scmp.eq.s32.totalorder %s32, 0
    %p53 = por %p51, %p52
    %p54 = scmp.ne.s32.totalorder %s40, %s41
    %p55 = scmp.eq.s32.totalorder %s33, 1
    %p56 = por %p54, %p55
    %p58 = scmp.ne.s32.totalorder %s41, %s57
    %p59 = scmp.eq.s32.totalorder %s33, 0
    %p60 = por %p58, %p59
    %s61 = ssub.s32 %s27, %s34
    %p62 = scmp.eq.s32.totalorder %s61, 0
    %s64 = sadd.s32 %s63, 1
    %s65 = scalar_select %p62, %s63, %s64
    %p68 = pneg %p62
    %p69 = scmp.eq.s32.totalorder %s27, 1
    %p70 = por %p68, %p69
    %p71 = scmp.ne.s32.totalorder %s63, %s66
    %p72 = scmp.eq.s32.totalorder %s27, 0
    %p73 = por %p71, %p72
    %p74 = scmp.ne.s32.totalorder %s63, %s66
    %p75 = scmp.eq.s32.totalorder %s32, 1
    %p76 = por %p74, %p75
    %p77 = scmp.ne.s32.totalorder %s66, %s67
    %p78 = scmp.eq.s32.totalorder %s32, 0
    %p79 = por %p77, %p78
    %p80 = scmp.ne.s32.totalorder %s66, %s67
    %p81 = scmp.eq.s32.totalorder %s33, 1
    %p82 = por %p80, %p81
    %p84 = scmp.ne.s32.totalorder %s67, %s83
    %p85 = scmp.eq.s32.totalorder %s33, 0
    %p86 = por %p84, %p85
    %s88 = sadd.s32 %s87, 1
    %p91 = scmp.eq.s32.totalorder %s27, 1
    %p92 = scmp.ne.s32.totalorder %s87, %s89
    %p93 = scmp.eq.s32.totalorder %s27, 0
    %p94 = por %p92, %p93
    %p95 = scmp.ne.s32.totalorder %s87, %s89
    %p96 = scmp.eq.s32.totalorder %s32, 1
    %p97 = por %p95, %p96
    %p98 = scmp.ne.s32.totalorder %s89, %s90
    %p99 = scmp.eq.s32.totalorder %s32, 0
    %p100 = por %p98, %p99
    %p101 = scmp.ne.s32.totalorder %s89, %s90
    %p102 = scmp.eq.s32.totalorder %s33, 1
    %p103 = por %p101, %p102
    %p105 = scmp.ne.s32.totalorder %s90, %s104
    %p106 = scmp.eq.s32.totalorder %s33, 0
    %p107 = por %p105, %p106
    %s109 = sadd.s32 %s108, 1
    %p112 = scmp.eq.s32.totalorder %s27, 1
    %p113 = scmp.ne.s32.totalorder %s108, %s110
    %p114 = scmp.eq.s32.totalorder %s27, 0
    %p115 = por %p113, %p114
    %p116 = scmp.ne.s32.totalorder %s108, %s110
    %p117 = scmp.eq.s32.totalorder %s32, 1
    %p118 = por %p116, %p117
    %p119 = scmp.ne.s32.totalorder %s110, %s111
    %p120 = scmp.eq.s32.totalorder %s32, 0
    %p121 = por %p119, %p120
    %p122 = scmp.ne.s32.totalorder %s110, %s111
    %p123 = scmp.eq.s32.totalorder %s33, 1
    %p124 = por %p122, %p123
    %p126 = scmp.ne.s32.totalorder %s111, %s125
    %p127 = scmp.eq.s32.totalorder %s33, 0
    %p128 = por %p126, %p127
    %s130 = sadd.s32 %s129, 1
    %p133 = scmp.eq.s32.totalorder %s27, 1
    %p134 = scmp.ne.s32.totalorder %s129, %s131
    %p135 = scmp.eq.s32.totalorder %s27, 0
    %p136 = por %p134, %p135
    %p137 = scmp.ne.s32.totalorder %s129, %s131
    %p138 = scmp.eq.s32.totalorder %s32, 1
    %p139 = por %p137, %p138
    %p140 = scmp.ne.s32.totalorder %s131, %s132
    %p141 = scmp.eq.s32.totalorder %s32, 0
    %p142 = por %p140, %p141
    %p143 = scmp.ne.s32.totalorder %s131, %s132
    %p144 = scmp.eq.s32.totalorder %s33, 1
    %p145 = por %p143, %p144
    %p147 = scmp.ne.s32.totalorder %s132, %s146
    %p148 = scmp.eq.s32.totalorder %s33, 0
    %p149 = por %p147, %p148
    %s151 = sadd.s32 %s150, 1
    %p154 = scmp.eq.s32.totalorder %s27, 1
    %p155 = scmp.ne.s32.totalorder %s150, %s152
    %p156 = scmp.eq.s32.totalorder %s27, 0
    %p157 = por %p155, %p156
    %p158 = scmp.ne.s32.totalorder %s150, %s152
    %p159 = scmp.eq.s32.totalorder %s32, 1
    %p160 = por %p158, %p159
    %p161 = scmp.ne.s32.totalorder %s152, %s153
    %p162 = scmp.eq.s32.totalorder %s32, 0
    %p163 = por %p161, %p162
    %p164 = scmp.ne.s32.totalorder %s152, %s153
    %p165 = scmp.eq.s32.totalorder %s33, 1
    %p166 = por %p164, %p165
    %p168 = scmp.ne.s32.totalorder %s153, %s167
    %p169 = scmp.eq.s32.totalorder %s33, 0
    %p170 = por %p168, %p169
    %s172 = sadd.s32 %s171, 1
    %p175 = scmp.eq.s32.totalorder %s27, 1
    %p176 = scmp.ne.s32.totalorder %s171, %s173
    %p177 = scmp.eq.s32.totalorder %s27, 0
    %p178 = por %p176, %p177
    %p179 = scmp.ne.s32.totalorder %s171, %s173
    %p180 = scmp.eq.s32.totalorder %s32, 1
    %p181 = por %p179, %p180
    %p182 = scmp.ne.s32.totalorder %s173, %s174
    %p183 = scmp.eq.s32.totalorder %s32, 0
    %p184 = por %p182, %p183
    %p185 = scmp.ne.s32.totalorder %s173, %s174
    %p186 = scmp.eq.s32.totalorder %s33, 1
    %p187 = por %p185, %p186
    %p189 = scmp.ne.s32.totalorder %s174, %s188
    %p190 = scmp.eq.s32.totalorder %s33, 0
    %p191 = por %p189, %p190
    %s193 = sadd.s32 %s192, 1
    %p196 = scmp.eq.s32.totalorder %s27, 1
    %p197 = scmp.ne.s32.totalorder %s192, %s194
    %p198 = scmp.eq.s32.totalorder %s27, 0
    %p199 = por %p197, %p198
    %p200 = scmp.ne.s32.totalorder %s192, %s194
    %p201 = scmp.eq.s32.totalorder %s32, 1
    %p202 = por %p200, %p201
    %p203 = scmp.ne.s32.totalorder %s194, %s195
    %p204 = scmp.eq.s32.totalorder %s32, 0
    %p205 = por %p203, %p204
    %p206 = scmp.ne.s32.totalorder %s194, %s195
    %p207 = scmp.eq.s32.totalorder %s33, 1
    %p208 = por %p206, %p207
    %p210 = scmp.ne.s32.totalorder %s195, %s209
    %p211 = scmp.eq.s32.totalorder %s33, 0
    %p212 = por %p210, %p211
    %s214 = sadd.s32 %s213, 1
    %p217 = scmp.eq.s32.totalorder %s27, 1
    %p218 = scmp.ne.s32.totalorder %s213, %s215
    %p219 = scmp.eq.s32.totalorder %s27, 0
    %p220 = por %p218, %p219
    %p221 = scmp.ne.s32.totalorder %s213, %s215
    %p222 = scmp.eq.s32.totalorder %s32, 1
    %p223 = por %p221, %p222
    %p224 = scmp.ne.s32.totalorder %s215, %s216
    %p225 = scmp.eq.s32.totalorder %s32, 0
    %p226 = por %p224, %p225
    %p227 = scmp.ne.s32.totalorder %s215, %s216
    %p228 = scmp.eq.s32.totalorder %s33, 1
    %p229 = por %p227, %p228
    %p231 = scmp.ne.s32.totalorder %s216, %s230
    %p232 = scmp.eq.s32.totalorder %s33, 0
    %p233 = por %p231, %p232
    %s235 = sadd.s32 %s234, 1
    %p238 = scmp.eq.s32.totalorder %s27, 1
    %p239 = scmp.ne.s32.totalorder %s234, %s236
    %p240 = scmp.eq.s32.totalorder %s27, 0
    %p241 = por %p239, %p240
    %p242 = scmp.ne.s32.totalorder %s234, %s236
    %p243 = scmp.eq.s32.totalorder %s32, 1
    %p244 = por %p242, %p243
    %p245 = scmp.ne.s32.totalorder %s236, %s237
    %p246 = scmp.eq.s32.totalorder %s32, 0
    %p247 = por %p245, %p246
    %p248 = scmp.ne.s32.totalorder %s236, %s237
    %p249 = scmp.eq.s32.totalorder %s33, 1
    %p250 = por %p248, %p249
    %p252 = scmp.ne.s32.totalorder %s237, %s251
    %p253 = scmp.eq.s32.totalorder %s33, 0
    %p254 = por %p252, %p253
    %s256 = sadd.s32 %s255, 1
    %p259 = scmp.eq.s32.totalorder %s27, 1
    %p260 = scmp.ne.s32.totalorder %s255, %s257
    %p261 = scmp.eq.s32.totalorder %s27, 0
    %p262 = por %p260, %p261
    %p263 = scmp.ne.s32.totalorder %s255, %s257
    %p264 = scmp.eq.s32.totalorder %s32, 1
    %p265 = por %p263, %p264
    %p266 = scmp.ne.s32.totalorder %s257, %s258
    %p267 = scmp.eq.s32.totalorder %s32, 0
    %p268 = por %p266, %p267
    %p269 = scmp.ne.s32.totalorder %s257, %s258
    %p270 = scmp.eq.s32.totalorder %s33, 1
    %p271 = por %p269, %p270
    %p273 = scmp.ne.s32.totalorder %s258, %s272
    %p274 = scmp.eq.s32.totalorder %s33, 0
    %p275 = por %p273, %p274
    %s277 = sadd.s32 %s276, 1
    %p280 = scmp.eq.s32.totalorder %s27, 1
    %p281 = scmp.ne.s32.totalorder %s276, %s278
    %p282 = scmp.eq.s32.totalorder %s27, 0
    %p283 = por %p281, %p282
    %p284 = scmp.ne.s32.totalorder %s276, %s278
    %p285 = scmp.eq.s32.totalorder %s32, 1
    %p286 = por %p284, %p285
    %p287 = scmp.ne.s32.totalorder %s278, %s279
    %p288 = scmp.eq.s32.totalorder %s32, 0
    %p289 = por %p287, %p288
    %p290 = scmp.ne.s32.totalorder %s278, %s279
    %p291 = scmp.eq.s32.totalorder %s33, 1
    %p292 = por %p290, %p291
    %p294 = scmp.ne.s32.totalorder %s279, %s293
    %p295 = scmp.eq.s32.totalorder %s33, 0
    %p296 = por %p294, %p295
    %s298 = sadd.s32 %s297, 1
    %p301 = scmp.eq.s32.totalorder %s27, 1
    %p302 = scmp.ne.s32.totalorder %s297, %s299
    %p303 = scmp.eq.s32.totalorder %s27, 0
    %p304 = por %p302, %p303
    %p305 = scmp.ne.s32.totalorder %s297, %s299
    %p306 = scmp.eq.s32.totalorder %s32, 1
    %p307 = por %p305, %p306
    %p308 = scmp.ne.s32.totalorder %s299, %s300
    %p309 = scmp.eq.s32.totalorder %s32, 0
    %p310 = por %p308, %p309
    %p311 = scmp.ne.s32.totalorder %s299, %s300
    %p312 = scmp.eq.s32.totalorder %s33, 1
    %p313 = por %p311, %p312
    %p315 = scmp.ne.s32.totalorder %s300, %s314
    %p316 = scmp.eq.s32.totalorder %s33, 0
    %p317 = por %p315, %p316
    %s319 = sadd.s32 %s318, 1
    %p322 = scmp.eq.s32.totalorder %s27, 1
    %p323 = scmp.ne.s32.totalorder %s318, %s320
    %p324 = scmp.eq.s32.totalorder %s27, 0
    %p325 = por %p323, %p324
    %p326 = scmp.ne.s32.totalorder %s318, %s320
    %p327 = scmp.eq.s32.totalorder %s32, 1
    %p328 = por %p326, %p327
    %p329 = scmp.ne.s32.totalorder %s320, %s321
    %p330 = scmp.eq.s32.totalorder %s32, 0
    %p331 = por %p329, %p330
    %p332 = scmp.ne.s32.totalorder %s320, %s321
    %p333 = scmp.eq.s32.totalorder %s33, 1
    %p334 = por %p332, %p333
    %p336 = scmp.ne.s32.totalorder %s321, %s335
    %p337 = scmp.eq.s32.totalorder %s33, 0
    %p338 = por %p336, %p337
    %s340 = sadd.s32 %s339, 1
    %p343 = scmp.eq.s32.totalorder %s27, 1
    %p344 = scmp.ne.s32.totalorder %s339, %s341
    %p345 = scmp.eq.s32.totalorder %s27, 0
    %p346 = por %p344, %p345
    %p347 = scmp.ne.s32.totalorder %s339, %s341
    %p348 = scmp.eq.s32.totalorder %s32, 1
    %p349 = por %p347, %p348
    %p350 = scmp.ne.s32.totalorder %s341, %s342
    %p351 = scmp.eq.s32.totalorder %s32, 0
    %p352 = por %p350, %p351
    %p353 = scmp.ne.s32.totalorder %s341, %s342
    %p354 = scmp.eq.s32.totalorder %s33, 1
    %p355 = por %p353, %p354
    %p357 = scmp.ne.s32.totalorder %s342, %s356
    %p358 = scmp.eq.s32.totalorder %s33, 0
    %p359 = por %p357, %p358
    %s361 = sadd.s32 %s360, 1
    %p364 = scmp.eq.s32.totalorder %s27, 1
    %p365 = scmp.ne.s32.totalorder %s360, %s362
    %p366 = scmp.eq.s32.totalorder %s27, 0
    %p367 = por %p365, %p366
    %p368 = scmp.ne.s32.totalorder %s360, %s362
    %p369 = scmp.eq.s32.totalorder %s32, 1
    %p370 = por %p368, %p369
    %p371 = scmp.ne.s32.totalorder %s362, %s363
    %p372 = scmp.eq.s32.totalorder %s32, 0
    %p373 = por %p371, %p372
    %p374 = scmp.ne.s32.totalorder %s362, %s363
    %p375 = scmp.eq.s32.totalorder %s33, 1
    %p376 = por %p374, %p375
    %p378 = scmp.ne.s32.totalorder %s363, %s377
    %p379 = scmp.eq.s32.totalorder %s33, 0
    %p380 = por %p378, %p379
    %s382 = sadd.s32 %s381, 1
    %p385 = scmp.eq.s32.totalorder %s27, 1
    %p386 = scmp.ne.s32.totalorder %s381, %s383
    %p387 = scmp.eq.s32.totalorder %s27, 0
    %p388 = por %p386, %p387
    %p389 = scmp.ne.s32.totalorder %s381, %s383
    %p390 = scmp.eq.s32.totalorder %s32, 1
    %p391 = por %p389, %p390
    %p392 = scmp.ne.s32.totalorder %s383, %s384
    %p393 = scmp.eq.s32.totalorder %s32, 0
    %p394 = por %p392, %p393
    %p395 = scmp.ne.s32.totalorder %s383, %s384
    %p396 = scmp.eq.s32.totalorder %s33, 1
    %p397 = por %p395, %p396
    %p399 = scmp.ne.s32.totalorder %s384, %s398
    %p400 = scmp.eq.s32.totalorder %s33, 0
    %p401 = por %p399, %p400
    %s403 = sadd.s32 %s402, 1
    %p406 = scmp.eq.s32.totalorder %s27, 1
    %p407 = scmp.ne.s32.totalorder %s402, %s404
    %p408 = scmp.eq.s32.totalorder %s27, 0
    %p409 = por %p407, %p408
    %p410 = scmp.ne.s32.totalorder %s402, %s404
    %p411 = scmp.eq.s32.totalorder %s32, 1
    %p412 = por %p410, %p411
    %p413 = scmp.ne.s32.totalorder %s404, %s405
    %p414 = scmp.eq.s32.totalorder %s32, 0
    %p415 = por %p413, %p414
    %p416 = scmp.ne.s32.totalorder %s404, %s405
    %p417 = scmp.eq.s32.totalorder %s33, 1
    %p418 = por %p416, %p417
    %p420 = scmp.ne.s32.totalorder %s405, %s419
    %p421 = scmp.eq.s32.totalorder %s33, 0
    %p422 = por %p420, %p421
    %s424 = sadd.s32 %s423, 1
    %p427 = scmp.eq.s32.totalorder %s27, 1
    %p428 = scmp.ne.s32.totalorder %s423, %s425
    %p429 = scmp.eq.s32.totalorder %s27, 0
    %p430 = por %p428, %p429
    %p431 = scmp.ne.s32.totalorder %s423, %s425
    %p432 = scmp.eq.s32.totalorder %s32, 1
    %p433 = por %p431, %p432
    %p434 = scmp.ne.s32.totalorder %s425, %s426
    %p435 = scmp.eq.s32.totalorder %s32, 0
    %p436 = por %p434, %p435
    %p437 = scmp.ne.s32.totalorder %s425, %s426
    %p438 = scmp.eq.s32.totalorder %s33, 1
    %p439 = por %p437, %p438
    %p441 = scmp.ne.s32.totalorder %s426, %s440
    %p442 = scmp.eq.s32.totalorder %s33, 0
    %p443 = por %p441, %p442
    %s445 = sadd.s32 %s444, 1
    %p448 = scmp.eq.s32.totalorder %s27, 1
    %p449 = scmp.ne.s32.totalorder %s444, %s446
    %p450 = scmp.eq.s32.totalorder %s27, 0
    %p451 = por %p449, %p450
    %p452 = scmp.ne.s32.totalorder %s444, %s446
    %p453 = scmp.eq.s32.totalorder %s32, 1
    %p454 = por %p452, %p453
    %p455 = scmp.ne.s32.totalorder %s446, %s447
    %p456 = scmp.eq.s32.totalorder %s32, 0
    %p457 = por %p455, %p456
    %p458 = scmp.ne.s32.totalorder %s446, %s447
    %p459 = scmp.eq.s32.totalorder %s33, 1
    %p460 = por %p458, %p459
    %p462 = scmp.ne.s32.totalorder %s447, %s461
    %p463 = scmp.eq.s32.totalorder %s33, 0
    %p464 = por %p462, %p463
    %s466 = sadd.s32 %s465, 1
    %p469 = scmp.eq.s32.totalorder %s27, 1
    %p470 = scmp.ne.s32.totalorder %s465, %s467
    %p471 = scmp.eq.s32.totalorder %s27, 0
    %p472 = por %p470, %p471
    %p473 = scmp.ne.s32.totalorder %s465, %s467
    %p474 = scmp.eq.s32.totalorder %s32, 1
    %p475 = por %p473, %p474
    %p476 = scmp.ne.s32.totalorder %s467, %s468
    %p477 = scmp.eq.s32.totalorder %s32, 0
    %p478 = por %p476, %p477
    %p479 = scmp.ne.s32.totalorder %s467, %s468
    %p480 = scmp.eq.s32.totalorder %s33, 1
    %p481 = por %p479, %p480
    %p483 = scmp.ne.s32.totalorder %s468, %s482
    %p484 = scmp.eq.s32.totalorder %s33, 0
    %p485 = por %p483, %p484
    %s486 = ssub.s32 %s27, %s34
    %p487 = scmp.eq.s32.totalorder %s486, 0
    %s489 = sadd.s32 %s488, 1
    %s490 = scalar_select %p487, %s488, %s489
    %p493 = pneg %p487
    %p494 = scmp.eq.s32.totalorder %s27, 1
    %p495 = por %p493, %p494
    %p496 = scmp.ne.s32.totalorder %s488, %s491
    %p497 = scmp.eq.s32.totalorder %s27, 0
    %p498 = por %p496, %p497
    %p499 = scmp.ne.s32.totalorder %s488, %s491
    %p500 = scmp.eq.s32.totalorder %s32, 1
    %p501 = por %p499, %p500
    %p502 = scmp.ne.s32.totalorder %s491, %s492
    %p503 = scmp.eq.s32.totalorder %s32, 0
    %p504 = por %p502, %p503
    %p505 = scmp.ne.s32.totalorder %s491, %s492
    %p506 = scmp.eq.s32.totalorder %s33, 1
    %p507 = por %p505, %p506
    %p509 = scmp.ne.s32.totalorder %s492, %s508
    %p510 = scmp.eq.s32.totalorder %s33, 0
    %p511 = por %p509, %p510
    %p512 = scmp.le.s32.totalorder 1, %s27
    %p513 = scmp.lt.s32.totalorder %s27, 3
    %p514 = pnand %p512, %p513
    %p515 = pneg %p514
    // Predicated region
    $region9: #{lmim_forward.4} parent=5 // pred_check
      _
    $region10: #{lmim_forward.4} parent=5 // pred_check_branch
      %517 = sbr.rel (%p514) target = $region12
    $region11: #{lmim_forward.4} parent=5 // pred_region
      %s518 = ssub.s32 %s27, 1
      // Predicated region
      $region13: #{lmim_forward.4} parent=11 // pred_check
        %p519 = pneg %p100
      $region14: #{lmim_forward.4} parent=11 // pred_check_branch
        %521 = sbr.rel (%p519) target = $region16
      $region15: #{lmim_forward.4} parent=11 // pred_region
        _
      $region16: #{lmim_forward.4} parent=11 // pred_fallthru
        _
      // Predicated region
      $region17: #{lmim_forward.4} parent=11 // pred_check
        %p522 = pneg %p121
      $region18: #{lmim_forward.4} parent=11 // pred_check_branch
        %524 = sbr.rel (%p522) target = $region20
      $region19: #{lmim_forward.4} parent=11 // pred_region
        _
      $region20: #{lmim_forward.4} parent=11 // pred_fallthru
        _
      // Predicated region
      $region21: #{lmim_forward.4} parent=11 // pred_check
        %p525 = pneg %p142
      $region22: #{lmim_forward.4} parent=11 // pred_check_branch
        %527 = sbr.rel (%p525) target = $region24
      $region23: #{lmim_forward.4} parent=11 // pred_region
        _
      $region24: #{lmim_forward.4} parent=11 // pred_fallthru
        _
      // Predicated region
      $region25: #{lmim_forward.4} parent=11 // pred_check
        %p528 = pneg %p163
      $region26: #{lmim_forward.4} parent=11 // pred_check_branch
        %530 = sbr.rel (%p528) target = $region28
      $region27: #{lmim_forward.4} parent=11 // pred_region
        _
      $region28: #{lmim_forward.4} parent=11 // pred_fallthru
        _
      // Predicated region
      $region29: #{lmim_forward.4} parent=11 // pred_check
        %p531 = pneg %p184
      $region30: #{lmim_forward.4} parent=11 // pred_check_branch
        %533 = sbr.rel (%p531) target = $region32
      $region31: #{lmim_forward.4} parent=11 // pred_region
        _
      $region32: #{lmim_forward.4} parent=11 // pred_fallthru
        _
      // Predicated region
      $region33: #{lmim_forward.4} parent=11 // pred_check
        %p534 = pneg %p205
      $region34: #{lmim_forward.4} parent=11 // pred_check_branch
        %536 = sbr.rel (%p534) target = $region36
      $region35: #{lmim_forward.4} parent=11 // pred_region
        _
      $region36: #{lmim_forward.4} parent=11 // pred_fallthru
        _
      // Predicated region
      $region37: #{lmim_forward.4} parent=11 // pred_check
        %p537 = pneg %p226
      $region38: #{lmim_forward.4} parent=11 // pred_check_branch
        %539 = sbr.rel (%p537) target = $region40
      $region39: #{lmim_forward.4} parent=11 // pred_region
        _
      $region40: #{lmim_forward.4} parent=11 // pred_fallthru
        _
      // Predicated region
      $region41: #{lmim_forward.4} parent=11 // pred_check
        %p540 = pneg %p247
      $region42: #{lmim_forward.4} parent=11 // pred_check_branch
        %542 = sbr.rel (%p540) target = $region44
      $region43: #{lmim_forward.4} parent=11 // pred_region
        _
      $region44: #{lmim_forward.4} parent=11 // pred_fallthru
        _
      // Predicated region
      $region45: #{lmim_forward.4} parent=11 // pred_check
        %p543 = pneg %p268
      $region46: #{lmim_forward.4} parent=11 // pred_check_branch
        %545 = sbr.rel (%p543) target = $region48
      $region47: #{lmim_forward.4} parent=11 // pred_region
        _
      $region48: #{lmim_forward.4} parent=11 // pred_fallthru
        _
      // Predicated region
      $region49: #{lmim_forward.4} parent=11 // pred_check
        %p546 = pneg %p289
      $region50: #{lmim_forward.4} parent=11 // pred_check_branch
        %548 = sbr.rel (%p546) target = $region52
      $region51: #{lmim_forward.4} parent=11 // pred_region
        _
      $region52: #{lmim_forward.4} parent=11 // pred_fallthru
        _
      // Predicated region
      $region53: #{lmim_forward.4} parent=11 // pred_check
        %p549 = pneg %p310
      $region54: #{lmim_forward.4} parent=11 // pred_check_branch
        %551 = sbr.rel (%p549) target = $region56
      $region55: #{lmim_forward.4} parent=11 // pred_region
        _
      $region56: #{lmim_forward.4} parent=11 // pred_fallthru
        _
      // Predicated region
      $region57: #{lmim_forward.4} parent=11 // pred_check
        %p552 = pneg %p331
      $region58: #{lmim_forward.4} parent=11 // pred_check_branch
        %554 = sbr.rel (%p552) target = $region60
      $region59: #{lmim_forward.4} parent=11 // pred_region
        _
      $region60: #{lmim_forward.4} parent=11 // pred_fallthru
        _
      // Predicated region
      $region61: #{lmim_forward.4} parent=11 // pred_check
        %p555 = pneg %p352
      $region62: #{lmim_forward.4} parent=11 // pred_check_branch
        %557 = sbr.rel (%p555) target = $region64
      $region63: #{lmim_forward.4} parent=11 // pred_region
        _
      $region64: #{lmim_forward.4} parent=11 // pred_fallthru
        _
      // Predicated region
      $region65: #{lmim_forward.4} parent=11 // pred_check
        %p558 = pneg %p373
      $region66: #{lmim_forward.4} parent=11 // pred_check_branch
        %560 = sbr.rel (%p558) target = $region68
      $region67: #{lmim_forward.4} parent=11 // pred_region
        _
      $region68: #{lmim_forward.4} parent=11 // pred_fallthru
        _
      // Predicated region
      $region69: #{lmim_forward.4} parent=11 // pred_check
        %p561 = pneg %p394
      $region70: #{lmim_forward.4} parent=11 // pred_check_branch
        %563 = sbr.rel (%p561) target = $region72
      $region71: #{lmim_forward.4} parent=11 // pred_region
        _
      $region72: #{lmim_forward.4} parent=11 // pred_fallthru
        _
      // Predicated region
      $region73: #{lmim_forward.4} parent=11 // pred_check
        %p564 = pneg %p415
      $region74: #{lmim_forward.4} parent=11 // pred_check_branch
        %566 = sbr.rel (%p564) target = $region76
      $region75: #{lmim_forward.4} parent=11 // pred_region
        _
      $region76: #{lmim_forward.4} parent=11 // pred_fallthru
        _
      // Predicated region
      $region77: #{lmim_forward.4} parent=11 // pred_check
        %p567 = pneg %p436
      $region78: #{lmim_forward.4} parent=11 // pred_check_branch
        %569 = sbr.rel (%p567) target = $region80
      $region79: #{lmim_forward.4} parent=11 // pred_region
        _
      $region80: #{lmim_forward.4} parent=11 // pred_fallthru
        _
      // Predicated region
      $region81: #{lmim_forward.4} parent=11 // pred_check
        %p570 = pneg %p457
      $region82: #{lmim_forward.4} parent=11 // pred_check_branch
        %572 = sbr.rel (%p570) target = $region84
      $region83: #{lmim_forward.4} parent=11 // pred_region
        _
      $region84: #{lmim_forward.4} parent=11 // pred_fallthru
        _
      // Predicated region
      $region85: #{lmim_forward.4} parent=11 // pred_check
        %p573 = pneg %p478
      $region86: #{lmim_forward.4} parent=11 // pred_check_branch
        %575 = sbr.rel (%p573) target = $region88
      $region87: #{lmim_forward.4} parent=11 // pred_region
        _
      $region88: #{lmim_forward.4} parent=11 // pred_fallthru
        _
    $region12: #{lmim_forward.4} parent=5 // pred_fallthru
      _
    %p576 = scmp.lt.s32.totalorder %s27, 2
    // Predicated region
    $region89: #{lmim_forward.4} parent=5 // pred_check
      %p577 = pneg %p576
    $region90: #{lmim_forward.4} parent=5 // pred_check_branch
      %579 = sbr.rel (%p577) target = $region92
    $region91: #{lmim_forward.4} parent=5 // pred_region
      // Predicated region
      $region93: #{lmim_forward.4} parent=91 // pred_check
        %p580 = pneg %p47
      $region94: #{lmim_forward.4} parent=91 // pred_check_branch
        %582 = sbr.rel (%p580) target = $region96
      $region95: #{lmim_forward.4} parent=91 // pred_region
        %p583 = scmp.lt.s32.totalorder %s27, 1
        %s584 = scalar_select %p583, %s27, 1
        %s585 = smul.addr %s584, 2
        %s586 = smul.addr %s585, 8
        %s587 = scalar_lea.vmem %s0, %s586
      $region96: #{lmim_forward.4} parent=91 // pred_fallthru
        _
      // Predicated region
      $region97: #{lmim_forward.4} parent=91 // pred_check
        %p588 = pneg %p73
      $region98: #{lmim_forward.4} parent=91 // pred_check_branch
        %590 = sbr.rel (%p588) target = $region100
      $region99: #{lmim_forward.4} parent=91 // pred_region
        %p591 = scmp.lt.s32.totalorder %s27, 1
        %s592 = scalar_select %p591, %s27, 1
        %s593 = smul.addr %s592, 2
        %s594 = smul.addr %s593, 8
        %s595 = scalar_lea.vmem %s1, %s594
      $region100: #{lmim_forward.4} parent=91 // pred_fallthru
        _
    $region92: #{lmim_forward.4} parent=5 // pred_fallthru
      _
    %p596 = scmp.le.s32.totalorder 1, %s27
    %p597 = scmp.lt.s32.totalorder %s27, 3
    %p598 = pnand %p596, %p597
    %p599 = pneg %p598
    // Predicated region
    $region101: #{lmim_forward.4} parent=5 // pred_check
      _
    $region102: #{lmim_forward.4} parent=5 // pred_check_branch
      %601 = sbr.rel (%p598) target = $region104
    $region103: #{lmim_forward.4} parent=5 // pred_region
      %s602 = ssub.s32 %s27, 1
      %p603 = scmp.lt.s32.totalorder %s32, 1
      %s604 = scalar_select %p603, %s32, 1
      %s605 = smul.addr %s604, 2
      %s606 = smul.addr %s605, 8
      %s607 = scalar_lea.vmem %s0, %s606
      %p608 = pneg %p53
      %p609 = pneg %p50
      %p610 = scmp.lt.s32.totalorder %s32, 1
      %s611 = scalar_select %p610, %s32, 1
      %s612 = smul.addr %s611, 2
      %s613 = smul.addr %s612, 8
      %s614 = scalar_lea.vmem %s1, %s613
      %p615 = pneg %p79
      %p616 = pneg %p76
      %p617 = pneg %p100
      %p618 = pneg %p97
      %p619 = pneg %p121
      %p620 = pneg %p118
      %p621 = pneg %p142
      %p622 = pneg %p139
      %p623 = pneg %p163
      %p624 = pneg %p160
      %p625 = pneg %p184
      %p626 = pneg %p181
      %p627 = pneg %p205
      %p628 = pneg %p202
      %p629 = pneg %p226
      %p630 = pneg %p223
      %p631 = pneg %p247
      %p632 = pneg %p244
      %p633 = pneg %p268
      %p634 = pneg %p265
      %p635 = pneg %p289
      %p636 = pneg %p286
      %p637 = pneg %p310
      %p638 = pneg %p307
      %p639 = pneg %p331
      %p640 = pneg %p328
      %p641 = pneg %p352
      %p642 = pneg %p349
      %p643 = pneg %p373
      %p644 = pneg %p370
      %p645 = pneg %p394
      %p646 = pneg %p391
      %p647 = pneg %p415
      %p648 = pneg %p412
      %p649 = pneg %p436
      %p650 = pneg %p433
      %p651 = pneg %p457
      %p652 = pneg %p454
      %p653 = pneg %p478
      %p654 = pneg %p475
      %p655 = pneg %p504
      %p656 = pneg %p501
      %p657 = scmp.lt.s32.totalorder %s32, 1
      %s658 = scalar_select %p657, %s32, 1
      %s659 = smul.addr %s658, 2
      %s660 = smul.addr %s659, 8
      %s661 = scalar_lea.vmem %s21, %s660
      %p662 = scmp.lt.s32.totalorder %s32, 1
      %s663 = scalar_select %p662, %s32, 1
      %s664 = smul.addr %s663, 2
      %s665 = smul.addr %s664, 8
      %s666 = scalar_lea.vmem %s0, %s665
      %p667 = scmp.lt.s32.totalorder %s32, 1
      %s668 = scalar_select %p667, %s32, 1
      %s669 = smul.addr %s668, 2
      %s670 = smul.addr %s669, 8
      %s671 = scalar_lea.vmem %s1, %s670
      %p672 = scmp.lt.s32.totalorder %s32, 1
      %s673 = scalar_select %p672, %s32, 1
      %s674 = smul.addr %s673, 2
      %s675 = smul.addr %s674, 8
      %s676 = scalar_lea.vmem %s21, %s675
      %v677 = vld [vmem:[%s666] sm:$0xff]
      %v678 = vld [vmem:[%s666 + $0x8] sm:$0x1]
      %v679 = vld [vmem:[%s2] sm:$0xff]
      %v680 = vld [vmem:[%s2 + $0x8] sm:$0xff]
      %v681 = vld [vmem:[%s2 + $0x10] sm:$0xff]
      %v682 = vld [vmem:[%s2 + $0x18] sm:$0xff]
      %v683 = vld [vmem:[%s2 + $0x20] sm:$0xff]
      %v684 = vld [vmem:[%s2 + $0x28] sm:$0xff]
      %v685 = vld [vmem:[%s3] sm:$0x1]
      %v687 = vlaneseq
      %v688 = vshrl.u32 %v687, 7
      %v689 = vsub.s32 0, %v688
      %v690 = vrot.slane %v685, %v689
      %vm692 = vcmask 392192
      %v694 = vsel %vm692, %v677, 0
      %v697 = vsel %vm692, %v678, 0
      %699 = vmatprep.subr.mxu0 0.0
      %700 = vmatpush1.msra.mxu0 %v679
      %701 = vmatprep.subr.mxu0 0.0
      %702 = vmatpush1.msra.mxu0 %v680
      %703 = vmatprep.subr.mxu0 0.0
      %704 = vmatpush1.msra.mxu0 %v681
      %705 = vmatprep.subr.mxu0 0.0
      %706 = vmatpush1.msra.mxu0 %v682
      %707 = vmatprep.subr.mxu0 0.0
      %708 = vmatpush1.msra.mxu0 %v683
      %709 = vmatprep.subr.mxu0 0.0
      %710 = vmatpush1.msra.mxu0 %v684
      %711 = vmatprep.subr.mxu0 0.0
      %712 = vmatpush1.msra.mxu0 0.0
      %713 = vmatprep.subr.mxu0 0.0
      %714 = vmatpush1.msra.mxu0 0.0
      %715 = vmatprep.subr.mxu0 0.0
      %716 = vmatpush1.msra.mxu0 0.0
      %717 = vmatprep.subr.mxu0 0.0
      %718 = vmatpush1.msra.mxu0 0.0
      %719 = vmatprep.subr.mxu0 0.0
      %720 = vmatpush1.msra.mxu0 0.0
      %721 = vmatprep.subr.mxu0 0.0
      %722 = vmatpush1.msra.mxu0 0.0
      %723 = vmatprep.subr.mxu0 0.0
      %724 = vmatpush1.msra.mxu0 0.0
      %725 = vmatprep.subr.mxu0 0.0
      %726 = vmatpush1.msra.mxu0 0.0
      %727 = vmatprep.subr.mxu0 0.0
      %728 = vmatpush1.msra.mxu0 0.0
      %729 = vmatprep.subr.mxu0 0.0
      %730 = vmatpush1.msra.mxu0 0.0
      %731 = vmatprep.subr.mxu0 0.0
      %732 = vmatpush1.msra.mxu0 0.0
      %733 = vmatprep.subr.mxu0 0.0
      %734 = vmatpush1.msra.mxu0 0.0
      %735 = vmatprep.subr.mxu0 0.0
      %736 = vmatpush1.msra.mxu0 0.0
      %737 = vmatprep.subr.mxu0 0.0
      %738 = vmatpush1.msra.mxu0 0.0
      %739 = vmatprep.subr.mxu0 0.0
      %740 = vmatpush1.msra.mxu0 0.0
      %741 = vmatprep.subr.mxu0 0.0
      %742 = vmatpush1.msra.mxu0 0.0
      %743 = vmatprep.subr.mxu0 0.0
      %744 = vmatpush1.msra.mxu0 0.0
      %745 = vmatprep.subr.mxu0 0.0
      %746 = vmatpush1.msra.mxu0 0.0
      %747 = vmatprep.subr.mxu0 0.0
      %748 = vmatpush1.msra.mxu0 0.0
      %749 = vmatprep.subr.mxu0 0.0
      %750 = vmatpush1.msra.mxu0 0.0
      %751 = vmatprep.subr.mxu0 0.0
      %752 = vmatpush1.msra.mxu0 0.0
      %753 = vmatprep.subr.mxu0 0.0
      %754 = vmatpush1.msra.mxu0 0.0
      %755 = vmatprep.subr.mxu0 0.0
      %756 = vmatpush1.msra.mxu0 0.0
      %757 = vmatprep.subr.mxu0 0.0
      %758 = vmatpush1.msra.mxu0 0.0
      %759 = vmatprep.subr.mxu0 0.0
      %760 = vmatpush1.msra.mxu0 0.0
      %761 = vmatprep.subr.mxu0 0.0
      %762 = vmatpush1.msra.mxu0 0.0
      %763 = vmatprep.mubr.f32.mxu0 0.0
      %764 = vmatmul.mubr.f32.gmra.mrb[0].mxu0 %v694
      %v765 = vpop.f32.mrb[0].mxu0
      %v766 = vadd.f32 %v690, %v765
      %v767 = vpop.f32.mrb[0].mxu0
      %768 = vmatprep.mubr.f32.mxu0 0.0
      %769 = vmatmul.mubr.f32.gmra.mrb[0].mxu0 %v697
      %v770 = vpop.f32.mrb[0].mxu0
      %v771 = vadd.f32 %v690, %v770
      %v772 = vpop.f32.mrb[0].mxu0
      %773 = vdwg.mxu0
      %v774 = vld [vmem:[%s671] sm:$0xff]
      %v775 = vld [vmem:[%s671 + $0x8] sm:$0x1]
      %v776 = vadd.f32 %v766, %v774
      %v777 = vadd.f32 %v771, %v775
      %v778 = vld [vmem:[%s4] sm:$0x1]
      %v779 = vld [vmem:[%s5] sm:$0x1]
      %vm780 = vcmask 261120
      %v781 = vsel %vm780, %v776, 0.0
      %782 = vadd.xlane.f32.xlu0 %v781
      %v783 = vpop.xlane.xlu0 %782
      %vm784 = vcmask 253952
      %v785 = vsel %vm784, %v777, 0.0
      %786 = vadd.xlane.f32.xlu0 %v785
      %v787 = vpop.xlane.xlu0 %786
      %v788 = vrcp.pop 32.0
      %v789 = vmul.f32 %v783, %v788
      %v790 = vmul.f32 %v787, %v788
      %v791 = vsub.f32 %v776, %v789
      %v792 = vsub.f32 %v777, %v790
      %v793 = vmul.f32 %v791, %v791
      %v794 = vmul.f32 %v792, %v792
      %v795 = vsel %vm780, %v793, 0.0
      %796 = vadd.xlane.f32.xlu0 %v795
      %v797 = vpop.xlane.xlu0 %796
      %v798 = vsel %vm784, %v794, 0.0
      %799 = vadd.xlane.f32.xlu0 %v798
      %v800 = vpop.xlane.xlu0 %799
      %v801 = vmul.f32 %v797, %v788
      %v802 = vmul.f32 %v800, %v788
      %v803 = vadd.f32 %v801, 1e-05
      %v804 = vadd.f32 %v802, 1e-05
      %v805 = vrsqrt.pop %v803
      %v806 = vrsqrt.pop %v804
      %v807 = vmul.f32 %v791, %v805
      %v808 = vmul.f32 %v792, %v806
      %v810 = vlaneseq
      %v811 = vshrl.u32 %v810, 7
      %v812 = vsub.s32 0, %v811
      %v813 = vrot.slane %v778, %v812
      %v815 = vmul.f32 %v807, %v813
      %v816 = vmul.f32 %v808, %v813
      %v818 = vlaneseq
      %v819 = vshrl.u32 %v818, 7
      %v820 = vsub.s32 0, %v819
      %v821 = vrot.slane %v779, %v820
      %v823 = vadd.f32 %v815, %v821
      %v824 = vadd.f32 %v816, %v821
      %v825 = vld [vmem:[%s6] sm:$0xff]
      %v826 = vld [vmem:[%s6 + $0x8] sm:$0xff]
      %v827 = vld [vmem:[%s6 + $0x10] sm:$0xff]
      %v828 = vld [vmem:[%s6 + $0x18] sm:$0xff]
      %v829 = vld [vmem:[%s7] sm:$0x1]
      %v831 = vlaneseq
      %v832 = vshrl.u32 %v831, 7
      %v833 = vsub.s32 0, %v832
      %v834 = vrot.slane %v829, %v833
      %v837 = vsel %vm780, %v823, 0
      %v840 = vsel %vm780, %v824, 0
      %842 = vmatprep.subr.mxu0 0.0
      %843 = vmatpush1.msra.mxu0 %v825
      %844 = vmatprep.subr.mxu0 0.0
      %845 = vmatpush1.msra.mxu0 %v826
      %846 = vmatprep.subr.mxu0 0.0
      %847 = vmatpush1.msra.mxu0 %v827
      %848 = vmatprep.subr.mxu0 0.0
      %849 = vmatpush1.msra.mxu0 %v828
      %850 = vmatprep.subr.mxu0 0.0
      %851 = vmatpush1.msra.mxu0 0.0
      %852 = vmatprep.subr.mxu0 0.0
      %853 = vmatpush1.msra.mxu0 0.0
      %854 = vmatprep.subr.mxu0 0.0
      %855 = vmatpush1.msra.mxu0 0.0
      %856 = vmatprep.subr.mxu0 0.0
      %857 = vmatpush1.msra.mxu0 0.0
      %858 = vmatprep.subr.mxu0 0.0
      %859 = vmatpush1.msra.mxu0 0.0
      %860 = vmatprep.subr.mxu0 0.0
      %861 = vmatpush1.msra.mxu0 0.0
      %862 = vmatprep.subr.mxu0 0.0
      %863 = vmatpush1.msra.mxu0 0.0
      %864 = vmatprep.subr.mxu0 0.0
      %865 = vmatpush1.msra.mxu0 0.0
      %866 = vmatprep.subr.mxu0 0.0
      %867 = vmatpush1.msra.mxu0 0.0
      %868 = vmatprep.subr.mxu0 0.0
      %869 = vmatpush1.msra.mxu0 0.0
      %870 = vmatprep.subr.mxu0 0.0
      %871 = vmatpush1.msra.mxu0 0.0
      %872 = vmatprep.subr.mxu0 0.0
      %873 = vmatpush1.msra.mxu0 0.0
      %874 = vmatprep.subr.mxu0 0.0
      %875 = vmatpush1.msra.mxu0 0.0
      %876 = vmatprep.subr.mxu0 0.0
      %877 = vmatpush1.msra.mxu0 0.0
      %878 = vmatprep.subr.mxu0 0.0
      %879 = vmatpush1.msra.mxu0 0.0
      %880 = vmatprep.subr.mxu0 0.0
      %881 = vmatpush1.msra.mxu0 0.0
      %882 = vmatprep.subr.mxu0 0.0
      %883 = vmatpush1.msra.mxu0 0.0
      %884 = vmatprep.subr.mxu0 0.0
      %885 = vmatpush1.msra.mxu0 0.0
      %886 = vmatprep.subr.mxu0 0.0
      %887 = vmatpush1.msra.mxu0 0.0
      %888 = vmatprep.subr.mxu0 0.0
      %889 = vmatpush1.msra.mxu0 0.0
      %890 = vmatprep.subr.mxu0 0.0
      %891 = vmatpush1.msra.mxu0 0.0
      %892 = vmatprep.subr.mxu0 0.0
      %893 = vmatpush1.msra.mxu0 0.0
      %894 = vmatprep.subr.mxu0 0.0
      %895 = vmatpush1.msra.mxu0 0.0
      %896 = vmatprep.subr.mxu0 0.0
      %897 = vmatpush1.msra.mxu0 0.0
      %898 = vmatprep.subr.mxu0 0.0
      %899 = vmatpush1.msra.mxu0 0.0
      %900 = vmatprep.subr.mxu0 0.0
      %901 = vmatpush1.msra.mxu0 0.0
      %902 = vmatprep.subr.mxu0 0.0
      %903 = vmatpush1.msra.mxu0 0.0
      %904 = vmatprep.subr.mxu0 0.0
      %905 = vmatpush1.msra.mxu0 0.0
      %906 = vmatprep.mubr.f32.mxu0 0.0
      %907 = vmatmul.mubr.f32.gmra.mrb[0].mxu0 %v837
      %v908 = vpop.f32.mrb[0].mxu0
      %v909 = vadd.f32 %v834, %v908
      %v910 = vpop.f32.mrb[0].mxu0
      %911 = vmatprep.mubr.f32.mxu0 0.0
      %912 = vmatmul.mubr.f32.gmra.mrb[0].mxu0 %v840
      %v913 = vpop.f32.mrb[0].mxu0
      %v914 = vadd.f32 %v834, %v913
      %v915 = vpop.f32.mrb[0].mxu0
      %916 = vdwg.mxu0
      %v917 = vld [vmem:[%s9] sm:$0x1]
      %v919 = vlaneseq
      %v920 = vshrl.u32 %v919, 7
      %v921 = vsub.s32 0, %v920
      %v922 = vrot.slane %v917, %v921
      %v924 = vadd.f32 %v922, 0.0
      %927 = vrot.lane.b32.xlu0 %v909, 96
      %v928 = vpop.permute.xlu0 %927
      %929 = vrot.lane.b32.xlu0 %v914, 96
      %v930 = vpop.permute.xlu0 %929
      %vm931 = vcmask 64512
      %v932 = vsel %vm931, %v909, 0
      %v934 = vsel %vm931, %v914, 0
      %v936 = vsel %vm931, %v928, 0
      %v938 = vsel %vm931, %v930, 0
      %940 = vmatprep.subr.mxu0 0.0
      %941 = vmatpush1.xpose.msra.mxu0 %v936
      %942 = vmatprep.subr.mxu0 0.0
      %943 = vmatpush1.xpose.msra.mxu0 %v938
      %944 = vmatprep.subr.mxu0 0.0
      %945 = vmatpush1.xpose.msra.mxu0 0.0
      %946 = vmatprep.subr.mxu0 0.0
      %947 = vmatpush1.xpose.msra.mxu0 0.0
      %948 = vmatprep.subr.mxu0 0.0
      %949 = vmatpush1.xpose.msra.mxu0 0.0
      %950 = vmatprep.subr.mxu0 0.0
      %951 = vmatpush1.xpose.msra.mxu0 0.0
      %952 = vmatprep.subr.mxu0 0.0
      %953 = vmatpush1.xpose.msra.mxu0 0.0
      %954 = vmatprep.subr.mxu0 0.0
      %955 = vmatpush1.xpose.msra.mxu0 0.0
      %956 = vmatprep.subr.mxu0 0.0
      %957 = vmatpush1.xpose.msra.mxu0 0.0
      %958 = vmatprep.subr.mxu0 0.0
      %959 = vmatpush1.xpose.msra.mxu0 0.0
      %960 = vmatprep.subr.mxu0 0.0
      %961 = vmatpush1.xpose.msra.mxu0 0.0
      %962 = vmatprep.subr.mxu0 0.0
      %963 = vmatpush1.xpose.msra.mxu0 0.0
      %964 = vmatprep.subr.mxu0 0.0
      %965 = vmatpush1.xpose.msra.mxu0 0.0
      %966 = vmatprep.subr.mxu0 0.0
      %967 = vmatpush1.xpose.msra.mxu0 0.0
      %968 = vmatprep.subr.mxu0 0.0
      %969 = vmatpush1.xpose.msra.mxu0 0.0
      %970 = vmatprep.subr.mxu0 0.0
      %971 = vmatpush1.xpose.msra.mxu0 0.0
      %972 = vmatprep.subr.mxu0 0.0
      %973 = vmatpush1.xpose.msra.mxu0 0.0
      %974 = vmatprep.subr.mxu0 0.0
      %975 = vmatpush1.xpose.msra.mxu0 0.0
      %976 = vmatprep.subr.mxu0 0.0
      %977 = vmatpush1.xpose.msra.mxu0 0.0
      %978 = vmatprep.subr.mxu0 0.0
      %979 = vmatpush1.xpose.msra.mxu0 0.0
      %980 = vmatprep.subr.mxu0 0.0
      %981 = vmatpush1.xpose.msra.mxu0 0.0
      %982 = vmatprep.subr.mxu0 0.0
      %983 = vmatpush1.xpose.msra.mxu0 0.0
      %984 = vmatprep.subr.mxu0 0.0
      %985 = vmatpush1.xpose.msra.mxu0 0.0
      %986 = vmatprep.subr.mxu0 0.0
      %987 = vmatpush1.xpose.msra.mxu0 0.0
      %988 = vmatprep.subr.mxu0 0.0
      %989 = vmatpush1.xpose.msra.mxu0 0.0
      %990 = vmatprep.subr.mxu0 0.0
      %991 = vmatpush1.xpose.msra.mxu0 0.0
      %992 = vmatprep.subr.mxu0 0.0
      %993 = vmatpush1.xpose.msra.mxu0 0.0
      %994 = vmatprep.subr.mxu0 0.0
      %995 = vmatpush1.xpose.msra.mxu0 0.0
      %996 = vmatprep.subr.mxu0 0.0
      %997 = vmatpush1.xpose.msra.mxu0 0.0
      %998 = vmatprep.subr.mxu0 0.0
      %999 = vmatpush1.xpose.msra.mxu0 0.0
      %1000 = vmatprep.subr.mxu0 0.0
      %1001 = vmatpush1.xpose.msra.mxu0 0.0
      %1002 = vmatprep.subr.mxu0 0.0
      %1003 = vmatpush1.xpose.msra.mxu0 0.0
      %1004 = vmatprep.mubr.f32.mxu0 0.0
      %1005 = vmatmul.mubr.f32.gmra.mrb[0].mxu0 %v932
      %v1006 = vpop.f32.mrb[0].mxu0
      %v1007 = vadd.f32 0.0, %v1006
      %v1008 = vpop.f32.mrb[0].mxu0
      %1009 = vmatprep.mubr.f32.mxu0 0.0
      %1010 = vmatmul.mubr.f32.gmra.mrb[0].mxu0 %v934
      %v1011 = vpop.f32.mrb[0].mxu0
      %v1012 = vadd.f32 0.0, %v1011
      %v1013 = vpop.f32.mrb[0].mxu0
      %1014 = vdwg.mxu0
      %v1015 = vmul.f32 %v1007, 0.35355338
      %v1016 = vmul.f32 %v1012, 0.35355338
      %vm1017 = vcmask 72704
      %v1018 = vsel %vm1017, %v1015, -inf
      %1019 = vmax.xlane.f32.xlu0 %v1018
      %v1020 = vpop.xlane.xlu0 %1019
      %vm1021 = vcmask 65536
      %v1022 = vsel %vm1021, %v1016, -inf
      %1023 = vmax.xlane.f32.xlu0 %v1022
      %v1024 = vpop.xlane.xlu0 %1023
      %v1025 = vsub.f32 %v1015, %v1020
      %v1026 = vsub.f32 %v1016, %v1024
      %v1027 = vmul.f32 %v1025, 1.442695
      %v1028 = vpow.pop %v1027
      %v1029 = vmul.f32 %v1026, 1.442695
      %v1030 = vpow.pop %v1029
      %v1031 = vsel %vm1017, %v1028, 0.0
      %1032 = vadd.xlane.f32.xlu0 %v1031
      %v1033 = vpop.xlane.xlu0 %1032
      %v1034 = vsel %vm1021, %v1030, 0.0
      %1035 = vadd.xlane.f32.xlu0 %v1034
      %v1036 = vpop.xlane.xlu0 %1035
      %v1037 = vrcp.pop %v1033
      %v1038 = vrcp.pop %v1036
      %v1039 = vmul.f32 %v1028, %v1037
      %v1040 = vmul.f32 %v1030, %v1038
      %1041 = vrot.lane.b32.xlu0 %v909, 64
      %v1042 = vpop.permute.xlu0 %1041
      %1043 = vrot.lane.b32.xlu0 %v914, 64
      %v1044 = vpop.permute.xlu0 %1043
      %v1047 = vsel %vm1017, %v1039, 0
      %v1050 = vsel %vm1017, %v1040, 0
      %vm1052 = vcmask 1040384
      %v1053 = vsel %vm1052, %v1044, 0
      %1055 = vmatprep.subr.mxu0 0.0
      %1056 = vmatpush1.msra.mxu0 %v1042
      %1057 = vmatprep.subr.mxu0 0.0
      %1058 = vmatpush1.msra.mxu0 %v1053
      %1059 = vmatprep.subr.mxu0 0.0
      %1060 = vmatpush1.msra.mxu0 0.0
      %1061 = vmatprep.subr.mxu0 0.0
      %1062 = vmatpush1.msra.mxu0 0.0
      %1063 = vmatprep.subr.mxu0 0.0
      %1064 = vmatpush1.msra.mxu0 0.0
      %1065 = vmatprep.subr.mxu0 0.0
      %1066 = vmatpush1.msra.mxu0 0.0
      %1067 = vmatprep.subr.mxu0 0.0
      %1068 = vmatpush1.msra.mxu0 0.0
      %1069 = vmatprep.subr.mxu0 0.0
      %1070 = vmatpush1.msra.mxu0 0.0
      %1071 = vmatprep.subr.mxu0 0.0
      %1072 = vmatpush1.msra.mxu0 0.0
      %1073 = vmatprep.subr.mxu0 0.0
      %1074 = vmatpush1.msra.mxu0 0.0
      %1075 = vmatprep.subr.mxu0 0.0
      %1076 = vmatpush1.msra.mxu0 0.0
      %1077 = vmatprep.subr.mxu0 0.0
      %1078 = vmatpush1.msra.mxu0 0.0
      %1079 = vmatprep.subr.mxu0 0.0
      %1080 = vmatpush1.msra.mxu0 0.0
      %1081 = vmatprep.subr.mxu0 0.0
      %1082 = vmatpush1.msra.mxu0 0.0
      %1083 = vmatprep.subr.mxu0 0.0
      %1084 = vmatpush1.msra.mxu0 0.0
      %1085 = vmatprep.subr.mxu0 0.0
      %1086 = vmatpush1.msra.mxu0 0.0
      %1087 = vmatprep.subr.mxu0 0.0
      %1088 = vmatpush1.msra.mxu0 0.0
      %1089 = vmatprep.subr.mxu0 0.0
      %1090 = vmatpush1.msra.mxu0 0.0
      %1091 = vmatprep.subr.mxu0 0.0
      %1092 = vmatpush1.msra.mxu0 0.0
      %1093 = vmatprep.subr.mxu0 0.0
      %1094 = vmatpush1.msra.mxu0 0.0
      %1095 = vmatprep.subr.mxu0 0.0
      %1096 = vmatpush1.msra.mxu0 0.0
      %1097 = vmatprep.subr.mxu0 0.0
      %1098 = vmatpush1.msra.mxu0 0.0
      %1099 = vmatprep.subr.mxu0 0.0
      %1100 = vmatpush1.msra.mxu0 0.0
      %1101 = vmatprep.subr.mxu0 0.0
      %1102 = vmatpush1.msra.mxu0 0.0
      %1103 = vmatprep.subr.mxu0 0.0
      %1104 = vmatpush1.msra.mxu0 0.0
      %1105 = vmatprep.subr.mxu0 0.0
      %1106 = vmatpush1.msra.mxu0 0.0
      %1107 = vmatprep.subr.mxu0 0.0
      %1108 = vmatpush1.msra.mxu0 0.0
      %1109 = vmatprep.subr.mxu0 0.0
      %1110 = vmatpush1.msra.mxu0 0.0
      %1111 = vmatprep.subr.mxu0 0.0
      %1112 = vmatpush1.msra.mxu0 0.0
      %1113 = vmatprep.subr.mxu0 0.0
      %1114 = vmatpush1.msra.mxu0 0.0
      %1115 = vmatprep.subr.mxu0 0.0
      %1116 = vmatpush1.msra.mxu0 0.0
      %1117 = vmatprep.subr.mxu0 0.0
      %1118 = vmatpush1.msra.mxu0 0.0
      %1119 = vmatprep.mubr.f32.mxu0 0.0
      %1120 = vmatmul.mubr.f32.gmra.mrb[0].mxu0 %v1047
      %v1121 = vpop.f32.mrb[0].mxu0
      %v1122 = vadd.f32 0.0, %v1121
      %v1123 = vpop.f32.mrb[0].mxu0
      %1124 = vmatprep.mubr.f32.mxu0 0.0
      %1125 = vmatmul.mubr.f32.gmra.mrb[0].mxu0 %v1050
      %v1126 = vpop.f32.mrb[0].mxu0
      %v1127 = vadd.f32 0.0, %v1126
      %v1128 = vpop.f32.mrb[0].mxu0
      %1129 = vdwg.mxu0
      %v1130 = vld [vmem:[%s8] sm:$0xff]
      %v1132 = vsel %vm931, %v1122, 0
      %v1135 = vsel %vm931, %v1127, 0
      %1137 = vmatprep.subr.mxu0 0.0
      %1138 = vmatpush1.msra.mxu0 %v1130
      %1139 = vmatprep.subr.mxu0 0.0
      %1140 = vmatpush1.msra.mxu0 0.0
      %1141 = vmatprep.subr.mxu0 0.0
      %1142 = vmatpush1.msra.mxu0 0.0
      %1143 = vmatprep.subr.mxu0 0.0
      %1144 = vmatpush1.msra.mxu0 0.0
      %1145 = vmatprep.subr.mxu0 0.0
      %1146 = vmatpush1.msra.mxu0 0.0
      %1147 = vmatprep.subr.mxu0 0.0
      %1148 = vmatpush1.msra.mxu0 0.0
      %1149 = vmatprep.subr.mxu0 0.0
      %1150 = vmatpush1.msra.mxu0 0.0
      %1151 = vmatprep.subr.mxu0 0.0
      %1152 = vmatpush1.msra.mxu0 0.0
      %1153 = vmatprep.subr.mxu0 0.0
      %1154 = vmatpush1.msra.mxu0 0.0
      %1155 = vmatprep.subr.mxu0 0.0
      %1156 = vmatpush1.msra.mxu0 0.0
      %1157 = vmatprep.subr.mxu0 0.0
      %1158 = vmatpush1.msra.mxu0 0.0
      %1159 = vmatprep.subr.mxu0 0.0
      %1160 = vmatpush1.msra.mxu0 0.0
      %1161 = vmatprep.subr.mxu0 0.0
      %1162 = vmatpush1.msra.mxu0 0.0
      %1163 = vmatprep.subr.mxu0 0.0
      %1164 = vmatpush1.msra.mxu0 0.0
      %1165 = vmatprep.subr.mxu0 0.0
      %1166 = vmatpush1.msra.mxu0 0.0
      %1167 = vmatprep.subr.mxu0 0.0
      %1168 = vmatpush1.msra.mxu0 0.0
      %1169 = vmatprep.subr.mxu0 0.0
      %1170 = vmatpush1.msra.mxu0 0.0
      %1171 = vmatprep.subr.mxu0 0.0
      %1172 = vmatpush1.msra.mxu0 0.0
      %1173 = vmatprep.subr.mxu0 0.0
      %1174 = vmatpush1.msra.mxu0 0.0
      %1175 = vmatprep.subr.mxu0 0.0
      %1176 = vmatpush1.msra.mxu0 0.0
      %1177 = vmatprep.subr.mxu0 0.0
      %1178 = vmatpush1.msra.mxu0 0.0
      %1179 = vmatprep.subr.mxu0 0.0
      %1180 = vmatpush1.msra.mxu0 0.0
      %1181 = vmatprep.subr.mxu0 0.0
      %1182 = vmatpush1.msra.mxu0 0.0
      %1183 = vmatprep.subr.mxu0 0.0
      %1184 = vmatpush1.msra.mxu0 0.0
      %1185 = vmatprep.subr.mxu0 0.0
      %1186 = vmatpush1.msra.mxu0 0.0
      %1187 = vmatprep.subr.mxu0 0.0
      %1188 = vmatpush1.msra.mxu0 0.0
      %1189 = vmatprep.subr.mxu0 0.0
      %1190 = vmatpush1.msra.mxu0 0.0
      %1191 = vmatprep.subr.mxu0 0.0
      %1192 = vmatpush1.msra.mxu0 0.0
      %1193 = vmatprep.subr.mxu0 0.0
      %1194 = vmatpush1.msra.mxu0 0.0
      %1195 = vmatprep.subr.mxu0 0.0
      %1196 = vmatpush1.msra.mxu0 0.0
      %1197 = vmatprep.subr.mxu0 0.0
      %1198 = vmatpush1.msra.mxu0 0.0
      %1199 = vmatprep.subr.mxu0 0.0
      %1200 = vmatpush1.msra.mxu0 0.0
      %1201 = vmatprep.mubr.f32.mxu0 0.0
      %1202 = vmatmul.mubr.f32.gmra.mrb[0].mxu0 %v1132
      %v1203 = vpop.f32.mrb[0].mxu0
      %v1204 = vadd.f32 0.0, %v1203
      %v1205 = vpop.f32.mrb[0].mxu0
      %1206 = vmatprep.mubr.f32.mxu0 0.0
      %1207 = vmatmul.mubr.f32.gmra.mrb[0].mxu0 %v1135
      %v1208 = vpop.f32.mrb[0].mxu0
      %v1209 = vadd.f32 0.0, %v1208
      %v1210 = vpop.f32.mrb[0].mxu0
      %1211 = vdwg.mxu0
      %v1212 = vadd.f32 %v924, %v1204
      %v1213 = vadd.f32 %v924, %v1209
      %1214 = vrot.lane.b32.xlu0 %v909, 120
      %v1215 = vpop.permute.xlu0 %1214
      %1216 = vrot.lane.b32.xlu0 %v914, 120
      %v1217 = vpop.permute.xlu0 %1216
      %1218 = vrot.lane.b32.xlu0 %v909, 88
      %v1219 = vpop.permute.xlu0 %1218
      %1220 = vrot.lane.b32.xlu0 %v914, 88
      %v1221 = vpop.permute.xlu0 %1220
      %v1222 = vsel %vm931, %v1215, 0
      %v1224 = vsel %vm931, %v1217, 0
      %v1226 = vsel %vm931, %v1219, 0
      %v1228 = vsel %vm931, %v1221, 0
      %1230 = vmatprep.subr.mxu0 0.0
      %1231 = vmatpush1.xpose.msra.mxu0 %v1226
      %1232 = vmatprep.subr.mxu0 0.0
      %1233 = vmatpush1.xpose.msra.mxu0 %v1228
      %1234 = vmatprep.subr.mxu0 0.0
      %1235 = vmatpush1.xpose.msra.mxu0 0.0
      %1236 = vmatprep.subr.mxu0 0.0
      %1237 = vmatpush1.xpose.msra.mxu0 0.0
      %1238 = vmatprep.subr.mxu0 0.0
      %1239 = vmatpush1.xpose.msra.mxu0 0.0
      %1240 = vmatprep.subr.mxu0 0.0
      %1241 = vmatpush1.xpose.msra.mxu0 0.0
      %1242 = vmatprep.subr.mxu0 0.0
      %1243 = vmatpush1.xpose.msra.mxu0 0.0
      %1244 = vmatprep.subr.mxu0 0.0
      %1245 = vmatpush1.xpose.msra.mxu0 0.0
      %1246 = vmatprep.subr.mxu0 0.0
      %1247 = vmatpush1.xpose.msra.mxu0 0.0
      %1248 = vmatprep.subr.mxu0 0.0
      %1249 = vmatpush1.xpose.msra.mxu0 0.0
      %1250 = vmatprep.subr.mxu0 0.0
      %1251 = vmatpush1.xpose.msra.mxu0 0.0
      %1252 = vmatprep.subr.mxu0 0.0
      %1253 = vmatpush1.xpose.msra.mxu0 0.0
      %1254 = vmatprep.subr.mxu0 0.0
      %1255 = vmatpush1.xpose.msra.mxu0 0.0
      %1256 = vmatprep.subr.mxu0 0.0
      %1257 = vmatpush1.xpose.msra.mxu0 0.0
      %1258 = vmatprep.subr.mxu0 0.0
      %1259 = vmatpush1.xpose.msra.mxu0 0.0
      %1260 = vmatprep.subr.mxu0 0.0
      %1261 = vmatpush1.xpose.msra.mxu0 0.0
      %1262 = vmatprep.subr.mxu0 0.0
      %1263 = vmatpush1.xpose.msra.mxu0 0.0
      %1264 = vmatprep.subr.mxu0 0.0
      %1265 = vmatpush1.xpose.msra.mxu0 0.0
      %1266 = vmatprep.subr.mxu0 0.0
      %1267 = vmatpush1.xpose.msra.mxu0 0.0
      %1268 = vmatprep.subr.mxu0 0.0
      %1269 = vmatpush1.xpose.msra.mxu0 0.0
      %1270 = vmatprep.subr.mxu0 0.0
      %1271 = vmatpush1.xpose.msra.mxu0 0.0
      %1272 = vmatprep.subr.mxu0 0.0
      %1273 = vmatpush1.xpose.msra.mxu0 0.0
      %1274 = vmatprep.subr.mxu0 0.0
      %1275 = vmatpush1.xpose.msra.mxu0 0.0
      %1276 = vmatprep.subr.mxu0 0.0
      %1277 = vmatpush1.xpose.msra.mxu0 0.0
      %1278 = vmatprep.subr.mxu0 0.0
      %1279 = vmatpush1.xpose.msra.mxu0 0.0
      %1280 = vmatprep.subr.mxu0 0.0
      %1281 = vmatpush1.xpose.msra.mxu0 0.0
      %1282 = vmatprep.subr.mxu0 0.0
      %1283 = vmatpush1.xpose.msra.mxu0 0.0
      %1284 = vmatprep.subr.mxu0 0.0
      %1285 = vmatpush1.xpose.msra.mxu0 0.0
      %1286 = vmatprep.subr.mxu0 0.0
      %1287 = vmatpush1.xpose.msra.mxu0 0.0
      %1288 = vmatprep.subr.mxu0 0.0
      %1289 = vmatpush1.xpose.msra.mxu0 0.0
      %1290 = vmatprep.subr.mxu0 0.0
      %1291 = vmatpush1.xpose.msra.mxu0 0.0
      %1292 = vmatprep.subr.mxu0 0.0
      %1293 = vmatpush1.xpose.msra.mxu0 0.0
      %1294 = vmatprep.mubr.f32.mxu0 0.0
      %1295 = vmatmul.mubr.f32.gmra.mrb[0].mxu0 %v1222
      %v1296 = vpop.f32.mrb[0].mxu0
      %v1297 = vadd.f32 0.0, %v1296
      %v1298 = vpop.f32.mrb[0].mxu0
      %1299 = vmatprep.mubr.f32.mxu0 0.0
      %1300 = vmatmul.mubr.f32.gmra.mrb[0].mxu0 %v1224
      %v1301 = vpop.f32.mrb[0].mxu0
      %v1302 = vadd.f32 0.0, %v1301
      %v1303 = vpop.f32.mrb[0].mxu0
      %1304 = vdwg.mxu0
      %v1305 = vmul.f32 %v1297, 0.35355338
      %v1306 = vmul.f32 %v1302, 0.35355338
      %v1307 = vsel %vm1017, %v1305, -inf
      %1308 = vmax.xlane.f32.xlu0 %v1307
      %v1309 = vpop.xlane.xlu0 %1308
      %v1310 = vsel %vm1021, %v1306, -inf
      %1311 = vmax.xlane.f32.xlu0 %v1310
      %v1312 = vpop.xlane.xlu0 %1311
      %v1313 = vsub.f32 %v1305, %v1309
      %v1314 = vsub.f32 %v1306, %v1312
      %v1315 = vmul.f32 %v1313, 1.442695
      %v1316 = vpow.pop %v1315
      %v1317 = vmul.f32 %v1314, 1.442695
      %v1318 = vpow.pop %v1317
      %v1319 = vsel %vm1017, %v1316, 0.0
      %1320 = vadd.xlane.f32.xlu0 %v1319
      %v1321 = vpop.xlane.xlu0 %1320
      %v1322 = vsel %vm1021, %v1318, 0.0
      %1323 = vadd.xlane.f32.xlu0 %v1322
      %v1324 = vpop.xlane.xlu0 %1323
      %v1325 = vrcp.pop %v1321
      %v1326 = vrcp.pop %v1324
      %v1327 = vmul.f32 %v1316, %v1325
      %v1328 = vmul.f32 %v1318, %v1326
      %1329 = vrot.lane.b32.xlu0 %v909, 56
      %v1330 = vpop.permute.xlu0 %1329
      %1331 = vrot.lane.b32.xlu0 %v914, 56
      %v1332 = vpop.permute.xlu0 %1331
      %v1335 = vsel %vm1017, %v1327, 0
      %v1338 = vsel %vm1017, %v1328, 0
      %v1340 = vsel %vm1052, %v1332, 0
      %1342 = vmatprep.subr.mxu0 0.0
      %1343 = vmatpush1.msra.mxu0 %v1330
      %1344 = vmatprep.subr.mxu0 0.0
      %1345 = vmatpush1.msra.mxu0 %v1340
      %1346 = vmatprep.subr.mxu0 0.0
      %1347 = vmatpush1.msra.mxu0 0.0
      %1348 = vmatprep.subr.mxu0 0.0
      %1349 = vmatpush1.msra.mxu0 0.0
      %1350 = vmatprep.subr.mxu0 0.0
      %1351 = vmatpush1.msra.mxu0 0.0
      %1352 = vmatprep.subr.mxu0 0.0
      %1353 = vmatpush1.msra.mxu0 0.0
      %1354 = vmatprep.subr.mxu0 0.0
      %1355 = vmatpush1.msra.mxu0 0.0
      %1356 = vmatprep.subr.mxu0 0.0
      %1357 = vmatpush1.msra.mxu0 0.0
      %1358 = vmatprep.subr.mxu0 0.0
      %1359 = vmatpush1.msra.mxu0 0.0
      %1360 = vmatprep.subr.mxu0 0.0
      %1361 = vmatpush1.msra.mxu0 0.0
      %1362 = vmatprep.subr.mxu0 0.0
      %1363 = vmatpush1.msra.mxu0 0.0
      %1364 = vmatprep.subr.mxu0 0.0
      %1365 = vmatpush1.msra.mxu0 0.0
      %1366 = vmatprep.subr.mxu0 0.0
      %1367 = vmatpush1.msra.mxu0 0.0
      %1368 = vmatprep.subr.mxu0 0.0
      %1369 = vmatpush1.msra.mxu0 0.0
      %1370 = vmatprep.subr.mxu0 0.0
      %1371 = vmatpush1.msra.mxu0 0.0
      %1372 = vmatprep.subr.mxu0 0.0
      %1373 = vmatpush1.msra.mxu0 0.0
      %1374 = vmatprep.subr.mxu0 0.0
      %1375 = vmatpush1.msra.mxu0 0.0
      %1376 = vmatprep.subr.mxu0 0.0
      %1377 = vmatpush1.msra.mxu0 0.0
      %1378 = vmatprep.subr.mxu0 0.0
      %1379 = vmatpush1.msra.mxu0 0.0
      %1380 = vmatprep.subr.mxu0 0.0
      %1381 = vmatpush1.msra.mxu0 0.0
      %1382 = vmatprep.subr.mxu0 0.0
      %1383 = vmatpush1.msra.mxu0 0.0
      %1384 = vmatprep.subr.mxu0 0.0
      %1385 = vmatpush1.msra.mxu0 0.0
      %1386 = vmatprep.subr.mxu0 0.0
      %1387 = vmatpush1.msra.mxu0 0.0
      %1388 = vmatprep.subr.mxu0 0.0
      %1389 = vmatpush1.msra.mxu0 0.0
      %1390 = vmatprep.subr.mxu0 0.0
      %1391 = vmatpush1.msra.mxu0 0.0
      %1392 = vmatprep.subr.mxu0 0.0
      %1393 = vmatpush1.msra.mxu0 0.0
      %1394 = vmatprep.subr.mxu0 0.0
      %1395 = vmatpush1.msra.mxu0 0.0
      %1396 = vmatprep.subr.mxu0 0.0
      %1397 = vmatpush1.msra.mxu0 0.0
      %1398 = vmatprep.subr.mxu0 0.0
      %1399 = vmatpush1.msra.mxu0 0.0
      %1400 = vmatprep.subr.mxu0 0.0
      %1401 = vmatpush1.msra.mxu0 0.0
      %1402 = vmatprep.subr.mxu0 0.0
      %1403 = vmatpush1.msra.mxu0 0.0
      %1404 = vmatprep.subr.mxu0 0.0
      %1405 = vmatpush1.msra.mxu0 0.0
      %1406 = vmatprep.mubr.f32.mxu0 0.0
      %1407 = vmatmul.mubr.f32.gmra.mrb[0].mxu0 %v1335
      %v1408 = vpop.f32.mrb[0].mxu0
      %v1409 = vadd.f32 0.0, %v1408
      %v1410 = vpop.f32.mrb[0].mxu0
      %1411 = vmatprep.mubr.f32.mxu0 0.0
      %1412 = vmatmul.mubr.f32.gmra.mrb[0].mxu0 %v1338
      %v1413 = vpop.f32.mrb[0].mxu0
      %v1414 = vadd.f32 0.0, %v1413
      %v1415 = vpop.f32.mrb[0].mxu0
      %1416 = vdwg.mxu0
      %v1417 = vld [vmem:[%s8 + $0x8] sm:$0xff]
      %v1419 = vsel %vm931, %v1409, 0
      %v1422 = vsel %vm931, %v1414, 0
      %1424 = vmatprep.subr.mxu0 0.0
      %1425 = vmatpush1.msra.mxu0 %v1417
      %1426 = vmatprep.subr.mxu0 0.0
      %1427 = vmatpush1.msra.mxu0 0.0
      %1428 = vmatprep.subr.mxu0 0.0
      %1429 = vmatpush1.msra.mxu0 0.0
      %1430 = vmatprep.subr.mxu0 0.0
      %1431 = vmatpush1.msra.mxu0 0.0
      %1432 = vmatprep.subr.mxu0 0.0
      %1433 = vmatpush1.msra.mxu0 0.0
      %1434 = vmatprep.subr.mxu0 0.0
      %1435 = vmatpush1.msra.mxu0 0.0
      %1436 = vmatprep.subr.mxu0 0.0
      %1437 = vmatpush1.msra.mxu0 0.0
      %1438 = vmatprep.subr.mxu0 0.0
      %1439 = vmatpush1.msra.mxu0 0.0
      %1440 = vmatprep.subr.mxu0 0.0
      %1441 = vmatpush1.msra.mxu0 0.0
      %1442 = vmatprep.subr.mxu0 0.0
      %1443 = vmatpush1.msra.mxu0 0.0
      %1444 = vmatprep.subr.mxu0 0.0
      %1445 = vmatpush1.msra.mxu0 0.0
      %1446 = vmatprep.subr.mxu0 0.0
      %1447 = vmatpush1.msra.mxu0 0.0
      %1448 = vmatprep.subr.mxu0 0.0
      %1449 = vmatpush1.msra.mxu0 0.0
      %1450 = vmatprep.subr.mxu0 0.0
      %1451 = vmatpush1.msra.mxu0 0.0
      %1452 = vmatprep.subr.mxu0 0.0
      %1453 = vmatpush1.msra.mxu0 0.0
      %1454 = vmatprep.subr.mxu0 0.0
      %1455 = vmatpush1.msra.mxu0 0.0
      %1456 = vmatprep.subr.mxu0 0.0
      %1457 = vmatpush1.msra.mxu0 0.0
      %1458 = vmatprep.subr.mxu0 0.0
      %1459 = vmatpush1.msra.mxu0 0.0
      %1460 = vmatprep.subr.mxu0 0.0
      %1461 = vmatpush1.msra.mxu0 0.0
      %1462 = vmatprep.subr.mxu0 0.0
      %1463 = vmatpush1.msra.mxu0 0.0
      %1464 = vmatprep.subr.mxu0 0.0
      %1465 = vmatpush1.msra.mxu0 0.0
      %1466 = vmatprep.subr.mxu0 0.0
      %1467 = vmatpush1.msra.mxu0 0.0
      %1468 = vmatprep.subr.mxu0 0.0
      %1469 = vmatpush1.msra.mxu0 0.0
      %1470 = vmatprep.subr.mxu0 0.0
      %1471 = vmatpush1.msra.mxu0 0.0
      %1472 = vmatprep.subr.mxu0 0.0
      %1473 = vmatpush1.msra.mxu0 0.0
      %1474 = vmatprep.subr.mxu0 0.0
      %1475 = vmatpush1.msra.mxu0 0.0
      %1476 = vmatprep.subr.mxu0 0.0
      %1477 = vmatpush1.msra.mxu0 0.0
      %1478 = vmatprep.subr.mxu0 0.0
      %1479 = vmatpush1.msra.mxu0 0.0
      %1480 = vmatprep.subr.mxu0 0.0
      %1481 = vmatpush1.msra.mxu0 0.0
      %1482 = vmatprep.subr.mxu0 0.0
      %1483 = vmatpush1.msra.mxu0 0.0
      %1484 = vmatprep.subr.mxu0 0.0
      %1485 = vmatpush1.msra.mxu0 0.0
      %1486 = vmatprep.subr.mxu0 0.0
      %1487 = vmatpush1.msra.mxu0 0.0
      %1488 = vmatprep.mubr.f32.mxu0 0.0
      %1489 = vmatmul.mubr.f32.gmra.mrb[0].mxu0 %v1419
      %v1490 = vpop.f32.mrb[0].mxu0
      %v1491 = vadd.f32 0.0, %v1490
      %v1492 = vpop.f32.mrb[0].mxu0
      %1493 = vmatprep.mubr.f32.mxu0 0.0
      %1494 = vmatmul.mubr.f32.gmra.mrb[0].mxu0 %v1422
      %v1495 = vpop.f32.mrb[0].mxu0
      %v1496 = vadd.f32 0.0, %v1495
      %v1497 = vpop.f32.mrb[0].mxu0
      %1498 = vdwg.mxu0
      %v1499 = vadd.f32 %v1212, %v1491
      %v1500 = vadd.f32 %v1213, %v1496
      %1501 = vrot.lane.b32.xlu0 %v909, 112
      %v1502 = vpop.permute.xlu0 %1501
      %1503 = vrot.lane.b32.xlu0 %v914, 112
      %v1504 = vpop.permute.xlu0 %1503
      %1505 = vrot.lane.b32.xlu0 %v909, 80
      %v1506 = vpop.permute.xlu0 %1505
      %1507 = vrot.lane.b32.xlu0 %v914, 80
      %v1508 = vpop.permute.xlu0 %1507
      %v1509 = vsel %vm931, %v1502, 0
      %v1511 = vsel %vm931, %v1504, 0
      %v1513 = vsel %vm931, %v1506, 0
      %v1515 = vsel %vm931, %v1508, 0
      %1517 = vmatprep.subr.mxu0 0.0
      %1518 = vmatpush1.xpose.msra.mxu0 %v1513
      %1519 = vmatprep.subr.mxu0 0.0
      %1520 = vmatpush1.xpose.msra.mxu0 %v1515
      %1521 = vmatprep.subr.mxu0 0.0
      %1522 = vmatpush1.xpose.msra.mxu0 0.0
      %1523 = vmatprep.subr.mxu0 0.0
      %1524 = vmatpush1.xpose.msra.mxu0 0.0
      %1525 = vmatprep.subr.mxu0 0.0
      %1526 = vmatpush1.xpose.msra.mxu0 0.0
      %1527 = vmatprep.subr.mxu0 0.0
      %1528 = vmatpush1.xpose.msra.mxu0 0.0
      %1529 = vmatprep.subr.mxu0 0.0
      %1530 = vmatpush1.xpose.msra.mxu0 0.0
      %1531 = vmatprep.subr.mxu0 0.0
      %1532 = vmatpush1.xpose.msra.mxu0 0.0
      %1533 = vmatprep.subr.mxu0 0.0
      %1534 = vmatpush1.xpose.msra.mxu0 0.0
      %1535 = vmatprep.subr.mxu0 0.0
      %1536 = vmatpush1.xpose.msra.mxu0 0.0
      %1537 = vmatprep.subr.mxu0 0.0
      %1538 = vmatpush1.xpose.msra.mxu0 0.0
      %1539 = vmatprep.subr.mxu0 0.0
      %1540 = vmatpush1.xpose.msra.mxu0 0.0
      %1541 = vmatprep.subr.mxu0 0.0
      %1542 = vmatpush1.xpose.msra.mxu0 0.0
      %1543 = vmatprep.subr.mxu0 0.0
      %1544 = vmatpush1.xpose.msra.mxu0 0.0
      %1545 = vmatprep.subr.mxu0 0.0
      %1546 = vmatpush1.xpose.msra.mxu0 0.0
      %1547 = vmatprep.subr.mxu0 0.0
      %1548 = vmatpush1.xpose.msra.mxu0 0.0
      %1549 = vmatprep.subr.mxu0 0.0
      %1550 = vmatpush1.xpose.msra.mxu0 0.0
      %1551 = vmatprep.subr.mxu0 0.0
      %1552 = vmatpush1.xpose.msra.mxu0 0.0
      %1553 = vmatprep.subr.mxu0 0.0
      %1554 = vmatpush1.xpose.msra.mxu0 0.0
      %1555 = vmatprep.subr.mxu0 0.0
      %1556 = vmatpush1.xpose.msra.mxu0 0.0
      %1557 = vmatprep.subr.mxu0 0.0
      %1558 = vmatpush1.xpose.msra.mxu0 0.0
      %1559 = vmatprep.subr.mxu0 0.0
      %1560 = vmatpush1.xpose.msra.mxu0 0.0
      %1561 = vmatprep.subr.mxu0 0.0
      %1562 = vmatpush1.xpose.msra.mxu0 0.0
      %1563 = vmatprep.subr.mxu0 0.0
      %1564 = vmatpush1.xpose.msra.mxu0 0.0
      %1565 = vmatprep.subr.mxu0 0.0
      %1566 = vmatpush1.xpose.msra.mxu0 0.0
      %1567 = vmatprep.subr.mxu0 0.0
      %1568 = vmatpush1.xpose.msra.mxu0 0.0
      %1569 = vmatprep.subr.mxu0 0.0
      %1570 = vmatpush1.xpose.msra.mxu0 0.0
      %1571 = vmatprep.subr.mxu0 0.0
      %1572 = vmatpush1.xpose.msra.mxu0 0.0
      %1573 = vmatprep.subr.mxu0 0.0
      %1574 = vmatpush1.xpose.msra.mxu0 0.0
      %1575 = vmatprep.subr.mxu0 0.0
      %1576 = vmatpush1.xpose.msra.mxu0 0.0
      %1577 = vmatprep.subr.mxu0 0.0
      %1578 = vmatpush1.xpose.msra.mxu0 0.0
      %1579 = vmatprep.subr.mxu0 0.0
      %1580 = vmatpush1.xpose.msra.mxu0 0.0
      %1581 = vmatprep.mubr.f32.mxu0 0.0
      %1582 = vmatmul.mubr.f32.gmra.mrb[0].mxu0 %v1509
      %v1583 = vpop.f32.mrb[0].mxu0
      %v1584 = vadd.f32 0.0, %v1583
      %v1585 = vpop.f32.mrb[0].mxu0
      %1586 = vmatprep.mubr.f32.mxu0 0.0
      %1587 = vmatmul.mubr.f32.gmra.mrb[0].mxu0 %v1511
      %v1588 = vpop.f32.mrb[0].mxu0
      %v1589 = vadd.f32 0.0, %v1588
      %v1590 = vpop.f32.mrb[0].mxu0
      %1591 = vdwg.mxu0
      %v1592 = vmul.f32 %v1584, 0.35355338
      %v1593 = vmul.f32 %v1589, 0.35355338
      %v1594 = vsel %vm1017, %v1592, -inf
      %1595 = vmax.xlane.f32.xlu0 %v1594
      %v1596 = vpop.xlane.xlu0 %1595
      %v1597 = vsel %vm1021, %v1593, -inf
      %1598 = vmax.xlane.f32.xlu0 %v1597
      %v1599 = vpop.xlane.xlu0 %1598
      %v1600 = vsub.f32 %v1592, %v1596
      %v1601 = vsub.f32 %v1593, %v1599
      %v1602 = vmul.f32 %v1600, 1.442695
      %v1603 = vpow.pop %v1602
      %v1604 = vmul.f32 %v1601, 1.442695
      %v1605 = vpow.pop %v1604
      %v1606 = vsel %vm1017, %v1603, 0.0
      %1607 = vadd.xlane.f32.xlu0 %v1606
      %v1608 = vpop.xlane.xlu0 %1607
      %v1609 = vsel %vm1021, %v1605, 0.0
      %1610 = vadd.xlane.f32.xlu0 %v1609
      %v1611 = vpop.xlane.xlu0 %1610
      %v1612 = vrcp.pop %v1608
      %v1613 = vrcp.pop %v1611
      %v1614 = vmul.f32 %v1603, %v1612
      %v1615 = vmul.f32 %v1605, %v1613
      %1616 = vrot.lane.b32.xlu0 %v909, 48
      %v1617 = vpop.permute.xlu0 %1616
      %1618 = vrot.lane.b32.xlu0 %v914, 48
      %v1619 = vpop.permute.xlu0 %1618
      %v1622 = vsel %vm1017, %v1614, 0
      %v1625 = vsel %vm1017, %v1615, 0
      %v1627 = vsel %vm1052, %v1619, 0
      %1629 = vmatprep.subr.mxu0 0.0
      %1630 = vmatpush1.msra.mxu0 %v1617
      %1631 = vmatprep.subr.mxu0 0.0
      %1632 = vmatpush1.msra.mxu0 %v1627
      %1633 = vmatprep.subr.mxu0 0.0
      %1634 = vmatpush1.msra.mxu0 0.0
      %1635 = vmatprep.subr.mxu0 0.0
      %1636 = vmatpush1.msra.mxu0 0.0
      %1637 = vmatprep.subr.mxu0 0.0
      %1638 = vmatpush1.msra.mxu0 0.0
      %1639 = vmatprep.subr.mxu0 0.0
      %1640 = vmatpush1.msra.mxu0 0.0
      %1641 = vmatprep.subr.mxu0 0.0
      %1642 = vmatpush1.msra.mxu0 0.0
      %1643 = vmatprep.subr.mxu0 0.0
      %1644 = vmatpush1.msra.mxu0 0.0
      %1645 = vmatprep.subr.mxu0 0.0
      %1646 = vmatpush1.msra.mxu0 0.0
      %1647 = vmatprep.subr.mxu0 0.0
      %1648 = vmatpush1.msra.mxu0 0.0
      %1649 = vmatprep.subr.mxu0 0.0
      %1650 = vmatpush1.msra.mxu0 0.0
      %1651 = vmatprep.subr.mxu0 0.0
      %1652 = vmatpush1.msra.mxu0 0.0
      %1653 = vmatprep.subr.mxu0 0.0
      %1654 = vmatpush1.msra.mxu0 0.0
      %1655 = vmatprep.subr.mxu0 0.0
      %1656 = vmatpush1.msra.mxu0 0.0
      %1657 = vmatprep.subr.mxu0 0.0
      %1658 = vmatpush1.msra.mxu0 0.0
      %1659 = vmatprep.subr.mxu0 0.0
      %1660 = vmatpush1.msra.mxu0 0.0
      %1661 = vmatprep.subr.mxu0 0.0
      %1662 = vmatpush1.msra.mxu0 0.0
      %1663 = vmatprep.subr.mxu0 0.0
      %1664 = vmatpush1.msra.mxu0 0.0
      %1665 = vmatprep.subr.mxu0 0.0
      %1666 = vmatpush1.msra.mxu0 0.0
      %1667 = vmatprep.subr.mxu0 0.0
      %1668 = vmatpush1.msra.mxu0 0.0
      %1669 = vmatprep.subr.mxu0 0.0
      %1670 = vmatpush1.msra.mxu0 0.0
      %1671 = vmatprep.subr.mxu0 0.0
      %1672 = vmatpush1.msra.mxu0 0.0
      %1673 = vmatprep.subr.mxu0 0.0
      %1674 = vmatpush1.msra.mxu0 0.0
      %1675 = vmatprep.subr.mxu0 0.0
      %1676 = vmatpush1.msra.mxu0 0.0
      %1677 = vmatprep.subr.mxu0 0.0
      %1678 = vmatpush1.msra.mxu0 0.0
      %1679 = vmatprep.subr.mxu0 0.0
      %1680 = vmatpush1.msra.mxu0 0.0
      %1681 = vmatprep.subr.mxu0 0.0
      %1682 = vmatpush1.msra.mxu0 0.0
      %1683 = vmatprep.subr.mxu0 0.0
      %1684 = vmatpush1.msra.mxu0 0.0
      %1685 = vmatprep.subr.mxu0 0.0
      %1686 = vmatpush1.msra.mxu0 0.0
      %1687 = vmatprep.subr.mxu0 0.0
      %1688 = vmatpush1.msra.mxu0 0.0
      %1689 = vmatprep.subr.mxu0 0.0
      %1690 = vmatpush1.msra.mxu0 0.0
      %1691 = vmatprep.subr.mxu0 0.0
      %1692 = vmatpush1.msra.mxu0 0.0
      %1693 = vmatprep.mubr.f32.mxu0 0.0
      %1694 = vmatmul.mubr.f32.gmra.mrb[0].mxu0 %v1622
      %v1695 = vpop.f32.mrb[0].mxu0
      %v1696 = vadd.f32 0.0, %v1695
      %v1697 = vpop.f32.mrb[0].mxu0
      %1698 = vmatprep.mubr.f32.mxu0 0.0
      %1699 = vmatmul.mubr.f32.gmra.mrb[0].mxu0 %v1625
      %v1700 = vpop.f32.mrb[0].mxu0
      %v1701 = vadd.f32 0.0, %v1700
      %v1702 = vpop.f32.mrb[0].mxu0
      %1703 = vdwg.mxu0
      %v1704 = vld [vmem:[%s8 + $0x10] sm:$0xff]
      %v1706 = vsel %vm931, %v1696, 0
      %v1709 = vsel %vm931, %v1701, 0
      %1711 = vmatprep.subr.mxu0 0.0
      %1712 = vmatpush1.msra.mxu0 %v1704
      %1713 = vmatprep.subr.mxu0 0.0
      %1714 = vmatpush1.msra.mxu0 0.0
      %1715 = vmatprep.subr.mxu0 0.0
      %1716 = vmatpush1.msra.mxu0 0.0
      %1717 = vmatprep.subr.mxu0 0.0
      %1718 = vmatpush1.msra.mxu0 0.0
      %1719 = vmatprep.subr.mxu0 0.0
      %1720 = vmatpush1.msra.mxu0 0.0
      %1721 = vmatprep.subr.mxu0 0.0
      %1722 = vmatpush1.msra.mxu0 0.0
      %1723 = vmatprep.subr.mxu0 0.0
      %1724 = vmatpush1.msra.mxu0 0.0
      %1725 = vmatprep.subr.mxu0 0.0
      %1726 = vmatpush1.msra.mxu0 0.0
      %1727 = vmatprep.subr.mxu0 0.0
      %1728 = vmatpush1.msra.mxu0 0.0
      %1729 = vmatprep.subr.mxu0 0.0
      %1730 = vmatpush1.msra.mxu0 0.0
      %1731 = vmatprep.subr.mxu0 0.0
      %1732 = vmatpush1.msra.mxu0 0.0
      %1733 = vmatprep.subr.mxu0 0.0
      %1734 = vmatpush1.msra.mxu0 0.0
      %1735 = vmatprep.subr.mxu0 0.0
      %1736 = vmatpush1.msra.mxu0 0.0
      %1737 = vmatprep.subr.mxu0 0.0
      %1738 = vmatpush1.msra.mxu0 0.0
      %1739 = vmatprep.subr.mxu0 0.0
      %1740 = vmatpush1.msra.mxu0 0.0
      %1741 = vmatprep.subr.mxu0 0.0
      %1742 = vmatpush1.msra.mxu0 0.0
      %1743 = vmatprep.subr.mxu0 0.0
      %1744 = vmatpush1.msra.mxu0 0.0
      %1745 = vmatprep.subr.mxu0 0.0
      %1746 = vmatpush1.msra.mxu0 0.0
      %1747 = vmatprep.subr.mxu0 0.0
      %1748 = vmatpush1.msra.mxu0 0.0
      %1749 = vmatprep.subr.mxu0 0.0
      %1750 = vmatpush1.msra.mxu0 0.0
      %1751 = vmatprep.subr.mxu0 0.0
      %1752 = vmatpush1.msra.mxu0 0.0
      %1753 = vmatprep.subr.mxu0 0.0
      %1754 = vmatpush1.msra.mxu0 0.0
      %1755 = vmatprep.subr.mxu0 0.0
      %1756 = vmatpush1.msra.mxu0 0.0
      %1757 = vmatprep.subr.mxu0 0.0
      %1758 = vmatpush1.msra.mxu0 0.0
      %1759 = vmatprep.subr.mxu0 0.0
      %1760 = vmatpush1.msra.mxu0 0.0
      %1761 = vmatprep.subr.mxu0 0.0
      %1762 = vmatpush1.msra.mxu0 0.0
      %1763 = vmatprep.subr.mxu0 0.0
      %1764 = vmatpush1.msra.mxu0 0.0
      %1765 = vmatprep.subr.mxu0 0.0
      %1766 = vmatpush1.msra.mxu0 0.0
      %1767 = vmatprep.subr.mxu0 0.0
      %1768 = vmatpush1.msra.mxu0 0.0
      %1769 = vmatprep.subr.mxu0 0.0
      %1770 = vmatpush1.msra.mxu0 0.0
      %1771 = vmatprep.subr.mxu0 0.0
      %1772 = vmatpush1.msra.mxu0 0.0
      %1773 = vmatprep.subr.mxu0 0.0
      %1774 = vmatpush1.msra.mxu0 0.0
      %1775 = vmatprep.mubr.f32.mxu0 0.0
      %1776 = vmatmul.mubr.f32.gmra.mrb[0].mxu0 %v1706
      %v1777 = vpop.f32.mrb[0].mxu0
      %v1778 = vadd.f32 0.0, %v1777
      %v1779 = vpop.f32.mrb[0].mxu0
      %1780 = vmatprep.mubr.f32.mxu0 0.0
      %1781 = vmatmul.mubr.f32.gmra.mrb[0].mxu0 %v1709
      %v1782 = vpop.f32.mrb[0].mxu0
      %v1783 = vadd.f32 0.0, %v1782
      %v1784 = vpop.f32.mrb[0].mxu0
      %1785 = vdwg.mxu0
      %v1786 = vadd.f32 %v1499, %v1778
      %v1787 = vadd.f32 %v1500, %v1783
      %1788 = vrot.lane.b32.xlu0 %v909, 104
      %v1789 = vpop.permute.xlu0 %1788
      %1790 = vrot.lane.b32.xlu0 %v914, 104
      %v1791 = vpop.permute.xlu0 %1790
      %1792 = vrot.lane.b32.xlu0 %v909, 72
      %v1793 = vpop.permute.xlu0 %1792
      %1794 = vrot.lane.b32.xlu0 %v914, 72
      %v1795 = vpop.permute.xlu0 %1794
      %v1796 = vsel %vm931, %v1789, 0
      %v1798 = vsel %vm931, %v1791, 0
      %v1800 = vsel %vm931, %v1793, 0
      %v1802 = vsel %vm931, %v1795, 0
      %1804 = vmatprep.subr.mxu0 0.0
      %1805 = vmatpush1.xpose.msra.mxu0 %v1800
      %1806 = vmatprep.subr.mxu0 0.0
      %1807 = vmatpush1.xpose.msra.mxu0 %v1802
      %1808 = vmatprep.subr.mxu0 0.0
      %1809 = vmatpush1.xpose.msra.mxu0 0.0
      %1810 = vmatprep.subr.mxu0 0.0
      %1811 = vmatpush1.xpose.msra.mxu0 0.0
      %1812 = vmatprep.subr.mxu0 0.0
      %1813 = vmatpush1.xpose.msra.mxu0 0.0
      %1814 = vmatprep.subr.mxu0 0.0
      %1815 = vmatpush1.xpose.msra.mxu0 0.0
      %1816 = vmatprep.subr.mxu0 0.0
      %1817 = vmatpush1.xpose.msra.mxu0 0.0
      %1818 = vmatprep.subr.mxu0 0.0
      %1819 = vmatpush1.xpose.msra.mxu0 0.0
      %1820 = vmatprep.subr.mxu0 0.0
      %1821 = vmatpush1.xpose.msra.mxu0 0.0
      %1822 = vmatprep.subr.mxu0 0.0
      %1823 = vmatpush1.xpose.msra.mxu0 0.0
      %1824 = vmatprep.subr.mxu0 0.0
      %1825 = vmatpush1.xpose.msra.mxu0 0.0
      %1826 = vmatprep.subr.mxu0 0.0
      %1827 = vmatpush1.xpose.msra.mxu0 0.0
      %1828 = vmatprep.subr.mxu0 0.0
      %1829 = vmatpush1.xpose.msra.mxu0 0.0
      %1830 = vmatprep.subr.mxu0 0.0
      %1831 = vmatpush1.xpose.msra.mxu0 0.0
      %1832 = vmatprep.subr.mxu0 0.0
      %1833 = vmatpush1.xpose.msra.mxu0 0.0
      %1834 = vmatprep.subr.mxu0 0.0
      %1835 = vmatpush1.xpose.msra.mxu0 0.0
      %1836 = vmatprep.subr.mxu0 0.0
      %1837 = vmatpush1.xpose.msra.mxu0 0.0
      %1838 = vmatprep.subr.mxu0 0.0
      %1839 = vmatpush1.xpose.msra.mxu0 0.0
      %1840 = vmatprep.subr.mxu0 0.0
      %1841 = vmatpush1.xpose.msra.mxu0 0.0
      %1842 = vmatprep.subr.mxu0 0.0
      %1843 = vmatpush1.xpose.msra.mxu0 0.0
      %1844 = vmatprep.subr.mxu0 0.0
      %1845 = vmatpush1.xpose.msra.mxu0 0.0
      %1846 = vmatprep.subr.mxu0 0.0
      %1847 = vmatpush1.xpose.msra.mxu0 0.0
      %1848 = vmatprep.subr.mxu0 0.0
      %1849 = vmatpush1.xpose.msra.mxu0 0.0
      %1850 = vmatprep.subr.mxu0 0.0
      %1851 = vmatpush1.xpose.msra.mxu0 0.0
      %1852 = vmatprep.subr.mxu0 0.0
      %1853 = vmatpush1.xpose.msra.mxu0 0.0
      %1854 = vmatprep.subr.mxu0 0.0
      %1855 = vmatpush1.xpose.msra.mxu0 0.0
      %1856 = vmatprep.subr.mxu0 0.0
      %1857 = vmatpush1.xpose.msra.mxu0 0.0
      %1858 = vmatprep.subr.mxu0 0.0
      %1859 = vmatpush1.xpose.msra.mxu0 0.0
      %1860 = vmatprep.subr.mxu0 0.0
      %1861 = vmatpush1.xpose.msra.mxu0 0.0
      %1862 = vmatprep.subr.mxu0 0.0
      %1863 = vmatpush1.xpose.msra.mxu0 0.0
      %1864 = vmatprep.subr.mxu0 0.0
      %1865 = vmatpush1.xpose.msra.mxu0 0.0
      %1866 = vmatprep.subr.mxu0 0.0
      %1867 = vmatpush1.xpose.msra.mxu0 0.0
      %1868 = vmatprep.mubr.f32.mxu0 0.0
      %1869 = vmatmul.mubr.f32.gmra.mrb[0].mxu0 %v1796
      %v1870 = vpop.f32.mrb[0].mxu0
      %v1871 = vadd.f32 0.0, %v1870
      %v1872 = vpop.f32.mrb[0].mxu0
      %1873 = vmatprep.mubr.f32.mxu0 0.0
      %1874 = vmatmul.mubr.f32.gmra.mrb[0].mxu0 %v1798
      %v1875 = vpop.f32.mrb[0].mxu0
      %v1876 = vadd.f32 0.0, %v1875
      %v1877 = vpop.f32.mrb[0].mxu0
      %1878 = vdwg.mxu0
      %v1879 = vmul.f32 %v1871, 0.35355338
      %v1880 = vmul.f32 %v1876, 0.35355338
      %v1881 = vsel %vm1017, %v1879, -inf
      %1882 = vmax.xlane.f32.xlu0 %v1881
      %v1883 = vpop.xlane.xlu0 %1882
      %v1884 = vsel %vm1021, %v1880, -inf
      %1885 = vmax.xlane.f32.xlu0 %v1884
      %v1886 = vpop.xlane.xlu0 %1885
      %v1887 = vsub.f32 %v1879, %v1883
      %v1888 = vsub.f32 %v1880, %v1886
      %v1889 = vmul.f32 %v1887, 1.442695
      %v1890 = vpow.pop %v1889
      %v1891 = vmul.f32 %v1888, 1.442695
      %v1892 = vpow.pop %v1891
      %v1893 = vsel %vm1017, %v1890, 0.0
      %1894 = vadd.xlane.f32.xlu0 %v1893
      %v1895 = vpop.xlane.xlu0 %1894
      %v1896 = vsel %vm1021, %v1892, 0.0
      %1897 = vadd.xlane.f32.xlu0 %v1896
      %v1898 = vpop.xlane.xlu0 %1897
      %v1899 = vrcp.pop %v1895
      %v1900 = vrcp.pop %v1898
      %v1901 = vmul.f32 %v1890, %v1899
      %v1902 = vmul.f32 %v1892, %v1900
      %1903 = vrot.lane.b32.xlu0 %v909, 40
      %v1904 = vpop.permute.xlu0 %1903
      %1905 = vrot.lane.b32.xlu0 %v914, 40
      %v1906 = vpop.permute.xlu0 %1905
      %v1909 = vsel %vm1017, %v1901, 0
      %v1912 = vsel %vm1017, %v1902, 0
      %v1914 = vsel %vm1052, %v1906, 0
      %1916 = vmatprep.subr.mxu0 0.0
      %1917 = vmatpush1.msra.mxu0 %v1904
      %1918 = vmatprep.subr.mxu0 0.0
      %1919 = vmatpush1.msra.mxu0 %v1914
      %1920 = vmatprep.subr.mxu0 0.0
      %1921 = vmatpush1.msra.mxu0 0.0
      %1922 = vmatprep.subr.mxu0 0.0
      %1923 = vmatpush1.msra.mxu0 0.0
      %1924 = vmatprep.subr.mxu0 0.0
      %1925 = vmatpush1.msra.mxu0 0.0
      %1926 = vmatprep.subr.mxu0 0.0
      %1927 = vmatpush1.msra.mxu0 0.0
      %1928 = vmatprep.subr.mxu0 0.0
      %1929 = vmatpush1.msra.mxu0 0.0
      %1930 = vmatprep.subr.mxu0 0.0
      %1931 = vmatpush1.msra.mxu0 0.0
      %1932 = vmatprep.subr.mxu0 0.0
      %1933 = vmatpush1.msra.mxu0 0.0
      %1934 = vmatprep.subr.mxu0 0.0
      %1935 = vmatpush1.msra.mxu0 0.0
      %1936 = vmatprep.subr.mxu0 0.0
      %1937 = vmatpush1.msra.mxu0 0.0
      %1938 = vmatprep.subr.mxu0 0.0
      %1939 = vmatpush1.msra.mxu0 0.0
      %1940 = vmatprep.subr.mxu0 0.0
      %1941 = vmatpush1.msra.mxu0 0.0
      %1942 = vmatprep.subr.mxu0 0.0
      %1943 = vmatpush1.msra.mxu0 0.0
      %1944 = vmatprep.subr.mxu0 0.0
      %1945 = vmatpush1.msra.mxu0 0.0
      %1946 = vmatprep.subr.mxu0 0.0
      %1947 = vmatpush1.msra.mxu0 0.0
      %1948 = vmatprep.subr.mxu0 0.0
      %1949 = vmatpush1.msra.mxu0 0.0
      %1950 = vmatprep.subr.mxu0 0.0
      %1951 = vmatpush1.msra.mxu0 0.0
      %1952 = vmatprep.subr.mxu0 0.0
      %1953 = vmatpush1.msra.mxu0 0.0
      %1954 = vmatprep.subr.mxu0 0.0
      %1955 = vmatpush1.msra.mxu0 0.0
      %1956 = vmatprep.subr.mxu0 0.0
      %1957 = vmatpush1.msra.mxu0 0.0
      %1958 = vmatprep.subr.mxu0 0.0
      %1959 = vmatpush1.msra.mxu0 0.0
      %1960 = vmatprep.subr.mxu0 0.0
      %1961 = vmatpush1.msra.mxu0 0.0
      %1962 = vmatprep.subr.mxu0 0.0
      %1963 = vmatpush1.msra.mxu0 0.0
      %1964 = vmatprep.subr.mxu0 0.0
      %1965 = vmatpush1.msra.mxu0 0.0
      %1966 = vmatprep.subr.mxu0 0.0
      %1967 = vmatpush1.msra.mxu0 0.0
      %1968 = vmatprep.subr.mxu0 0.0
      %1969 = vmatpush1.msra.mxu0 0.0
      %1970 = vmatprep.subr.mxu0 0.0
      %1971 = vmatpush1.msra.mxu0 0.0
      %1972 = vmatprep.subr.mxu0 0.0
      %1973 = vmatpush1.msra.mxu0 0.0
      %1974 = vmatprep.subr.mxu0 0.0
      %1975 = vmatpush1.msra.mxu0 0.0
      %1976 = vmatprep.subr.mxu0 0.0
      %1977 = vmatpush1.msra.mxu0 0.0
      %1978 = vmatprep.subr.mxu0 0.0
      %1979 = vmatpush1.msra.mxu0 0.0
      %1980 = vmatprep.mubr.f32.mxu0 0.0
      %1981 = vmatmul.mubr.f32.gmra.mrb[0].mxu0 %v1909
      %v1982 = vpop.f32.mrb[0].mxu0
      %v1983 = vadd.f32 0.0, %v1982
      %v1984 = vpop.f32.mrb[0].mxu0
      %1985 = vmatprep.mubr.f32.mxu0 0.0
      %1986 = vmatmul.mubr.f32.gmra.mrb[0].mxu0 %v1912
      %v1987 = vpop.f32.mrb[0].mxu0
      %v1988 = vadd.f32 0.0, %v1987
      %v1989 = vpop.f32.mrb[0].mxu0
      %1990 = vdwg.mxu0
      %v1991 = vld [vmem:[%s8 + $0x18] sm:$0xff]
      %v1993 = vsel %vm931, %v1983, 0
      %v1996 = vsel %vm931, %v1988, 0
      %1998 = vmatprep.subr.mxu0 0.0
      %1999 = vmatpush1.msra.mxu0 %v1991
      %2000 = vmatprep.subr.mxu0 0.0
      %2001 = vmatpush1.msra.mxu0 0.0
      %2002 = vmatprep.subr.mxu0 0.0
      %2003 = vmatpush1.msra.mxu0 0.0
      %2004 = vmatprep.subr.mxu0 0.0
      %2005 = vmatpush1.msra.mxu0 0.0
      %2006 = vmatprep.subr.mxu0 0.0
      %2007 = vmatpush1.msra.mxu0 0.0
      %2008 = vmatprep.subr.mxu0 0.0
      %2009 = vmatpush1.msra.mxu0 0.0
      %2010 = vmatprep.subr.mxu0 0.0
      %2011 = vmatpush1.msra.mxu0 0.0
      %2012 = vmatprep.subr.mxu0 0.0
      %2013 = vmatpush1.msra.mxu0 0.0
      %2014 = vmatprep.subr.mxu0 0.0
      %2015 = vmatpush1.msra.mxu0 0.0
      %2016 = vmatprep.subr.mxu0 0.0
      %2017 = vmatpush1.msra.mxu0 0.0
      %2018 = vmatprep.subr.mxu0 0.0
      %2019 = vmatpush1.msra.mxu0 0.0
      %2020 = vmatprep.subr.mxu0 0.0
      %2021 = vmatpush1.msra.mxu0 0.0
      %2022 = vmatprep.subr.mxu0 0.0
      %2023 = vmatpush1.msra.mxu0 0.0
      %2024 = vmatprep.subr.mxu0 0.0
      %2025 = vmatpush1.msra.mxu0 0.0
      %2026 = vmatprep.subr.mxu0 0.0
      %2027 = vmatpush1.msra.mxu0 0.0
      %2028 = vmatprep.subr.mxu0 0.0
      %2029 = vmatpush1.msra.mxu0 0.0
      %2030 = vmatprep.subr.mxu0 0.0
      %2031 = vmatpush1.msra.mxu0 0.0
      %2032 = vmatprep.subr.mxu0 0.0
      %2033 = vmatpush1.msra.mxu0 0.0
      %2034 = vmatprep.subr.mxu0 0.0
      %2035 = vmatpush1.msra.mxu0 0.0
      %2036 = vmatprep.subr.mxu0 0.0
      %2037 = vmatpush1.msra.mxu0 0.0
      %2038 = vmatprep.subr.mxu0 0.0
      %2039 = vmatpush1.msra.mxu0 0.0
      %2040 = vmatprep.subr.mxu0 0.0
      %2041 = vmatpush1.msra.mxu0 0.0
      %2042 = vmatprep.subr.mxu0 0.0
      %2043 = vmatpush1.msra.mxu0 0.0
      %2044 = vmatprep.subr.mxu0 0.0
      %2045 = vmatpush1.msra.mxu0 0.0
      %2046 = vmatprep.subr.mxu0 0.0
      %2047 = vmatpush1.msra.mxu0 0.0
      %2048 = vmatprep.subr.mxu0 0.0
      %2049 = vmatpush1.msra.mxu0 0.0
      %2050 = vmatprep.subr.mxu0 0.0
      %2051 = vmatpush1.msra.mxu0 0.0
      %2052 = vmatprep.subr.mxu0 0.0
      %2053 = vmatpush1.msra.mxu0 0.0
      %2054 = vmatprep.subr.mxu0 0.0
      %2055 = vmatpush1.msra.mxu0 0.0
      %2056 = vmatprep.subr.mxu0 0.0
      %2057 = vmatpush1.msra.mxu0 0.0
      %2058 = vmatprep.subr.mxu0 0.0
      %2059 = vmatpush1.msra.mxu0 0.0
      %2060 = vmatprep.subr.mxu0 0.0
      %2061 = vmatpush1.msra.mxu0 0.0
      %2062 = vmatprep.mubr.f32.mxu0 0.0
      %2063 = vmatmul.mubr.f32.gmra.mrb[0].mxu0 %v1993
      %v2064 = vpop.f32.mrb[0].mxu0
      %v2065 = vadd.f32 0.0, %v2064
      %v2066 = vpop.f32.mrb[0].mxu0
      %2067 = vmatprep.mubr.f32.mxu0 0.0
      %2068 = vmatmul.mubr.f32.gmra.mrb[0].mxu0 %v1996
      %v2069 = vpop.f32.mrb[0].mxu0
      %v2070 = vadd.f32 0.0, %v2069
      %v2071 = vpop.f32.mrb[0].mxu0
      %2072 = vdwg.mxu0
      %v2073 = vadd.f32 %v1786, %v2065
      %v2074 = vadd.f32 %v1787, %v2070
      %v2075 = vadd.f32 %v776, %v2073
      %v2076 = vadd.f32 %v777, %v2074
      %v2077 = vld [vmem:[%s10] sm:$0x1]
      %v2078 = vld [vmem:[%s11] sm:$0x1]
      %v2079 = vsel %vm780, %v2075, 0.0
      %2080 = vadd.xlane.f32.xlu0 %v2079
      %v2081 = vpop.xlane.xlu0 %2080
      %v2082 = vsel %vm784, %v2076, 0.0
      %2083 = vadd.xlane.f32.xlu0 %v2082
      %v2084 = vpop.xlane.xlu0 %2083
      %v2085 = vmul.f32 %v2081, %v788
      %v2086 = vmul.f32 %v2084, %v788
      %v2087 = vsub.f32 %v2075, %v2085
      %v2088 = vsub.f32 %v2076, %v2086
      %v2089 = vmul.f32 %v2087, %v2087
      %v2090 = vmul.f32 %v2088, %v2088
      %v2091 = vsel %vm780, %v2089, 0.0
      %2092 = vadd.xlane.f32.xlu0 %v2091
      %v2093 = vpop.xlane.xlu0 %2092
      %v2094 = vsel %vm784, %v2090, 0.0
      %2095 = vadd.xlane.f32.xlu0 %v2094
      %v2096 = vpop.xlane.xlu0 %2095
      %v2097 = vmul.f32 %v2093, %v788
      %v2098 = vmul.f32 %v2096, %v788
      %v2099 = vadd.f32 %v2097, 1e-05
      %v2100 = vadd.f32 %v2098, 1e-05
      %v2101 = vrsqrt.pop %v2099
      %v2102 = vrsqrt.pop %v2100
      %v2103 = vmul.f32 %v2087, %v2101
      %v2104 = vmul.f32 %v2088, %v2102
      %v2106 = vlaneseq
      %v2107 = vshrl.u32 %v2106, 7
      %v2108 = vsub.s32 0, %v2107
      %v2109 = vrot.slane %v2077, %v2108
      %v2111 = vmul.f32 %v2103, %v2109
      %v2112 = vmul.f32 %v2104, %v2109
      %v2114 = vlaneseq
      %v2115 = vshrl.u32 %v2114, 7
      %v2116 = vsub.s32 0, %v2115
      %v2117 = vrot.slane %v2078, %v2116
      %v2119 = vadd.f32 %v2111, %v2117
      %v2120 = vadd.f32 %v2112, %v2117
      %v2121 = vld [vmem:[%s12] sm:$0xff]
      %v2122 = vld [vmem:[%s12 + $0x8] sm:$0xff]
      %v2123 = vld [vmem:[%s12 + $0x10] sm:$0xff]
      %v2124 = vld [vmem:[%s12 + $0x18] sm:$0xff]
      %v2125 = vld [vmem:[%s13] sm:$0x1]
      %v2127 = vlaneseq
      %v2128 = vshrl.u32 %v2127, 7
      %v2129 = vsub.s32 0, %v2128
      %v2130 = vrot.slane %v2125, %v2129
      %v2133 = vsel %vm780, %v2119, 0
      %v2136 = vsel %vm780, %v2120, 0
      %2138 = vmatprep.subr.mxu0 0.0
      %2139 = vmatpush1.msra.mxu0 %v2121
      %2140 = vmatprep.subr.mxu0 0.0
      %2141 = vmatpush1.msra.mxu0 %v2122
      %2142 = vmatprep.subr.mxu0 0.0
      %2143 = vmatpush1.msra.mxu0 %v2123
      %2144 = vmatprep.subr.mxu0 0.0
      %2145 = vmatpush1.msra.mxu0 %v2124
      %2146 = vmatprep.subr.mxu0 0.0
      %2147 = vmatpush1.msra.mxu0 0.0
      %2148 = vmatprep.subr.mxu0 0.0
      %2149 = vmatpush1.msra.mxu0 0.0
      %2150 = vmatprep.subr.mxu0 0.0
      %2151 = vmatpush1.msra.mxu0 0.0
      %2152 = vmatprep.subr.mxu0 0.0
      %2153 = vmatpush1.msra.mxu0 0.0
      %2154 = vmatprep.subr.mxu0 0.0
      %2155 = vmatpush1.msra.mxu0 0.0
      %2156 = vmatprep.subr.mxu0 0.0
      %2157 = vmatpush1.msra.mxu0 0.0
      %2158 = vmatprep.subr.mxu0 0.0
      %2159 = vmatpush1.msra.mxu0 0.0
      %2160 = vmatprep.subr.mxu0 0.0
      %2161 = vmatpush1.msra.mxu0 0.0
      %2162 = vmatprep.subr.mxu0 0.0
      %2163 = vmatpush1.msra.mxu0 0.0
      %2164 = vmatprep.subr.mxu0 0.0
      %2165 = vmatpush1.msra.mxu0 0.0
      %2166 = vmatprep.subr.mxu0 0.0
      %2167 = vmatpush1.msra.mxu0 0.0
      %2168 = vmatprep.subr.mxu0 0.0
      %2169 = vmatpush1.msra.mxu0 0.0
      %2170 = vmatprep.subr.mxu0 0.0
      %2171 = vmatpush1.msra.mxu0 0.0
      %2172 = vmatprep.subr.mxu0 0.0
      %2173 = vmatpush1.msra.mxu0 0.0
      %2174 = vmatprep.subr.mxu0 0.0
      %2175 = vmatpush1.msra.mxu0 0.0
      %2176 = vmatprep.subr.mxu0 0.0
      %2177 = vmatpush1.msra.mxu0 0.0
      %2178 = vmatprep.subr.mxu0 0.0
      %2179 = vmatpush1.msra.mxu0 0.0
      %2180 = vmatprep.subr.mxu0 0.0
      %2181 = vmatpush1.msra.mxu0 0.0
      %2182 = vmatprep.subr.mxu0 0.0
      %2183 = vmatpush1.msra.mxu0 0.0
      %2184 = vmatprep.subr.mxu0 0.0
      %2185 = vmatpush1.msra.mxu0 0.0
      %2186 = vmatprep.subr.mxu0 0.0
      %2187 = vmatpush1.msra.mxu0 0.0
      %2188 = vmatprep.subr.mxu0 0.0
      %2189 = vmatpush1.msra.mxu0 0.0
      %2190 = vmatprep.subr.mxu0 0.0
      %2191 = vmatpush1.msra.mxu0 0.0
      %2192 = vmatprep.subr.mxu0 0.0
      %2193 = vmatpush1.msra.mxu0 0.0
      %2194 = vmatprep.subr.mxu0 0.0
      %2195 = vmatpush1.msra.mxu0 0.0
      %2196 = vmatprep.subr.mxu0 0.0
      %2197 = vmatpush1.msra.mxu0 0.0
      %2198 = vmatprep.subr.mxu0 0.0
      %2199 = vmatpush1.msra.mxu0 0.0
      %2200 = vmatprep.subr.mxu0 0.0
      %2201 = vmatpush1.msra.mxu0 0.0
      %2202 = vmatprep.mubr.f32.mxu0 0.0
      %2203 = vmatmul.mubr.f32.gmra.mrb[0].mxu0 %v2133
      %v2204 = vpop.f32.mrb[0].mxu0
      %v2205 = vadd.f32 %v2130, %v2204
      %v2206 = vpop.f32.mrb[0].mxu0
      %2207 = vmatprep.mubr.f32.mxu0 0.0
      %2208 = vmatmul.mubr.f32.gmra.mrb[0].mxu0 %v2136
      %v2209 = vpop.f32.mrb[0].mxu0
      %v2210 = vadd.f32 %v2130, %v2209
      %v2211 = vpop.f32.mrb[0].mxu0
      %2212 = vdwg.mxu0
      %v2213 = vmul.f32 %v2205, %v2205
      %v2214 = vmul.f32 %v2210, %v2210
      %v2215 = vmul.f32 %v2205, %v2213
      %v2216 = vmul.f32 %v2210, %v2214
      %v2217 = vmul.f32 %v2215, 0.044715
      %v2218 = vmul.f32 %v2216, 0.044715
      %v2219 = vadd.f32 %v2205, %v2217
      %v2220 = vadd.f32 %v2210, %v2218
      %v2221 = vmul.f32 %v2219, 0.7978846
      %v2222 = vmul.f32 %v2220, 0.7978846
      %v2223 = vtanh.pop %v2221
      %v2224 = vtanh.pop %v2222
      %v2225 = vadd.f32 %v2223, 1.0
      %v2226 = vadd.f32 %v2224, 1.0
      %v2227 = vmul.f32 %v2225, 0.5
      %v2228 = vmul.f32 %v2226, 0.5
      %v2229 = vmul.f32 %v2205, %v2227
      %v2230 = vmul.f32 %v2210, %v2228
      %v2231 = vld [vmem:[%s14] sm:$0xff]
      %v2232 = vld [vmem:[%s14 + $0x8] sm:$0xff]
      %v2233 = vld [vmem:[%s14 + $0x10] sm:$0xff]
      %v2234 = vld [vmem:[%s14 + $0x18] sm:$0xff]
      %v2235 = vld [vmem:[%s14 + $0x20] sm:$0xff]
      %v2236 = vld [vmem:[%s14 + $0x28] sm:$0xff]
      %v2237 = vld [vmem:[%s14 + $0x30] sm:$0xff]
      %v2238 = vld [vmem:[%s14 + $0x38] sm:$0xff]
      %v2239 = vld [vmem:[%s15] sm:$0x1]
      %v2241 = vlaneseq
      %v2242 = vshrl.u32 %v2241, 7
      %v2243 = vsub.s32 0, %v2242
      %v2244 = vrot.slane %v2239, %v2243
      %vm2246 = vcmask 523264
      %v2248 = vsel %vm2246, %v2229, 0
      %v2251 = vsel %vm2246, %v2230, 0
      %2253 = vmatprep.subr.mxu0 0.0
      %2254 = vmatpush1.msra.mxu0 %v2231
      %2255 = vmatprep.subr.mxu0 0.0
      %2256 = vmatpush1.msra.mxu0 %v2232
      %2257 = vmatprep.subr.mxu0 0.0
      %2258 = vmatpush1.msra.mxu0 %v2233
      %2259 = vmatprep.subr.mxu0 0.0
      %2260 = vmatpush1.msra.mxu0 %v2234
      %2261 = vmatprep.subr.mxu0 0.0
      %2262 = vmatpush1.msra.mxu0 %v2235
      %2263 = vmatprep.subr.mxu0 0.0
      %2264 = vmatpush1.msra.mxu0 %v2236
      %2265 = vmatprep.subr.mxu0 0.0
      %2266 = vmatpush1.msra.mxu0 %v2237
      %2267 = vmatprep.subr.mxu0 0.0
      %2268 = vmatpush1.msra.mxu0 %v2238
      %2269 = vmatprep.subr.mxu0 0.0
      %2270 = vmatpush1.msra.mxu0 0.0
      %2271 = vmatprep.subr.mxu0 0.0
      %2272 = vmatpush1.msra.mxu0 0.0
      %2273 = vmatprep.subr.mxu0 0.0
      %2274 = vmatpush1.msra.mxu0 0.0
      %2275 = vmatprep.subr.mxu0 0.0
      %2276 = vmatpush1.msra.mxu0 0.0
      %2277 = vmatprep.subr.mxu0 0.0
      %2278 = vmatpush1.msra.mxu0 0.0
      %2279 = vmatprep.subr.mxu0 0.0
      %2280 = vmatpush1.msra.mxu0 0.0
      %2281 = vmatprep.subr.mxu0 0.0
      %2282 = vmatpush1.msra.mxu0 0.0
      %2283 = vmatprep.subr.mxu0 0.0
      %2284 = vmatpush1.msra.mxu0 0.0
      %2285 = vmatprep.subr.mxu0 0.0
      %2286 = vmatpush1.msra.mxu0 0.0
      %2287 = vmatprep.subr.mxu0 0.0
      %2288 = vmatpush1.msra.mxu0 0.0
      %2289 = vmatprep.subr.mxu0 0.0
      %2290 = vmatpush1.msra.mxu0 0.0
      %2291 = vmatprep.subr.mxu0 0.0
      %2292 = vmatpush1.msra.mxu0 0.0
      %2293 = vmatprep.subr.mxu0 0.0
      %2294 = vmatpush1.msra.mxu0 0.0
      %2295 = vmatprep.subr.mxu0 0.0
      %2296 = vmatpush1.msra.mxu0 0.0
      %2297 = vmatprep.subr.mxu0 0.0
      %2298 = vmatpush1.msra.mxu0 0.0
      %2299 = vmatprep.subr.mxu0 0.0
      %2300 = vmatpush1.msra.mxu0 0.0
      %2301 = vmatprep.subr.mxu0 0.0
      %2302 = vmatpush1.msra.mxu0 0.0
      %2303 = vmatprep.subr.mxu0 0.0
      %2304 = vmatpush1.msra.mxu0 0.0
      %2305 = vmatprep.subr.mxu0 0.0
      %2306 = vmatpush1.msra.mxu0 0.0
      %2307 = vmatprep.subr.mxu0 0.0
      %2308 = vmatpush1.msra.mxu0 0.0
      %2309 = vmatprep.subr.mxu0 0.0
      %2310 = vmatpush1.msra.mxu0 0.0
      %2311 = vmatprep.subr.mxu0 0.0
      %2312 = vmatpush1.msra.mxu0 0.0
      %2313 = vmatprep.subr.mxu0 0.0
      %2314 = vmatpush1.msra.mxu0 0.0
      %2315 = vmatprep.subr.mxu0 0.0
      %2316 = vmatpush1.msra.mxu0 0.0
      %2317 = vmatprep.mubr.f32.mxu0 0.0
      %2318 = vmatmul.mubr.f32.gmra.mrb[0].mxu0 %v2248
      %v2319 = vpop.f32.mrb[0].mxu0
      %v2320 = vadd.f32 %v2244, %v2319
      %v2321 = vpop.f32.mrb[0].mxu0
      %2322 = vmatprep.mubr.f32.mxu0 0.0
      %2323 = vmatmul.mubr.f32.gmra.mrb[0].mxu0 %v2251
      %v2324 = vpop.f32.mrb[0].mxu0
      %v2325 = vadd.f32 %v2244, %v2324
      %v2326 = vpop.f32.mrb[0].mxu0
      %2327 = vdwg.mxu0
      %v2328 = vadd.f32 %v2075, %v2320
      %v2329 = vadd.f32 %v2076, %v2325
      %s2330 = scalar_lea.vmem %s4, 1
      %v2331 = vld [vmem:[%s2330] sm:$0x1]
      %s2332 = scalar_lea.vmem %s5, 1
      %v2333 = vld [vmem:[%s2332] sm:$0x1]
      %v2334 = vsel %vm780, %v2328, 0.0
      %2335 = vadd.xlane.f32.xlu0 %v2334
      %v2336 = vpop.xlane.xlu0 %2335
      %v2337 = vsel %vm784, %v2329, 0.0
      %2338 = vadd.xlane.f32.xlu0 %v2337
      %v2339 = vpop.xlane.xlu0 %2338
      %v2340 = vmul.f32 %v2336, %v788
      %v2341 = vmul.f32 %v2339, %v788
      %v2342 = vsub.f32 %v2328, %v2340
      %v2343 = vsub.f32 %v2329, %v2341
      %v2344 = vmul.f32 %v2342, %v2342
      %v2345 = vmul.f32 %v2343, %v2343
      %v2346 = vsel %vm780, %v2344, 0.0
      %2347 = vadd.xlane.f32.xlu0 %v2346
      %v2348 = vpop.xlane.xlu0 %2347
      %v2349 = vsel %vm784, %v2345, 0.0
      %2350 = vadd.xlane.f32.xlu0 %v2349
      %v2351 = vpop.xlane.xlu0 %2350
      %v2352 = vmul.f32 %v2348, %v788
      %v2353 = vmul.f32 %v2351, %v788
      %v2354 = vadd.f32 %v2352, 1e-05
      %v2355 = vadd.f32 %v2353, 1e-05
      %v2356 = vrsqrt.pop %v2354
      %v2357 = vrsqrt.pop %v2355
      %v2358 = vmul.f32 %v2342, %v2356
      %v2359 = vmul.f32 %v2343, %v2357
      %v2361 = vlaneseq
      %v2362 = vshrl.u32 %v2361, 7
      %v2363 = vsub.s32 0, %v2362
      %v2364 = vrot.slane %v2331, %v2363
      %v2366 = vmul.f32 %v2358, %v2364
      %v2367 = vmul.f32 %v2359, %v2364
      %v2369 = vlaneseq
      %v2370 = vshrl.u32 %v2369, 7
      %v2371 = vsub.s32 0, %v2370
      %v2372 = vrot.slane %v2333, %v2371
      %v2374 = vadd.f32 %v2366, %v2372
      %v2375 = vadd.f32 %v2367, %v2372
      %s2376 = scalar_lea.vmem %s6, 32
      %v2377 = vld [vmem:[%s2376] sm:$0xff]
      %v2378 = vld [vmem:[%s2376 + $0x8] sm:$0xff]
      %v2379 = vld [vmem:[%s2376 + $0x10] sm:$0xff]
      %v2380 = vld [vmem:[%s2376 + $0x18] sm:$0xff]
      %s2381 = scalar_lea.vmem %s7, 1
      %v2382 = vld [vmem:[%s2381] sm:$0x1]
      %v2384 = vlaneseq
      %v2385 = vshrl.u32 %v2384, 7
      %v2386 = vsub.s32 0, %v2385
      %v2387 = vrot.slane %v2382, %v2386
      %v2390 = vsel %vm780, %v2374, 0
      %v2393 = vsel %vm780, %v2375, 0
      %2395 = vmatprep.subr.mxu0 0.0
      %2396 = vmatpush1.msra.mxu0 %v2377
      %2397 = vmatprep.subr.mxu0 0.0
      %2398 = vmatpush1.msra.mxu0 %v2378
      %2399 = vmatprep.subr.mxu0 0.0
      %2400 = vmatpush1.msra.mxu0 %v2379
      %2401 = vmatprep.subr.mxu0 0.0
      %2402 = vmatpush1.msra.mxu0 %v2380
      %2403 = vmatprep.subr.mxu0 0.0
      %2404 = vmatpush1.msra.mxu0 0.0
      %2405 = vmatprep.subr.mxu0 0.0
      %2406 = vmatpush1.msra.mxu0 0.0
      %2407 = vmatprep.subr.mxu0 0.0
      %2408 = vmatpush1.msra.mxu0 0.0
      %2409 = vmatprep.subr.mxu0 0.0
      %2410 = vmatpush1.msra.mxu0 0.0
      %2411 = vmatprep.subr.mxu0 0.0
      %2412 = vmatpush1.msra.mxu0 0.0
      %2413 = vmatprep.subr.mxu0 0.0
      %2414 = vmatpush1.msra.mxu0 0.0
      %2415 = vmatprep.subr.mxu0 0.0
      %2416 = vmatpush1.msra.mxu0 0.0
      %2417 = vmatprep.subr.mxu0 0.0
      %2418 = vmatpush1.msra.mxu0 0.0
      %2419 = vmatprep.subr.mxu0 0.0
      %2420 = vmatpush1.msra.mxu0 0.0
      %2421 = vmatprep.subr.mxu0 0.0
      %2422 = vmatpush1.msra.mxu0 0.0
      %2423 = vmatprep.subr.mxu0 0.0
      %2424 = vmatpush1.msra.mxu0 0.0
      %2425 = vmatprep.subr.mxu0 0.0
      %2426 = vmatpush1.msra.mxu0 0.0
      %2427 = vmatprep.subr.mxu0 0.0
      %2428 = vmatpush1.msra.mxu0 0.0
      %2429 = vmatprep.subr.mxu0 0.0
      %2430 = vmatpush1.msra.mxu0 0.0
      %2431 = vmatprep.subr.mxu0 0.0
      %2432 = vmatpush1.msra.mxu0 0.0
      %2433 = vmatprep.subr.mxu0 0.0
      %2434 = vmatpush1.msra.mxu0 0.0
      %2435 = vmatprep.subr.mxu0 0.0
      %2436 = vmatpush1.msra.mxu0 0.0
      %2437 = vmatprep.subr.mxu0 0.0
      %2438 = vmatpush1.msra.mxu0 0.0
      %2439 = vmatprep.subr.mxu0 0.0
      %2440 = vmatpush1.msra.mxu0 0.0
      %2441 = vmatprep.subr.mxu0 0.0
      %2442 = vmatpush1.msra.mxu0 0.0
      %2443 = vmatprep.subr.mxu0 0.0
      %2444 = vmatpush1.msra.mxu0 0.0
      %2445 = vmatprep.subr.mxu0 0.0
      %2446 = vmatpush1.msra.mxu0 0.0
      %2447 = vmatprep.subr.mxu0 0.0
      %2448 = vmatpush1.msra.mxu0 0.0
      %2449 = vmatprep.subr.mxu0 0.0
      %2450 = vmatpush1.msra.mxu0 0.0
      %2451 = vmatprep.subr.mxu0 0.0
      %2452 = vmatpush1.msra.mxu0 0.0
      %2453 = vmatprep.subr.mxu0 0.0
      %2454 = vmatpush1.msra.mxu0 0.0
      %2455 = vmatprep.subr.mxu0 0.0
      %2456 = vmatpush1.msra.mxu0 0.0
      %2457 = vmatprep.subr.mxu0 0.0
      %2458 = vmatpush1.msra.mxu0 0.0
      %2459 = vmatprep.mubr.f32.mxu0 0.0
      %2460 = vmatmul.mubr.f32.gmra.mrb[0].mxu0 %v2390
      %v2461 = vpop.f32.mrb[0].mxu0
      %v2462 = vadd.f32 %v2387, %v2461
      %v2463 = vpop.f32.mrb[0].mxu0
      %2464 = vmatprep.mubr.f32.mxu0 0.0
      %2465 = vmatmul.mubr.f32.gmra.mrb[0].mxu0 %v2393
      %v2466 = vpop.f32.mrb[0].mxu0
      %v2467 = vadd.f32 %v2387, %v2466
      %v2468 = vpop.f32.mrb[0].mxu0
      %2469 = vdwg.mxu0
      %s2470 = scalar_lea.vmem %s9, 1
      %v2471 = vld [vmem:[%s2470] sm:$0x1]
      %v2473 = vlaneseq
      %v2474 = vshrl.u32 %v2473, 7
      %v2475 = vsub.s32 0, %v2474
      %v2476 = vrot.slane %v2471, %v2475
      %v2478 = vadd.f32 %v2476, 0.0
      %2481 = vrot.lane.b32.xlu0 %v2462, 96
      %v2482 = vpop.permute.xlu0 %2481
      %2483 = vrot.lane.b32.xlu0 %v2467, 96
      %v2484 = vpop.permute.xlu0 %2483
      %v2485 = vsel %vm931, %v2462, 0
      %v2487 = vsel %vm931, %v2467, 0
      %v2489 = vsel %vm931, %v2482, 0
      %v2491 = vsel %vm931, %v2484, 0
      %2493 = vmatprep.subr.mxu0 0.0
      %2494 = vmatpush1.xpose.msra.mxu0 %v2489
      %2495 = vmatprep.subr.mxu0 0.0
      %2496 = vmatpush1.xpose.msra.mxu0 %v2491
      %2497 = vmatprep.subr.mxu0 0.0
      %2498 = vmatpush1.xpose.msra.mxu0 0.0
      %2499 = vmatprep.subr.mxu0 0.0
      %2500 = vmatpush1.xpose.msra.mxu0 0.0
      %2501 = vmatprep.subr.mxu0 0.0
      %2502 = vmatpush1.xpose.msra.mxu0 0.0
      %2503 = vmatprep.subr.mxu0 0.0
      %2504 = vmatpush1.xpose.msra.mxu0 0.0
      %2505 = vmatprep.subr.mxu0 0.0
      %2506 = vmatpush1.xpose.msra.mxu0 0.0
      %2507 = vmatprep.subr.mxu0 0.0
      %2508 = vmatpush1.xpose.msra.mxu0 0.0
      %2509 = vmatprep.subr.mxu0 0.0
      %2510 = vmatpush1.xpose.msra.mxu0 0.0
      %2511 = vmatprep.subr.mxu0 0.0
      %2512 = vmatpush1.xpose.msra.mxu0 0.0
      %2513 = vmatprep.subr.mxu0 0.0
      %2514 = vmatpush1.xpose.msra.mxu0 0.0
      %2515 = vmatprep.subr.mxu0 0.0
      %2516 = vmatpush1.xpose.msra.mxu0 0.0
      %2517 = vmatprep.subr.mxu0 0.0
      %2518 = vmatpush1.xpose.msra.mxu0 0.0
      %2519 = vmatprep.subr.mxu0 0.0
      %2520 = vmatpush1.xpose.msra.mxu0 0.0
      %2521 = vmatprep.subr.mxu0 0.0
      %2522 = vmatpush1.xpose.msra.mxu0 0.0
      %2523 = vmatprep.subr.mxu0 0.0
      %2524 = vmatpush1.xpose.msra.mxu0 0.0
      %2525 = vmatprep.subr.mxu0 0.0
      %2526 = vmatpush1.xpose.msra.mxu0 0.0
      %2527 = vmatprep.subr.mxu0 0.0
      %2528 = vmatpush1.xpose.msra.mxu0 0.0
      %2529 = vmatprep.subr.mxu0 0.0
      %2530 = vmatpush1.xpose.msra.mxu0 0.0
      %2531 = vmatprep.subr.mxu0 0.0
      %2532 = vmatpush1.xpose.msra.mxu0 0.0
      %2533 = vmatprep.subr.mxu0 0.0
      %2534 = vmatpush1.xpose.msra.mxu0 0.0
      %2535 = vmatprep.subr.mxu0 0.0
      %2536 = vmatpush1.xpose.msra.mxu0 0.0
      %2537 = vmatprep.subr.mxu0 0.0
      %2538 = vmatpush1.xpose.msra.mxu0 0.0
      %2539 = vmatprep.subr.mxu0 0.0
      %2540 = vmatpush1.xpose.msra.mxu0 0.0
      %2541 = vmatprep.subr.mxu0 0.0
      %2542 = vmatpush1.xpose.msra.mxu0 0.0
      %2543 = vmatprep.subr.mxu0 0.0
      %2544 = vmatpush1.xpose.msra.mxu0 0.0
      %2545 = vmatprep.subr.mxu0 0.0
      %2546 = vmatpush1.xpose.msra.mxu0 0.0
      %2547 = vmatprep.subr.mxu0 0.0
      %2548 = vmatpush1.xpose.msra.mxu0 0.0
      %2549 = vmatprep.subr.mxu0 0.0
      %2550 = vmatpush1.xpose.msra.mxu0 0.0
      %2551 = vmatprep.subr.mxu0 0.0
      %2552 = vmatpush1.xpose.msra.mxu0 0.0
      %2553 = vmatprep.subr.mxu0 0.0
      %2554 = vmatpush1.xpose.msra.mxu0 0.0
      %2555 = vmatprep.subr.mxu0 0.0
      %2556 = vmatpush1.xpose.msra.mxu0 0.0
      %2557 = vmatprep.mubr.f32.mxu0 0.0
      %2558 = vmatmul.mubr.f32.gmra.mrb[0].mxu0 %v2485
      %v2559 = vpop.f32.mrb[0].mxu0
      %v2560 = vadd.f32 0.0, %v2559
      %v2561 = vpop.f32.mrb[0].mxu0
      %2562 = vmatprep.mubr.f32.mxu0 0.0
      %2563 = vmatmul.mubr.f32.gmra.mrb[0].mxu0 %v2487
      %v2564 = vpop.f32.mrb[0].mxu0
      %v2565 = vadd.f32 0.0, %v2564
      %v2566 = vpop.f32.mrb[0].mxu0
      %2567 = vdwg.mxu0
      %v2568 = vmul.f32 %v2560, 0.35355338
      %v2569 = vmul.f32 %v2565, 0.35355338
      %v2570 = vsel %vm1017, %v2568, -inf
      %2571 = vmax.xlane.f32.xlu0 %v2570
      %v2572 = vpop.xlane.xlu0 %2571
      %v2573 = vsel %vm1021, %v2569, -inf
      %2574 = vmax.xlane.f32.xlu0 %v2573
      %v2575 = vpop.xlane.xlu0 %2574
      %v2576 = vsub.f32 %v2568, %v2572
      %v2577 = vsub.f32 %v2569, %v2575
      %v2578 = vmul.f32 %v2576, 1.442695
      %v2579 = vpow.pop %v2578
      %v2580 = vmul.f32 %v2577, 1.442695
      %v2581 = vpow.pop %v2580
      %v2582 = vsel %vm1017, %v2579, 0.0
      %2583 = vadd.xlane.f32.xlu0 %v2582
      %v2584 = vpop.xlane.xlu0 %2583
      %v2585 = vsel %vm1021, %v2581, 0.0
      %2586 = vadd.xlane.f32.xlu0 %v2585
      %v2587 = vpop.xlane.xlu0 %2586
      %v2588 = vrcp.pop %v2584
      %v2589 = vrcp.pop %v2587
      %v2590 = vmul.f32 %v2579, %v2588
      %v2591 = vmul.f32 %v2581, %v2589
      %2592 = vrot.lane.b32.xlu0 %v2462, 64
      %v2593 = vpop.permute.xlu0 %2592
      %2594 = vrot.lane.b32.xlu0 %v2467, 64
      %v2595 = vpop.permute.xlu0 %2594
      %v2598 = vsel %vm1017, %v2590, 0
      %v2601 = vsel %vm1017, %v2591, 0
      %v2603 = vsel %vm1052, %v2595, 0
      %2605 = vmatprep.subr.mxu0 0.0
      %2606 = vmatpush1.msra.mxu0 %v2593
      %2607 = vmatprep.subr.mxu0 0.0
      %2608 = vmatpush1.msra.mxu0 %v2603
      %2609 = vmatprep.subr.mxu0 0.0
      %2610 = vmatpush1.msra.mxu0 0.0
      %2611 = vmatprep.subr.mxu0 0.0
      %2612 = vmatpush1.msra.mxu0 0.0
      %2613 = vmatprep.subr.mxu0 0.0
      %2614 = vmatpush1.msra.mxu0 0.0
      %2615 = vmatprep.subr.mxu0 0.0
      %2616 = vmatpush1.msra.mxu0 0.0
      %2617 = vmatprep.subr.mxu0 0.0
      %2618 = vmatpush1.msra.mxu0 0.0
      %2619 = vmatprep.subr.mxu0 0.0
      %2620 = vmatpush1.msra.mxu0 0.0
      %2621 = vmatprep.subr.mxu0 0.0
      %2622 = vmatpush1.msra.mxu0 0.0
      %2623 = vmatprep.subr.mxu0 0.0
      %2624 = vmatpush1.msra.mxu0 0.0
      %2625 = vmatprep.subr.mxu0 0.0
      %2626 = vmatpush1.msra.mxu0 0.0
      %2627 = vmatprep.subr.mxu0 0.0
      %2628 = vmatpush1.msra.mxu0 0.0
      %2629 = vmatprep.subr.mxu0 0.0
      %2630 = vmatpush1.msra.mxu0 0.0
      %2631 = vmatprep.subr.mxu0 0.0
      %2632 = vmatpush1.msra.mxu0 0.0
      %2633 = vmatprep.subr.mxu0 0.0
      %2634 = vmatpush1.msra.mxu0 0.0
      %2635 = vmatprep.subr.mxu0 0.0
      %2636 = vmatpush1.msra.mxu0 0.0
      %2637 = vmatprep.subr.mxu0 0.0
      %2638 = vmatpush1.msra.mxu0 0.0
      %2639 = vmatprep.subr.mxu0 0.0
      %2640 = vmatpush1.msra.mxu0 0.0
      %2641 = vmatprep.subr.mxu0 0.0
      %2642 = vmatpush1.msra.mxu0 0.0
      %2643 = vmatprep.subr.mxu0 0.0
      %2644 = vmatpush1.msra.mxu0 0.0
      %2645 = vmatprep.subr.mxu0 0.0
      %2646 = vmatpush1.msra.mxu0 0.0
      %2647 = vmatprep.subr.mxu0 0.0
      %2648 = vmatpush1.msra.mxu0 0.0
      %2649 = vmatprep.subr.mxu0 0.0
      %2650 = vmatpush1.msra.mxu0 0.0
      %2651 = vmatprep.subr.mxu0 0.0
      %2652 = vmatpush1.msra.mxu0 0.0
      %2653 = vmatprep.subr.mxu0 0.0
      %2654 = vmatpush1.msra.mxu0 0.0
      %2655 = vmatprep.subr.mxu0 0.0
      %2656 = vmatpush1.msra.mxu0 0.0
      %2657 = vmatprep.subr.mxu0 0.0
      %2658 = vmatpush1.msra.mxu0 0.0
      %2659 = vmatprep.subr.mxu0 0.0
      %2660 = vmatpush1.msra.mxu0 0.0
      %2661 = vmatprep.subr.mxu0 0.0
      %2662 = vmatpush1.msra.mxu0 0.0
      %2663 = vmatprep.subr.mxu0 0.0
      %2664 = vmatpush1.msra.mxu0 0.0
      %2665 = vmatprep.subr.mxu0 0.0
      %2666 = vmatpush1.msra.mxu0 0.0
      %2667 = vmatprep.subr.mxu0 0.0
      %2668 = vmatpush1.msra.mxu0 0.0
      %2669 = vmatprep.mubr.f32.mxu0 0.0
      %2670 = vmatmul.mubr.f32.gmra.mrb[0].mxu0 %v2598
      %v2671 = vpop.f32.mrb[0].mxu0
      %v2672 = vadd.f32 0.0, %v2671
      %v2673 = vpop.f32.mrb[0].mxu0
      %2674 = vmatprep.mubr.f32.mxu0 0.0
      %2675 = vmatmul.mubr.f32.gmra.mrb[0].mxu0 %v2601
      %v2676 = vpop.f32.mrb[0].mxu0
      %v2677 = vadd.f32 0.0, %v2676
      %v2678 = vpop.f32.mrb[0].mxu0
      %2679 = vdwg.mxu0
      %s2680 = scalar_lea.vmem %s8, 32
      %v2681 = vld [vmem:[%s2680] sm:$0xff]
      %v2683 = vsel %vm931, %v2672, 0
      %v2686 = vsel %vm931, %v2677, 0
      %2688 = vmatprep.subr.mxu0 0.0
      %2689 = vmatpush1.msra.mxu0 %v2681
      %2690 = vmatprep.subr.mxu0 0.0
      %2691 = vmatpush1.msra.mxu0 0.0
      %2692 = vmatprep.subr.mxu0 0.0
      %2693 = vmatpush1.msra.mxu0 0.0
      %2694 = vmatprep.subr.mxu0 0.0
      %2695 = vmatpush1.msra.mxu0 0.0
      %2696 = vmatprep.subr.mxu0 0.0
      %2697 = vmatpush1.msra.mxu0 0.0
      %2698 = vmatprep.subr.mxu0 0.0
      %2699 = vmatpush1.msra.mxu0 0.0
      %2700 = vmatprep.subr.mxu0 0.0
      %2701 = vmatpush1.msra.mxu0 0.0
      %2702 = vmatprep.subr.mxu0 0.0
      %2703 = vmatpush1.msra.mxu0 0.0
      %2704 = vmatprep.subr.mxu0 0.0
      %2705 = vmatpush1.msra.mxu0 0.0
      %2706 = vmatprep.subr.mxu0 0.0
      %2707 = vmatpush1.msra.mxu0 0.0
      %2708 = vmatprep.subr.mxu0 0.0
      %2709 = vmatpush1.msra.mxu0 0.0
      %2710 = vmatprep.subr.mxu0 0.0
      %2711 = vmatpush1.msra.mxu0 0.0
      %2712 = vmatprep.subr.mxu0 0.0
      %2713 = vmatpush1.msra.mxu0 0.0
      %2714 = vmatprep.subr.mxu0 0.0
      %2715 = vmatpush1.msra.mxu0 0.0
      %2716 = vmatprep.subr.mxu0 0.0
      %2717 = vmatpush1.msra.mxu0 0.0
      %2718 = vmatprep.subr.mxu0 0.0
      %2719 = vmatpush1.msra.mxu0 0.0
      %2720 = vmatprep.subr.mxu0 0.0
      %2721 = vmatpush1.msra.mxu0 0.0
      %2722 = vmatprep.subr.mxu0 0.0
      %2723 = vmatpush1.msra.mxu0 0.0
      %2724 = vmatprep.subr.mxu0 0.0
      %2725 = vmatpush1.msra.mxu0 0.0
      %2726 = vmatprep.subr.mxu0 0.0
      %2727 = vmatpush1.msra.mxu0 0.0
      %2728 = vmatprep.subr.mxu0 0.0
      %2729 = vmatpush1.msra.mxu0 0.0
      %2730 = vmatprep.subr.mxu0 0.0
      %2731 = vmatpush1.msra.mxu0 0.0
      %2732 = vmatprep.subr.mxu0 0.0
      %2733 = vmatpush1.msra.mxu0 0.0
      %2734 = vmatprep.subr.mxu0 0.0
      %2735 = vmatpush1.msra.mxu0 0.0
      %2736 = vmatprep.subr.mxu0 0.0
      %2737 = vmatpush1.msra.mxu0 0.0
      %2738 = vmatprep.subr.mxu0 0.0
      %2739 = vmatpush1.msra.mxu0 0.0
      %2740 = vmatprep.subr.mxu0 0.0
      %2741 = vmatpush1.msra.mxu0 0.0
      %2742 = vmatprep.subr.mxu0 0.0
      %2743 = vmatpush1.msra.mxu0 0.0
      %2744 = vmatprep.subr.mxu0 0.0
      %2745 = vmatpush1.msra.mxu0 0.0
      %2746 = vmatprep.subr.mxu0 0.0
      %2747 = vmatpush1.msra.mxu0 0.0
      %2748 = vmatprep.subr.mxu0 0.0
      %2749 = vmatpush1.msra.mxu0 0.0
      %2750 = vmatprep.subr.mxu0 0.0
      %2751 = vmatpush1.msra.mxu0 0.0
      %2752 = vmatprep.mubr.f32.mxu0 0.0
      %2753 = vmatmul.mubr.f32.gmra.mrb[0].mxu0 %v2683
      %v2754 = vpop.f32.mrb[0].mxu0
      %v2755 = vadd.f32 0.0, %v2754
      %v2756 = vpop.f32.mrb[0].mxu0
      %2757 = vmatprep.mubr.f32.mxu0 0.0
      %2758 = vmatmul.mubr.f32.gmra.mrb[0].mxu0 %v2686
      %v2759 = vpop.f32.mrb[0].mxu0
      %v2760 = vadd.f32 0.0, %v2759
      %v2761 = vpop.f32.mrb[0].mxu0
      %2762 = vdwg.mxu0
      %v2763 = vadd.f32 %v2478, %v2755
      %v2764 = vadd.f32 %v2478, %v2760
      %2765 = vrot.lane.b32.xlu0 %v2462, 120
      %v2766 = vpop.permute.xlu0 %2765
      %2767 = vrot.lane.b32.xlu0 %v2467, 120
      %v2768 = vpop.permute.xlu0 %2767
      %2769 = vrot.lane.b32.xlu0 %v2462, 88
      %v2770 = vpop.permute.xlu0 %2769
      %2771 = vrot.lane.b32.xlu0 %v2467, 88
      %v2772 = vpop.permute.xlu0 %2771
      %v2773 = vsel %vm931, %v2766, 0
      %v2775 = vsel %vm931, %v2768, 0
      %v2777 = vsel %vm931, %v2770, 0
      %v2779 = vsel %vm931, %v2772, 0
      %2781 = vmatprep.subr.mxu0 0.0
      %2782 = vmatpush1.xpose.msra.mxu0 %v2777
      %2783 = vmatprep.subr.mxu0 0.0
      %2784 = vmatpush1.xpose.msra.mxu0 %v2779
      %2785 = vmatprep.subr.mxu0 0.0
      %2786 = vmatpush1.xpose.msra.mxu0 0.0
      %2787 = vmatprep.subr.mxu0 0.0
      %2788 = vmatpush1.xpose.msra.mxu0 0.0
      %2789 = vmatprep.subr.mxu0 0.0
      %2790 = vmatpush1.xpose.msra.mxu0 0.0
      %2791 = vmatprep.subr.mxu0 0.0
      %2792 = vmatpush1.xpose.msra.mxu0 0.0
      %2793 = vmatprep.subr.mxu0 0.0
      %2794 = vmatpush1.xpose.msra.mxu0 0.0
      %2795 = vmatprep.subr.mxu0 0.0
      %2796 = vmatpush1.xpose.msra.mxu0 0.0
      %2797 = vmatprep.subr.mxu0 0.0
      %2798 = vmatpush1.xpose.msra.mxu0 0.0
      %2799 = vmatprep.subr.mxu0 0.0
      %2800 = vmatpush1.xpose.msra.mxu0 0.0
      %2801 = vmatprep.subr.mxu0 0.0
      %2802 = vmatpush1.xpose.msra.mxu0 0.0
      %2803 = vmatprep.subr.mxu0 0.0
      %2804 = vmatpush1.xpose.msra.mxu0 0.0
      %2805 = vmatprep.subr.mxu0 0.0
      %2806 = vmatpush1.xpose.msra.mxu0 0.0
      %2807 = vmatprep.subr.mxu0 0.0
      %2808 = vmatpush1.xpose.msra.mxu0 0.0
      %2809 = vmatprep.subr.mxu0 0.0
      %2810 = vmatpush1.xpose.msra.mxu0 0.0
      %2811 = vmatprep.subr.mxu0 0.0
      %2812 = vmatpush1.xpose.msra.mxu0 0.0
      %2813 = vmatprep.subr.mxu0 0.0
      %2814 = vmatpush1.xpose.msra.mxu0 0.0
      %2815 = vmatprep.subr.mxu0 0.0
      %2816 = vmatpush1.xpose.msra.mxu0 0.0
      %2817 = vmatprep.subr.mxu0 0.0
      %2818 = vmatpush1.xpose.msra.mxu0 0.0
      %2819 = vmatprep.subr.mxu0 0.0
      %2820 = vmatpush1.xpose.msra.mxu0 0.0
      %2821 = vmatprep.subr.mxu0 0.0
      %2822 = vmatpush1.xpose.msra.mxu0 0.0
      %2823 = vmatprep.subr.mxu0 0.0
      %2824 = vmatpush1.xpose.msra.mxu0 0.0
      %2825 = vmatprep.subr.mxu0 0.0
      %2826 = vmatpush1.xpose.msra.mxu0 0.0
      %2827 = vmatprep.subr.mxu0 0.0
      %2828 = vmatpush1.xpose.msra.mxu0 0.0
      %2829 = vmatprep.subr.mxu0 0.0
      %2830 = vmatpush1.xpose.msra.mxu0 0.0
      %2831 = vmatprep.subr.mxu0 0.0
      %2832 = vmatpush1.xpose.msra.mxu0 0.0
      %2833 = vmatprep.subr.mxu0 0.0
      %2834 = vmatpush1.xpose.msra.mxu0 0.0
      %2835 = vmatprep.subr.mxu0 0.0
      %2836 = vmatpush1.xpose.msra.mxu0 0.0
      %2837 = vmatprep.subr.mxu0 0.0
      %2838 = vmatpush1.xpose.msra.mxu0 0.0
      %2839 = vmatprep.subr.mxu0 0.0
      %2840 = vmatpush1.xpose.msra.mxu0 0.0
      %2841 = vmatprep.subr.mxu0 0.0
      %2842 = vmatpush1.xpose.msra.mxu0 0.0
      %2843 = vmatprep.subr.mxu0 0.0
      %2844 = vmatpush1.xpose.msra.mxu0 0.0
      %2845 = vmatprep.mubr.f32.mxu0 0.0
      %2846 = vmatmul.mubr.f32.gmra.mrb[0].mxu0 %v2773
      %v2847 = vpop.f32.mrb[0].mxu0
      %v2848 = vadd.f32 0.0, %v2847
      %v2849 = vpop.f32.mrb[0].mxu0
      %2850 = vmatprep.mubr.f32.mxu0 0.0
      %2851 = vmatmul.mubr.f32.gmra.mrb[0].mxu0 %v2775
      %v2852 = vpop.f32.mrb[0].mxu0
      %v2853 = vadd.f32 0.0, %v2852
      %v2854 = vpop.f32.mrb[0].mxu0
      %2855 = vdwg.mxu0
      %v2856 = vmul.f32 %v2848, 0.35355338
      %v2857 = vmul.f32 %v2853, 0.35355338
      %v2858 = vsel %vm1017, %v2856, -inf
      %2859 = vmax.xlane.f32.xlu0 %v2858
      %v2860 = vpop.xlane.xlu0 %2859
      %v2861 = vsel %vm1021, %v2857, -inf
      %2862 = vmax.xlane.f32.xlu0 %v2861
      %v2863 = vpop.xlane.xlu0 %2862
      %v2864 = vsub.f32 %v2856, %v2860
      %v2865 = vsub.f32 %v2857, %v2863
      %v2866 = vmul.f32 %v2864, 1.442695
      %v2867 = vpow.pop %v2866
      %v2868 = vmul.f32 %v2865, 1.442695
      %v2869 = vpow.pop %v2868
      %v2870 = vsel %vm1017, %v2867, 0.0
      %2871 = vadd.xlane.f32.xlu0 %v2870
      %v2872 = vpop.xlane.xlu0 %2871
      %v2873 = vsel %vm1021, %v2869, 0.0
      %2874 = vadd.xlane.f32.xlu0 %v2873
      %v2875 = vpop.xlane.xlu0 %2874
      %v2876 = vrcp.pop %v2872
      %v2877 = vrcp.pop %v2875
      %v2878 = vmul.f32 %v2867, %v2876
      %v2879 = vmul.f32 %v2869, %v2877
      %2880 = vrot.lane.b32.xlu0 %v2462, 56
      %v2881 = vpop.permute.xlu0 %2880
      %2882 = vrot.lane.b32.xlu0 %v2467, 56
      %v2883 = vpop.permute.xlu0 %2882
      %v2886 = vsel %vm1017, %v2878, 0
      %v2889 = vsel %vm1017, %v2879, 0
      %v2891 = vsel %vm1052, %v2883, 0
      %2893 = vmatprep.subr.mxu0 0.0
      %2894 = vmatpush1.msra.mxu0 %v2881
      %2895 = vmatprep.subr.mxu0 0.0
      %2896 = vmatpush1.msra.mxu0 %v2891
      %2897 = vmatprep.subr.mxu0 0.0
      %2898 = vmatpush1.msra.mxu0 0.0
      %2899 = vmatprep.subr.mxu0 0.0
      %2900 = vmatpush1.msra.mxu0 0.0
      %2901 = vmatprep.subr.mxu0 0.0
      %2902 = vmatpush1.msra.mxu0 0.0
      %2903 = vmatprep.subr.mxu0 0.0
      %2904 = vmatpush1.msra.mxu0 0.0
      %2905 = vmatprep.subr.mxu0 0.0
      %2906 = vmatpush1.msra.mxu0 0.0
      %2907 = vmatprep.subr.mxu0 0.0
      %2908 = vmatpush1.msra.mxu0 0.0
      %2909 = vmatprep.subr.mxu0 0.0
      %2910 = vmatpush1.msra.mxu0 0.0
      %2911 = vmatprep.subr.mxu0 0.0
      %2912 = vmatpush1.msra.mxu0 0.0
      %2913 = vmatprep.subr.mxu0 0.0
      %2914 = vmatpush1.msra.mxu0 0.0
      %2915 = vmatprep.subr.mxu0 0.0
      %2916 = vmatpush1.msra.mxu0 0.0
      %2917 = vmatprep.subr.mxu0 0.0
      %2918 = vmatpush1.msra.mxu0 0.0
      %2919 = vmatprep.subr.mxu0 0.0
      %2920 = vmatpush1.msra.mxu0 0.0
      %2921 = vmatprep.subr.mxu0 0.0
      %2922 = vmatpush1.msra.mxu0 0.0
      %2923 = vmatprep.subr.mxu0 0.0
      %2924 = vmatpush1.msra.mxu0 0.0
      %2925 = vmatprep.subr.mxu0 0.0
      %2926 = vmatpush1.msra.mxu0 0.0
      %2927 = vmatprep.subr.mxu0 0.0
      %2928 = vmatpush1.msra.mxu0 0.0
      %2929 = vmatprep.subr.mxu0 0.0
      %2930 = vmatpush1.msra.mxu0 0.0
      %2931 = vmatprep.subr.mxu0 0.0
      %2932 = vmatpush1.msra.mxu0 0.0
      %2933 = vmatprep.subr.mxu0 0.0
      %2934 = vmatpush1.msra.mxu0 0.0
      %2935 = vmatprep.subr.mxu0 0.0
      %2936 = vmatpush1.msra.mxu0 0.0
      %2937 = vmatprep.subr.mxu0 0.0
      %2938 = vmatpush1.msra.mxu0 0.0
      %2939 = vmatprep.subr.mxu0 0.0
      %2940 = vmatpush1.msra.mxu0 0.0
      %2941 = vmatprep.subr.mxu0 0.0
      %2942 = vmatpush1.msra.mxu0 0.0
      %2943 = vmatprep.subr.mxu0 0.0
      %2944 = vmatpush1.msra.mxu0 0.0
      %2945 = vmatprep.subr.mxu0 0.0
      %2946 = vmatpush1.msra.mxu0 0.0
      %2947 = vmatprep.subr.mxu0 0.0
      %2948 = vmatpush1.msra.mxu0 0.0
      %2949 = vmatprep.subr.mxu0 0.0
      %2950 = vmatpush1.msra.mxu0 0.0
      %2951 = vmatprep.subr.mxu0 0.0
      %2952 = vmatpush1.msra.mxu0 0.0
      %2953 = vmatprep.subr.mxu0 0.0
      %2954 = vmatpush1.msra.mxu0 0.0
      %2955 = vmatprep.subr.mxu0 0.0
      %2956 = vmatpush1.msra.mxu0 0.0
      %2957 = vmatprep.mubr.f32.mxu0 0.0
      %2958 = vmatmul.mubr.f32.gmra.mrb[0].mxu0 %v2886
      %v2959 = vpop.f32.mrb[0].mxu0
      %v2960 = vadd.f32 0.0, %v2959
      %v2961 = vpop.f32.mrb[0].mxu0
      %2962 = vmatprep.mubr.f32.mxu0 0.0
      %2963 = vmatmul.mubr.f32.gmra.mrb[0].mxu0 %v2889
      %v2964 = vpop.f32.mrb[0].mxu0
      %v2965 = vadd.f32 0.0, %v2964
      %v2966 = vpop.f32.mrb[0].mxu0
      %2967 = vdwg.mxu0
      %v2968 = vld [vmem:[%s2680 + $0x8] sm:$0xff]
      %v2970 = vsel %vm931, %v2960, 0
      %v2973 = vsel %vm931, %v2965, 0
      %2975 = vmatprep.subr.mxu0 0.0
      %2976 = vmatpush1.msra.mxu0 %v2968
      %2977 = vmatprep.subr.mxu0 0.0
      %2978 = vmatpush1.msra.mxu0 0.0
      %2979 = vmatprep.subr.mxu0 0.0
      %2980 = vmatpush1.msra.mxu0 0.0
      %2981 = vmatprep.subr.mxu0 0.0
      %2982 = vmatpush1.msra.mxu0 0.0
      %2983 = vmatprep.subr.mxu0 0.0
      %2984 = vmatpush1.msra.mxu0 0.0
      %2985 = vmatprep.subr.mxu0 0.0
      %2986 = vmatpush1.msra.mxu0 0.0
      %2987 = vmatprep.subr.mxu0 0.0
      %2988 = vmatpush1.msra.mxu0 0.0
      %2989 = vmatprep.subr.mxu0 0.0
      %2990 = vmatpush1.msra.mxu0 0.0
      %2991 = vmatprep.subr.mxu0 0.0
      %2992 = vmatpush1.msra.mxu0 0.0
      %2993 = vmatprep.subr.mxu0 0.0
      %2994 = vmatpush1.msra.mxu0 0.0
      %2995 = vmatprep.subr.mxu0 0.0
      %2996 = vmatpush1.msra.mxu0 0.0
      %2997 = vmatprep.subr.mxu0 0.0
      %2998 = vmatpush1.msra.mxu0 0.0
      %2999 = vmatprep.subr.mxu0 0.0
      %3000 = vmatpush1.msra.mxu0 0.0
      %3001 = vmatprep.subr.mxu0 0.0
      %3002 = vmatpush1.msra.mxu0 0.0
      %3003 = vmatprep.subr.mxu0 0.0
      %3004 = vmatpush1.msra.mxu0 0.0
      %3005 = vmatprep.subr.mxu0 0.0
      %3006 = vmatpush1.msra.mxu0 0.0
      %3007 = vmatprep.subr.mxu0 0.0
      %3008 = vmatpush1.msra.mxu0 0.0
      %3009 = vmatprep.subr.mxu0 0.0
      %3010 = vmatpush1.msra.mxu0 0.0
      %3011 = vmatprep.subr.mxu0 0.0
      %3012 = vmatpush1.msra.mxu0 0.0
      %3013 = vmatprep.subr.mxu0 0.0
      %3014 = vmatpush1.msra.mxu0 0.0
      %3015 = vmatprep.subr.mxu0 0.0
      %3016 = vmatpush1.msra.mxu0 0.0
      %3017 = vmatprep.subr.mxu0 0.0
      %3018 = vmatpush1.msra.mxu0 0.0
      %3019 = vmatprep.subr.mxu0 0.0
      %3020 = vmatpush1.msra.mxu0 0.0
      %3021 = vmatprep.subr.mxu0 0.0
      %3022 = vmatpush1.msra.mxu0 0.0
      %3023 = vmatprep.subr.mxu0 0.0
      %3024 = vmatpush1.msra.mxu0 0.0
      %3025 = vmatprep.subr.mxu0 0.0
      %3026 = vmatpush1.msra.mxu0 0.0
      %3027 = vmatprep.subr.mxu0 0.0
      %3028 = vmatpush1.msra.mxu0 0.0
      %3029 = vmatprep.subr.mxu0 0.0
      %3030 = vmatpush1.msra.mxu0 0.0
      %3031 = vmatprep.subr.mxu0 0.0
      %3032 = vmatpush1.msra.mxu0 0.0
      %3033 = vmatprep.subr.mxu0 0.0
      %3034 = vmatpush1.msra.mxu0 0.0
      %3035 = vmatprep.subr.mxu0 0.0
      %3036 = vmatpush1.msra.mxu0 0.0
      %3037 = vmatprep.subr.mxu0 0.0
      %3038 = vmatpush1.msra.mxu0 0.0
      %3039 = vmatprep.mubr.f32.mxu0 0.0
      %3040 = vmatmul.mubr.f32.gmra.mrb[0].mxu0 %v2970
      %v3041 = vpop.f32.mrb[0].mxu0
      %v3042 = vadd.f32 0.0, %v3041
      %v3043 = vpop.f32.mrb[0].mxu0
      %3044 = vmatprep.mubr.f32.mxu0 0.0
      %3045 = vmatmul.mubr.f32.gmra.mrb[0].mxu0 %v2973
      %v3046 = vpop.f32.mrb[0].mxu0
      %v3047 = vadd.f32 0.0, %v3046
      %v3048 = vpop.f32.mrb[0].mxu0
      %3049 = vdwg.mxu0
      %v3050 = vadd.f32 %v2763, %v3042
      %v3051 = vadd.f32 %v2764, %v3047
      %3052 = vrot.lane.b32.xlu0 %v2462, 112
      %v3053 = vpop.permute.xlu0 %3052
      %3054 = vrot.lane.b32.xlu0 %v2467, 112
      %v3055 = vpop.permute.xlu0 %3054
      %3056 = vrot.lane.b32.xlu0 %v2462, 80
      %v3057 = vpop.permute.xlu0 %3056
      %3058 = vrot.lane.b32.xlu0 %v2467, 80
      %v3059 = vpop.permute.xlu0 %3058
      %v3060 = vsel %vm931, %v3053, 0
      %v3062 = vsel %vm931, %v3055, 0
      %v3064 = vsel %vm931, %v3057, 0
      %v3066 = vsel %vm931, %v3059, 0
      %3068 = vmatprep.subr.mxu0 0.0
      %3069 = vmatpush1.xpose.msra.mxu0 %v3064
      %3070 = vmatprep.subr.mxu0 0.0
      %3071 = vmatpush1.xpose.msra.mxu0 %v3066
      %3072 = vmatprep.subr.mxu0 0.0
      %3073 = vmatpush1.xpose.msra.mxu0 0.0
      %3074 = vmatprep.subr.mxu0 0.0
      %3075 = vmatpush1.xpose.msra.mxu0 0.0
      %3076 = vmatprep.subr.mxu0 0.0
      %3077 = vmatpush1.xpose.msra.mxu0 0.0
      %3078 = vmatprep.subr.mxu0 0.0
      %3079 = vmatpush1.xpose.msra.mxu0 0.0
      %3080 = vmatprep.subr.mxu0 0.0
      %3081 = vmatpush1.xpose.msra.mxu0 0.0
      %3082 = vmatprep.subr.mxu0 0.0
      %3083 = vmatpush1.xpose.msra.mxu0 0.0
      %3084 = vmatprep.subr.mxu0 0.0
      %3085 = vmatpush1.xpose.msra.mxu0 0.0
      %3086 = vmatprep.subr.mxu0 0.0
      %3087 = vmatpush1.xpose.msra.mxu0 0.0
      %3088 = vmatprep.subr.mxu0 0.0
      %3089 = vmatpush1.xpose.msra.mxu0 0.0
      %3090 = vmatprep.subr.mxu0 0.0
      %3091 = vmatpush1.xpose.msra.mxu0 0.0
      %3092 = vmatprep.subr.mxu0 0.0
      %3093 = vmatpush1.xpose.msra.mxu0 0.0
      %3094 = vmatprep.subr.mxu0 0.0
      %3095 = vmatpush1.xpose.msra.mxu0 0.0
      %3096 = vmatprep.subr.mxu0 0.0
      %3097 = vmatpush1.xpose.msra.mxu0 0.0
      %3098 = vmatprep.subr.mxu0 0.0
      %3099 = vmatpush1.xpose.msra.mxu0 0.0
      %3100 = vmatprep.subr.mxu0 0.0
      %3101 = vmatpush1.xpose.msra.mxu0 0.0
      %3102 = vmatprep.subr.mxu0 0.0
      %3103 = vmatpush1.xpose.msra.mxu0 0.0
      %3104 = vmatprep.subr.mxu0 0.0
      %3105 = vmatpush1.xpose.msra.mxu0 0.0
      %3106 = vmatprep.subr.mxu0 0.0
      %3107 = vmatpush1.xpose.msra.mxu0 0.0
      %3108 = vmatprep.subr.mxu0 0.0
      %3109 = vmatpush1.xpose.msra.mxu0 0.0
      %3110 = vmatprep.subr.mxu0 0.0
      %3111 = vmatpush1.xpose.msra.mxu0 0.0
      %3112 = vmatprep.subr.mxu0 0.0
      %3113 = vmatpush1.xpose.msra.mxu0 0.0
      %3114 = vmatprep.subr.mxu0 0.0
      %3115 = vmatpush1.xpose.msra.mxu0 0.0
      %3116 = vmatprep.subr.mxu0 0.0
      %3117 = vmatpush1.xpose.msra.mxu0 0.0
      %3118 = vmatprep.subr.mxu0 0.0
      %3119 = vmatpush1.xpose.msra.mxu0 0.0
      %3120 = vmatprep.subr.mxu0 0.0
      %3121 = vmatpush1.xpose.msra.mxu0 0.0
      %3122 = vmatprep.subr.mxu0 0.0
      %3123 = vmatpush1.xpose.msra.mxu0 0.0
      %3124 = vmatprep.subr.mxu0 0.0
      %3125 = vmatpush1.xpose.msra.mxu0 0.0
      %3126 = vmatprep.subr.mxu0 0.0
      %3127 = vmatpush1.xpose.msra.mxu0 0.0
      %3128 = vmatprep.subr.mxu0 0.0
      %3129 = vmatpush1.xpose.msra.mxu0 0.0
      %3130 = vmatprep.subr.mxu0 0.0
      %3131 = vmatpush1.xpose.msra.mxu0 0.0
      %3132 = vmatprep.mubr.f32.mxu0 0.0
      %3133 = vmatmul.mubr.f32.gmra.mrb[0].mxu0 %v3060
      %v3134 = vpop.f32.mrb[0].mxu0
      %v3135 = vadd.f32 0.0, %v3134
      %v3136 = vpop.f32.mrb[0].mxu0
      %3137 = vmatprep.mubr.f32.mxu0 0.0
      %3138 = vmatmul.mubr.f32.gmra.mrb[0].mxu0 %v3062
      %v3139 = vpop.f32.mrb[0].mxu0
      %v3140 = vadd.f32 0.0, %v3139
      %v3141 = vpop.f32.mrb[0].mxu0
      %3142 = vdwg.mxu0
      %v3143 = vmul.f32 %v3135, 0.35355338
      %v3144 = vmul.f32 %v3140, 0.35355338
      %v3145 = vsel %vm1017, %v3143, -inf
      %3146 = vmax.xlane.f32.xlu0 %v3145
      %v3147 = vpop.xlane.xlu0 %3146
      %v3148 = vsel %vm1021, %v3144, -inf
      %3149 = vmax.xlane.f32.xlu0 %v3148
      %v3150 = vpop.xlane.xlu0 %3149
      %v3151 = vsub.f32 %v3143, %v3147
      %v3152 = vsub.f32 %v3144, %v3150
      %v3153 = vmul.f32 %v3151, 1.442695
      %v3154 = vpow.pop %v3153
      %v3155 = vmul.f32 %v3152, 1.442695
      %v3156 = vpow.pop %v3155
      %v3157 = vsel %vm1017, %v3154, 0.0
      %3158 = vadd.xlane.f32.xlu0 %v3157
      %v3159 = vpop.xlane.xlu0 %3158
      %v3160 = vsel %vm1021, %v3156, 0.0
      %3161 = vadd.xlane.f32.xlu0 %v3160
      %v3162 = vpop.xlane.xlu0 %3161
      %v3163 = vrcp.pop %v3159
      %v3164 = vrcp.pop %v3162
      %v3165 = vmul.f32 %v3154, %v3163
      %v3166 = vmul.f32 %v3156, %v3164
      %3167 = vrot.lane.b32.xlu0 %v2462, 48
      %v3168 = vpop.permute.xlu0 %3167
      %3169 = vrot.lane.b32.xlu0 %v2467, 48
      %v3170 = vpop.permute.xlu0 %3169
      %v3173 = vsel %vm1017, %v3165, 0
      %v3176 = vsel %vm1017, %v3166, 0
      %v3178 = vsel %vm1052, %v3170, 0
      %3180 = vmatprep.subr.mxu0 0.0
      %3181 = vmatpush1.msra.mxu0 %v3168
      %3182 = vmatprep.subr.mxu0 0.0
      %3183 = vmatpush1.msra.mxu0 %v3178
      %3184 = vmatprep.subr.mxu0 0.0
      %3185 = vmatpush1.msra.mxu0 0.0
      %3186 = vmatprep.subr.mxu0 0.0
      %3187 = vmatpush1.msra.mxu0 0.0
      %3188 = vmatprep.subr.mxu0 0.0
      %3189 = vmatpush1.msra.mxu0 0.0
      %3190 = vmatprep.subr.mxu0 0.0
      %3191 = vmatpush1.msra.mxu0 0.0
      %3192 = vmatprep.subr.mxu0 0.0
      %3193 = vmatpush1.msra.mxu0 0.0
      %3194 = vmatprep.subr.mxu0 0.0
      %3195 = vmatpush1.msra.mxu0 0.0
      %3196 = vmatprep.subr.mxu0 0.0
      %3197 = vmatpush1.msra.mxu0 0.0
      %3198 = vmatprep.subr.mxu0 0.0
      %3199 = vmatpush1.msra.mxu0 0.0
      %3200 = vmatprep.subr.mxu0 0.0
      %3201 = vmatpush1.msra.mxu0 0.0
      %3202 = vmatprep.subr.mxu0 0.0
      %3203 = vmatpush1.msra.mxu0 0.0
      %3204 = vmatprep.subr.mxu0 0.0
      %3205 = vmatpush1.msra.mxu0 0.0
      %3206 = vmatprep.subr.mxu0 0.0
      %3207 = vmatpush1.msra.mxu0 0.0
      %3208 = vmatprep.subr.mxu0 0.0
      %3209 = vmatpush1.msra.mxu0 0.0
      %3210 = vmatprep.subr.mxu0 0.0
      %3211 = vmatpush1.msra.mxu0 0.0
      %3212 = vmatprep.subr.mxu0 0.0
      %3213 = vmatpush1.msra.mxu0 0.0
      %3214 = vmatprep.subr.mxu0 0.0
      %3215 = vmatpush1.msra.mxu0 0.0
      %3216 = vmatprep.subr.mxu0 0.0
      %3217 = vmatpush1.msra.mxu0 0.0
      %3218 = vmatprep.subr.mxu0 0.0
      %3219 = vmatpush1.msra.mxu0 0.0
      %3220 = vmatprep.subr.mxu0 0.0
      %3221 = vmatpush1.msra.mxu0 0.0
      %3222 = vmatprep.subr.mxu0 0.0
      %3223 = vmatpush1.msra.mxu0 0.0
      %3224 = vmatprep.subr.mxu0 0.0
      %3225 = vmatpush1.msra.mxu0 0.0
      %3226 = vmatprep.subr.mxu0 0.0
      %3227 = vmatpush1.msra.mxu0 0.0
      %3228 = vmatprep.subr.mxu0 0.0
      %3229 = vmatpush1.msra.mxu0 0.0
      %3230 = vmatprep.subr.mxu0 0.0
      %3231 = vmatpush1.msra.mxu0 0.0
      %3232 = vmatprep.subr.mxu0 0.0
      %3233 = vmatpush1.msra.mxu0 0.0
      %3234 = vmatprep.subr.mxu0 0.0
      %3235 = vmatpush1.msra.mxu0 0.0
      %3236 = vmatprep.subr.mxu0 0.0
      %3237 = vmatpush1.msra.mxu0 0.0
      %3238 = vmatprep.subr.mxu0 0.0
      %3239 = vmatpush1.msra.mxu0 0.0
      %3240 = vmatprep.subr.mxu0 0.0
      %3241 = vmatpush1.msra.mxu0 0.0
      %3242 = vmatprep.subr.mxu0 0.0
      %3243 = vmatpush1.msra.mxu0 0.0
      %3244 = vmatprep.mubr.f32.mxu0 0.0
      %3245 = vmatmul.mubr.f32.gmra.mrb[0].mxu0 %v3173
      %v3246 = vpop.f32.mrb[0].mxu0
      %v3247 = vadd.f32 0.0, %v3246
      %v3248 = vpop.f32.mrb[0].mxu0
      %3249 = vmatprep.mubr.f32.mxu0 0.0
      %3250 = vmatmul.mubr.f32.gmra.mrb[0].mxu0 %v3176
      %v3251 = vpop.f32.mrb[0].mxu0
      %v3252 = vadd.f32 0.0, %v3251
      %v3253 = vpop.f32.mrb[0].mxu0
      %3254 = vdwg.mxu0
      %v3255 = vld [vmem:[%s2680 + $0x10] sm:$0xff]
      %v3257 = vsel %vm931, %v3247, 0
      %v3260 = vsel %vm931, %v3252, 0
      %3262 = vmatprep.subr.mxu0 0.0
      %3263 = vmatpush1.msra.mxu0 %v3255
      %3264 = vmatprep.subr.mxu0 0.0
      %3265 = vmatpush1.msra.mxu0 0.0
      %3266 = vmatprep.subr.mxu0 0.0
      %3267 = vmatpush1.msra.mxu0 0.0
      %3268 = vmatprep.subr.mxu0 0.0
      %3269 = vmatpush1.msra.mxu0 0.0
      %3270 = vmatprep.subr.mxu0 0.0
      %3271 = vmatpush1.msra.mxu0 0.0
      %3272 = vmatprep.subr.mxu0 0.0
      %3273 = vmatpush1.msra.mxu0 0.0
      %3274 = vmatprep.subr.mxu0 0.0
      %3275 = vmatpush1.msra.mxu0 0.0
      %3276 = vmatprep.subr.mxu0 0.0
      %3277 = vmatpush1.msra.mxu0 0.0
      %3278 = vmatprep.subr.mxu0 0.0
      %3279 = vmatpush1.msra.mxu0 0.0
      %3280 = vmatprep.subr.mxu0 0.0
      %3281 = vmatpush1.msra.mxu0 0.0
      %3282 = vmatprep.subr.mxu0 0.0
      %3283 = vmatpush1.msra.mxu0 0.0
      %3284 = vmatprep.subr.mxu0 0.0
      %3285 = vmatpush1.msra.mxu0 0.0
      %3286 = vmatprep.subr.mxu0 0.0
      %3287 = vmatpush1.msra.mxu0 0.0
      %3288 = vmatprep.subr.mxu0 0.0
      %3289 = vmatpush1.msra.mxu0 0.0
      %3290 = vmatprep.subr.mxu0 0.0
      %3291 = vmatpush1.msra.mxu0 0.0
      %3292 = vmatprep.subr.mxu0 0.0
      %3293 = vmatpush1.msra.mxu0 0.0
      %3294 = vmatprep.subr.mxu0 0.0
      %3295 = vmatpush1.msra.mxu0 0.0
      %3296 = vmatprep.subr.mxu0 0.0
      %3297 = vmatpush1.msra.mxu0 0.0
      %3298 = vmatprep.subr.mxu0 0.0
      %3299 = vmatpush1.msra.mxu0 0.0
      %3300 = vmatprep.subr.mxu0 0.0
      %3301 = vmatpush1.msra.mxu0 0.0
      %3302 = vmatprep.subr.mxu0 0.0
      %3303 = vmatpush1.msra.mxu0 0.0
      %3304 = vmatprep.subr.mxu0 0.0
      %3305 = vmatpush1.msra.mxu0 0.0
      %3306 = vmatprep.subr.mxu0 0.0
      %3307 = vmatpush1.msra.mxu0 0.0
      %3308 = vmatprep.subr.mxu0 0.0
      %3309 = vmatpush1.msra.mxu0 0.0
      %3310 = vmatprep.subr.mxu0 0.0
      %3311 = vmatpush1.msra.mxu0 0.0
      %3312 = vmatprep.subr.mxu0 0.0
      %3313 = vmatpush1.msra.mxu0 0.0
      %3314 = vmatprep.subr.mxu0 0.0
      %3315 = vmatpush1.msra.mxu0 0.0
      %3316 = vmatprep.subr.mxu0 0.0
      %3317 = vmatpush1.msra.mxu0 0.0
      %3318 = vmatprep.subr.mxu0 0.0
      %3319 = vmatpush1.msra.mxu0 0.0
      %3320 = vmatprep.subr.mxu0 0.0
      %3321 = vmatpush1.msra.mxu0 0.0
      %3322 = vmatprep.subr.mxu0 0.0
      %3323 = vmatpush1.msra.mxu0 0.0
      %3324 = vmatprep.subr.mxu0 0.0
      %3325 = vmatpush1.msra.mxu0 0.0
      %3326 = vmatprep.mubr.f32.mxu0 0.0
      %3327 = vmatmul.mubr.f32.gmra.mrb[0].mxu0 %v3257
      %v3328 = vpop.f32.mrb[0].mxu0
      %v3329 = vadd.f32 0.0, %v3328
      %v3330 = vpop.f32.mrb[0].mxu0
      %3331 = vmatprep.mubr.f32.mxu0 0.0
      %3332 = vmatmul.mubr.f32.gmra.mrb[0].mxu0 %v3260
      %v3333 = vpop.f32.mrb[0].mxu0
      %v3334 = vadd.f32 0.0, %v3333
      %v3335 = vpop.f32.mrb[0].mxu0
      %3336 = vdwg.mxu0
      %v3337 = vadd.f32 %v3050, %v3329
      %v3338 = vadd.f32 %v3051, %v3334
      %3339 = vrot.lane.b32.xlu0 %v2462, 104
      %v3340 = vpop.permute.xlu0 %3339
      %3341 = vrot.lane.b32.xlu0 %v2467, 104
      %v3342 = vpop.permute.xlu0 %3341
      %3343 = vrot.lane.b32.xlu0 %v2462, 72
      %v3344 = vpop.permute.xlu0 %3343
      %3345 = vrot.lane.b32.xlu0 %v2467, 72
      %v3346 = vpop.permute.xlu0 %3345
      %v3347 = vsel %vm931, %v3340, 0
      %v3349 = vsel %vm931, %v3342, 0
      %v3351 = vsel %vm931, %v3344, 0
      %v3353 = vsel %vm931, %v3346, 0
      %3355 = vmatprep.subr.mxu0 0.0
      %3356 = vmatpush1.xpose.msra.mxu0 %v3351
      %3357 = vmatprep.subr.mxu0 0.0
      %3358 = vmatpush1.xpose.msra.mxu0 %v3353
      %3359 = vmatprep.subr.mxu0 0.0
      %3360 = vmatpush1.xpose.msra.mxu0 0.0
      %3361 = vmatprep.subr.mxu0 0.0
      %3362 = vmatpush1.xpose.msra.mxu0 0.0
      %3363 = vmatprep.subr.mxu0 0.0
      %3364 = vmatpush1.xpose.msra.mxu0 0.0
      %3365 = vmatprep.subr.mxu0 0.0
      %3366 = vmatpush1.xpose.msra.mxu0 0.0
      %3367 = vmatprep.subr.mxu0 0.0
      %3368 = vmatpush1.xpose.msra.mxu0 0.0
      %3369 = vmatprep.subr.mxu0 0.0
      %3370 = vmatpush1.xpose.msra.mxu0 0.0
      %3371 = vmatprep.subr.mxu0 0.0
      %3372 = vmatpush1.xpose.msra.mxu0 0.0
      %3373 = vmatprep.subr.mxu0 0.0
      %3374 = vmatpush1.xpose.msra.mxu0 0.0
      %3375 = vmatprep.subr.mxu0 0.0
      %3376 = vmatpush1.xpose.msra.mxu0 0.0
      %3377 = vmatprep.subr.mxu0 0.0
      %3378 = vmatpush1.xpose.msra.mxu0 0.0
      %3379 = vmatprep.subr.mxu0 0.0
      %3380 = vmatpush1.xpose.msra.mxu0 0.0
      %3381 = vmatprep.subr.mxu0 0.0
      %3382 = vmatpush1.xpose.msra.mxu0 0.0
      %3383 = vmatprep.subr.mxu0 0.0
      %3384 = vmatpush1.xpose.msra.mxu0 0.0
      %3385 = vmatprep.subr.mxu0 0.0
      %3386 = vmatpush1.xpose.msra.mxu0 0.0
      %3387 = vmatprep.subr.mxu0 0.0
      %3388 = vmatpush1.xpose.msra.mxu0 0.0
      %3389 = vmatprep.subr.mxu0 0.0
      %3390 = vmatpush1.xpose.msra.mxu0 0.0
      %3391 = vmatprep.subr.mxu0 0.0
      %3392 = vmatpush1.xpose.msra.mxu0 0.0
      %3393 = vmatprep.subr.mxu0 0.0
      %3394 = vmatpush1.xpose.msra.mxu0 0.0
      %3395 = vmatprep.subr.mxu0 0.0
      %3396 = vmatpush1.xpose.msra.mxu0 0.0
      %3397 = vmatprep.subr.mxu0 0.0
      %3398 = vmatpush1.xpose.msra.mxu0 0.0
      %3399 = vmatprep.subr.mxu0 0.0
      %3400 = vmatpush1.xpose.msra.mxu0 0.0
      %3401 = vmatprep.subr.mxu0 0.0
      %3402 = vmatpush1.xpose.msra.mxu0 0.0
      %3403 = vmatprep.subr.mxu0 0.0
      %3404 = vmatpush1.xpose.msra.mxu0 0.0
      %3405 = vmatprep.subr.mxu0 0.0
      %3406 = vmatpush1.xpose.msra.mxu0 0.0
      %3407 = vmatprep.subr.mxu0 0.0
      %3408 = vmatpush1.xpose.msra.mxu0 0.0
      %3409 = vmatprep.subr.mxu0 0.0
      %3410 = vmatpush1.xpose.msra.mxu0 0.0
      %3411 = vmatprep.subr.mxu0 0.0
      %3412 = vmatpush1.xpose.msra.mxu0 0.0
      %3413 = vmatprep.subr.mxu0 0.0
      %3414 = vmatpush1.xpose.msra.mxu0 0.0
      %3415 = vmatprep.subr.mxu0 0.0
      %3416 = vmatpush1.xpose.msra.mxu0 0.0
      %3417 = vmatprep.subr.mxu0 0.0
      %3418 = vmatpush1.xpose.msra.mxu0 0.0
      %3419 = vmatprep.mubr.f32.mxu0 0.0
      %3420 = vmatmul.mubr.f32.gmra.mrb[0].mxu0 %v3347
      %v3421 = vpop.f32.mrb[0].mxu0
      %v3422 = vadd.f32 0.0, %v3421
      %v3423 = vpop.f32.mrb[0].mxu0
      %3424 = vmatprep.mubr.f32.mxu0 0.0
      %3425 = vmatmul.mubr.f32.gmra.mrb[0].mxu0 %v3349
      %v3426 = vpop.f32.mrb[0].mxu0
      %v3427 = vadd.f32 0.0, %v3426
      %v3428 = vpop.f32.mrb[0].mxu0
      %3429 = vdwg.mxu0
      %v3430 = vmul.f32 %v3422, 0.35355338
      %v3431 = vmul.f32 %v3427, 0.35355338
      %v3432 = vsel %vm1017, %v3430, -inf
      %3433 = vmax.xlane.f32.xlu0 %v3432
      %v3434 = vpop.xlane.xlu0 %3433
      %v3435 = vsel %vm1021, %v3431, -inf
      %3436 = vmax.xlane.f32.xlu0 %v3435
      %v3437 = vpop.xlane.xlu0 %3436
      %v3438 = vsub.f32 %v3430, %v3434
      %v3439 = vsub.f32 %v3431, %v3437
      %v3440 = vmul.f32 %v3438, 1.442695
      %v3441 = vpow.pop %v3440
      %v3442 = vmul.f32 %v3439, 1.442695
      %v3443 = vpow.pop %v3442
      %v3444 = vsel %vm1017, %v3441, 0.0
      %3445 = vadd.xlane.f32.xlu0 %v3444
      %v3446 = vpop.xlane.xlu0 %3445
      %v3447 = vsel %vm1021, %v3443, 0.0
      %3448 = vadd.xlane.f32.xlu0 %v3447
      %v3449 = vpop.xlane.xlu0 %3448
      %v3450 = vrcp.pop %v3446
      %v3451 = vrcp.pop %v3449
      %v3452 = vmul.f32 %v3441, %v3450
      %v3453 = vmul.f32 %v3443, %v3451
      %3454 = vrot.lane.b32.xlu0 %v2462, 40
      %v3455 = vpop.permute.xlu0 %3454
      %3456 = vrot.lane.b32.xlu0 %v2467, 40
      %v3457 = vpop.permute.xlu0 %3456
      %v3460 = vsel %vm1017, %v3452, 0
      %v3463 = vsel %vm1017, %v3453, 0
      %v3465 = vsel %vm1052, %v3457, 0
      %3467 = vmatprep.subr.mxu0 0.0
      %3468 = vmatpush1.msra.mxu0 %v3455
      %3469 = vmatprep.subr.mxu0 0.0
      %3470 = vmatpush1.msra.mxu0 %v3465
      %3471 = vmatprep.subr.mxu0 0.0
      %3472 = vmatpush1.msra.mxu0 0.0
      %3473 = vmatprep.subr.mxu0 0.0
      %3474 = vmatpush1.msra.mxu0 0.0
      %3475 = vmatprep.subr.mxu0 0.0
      %3476 = vmatpush1.msra.mxu0 0.0
      %3477 = vmatprep.subr.mxu0 0.0
      %3478 = vmatpush1.msra.mxu0 0.0
      %3479 = vmatprep.subr.mxu0 0.0
      %3480 = vmatpush1.msra.mxu0 0.0
      %3481 = vmatprep.subr.mxu0 0.0
      %3482 = vmatpush1.msra.mxu0 0.0
      %3483 = vmatprep.subr.mxu0 0.0
      %3484 = vmatpush1.msra.mxu0 0.0
      %3485 = vmatprep.subr.mxu0 0.0
      %3486 = vmatpush1.msra.mxu0 0.0
      %3487 = vmatprep.subr.mxu0 0.0
      %3488 = vmatpush1.msra.mxu0 0.0
      %3489 = vmatprep.subr.mxu0 0.0
      %3490 = vmatpush1.msra.mxu0 0.0
      %3491 = vmatprep.subr.mxu0 0.0
      %3492 = vmatpush1.msra.mxu0 0.0
      %3493 = vmatprep.subr.mxu0 0.0
      %3494 = vmatpush1.msra.mxu0 0.0
      %3495 = vmatprep.subr.mxu0 0.0
      %3496 = vmatpush1.msra.mxu0 0.0
      %3497 = vmatprep.subr.mxu0 0.0
      %3498 = vmatpush1.msra.mxu0 0.0
      %3499 = vmatprep.subr.mxu0 0.0
      %3500 = vmatpush1.msra.mxu0 0.0
      %3501 = vmatprep.subr.mxu0 0.0
      %3502 = vmatpush1.msra.mxu0 0.0
      %3503 = vmatprep.subr.mxu0 0.0
      %3504 = vmatpush1.msra.mxu0 0.0
      %3505 = vmatprep.subr.mxu0 0.0
      %3506 = vmatpush1.msra.mxu0 0.0
      %3507 = vmatprep.subr.mxu0 0.0
      %3508 = vmatpush1.msra.mxu0 0.0
      %3509 = vmatprep.subr.mxu0 0.0
      %3510 = vmatpush1.msra.mxu0 0.0
      %3511 = vmatprep.subr.mxu0 0.0
      %3512 = vmatpush1.msra.mxu0 0.0
      %3513 = vmatprep.subr.mxu0 0.0
      %3514 = vmatpush1.msra.mxu0 0.0
      %3515 = vmatprep.subr.mxu0 0.0
      %3516 = vmatpush1.msra.mxu0 0.0
      %3517 = vmatprep.subr.mxu0 0.0
      %3518 = vmatpush1.msra.mxu0 0.0
      %3519 = vmatprep.subr.mxu0 0.0
      %3520 = vmatpush1.msra.mxu0 0.0
      %3521 = vmatprep.subr.mxu0 0.0
      %3522 = vmatpush1.msra.mxu0 0.0
      %3523 = vmatprep.subr.mxu0 0.0
      %3524 = vmatpush1.msra.mxu0 0.0
      %3525 = vmatprep.subr.mxu0 0.0
      %3526 = vmatpush1.msra.mxu0 0.0
      %3527 = vmatprep.subr.mxu0 0.0
      %3528 = vmatpush1.msra.mxu0 0.0
      %3529 = vmatprep.subr.mxu0 0.0
      %3530 = vmatpush1.msra.mxu0 0.0
      %3531 = vmatprep.mubr.f32.mxu0 0.0
      %3532 = vmatmul.mubr.f32.gmra.mrb[0].mxu0 %v3460
      %v3533 = vpop.f32.mrb[0].mxu0
      %v3534 = vadd.f32 0.0, %v3533
      %v3535 = vpop.f32.mrb[0].mxu0
      %3536 = vmatprep.mubr.f32.mxu0 0.0
      %3537 = vmatmul.mubr.f32.gmra.mrb[0].mxu0 %v3463
      %v3538 = vpop.f32.mrb[0].mxu0
      %v3539 = vadd.f32 0.0, %v3538
      %v3540 = vpop.f32.mrb[0].mxu0
      %3541 = vdwg.mxu0
      %v3542 = vld [vmem:[%s2680 + $0x18] sm:$0xff]
      %v3544 = vsel %vm931, %v3534, 0
      %v3547 = vsel %vm931, %v3539, 0
      %3549 = vmatprep.subr.mxu0 0.0
      %3550 = vmatpush1.msra.mxu0 %v3542
      %3551 = vmatprep.subr.mxu0 0.0
      %3552 = vmatpush1.msra.mxu0 0.0
      %3553 = vmatprep.subr.mxu0 0.0
      %3554 = vmatpush1.msra.mxu0 0.0
      %3555 = vmatprep.subr.mxu0 0.0
      %3556 = vmatpush1.msra.mxu0 0.0
      %3557 = vmatprep.subr.mxu0 0.0
      %3558 = vmatpush1.msra.mxu0 0.0
      %3559 = vmatprep.subr.mxu0 0.0
      %3560 = vmatpush1.msra.mxu0 0.0
      %3561 = vmatprep.subr.mxu0 0.0
      %3562 = vmatpush1.msra.mxu0 0.0
      %3563 = vmatprep.subr.mxu0 0.0
      %3564 = vmatpush1.msra.mxu0 0.0
      %3565 = vmatprep.subr.mxu0 0.0
      %3566 = vmatpush1.msra.mxu0 0.0
      %3567 = vmatprep.subr.mxu0 0.0
      %3568 = vmatpush1.msra.mxu0 0.0
      %3569 = vmatprep.subr.mxu0 0.0
      %3570 = vmatpush1.msra.mxu0 0.0
      %3571 = vmatprep.subr.mxu0 0.0
      %3572 = vmatpush1.msra.mxu0 0.0
      %3573 = vmatprep.subr.mxu0 0.0
      %3574 = vmatpush1.msra.mxu0 0.0
      %3575 = vmatprep.subr.mxu0 0.0
      %3576 = vmatpush1.msra.mxu0 0.0
      %3577 = vmatprep.subr.mxu0 0.0
      %3578 = vmatpush1.msra.mxu0 0.0
      %3579 = vmatprep.subr.mxu0 0.0
      %3580 = vmatpush1.msra.mxu0 0.0
      %3581 = vmatprep.subr.mxu0 0.0
      %3582 = vmatpush1.msra.mxu0 0.0
      %3583 = vmatprep.subr.mxu0 0.0
      %3584 = vmatpush1.msra.mxu0 0.0
      %3585 = vmatprep.subr.mxu0 0.0
      %3586 = vmatpush1.msra.mxu0 0.0
      %3587 = vmatprep.subr.mxu0 0.0
      %3588 = vmatpush1.msra.mxu0 0.0
      %3589 = vmatprep.subr.mxu0 0.0
      %3590 = vmatpush1.msra.mxu0 0.0
      %3591 = vmatprep.subr.mxu0 0.0
      %3592 = vmatpush1.msra.mxu0 0.0
      %3593 = vmatprep.subr.mxu0 0.0
      %3594 = vmatpush1.msra.mxu0 0.0
      %3595 = vmatprep.subr.mxu0 0.0
      %3596 = vmatpush1.msra.mxu0 0.0
      %3597 = vmatprep.subr.mxu0 0.0
      %3598 = vmatpush1.msra.mxu0 0.0
      %3599 = vmatprep.subr.mxu0 0.0
      %3600 = vmatpush1.msra.mxu0 0.0
      %3601 = vmatprep.subr.mxu0 0.0
      %3602 = vmatpush1.msra.mxu0 0.0
      %3603 = vmatprep.subr.mxu0 0.0
      %3604 = vmatpush1.msra.mxu0 0.0
      %3605 = vmatprep.subr.mxu0 0.0
      %3606 = vmatpush1.msra.mxu0 0.0
      %3607 = vmatprep.subr.mxu0 0.0
      %3608 = vmatpush1.msra.mxu0 0.0
      %3609 = vmatprep.subr.mxu0 0.0
      %3610 = vmatpush1.msra.mxu0 0.0
      %3611 = vmatprep.subr.mxu0 0.0
      %3612 = vmatpush1.msra.mxu0 0.0
      %3613 = vmatprep.mubr.f32.mxu0 0.0
      %3614 = vmatmul.mubr.f32.gmra.mrb[0].mxu0 %v3544
      %v3615 = vpop.f32.mrb[0].mxu0
      %v3616 = vadd.f32 0.0, %v3615
      %v3617 = vpop.f32.mrb[0].mxu0
      %3618 = vmatprep.mubr.f32.mxu0 0.0
      %3619 = vmatmul.mubr.f32.gmra.mrb[0].mxu0 %v3547
      %v3620 = vpop.f32.mrb[0].mxu0
      %v3621 = vadd.f32 0.0, %v3620
      %v3622 = vpop.f32.mrb[0].mxu0
      %3623 = vdwg.mxu0
      %v3624 = vadd.f32 %v3337, %v3616
      %v3625 = vadd.f32 %v3338, %v3621
      %v3626 = vadd.f32 %v2328, %v3624
      %v3627 = vadd.f32 %v2329, %v3625
      %s3628 = scalar_lea.vmem %s10, 1
      %v3629 = vld [vmem:[%s3628] sm:$0x1]
      %s3630 = scalar_lea.vmem %s11, 1
      %v3631 = vld [vmem:[%s3630] sm:$0x1]
      %v3632 = vsel %vm780, %v3626, 0.0
      %3633 = vadd.xlane.f32.xlu0 %v3632
      %v3634 = vpop.xlane.xlu0 %3633
      %v3635 = vsel %vm784, %v3627, 0.0
      %3636 = vadd.xlane.f32.xlu0 %v3635
      %v3637 = vpop.xlane.xlu0 %3636
      %v3638 = vmul.f32 %v3634, %v788
      %v3639 = vmul.f32 %v3637, %v788
      %v3640 = vsub.f32 %v3626, %v3638
      %v3641 = vsub.f32 %v3627, %v3639
      %v3642 = vmul.f32 %v3640, %v3640
      %v3643 = vmul.f32 %v3641, %v3641
      %v3644 = vsel %vm780, %v3642, 0.0
      %3645 = vadd.xlane.f32.xlu0 %v3644
      %v3646 = vpop.xlane.xlu0 %3645
      %v3647 = vsel %vm784, %v3643, 0.0
      %3648 = vadd.xlane.f32.xlu0 %v3647
      %v3649 = vpop.xlane.xlu0 %3648
      %v3650 = vmul.f32 %v3646, %v788
      %v3651 = vmul.f32 %v3649, %v788
      %v3652 = vadd.f32 %v3650, 1e-05
      %v3653 = vadd.f32 %v3651, 1e-05
      %v3654 = vrsqrt.pop %v3652
      %v3655 = vrsqrt.pop %v3653
      %v3656 = vmul.f32 %v3640, %v3654
      %v3657 = vmul.f32 %v3641, %v3655
      %v3659 = vlaneseq
      %v3660 = vshrl.u32 %v3659, 7
      %v3661 = vsub.s32 0, %v3660
      %v3662 = vrot.slane %v3629, %v3661
      %v3664 = vmul.f32 %v3656, %v3662
      %v3665 = vmul.f32 %v3657, %v3662
      %v3667 = vlaneseq
      %v3668 = vshrl.u32 %v3667, 7
      %v3669 = vsub.s32 0, %v3668
      %v3670 = vrot.slane %v3631, %v3669
      %v3672 = vadd.f32 %v3664, %v3670
      %v3673 = vadd.f32 %v3665, %v3670
      %s3674 = scalar_lea.vmem %s12, 32
      %v3675 = vld [vmem:[%s3674] sm:$0xff]
      %v3676 = vld [vmem:[%s3674 + $0x8] sm:$0xff]
      %v3677 = vld [vmem:[%s3674 + $0x10] sm:$0xff]
      %v3678 = vld [vmem:[%s3674 + $0x18] sm:$0xff]
      %s3679 = scalar_lea.vmem %s13, 1
      %v3680 = vld [vmem:[%s3679] sm:$0x1]
      %v3682 = vlaneseq
      %v3683 = vshrl.u32 %v3682, 7
      %v3684 = vsub.s32 0, %v3683
      %v3685 = vrot.slane %v3680, %v3684
      %v3688 = vsel %vm780, %v3672, 0
      %v3691 = vsel %vm780, %v3673, 0
      %3693 = vmatprep.subr.mxu0 0.0
      %3694 = vmatpush1.msra.mxu0 %v3675
      %3695 = vmatprep.subr.mxu0 0.0
      %3696 = vmatpush1.msra.mxu0 %v3676
      %3697 = vmatprep.subr.mxu0 0.0
      %3698 = vmatpush1.msra.mxu0 %v3677
      %3699 = vmatprep.subr.mxu0 0.0
      %3700 = vmatpush1.msra.mxu0 %v3678
      %3701 = vmatprep.subr.mxu0 0.0
      %3702 = vmatpush1.msra.mxu0 0.0
      %3703 = vmatprep.subr.mxu0 0.0
      %3704 = vmatpush1.msra.mxu0 0.0
      %3705 = vmatprep.subr.mxu0 0.0
      %3706 = vmatpush1.msra.mxu0 0.0
      %3707 = vmatprep.subr.mxu0 0.0
      %3708 = vmatpush1.msra.mxu0 0.0
      %3709 = vmatprep.subr.mxu0 0.0
      %3710 = vmatpush1.msra.mxu0 0.0
      %3711 = vmatprep.subr.mxu0 0.0
      %3712 = vmatpush1.msra.mxu0 0.0
      %3713 = vmatprep.subr.mxu0 0.0
      %3714 = vmatpush1.msra.mxu0 0.0
      %3715 = vmatprep.subr.mxu0 0.0
      %3716 = vmatpush1.msra.mxu0 0.0
      %3717 = vmatprep.subr.mxu0 0.0
      %3718 = vmatpush1.msra.mxu0 0.0
      %3719 = vmatprep.subr.mxu0 0.0
      %3720 = vmatpush1.msra.mxu0 0.0
      %3721 = vmatprep.subr.mxu0 0.0
      %3722 = vmatpush1.msra.mxu0 0.0
      %3723 = vmatprep.subr.mxu0 0.0
      %3724 = vmatpush1.msra.mxu0 0.0
      %3725 = vmatprep.subr.mxu0 0.0
      %3726 = vmatpush1.msra.mxu0 0.0
      %3727 = vmatprep.subr.mxu0 0.0
      %3728 = vmatpush1.msra.mxu0 0.0
      %3729 = vmatprep.subr.mxu0 0.0
      %3730 = vmatpush1.msra.mxu0 0.0
      %3731 = vmatprep.subr.mxu0 0.0
      %3732 = vmatpush1.msra.mxu0 0.0
      %3733 = vmatprep.subr.mxu0 0.0
      %3734 = vmatpush1.msra.mxu0 0.0
      %3735 = vmatprep.subr.mxu0 0.0
      %3736 = vmatpush1.msra.mxu0 0.0
      %3737 = vmatprep.subr.mxu0 0.0
      %3738 = vmatpush1.msra.mxu0 0.0
      %3739 = vmatprep.subr.mxu0 0.0
      %3740 = vmatpush1.msra.mxu0 0.0
      %3741 = vmatprep.subr.mxu0 0.0
      %3742 = vmatpush1.msra.mxu0 0.0
      %3743 = vmatprep.subr.mxu0 0.0
      %3744 = vmatpush1.msra.mxu0 0.0
      %3745 = vmatprep.subr.mxu0 0.0
      %3746 = vmatpush1.msra.mxu0 0.0
      %3747 = vmatprep.subr.mxu0 0.0
      %3748 = vmatpush1.msra.mxu0 0.0
      %3749 = vmatprep.subr.mxu0 0.0
      %3750 = vmatpush1.msra.mxu0 0.0
      %3751 = vmatprep.subr.mxu0 0.0
      %3752 = vmatpush1.msra.mxu0 0.0
      %3753 = vmatprep.subr.mxu0 0.0
      %3754 = vmatpush1.msra.mxu0 0.0
      %3755 = vmatprep.subr.mxu0 0.0
      %3756 = vmatpush1.msra.mxu0 0.0
      %3757 = vmatprep.mubr.f32.mxu0 0.0
      %3758 = vmatmul.mubr.f32.gmra.mrb[0].mxu0 %v3688
      %v3759 = vpop.f32.mrb[0].mxu0
      %v3760 = vadd.f32 %v3685, %v3759
      %v3761 = vpop.f32.mrb[0].mxu0
      %3762 = vmatprep.mubr.f32.mxu0 0.0
      %3763 = vmatmul.mubr.f32.gmra.mrb[0].mxu0 %v3691
      %v3764 = vpop.f32.mrb[0].mxu0
      %v3765 = vadd.f32 %v3685, %v3764
      %v3766 = vpop.f32.mrb[0].mxu0
      %3767 = vdwg.mxu0
      %v3768 = vmul.f32 %v3760, %v3760
      %v3769 = vmul.f32 %v3765, %v3765
      %v3770 = vmul.f32 %v3760, %v3768
      %v3771 = vmul.f32 %v3765, %v3769
      %v3772 = vmul.f32 %v3770, 0.044715
      %v3773 = vmul.f32 %v3771, 0.044715
      %v3774 = vadd.f32 %v3760, %v3772
      %v3775 = vadd.f32 %v3765, %v3773
      %v3776 = vmul.f32 %v3774, 0.7978846
      %v3777 = vmul.f32 %v3775, 0.7978846
      %v3778 = vtanh.pop %v3776
      %v3779 = vtanh.pop %v3777
      %v3780 = vadd.f32 %v3778, 1.0
      %v3781 = vadd.f32 %v3779, 1.0
      %v3782 = vmul.f32 %v3780, 0.5
      %v3783 = vmul.f32 %v3781, 0.5
      %v3784 = vmul.f32 %v3760, %v3782
      %v3785 = vmul.f32 %v3765, %v3783
      %s3786 = scalar_lea.vmem %s14, 64
      %v3787 = vld [vmem:[%s3786] sm:$0xff]
      %v3788 = vld [vmem:[%s3786 + $0x8] sm:$0xff]
      %v3789 = vld [vmem:[%s3786 + $0x10] sm:$0xff]
      %v3790 = vld [vmem:[%s3786 + $0x18] sm:$0xff]
      %v3791 = vld [vmem:[%s3786 + $0x20] sm:$0xff]
      %v3792 = vld [vmem:[%s3786 + $0x28] sm:$0xff]
      %v3793 = vld [vmem:[%s3786 + $0x30] sm:$0xff]
      %v3794 = vld [vmem:[%s3786 + $0x38] sm:$0xff]
      %s3795 = scalar_lea.vmem %s15, 1
      %v3796 = vld [vmem:[%s3795] sm:$0x1]
      %v3798 = vlaneseq
      %v3799 = vshrl.u32 %v3798, 7
      %v3800 = vsub.s32 0, %v3799
      %v3801 = vrot.slane %v3796, %v3800
      %v3804 = vsel %vm2246, %v3784, 0
      %v3807 = vsel %vm2246, %v3785, 0
      %3809 = vmatprep.subr.mxu0 0.0
      %3810 = vmatpush1.msra.mxu0 %v3787
      %3811 = vmatprep.subr.mxu0 0.0
      %3812 = vmatpush1.msra.mxu0 %v3788
      %3813 = vmatprep.subr.mxu0 0.0
      %3814 = vmatpush1.msra.mxu0 %v3789
      %3815 = vmatprep.subr.mxu0 0.0
      %3816 = vmatpush1.msra.mxu0 %v3790
      %3817 = vmatprep.subr.mxu0 0.0
      %3818 = vmatpush1.msra.mxu0 %v3791
      %3819 = vmatprep.subr.mxu0 0.0
      %3820 = vmatpush1.msra.mxu0 %v3792
      %3821 = vmatprep.subr.mxu0 0.0
      %3822 = vmatpush1.msra.mxu0 %v3793
      %3823 = vmatprep.subr.mxu0 0.0
      %3824 = vmatpush1.msra.mxu0 %v3794
      %3825 = vmatprep.subr.mxu0 0.0
      %3826 = vmatpush1.msra.mxu0 0.0
      %3827 = vmatprep.subr.mxu0 0.0
      %3828 = vmatpush1.msra.mxu0 0.0
      %3829 = vmatprep.subr.mxu0 0.0
      %3830 = vmatpush1.msra.mxu0 0.0
      %3831 = vmatprep.subr.mxu0 0.0
      %3832 = vmatpush1.msra.mxu0 0.0
      %3833 = vmatprep.subr.mxu0 0.0
      %3834 = vmatpush1.msra.mxu0 0.0
      %3835 = vmatprep.subr.mxu0 0.0
      %3836 = vmatpush1.msra.mxu0 0.0
      %3837 = vmatprep.subr.mxu0 0.0
      %3838 = vmatpush1.msra.mxu0 0.0
      %3839 = vmatprep.subr.mxu0 0.0
      %3840 = vmatpush1.msra.mxu0 0.0
      %3841 = vmatprep.subr.mxu0 0.0
      %3842 = vmatpush1.msra.mxu0 0.0
      %3843 = vmatprep.subr.mxu0 0.0
      %3844 = vmatpush1.msra.mxu0 0.0
      %3845 = vmatprep.subr.mxu0 0.0
      %3846 = vmatpush1.msra.mxu0 0.0
      %3847 = vmatprep.subr.mxu0 0.0
      %3848 = vmatpush1.msra.mxu0 0.0
      %3849 = vmatprep.subr.mxu0 0.0
      %3850 = vmatpush1.msra.mxu0 0.0
      %3851 = vmatprep.subr.mxu0 0.0
      %3852 = vmatpush1.msra.mxu0 0.0
      %3853 = vmatprep.subr.mxu0 0.0
      %3854 = vmatpush1.msra.mxu0 0.0
      %3855 = vmatprep.subr.mxu0 0.0
      %3856 = vmatpush1.msra.mxu0 0.0
      %3857 = vmatprep.subr.mxu0 0.0
      %3858 = vmatpush1.msra.mxu0 0.0
      %3859 = vmatprep.subr.mxu0 0.0
      %3860 = vmatpush1.msra.mxu0 0.0
      %3861 = vmatprep.subr.mxu0 0.0
      %3862 = vmatpush1.msra.mxu0 0.0
      %3863 = vmatprep.subr.mxu0 0.0
      %3864 = vmatpush1.msra.mxu0 0.0
      %3865 = vmatprep.subr.mxu0 0.0
      %3866 = vmatpush1.msra.mxu0 0.0
      %3867 = vmatprep.subr.mxu0 0.0
      %3868 = vmatpush1.msra.mxu0 0.0
      %3869 = vmatprep.subr.mxu0 0.0
      %3870 = vmatpush1.msra.mxu0 0.0
      %3871 = vmatprep.subr.mxu0 0.0
      %3872 = vmatpush1.msra.mxu0 0.0
      %3873 = vmatprep.mubr.f32.mxu0 0.0
      %3874 = vmatmul.mubr.f32.gmra.mrb[0].mxu0 %v3804
      %v3875 = vpop.f32.mrb[0].mxu0
      %v3876 = vadd.f32 %v3801, %v3875
      %v3877 = vpop.f32.mrb[0].mxu0
      %3878 = vmatprep.mubr.f32.mxu0 0.0
      %3879 = vmatmul.mubr.f32.gmra.mrb[0].mxu0 %v3807
      %v3880 = vpop.f32.mrb[0].mxu0
      %v3881 = vadd.f32 %v3801, %v3880
      %v3882 = vpop.f32.mrb[0].mxu0
      %3883 = vdwg.mxu0
      %v3884 = vadd.f32 %v3626, %v3876
      %v3885 = vadd.f32 %v3627, %v3881
      %v3886 = vld [vmem:[%s16] sm:$0x1]
      %v3887 = vld [vmem:[%s17] sm:$0x1]
      %v3888 = vsel %vm780, %v3884, 0.0
      %3889 = vadd.xlane.f32.xlu0 %v3888
      %v3890 = vpop.xlane.xlu0 %3889
      %v3891 = vsel %vm784, %v3885, 0.0
      %3892 = vadd.xlane.f32.xlu0 %v3891
      %v3893 = vpop.xlane.xlu0 %3892
      %v3894 = vmul.f32 %v3890, %v788
      %v3895 = vmul.f32 %v3893, %v788
      %v3896 = vsub.f32 %v3884, %v3894
      %v3897 = vsub.f32 %v3885, %v3895
      %v3898 = vmul.f32 %v3896, %v3896
      %v3899 = vmul.f32 %v3897, %v3897
      %v3900 = vsel %vm780, %v3898, 0.0
      %3901 = vadd.xlane.f32.xlu0 %v3900
      %v3902 = vpop.xlane.xlu0 %3901
      %v3903 = vsel %vm784, %v3899, 0.0
      %3904 = vadd.xlane.f32.xlu0 %v3903
      %v3905 = vpop.xlane.xlu0 %3904
      %v3906 = vmul.f32 %v3902, %v788
      %v3907 = vmul.f32 %v3905, %v788
      %v3908 = vadd.f32 %v3906, 1e-05
      %v3909 = vadd.f32 %v3907, 1e-05
      %v3910 = vrsqrt.pop %v3908
      %v3911 = vrsqrt.pop %v3909
      %v3912 = vmul.f32 %v3896, %v3910
      %v3913 = vmul.f32 %v3897, %v3911
      %v3915 = vlaneseq
      %v3916 = vshrl.u32 %v3915, 7
      %v3917 = vsub.s32 0, %v3916
      %v3918 = vrot.slane %v3886, %v3917
      %v3920 = vmul.f32 %v3912, %v3918
      %v3921 = vmul.f32 %v3913, %v3918
      %v3923 = vlaneseq
      %v3924 = vshrl.u32 %v3923, 7
      %v3925 = vsub.s32 0, %v3924
      %v3926 = vrot.slane %v3887, %v3925
      %v3928 = vadd.f32 %v3920, %v3926
      %v3929 = vadd.f32 %v3921, %v3926
      %v3930 = vld [vmem:[%s18] sm:$0xff]
      %v3931 = vld [vmem:[%s18 + $0x8] sm:$0xff]
      %v3932 = vld [vmem:[%s18 + $0x10] sm:$0xff]
      %v3933 = vld [vmem:[%s18 + $0x18] sm:$0xff]
      %v3935 = vsel %vm780, %v3928, 0
      %v3938 = vsel %vm780, %v3929, 0
      %3940 = vmatprep.subr.mxu0 0.0
      %3941 = vmatpush1.msra.mxu0 %v3930
      %3942 = vmatprep.subr.mxu0 0.0
      %3943 = vmatpush1.msra.mxu0 %v3931
      %3944 = vmatprep.subr.mxu0 0.0
      %3945 = vmatpush1.msra.mxu0 %v3932
      %3946 = vmatprep.subr.mxu0 0.0
      %3947 = vmatpush1.msra.mxu0 %v3933
      %3948 = vmatprep.subr.mxu0 0.0
      %3949 = vmatpush1.msra.mxu0 0.0
      %3950 = vmatprep.subr.mxu0 0.0
      %3951 = vmatpush1.msra.mxu0 0.0
      %3952 = vmatprep.subr.mxu0 0.0
      %3953 = vmatpush1.msra.mxu0 0.0
      %3954 = vmatprep.subr.mxu0 0.0
      %3955 = vmatpush1.msra.mxu0 0.0
      %3956 = vmatprep.subr.mxu0 0.0
      %3957 = vmatpush1.msra.mxu0 0.0
      %3958 = vmatprep.subr.mxu0 0.0
      %3959 = vmatpush1.msra.mxu0 0.0
      %3960 = vmatprep.subr.mxu0 0.0
      %3961 = vmatpush1.msra.mxu0 0.0
      %3962 = vmatprep.subr.mxu0 0.0
      %3963 = vmatpush1.msra.mxu0 0.0
      %3964 = vmatprep.subr.mxu0 0.0
      %3965 = vmatpush1.msra.mxu0 0.0
      %3966 = vmatprep.subr.mxu0 0.0
      %3967 = vmatpush1.msra.mxu0 0.0
      %3968 = vmatprep.subr.mxu0 0.0
      %3969 = vmatpush1.msra.mxu0 0.0
      %3970 = vmatprep.subr.mxu0 0.0
      %3971 = vmatpush1.msra.mxu0 0.0
      %3972 = vmatprep.subr.mxu0 0.0
      %3973 = vmatpush1.msra.mxu0 0.0
      %3974 = vmatprep.subr.mxu0 0.0
      %3975 = vmatpush1.msra.mxu0 0.0
      %3976 = vmatprep.subr.mxu0 0.0
      %3977 = vmatpush1.msra.mxu0 0.0
      %3978 = vmatprep.subr.mxu0 0.0
      %3979 = vmatpush1.msra.mxu0 0.0
      %3980 = vmatprep.subr.mxu0 0.0
      %3981 = vmatpush1.msra.mxu0 0.0
      %3982 = vmatprep.subr.mxu0 0.0
      %3983 = vmatpush1.msra.mxu0 0.0
      %3984 = vmatprep.subr.mxu0 0.0
      %3985 = vmatpush1.msra.mxu0 0.0
      %3986 = vmatprep.subr.mxu0 0.0
      %3987 = vmatpush1.msra.mxu0 0.0
      %3988 = vmatprep.subr.mxu0 0.0
      %3989 = vmatpush1.msra.mxu0 0.0
      %3990 = vmatprep.subr.mxu0 0.0
      %3991 = vmatpush1.msra.mxu0 0.0
      %3992 = vmatprep.subr.mxu0 0.0
      %3993 = vmatpush1.msra.mxu0 0.0
      %3994 = vmatprep.subr.mxu0 0.0
      %3995 = vmatpush1.msra.mxu0 0.0
      %3996 = vmatprep.subr.mxu0 0.0
      %3997 = vmatpush1.msra.mxu0 0.0
      %3998 = vmatprep.subr.mxu0 0.0
      %3999 = vmatpush1.msra.mxu0 0.0
      %4000 = vmatprep.subr.mxu0 0.0
      %4001 = vmatpush1.msra.mxu0 0.0
      %4002 = vmatprep.subr.mxu0 0.0
      %4003 = vmatpush1.msra.mxu0 0.0
      %4004 = vmatprep.mubr.f32.mxu0 0.0
      %4005 = vmatmul.mubr.f32.gmra.mrb[0].mxu0 %v3935
      %v4006 = vpop.f32.mrb[0].mxu0
      %v4007 = vadd.f32 0.0, %v4006
      %v4008 = vpop.f32.mrb[0].mxu0
      %4009 = vmatprep.mubr.f32.mxu0 0.0
      %4010 = vmatmul.mubr.f32.gmra.mrb[0].mxu0 %v3938
      %v4011 = vpop.f32.mrb[0].mxu0
      %v4012 = vadd.f32 0.0, %v4011
      %v4013 = vpop.f32.mrb[0].mxu0
      %4014 = vdwg.mxu0
      %v4015 = vld [vmem:[%s19] sm:$0x1]
      %v4016 = vld [vmem:[%s20] sm:$0x1]
      %v4017 = vsel %vm780, %v4007, 0.0
      %4018 = vadd.xlane.f32.xlu0 %v4017
      %v4019 = vpop.xlane.xlu0 %4018
      %v4020 = vsel %vm784, %v4012, 0.0
      %4021 = vadd.xlane.f32.xlu0 %v4020
      %v4022 = vpop.xlane.xlu0 %4021
      %v4023 = vmul.f32 %v4019, %v788
      %v4024 = vmul.f32 %v4022, %v788
      %v4025 = vsub.f32 %v4007, %v4023
      %v4026 = vsub.f32 %v4012, %v4024
      %v4027 = vmul.f32 %v4025, %v4025
      %v4028 = vmul.f32 %v4026, %v4026
      %v4029 = vsel %vm780, %v4027, 0.0
      %4030 = vadd.xlane.f32.xlu0 %v4029
      %v4031 = vpop.xlane.xlu0 %4030
      %v4032 = vsel %vm784, %v4028, 0.0
      %4033 = vadd.xlane.f32.xlu0 %v4032
      %v4034 = vpop.xlane.xlu0 %4033
      %v4035 = vmul.f32 %v4031, %v788
      %v4036 = vmul.f32 %v4034, %v788
      %v4037 = vadd.f32 %v4035, 1e-05
      %v4038 = vadd.f32 %v4036, 1e-05
      %v4039 = vrsqrt.pop %v4037
      %v4040 = vrsqrt.pop %v4038
      %v4041 = vmul.f32 %v4025, %v4039
      %v4042 = vmul.f32 %v4026, %v4040
      %v4044 = vlaneseq
      %v4045 = vshrl.u32 %v4044, 7
      %v4046 = vsub.s32 0, %v4045
      %v4047 = vrot.slane %v4015, %v4046
      %v4049 = vmul.f32 %v4041, %v4047
      %v4050 = vmul.f32 %v4042, %v4047
      %v4052 = vlaneseq
      %v4053 = vshrl.u32 %v4052, 7
      %v4054 = vsub.s32 0, %v4053
      %v4055 = vrot.slane %v4016, %v4054
      %v4057 = vadd.f32 %v4049, %v4055
      %v4058 = vadd.f32 %v4050, %v4055
      %4059 = vst.msk [vmem:[%s676] sm:$0xff] %vm780, %v4057
      %4060 = vst.msk [vmem:[%s676 + $0x8] sm:$0x1] %vm784, %v4058
      %p4061 = scmp.lt.s32.totalorder %s32, 1
      %s4062 = scalar_select %p4061, %s32, 1
      %s4063 = smul.addr %s4062, 2
      %s4064 = smul.addr %s4063, 8
      %s4065 = scalar_lea.vmem %s21, %s4064
      // Predicated region
      $region105: #{lmim_forward.4} parent=103 // pred_check
        %p4066 = pneg %p501
      $region106: #{lmim_forward.4} parent=103 // pred_check_branch
        %4068 = sbr.rel (%p4066) target = $region108
      $region107: #{lmim_forward.4} parent=103 // pred_region
        _
      $region108: #{lmim_forward.4} parent=103 // pred_fallthru
        _
    $region104: #{lmim_forward.4} parent=5 // pred_fallthru
      _
    %p4069 = scmp.le.s32.totalorder 2, %s27
    // Predicated region
    $region109: #{lmim_forward.4} parent=5 // pred_check
      %p4070 = pneg %p4069
    $region110: #{lmim_forward.4} parent=5 // pred_check_branch
      %4072 = sbr.rel (%p4070) target = $region112
    $region111: #{lmim_forward.4} parent=5 // pred_region
      %s4073 = ssub.s32 %s27, 2
      // Predicated region
      $region113: #{lmim_forward.4} parent=111 // pred_check
        %p4074 = pneg %p507
      $region114: #{lmim_forward.4} parent=111 // pred_check_branch
        %4076 = sbr.rel (%p4074) target = $region116
      $region115: #{lmim_forward.4} parent=111 // pred_region
        %p4077 = scmp.lt.s32.totalorder %s33, 1
        %s4078 = scalar_select %p4077, %s33, 1
        %s4079 = smul.addr %s4078, 2
        %s4080 = smul.addr %s4079, 8
        %s4081 = scalar_lea.vmem %s21, %s4080
      $region116: #{lmim_forward.4} parent=111 // pred_fallthru
        _
    $region112: #{lmim_forward.4} parent=5 // pred_fallthru
      _
  $region6: #{lmim_forward.4} parent=0 // loop_footer
    %s31 = sadd.s32 1, %s27
  $region7: #{lmim_forward.4} parent=0 // loop_footer_branch
    %26 = sbr.rel target = $region3
  $region8: #{lmim_forward.4} parent=0 // loop_exit
    _

</llo_original>
